<compile_context>
chip_gen: v7x
topology: tpu7x:2x2x1
jax: 0.10.0
libtpu: 0.0.40
codegen_flags: <defaults>
</compile_context>

<pallas_src>
import functools

import jax
import jax.numpy as jnp
from jax.experimental import pallas as pl
from jax.experimental.pallas import tpu as pltpu


def _round_up(x, m):
    return ((x + m - 1) // m) * m


_VMEM_LIMIT = 32 * 1024 * 1024  # <= v7x's 64 MiB physical VMEM; fine on v5e/v6e


# ---------------------------------------------------------------------------
# Kernel 1: fused  out = act(A @ B + bias)    (A,B bf16; bias,acc f32)
# ---------------------------------------------------------------------------
def _matmul_bias_act_kernel(a_ref, b_ref, bias_ref, o_ref, *, activation):
    acc = jnp.dot(a_ref[...], b_ref[...], preferred_element_type=jnp.float32)
    acc = acc + bias_ref[...]                 # (1, N) broadcasts over rows
    if activation == "relu":
        acc = jnp.maximum(acc, 0.0)
    o_ref[...] = acc


def fused_matmul(a, b_p, bias_p, activation):
    """act(a @ b + bias).  b_p (K_pad,N_pad) bf16 and bias_p (1,N_pad) f32 are
    pre-padded at init; only the activation `a` is padded per call (fuses under jit)."""
    M, K = a.shape
    K_pad, N_pad = b_p.shape

    M_pad = max(16, _round_up(M, 16))
    # Split large patch matrices into 2 M-blocks: lets v7x's 2 TensorCores share
    # the work; costs only ~one extra pipeline step on single-TC v5e/v6e.
    tm = M_pad // 2 if (M_pad >= 1024 and (M_pad // 2) % 16 == 0) else M_pad
    n_m = M_pad // tm

    a_p = jnp.zeros((M_pad, K_pad), jnp.bfloat16).at[:M, :K].set(
        a.astype(jnp.bfloat16))

    kernel = functools.partial(_matmul_bias_act_kernel, activation=activation)
    out = pl.pallas_call(
        kernel,
        out_shape=jax.ShapeDtypeStruct((M_pad, N_pad), jnp.float32),
        grid=(n_m,),
        in_specs=[
            pl.BlockSpec((tm, K_pad), lambda i: (i, 0)),
            pl.BlockSpec((K_pad, N_pad), lambda i: (0, 0)),
            pl.BlockSpec((1, N_pad), lambda i: (0, 0)),
        ],
        out_specs=pl.BlockSpec((tm, N_pad), lambda i: (i, 0)),
        compiler_params=pltpu.CompilerParams(
            dimension_semantics=("parallel",),
            vmem_limit_bytes=_VMEM_LIMIT),
    )(a_p, b_p, bias_p)
    return out  # caller slices [:M, :n_valid] (fuses under jit)


# ---------------------------------------------------------------------------
# Kernel 2: fused  h = ReLU(x @ fc_w + fc_b);  out = heads(h)
#           lanes 0..2 -> actor (Softplus, beta=1, threshold=20), lane 3 -> critic
# ---------------------------------------------------------------------------
def _fc_heads_kernel(x_ref, fcw_ref, fcb_ref, hw_ref, hb_ref, o_ref):
    h = jnp.dot(x_ref[...], fcw_ref[...], preferred_element_type=jnp.float32)
    h = jnp.maximum(h + fcb_ref[...], 0.0)                       # (M, 512) f32
    out = jnp.dot(h.astype(jnp.bfloat16), hw_ref[...],
                  preferred_element_type=jnp.float32)
    out = out + hb_ref[...]
    lane = jax.lax.broadcasted_iota(jnp.int32, out.shape, 1)
    softplus = jnp.where(out > 20.0, out,
                         jnp.log1p(jnp.exp(jnp.minimum(out, 20.0))))
    o_ref[...] = jnp.where(lane < 3, softplus, out)


def fc_heads(h_flat, fcw_p, fcb_p, hw_p, hb_p):
    M, K = h_flat.shape
    K_pad, H = fcw_p.shape            # (5248, 512)
    N_pad = hw_p.shape[1]             # 128
    M_pad = max(16, _round_up(M, 16))

    x_p = jnp.zeros((M_pad, K_pad), jnp.bfloat16).at[:M, :K].set(
        h_flat.astype(jnp.bfloat16))

    return pl.pallas_call(
        _fc_heads_kernel,
        out_shape=jax.ShapeDtypeStruct((M_pad, N_pad), jnp.float32),
        grid=(1,),
        in_specs=[
            pl.BlockSpec((M_pad, K_pad), lambda i: (0, 0)),
            pl.BlockSpec((K_pad, H), lambda i: (0, 0)),
            pl.BlockSpec((1, H), lambda i: (0, 0)),
            pl.BlockSpec((H, N_pad), lambda i: (0, 0)),
            pl.BlockSpec((1, N_pad), lambda i: (0, 0)),
        ],
        out_specs=pl.BlockSpec((M_pad, N_pad), lambda i: (0, 0)),
        compiler_params=pltpu.CompilerParams(vmem_limit_bytes=_VMEM_LIMIT),
    )(x_p, fcw_p, fcb_p, hw_p, hb_p)


# ---------------------------------------------------------------------------
# im2col glue (plain JAX, fuses under jit): NHWC patches in (kh, kw, C) order
# ---------------------------------------------------------------------------
# TODO(synk): im2col stays as XLA glue; an in-kernel gather via index_map is
# possible but not worth it at this batch size.
def im2col_nhwc(x, kh, kw, stride):
    B, H, W, C = x.shape
    oh = (H - kh) // stride + 1
    ow = (W - kw) // stride + 1
    patches = []
    for i in range(kh):
        for j in range(kw):
            patches.append(
                x[:, i:i + oh * stride:stride, j:j + ow * stride:stride, :])
    p = jnp.stack(patches, axis=3)                        # (B, oh, ow, kh*kw, C)
    return p.reshape(B * oh * ow, kh * kw * C), oh, ow


def conv2d_relu(x_nhwc, w_p, b_p, *, kh, kw, stride, out_c):
    """Conv + ReLU via im2col + fused Pallas matmul (w_p pre-transposed/padded)."""
    patches, oh, ow = im2col_nhwc(x_nhwc, kh, kw, stride)
    M = patches.shape[0]
    y = fused_matmul(patches, w_p, b_p, "relu")[:M, :out_c]
    B = x_nhwc.shape[0]
    return y.reshape(B, oh, ow, out_c)


# ---------------------------------------------------------------------------
# Parameters (deterministic synthetic init, PyTorch shapes) + one-time prep
# ---------------------------------------------------------------------------
def init_params(key):
    ks = jax.random.split(key, 12)
    s = 0.05
    return {
        "c1_w": s * jax.random.normal(ks[0], (32, 3, 8, 8), jnp.float32),
        "c1_b": s * jax.random.normal(ks[1], (32,), jnp.float32),
        "c2_w": s * jax.random.normal(ks[2], (64, 32, 4, 4), jnp.float32),
        "c2_b": s * jax.random.normal(ks[3], (64,), jnp.float32),
        "c3_w": s * jax.random.normal(ks[4], (64, 64, 3, 3), jnp.float32),
        "c3_b": s * jax.random.normal(ks[5], (64,), jnp.float32),
        "fc_w": s * jax.random.normal(ks[6], (5184, 512), jnp.float32),
        "fc_b": s * jax.random.normal(ks[7], (512,), jnp.float32),
        "act_w": s * jax.random.normal(ks[8], (512, 3), jnp.float32),
        "act_b": s * jax.random.normal(ks[9], (3,), jnp.float32),
        "cri_w": s * jax.random.normal(ks[10], (512, 1), jnp.float32),
        "cri_b": s * jax.random.normal(ks[11], (1,), jnp.float32),
    }


def _pad_weight(w_mat, bias):
    K, N = w_mat.shape
    K_pad = _round_up(K, 128)
    N_pad = _round_up(N, 128)
    w_p = jnp.zeros((K_pad, N_pad), jnp.bfloat16).at[:K, :N].set(
        w_mat.astype(jnp.bfloat16))
    b_p = jnp.zeros((1, N_pad), jnp.float32).at[0, :N].set(bias)
    return w_p, b_p


def prepare_params(p):
    """One-time weight transforms: conv OIHW -> (kh*kw*I, O), fc row permutation
    (NCHW flatten -> NHWC flatten), head fusion, K/N zero-padding, bf16 cast."""
    prep = {}
    for name, (wk, bk) in {"c1": ("c1_w", "c1_b"),
                           "c2": ("c2_w", "c2_b"),
                           "c3": ("c3_w", "c3_b")}.items():
        w = p[wk]                                           # (O, I, kh, kw)
        o, i, kh, kw = w.shape
        w_mat = jnp.transpose(w, (2, 3, 1, 0)).reshape(kh * kw * i, o)
        prep[name + "_wp"], prep[name + "_bp"] = _pad_weight(w_mat, p[bk])

    # fc: rows indexed by NCHW (C,H,W) flatten in the torch module; permute to
    # NHWC (H,W,C) so the activation can be flattened without a transpose.
    fc_w = p["fc_w"].reshape(64, 9, 9, 512)                 # (C, H, W, out)
    fc_w = jnp.transpose(fc_w, (1, 2, 0, 3)).reshape(5184, 512)
    prep["fc_wp"], prep["fc_bp"] = _pad_weight(fc_w, p["fc_b"])

    # heads fused: cols 0..2 actor, col 3 critic; padded to 128 lanes.
    head_w = jnp.concatenate([p["act_w"], p["cri_w"]], axis=1)   # (512, 4)
    head_b = jnp.concatenate([p["act_b"], p["cri_b"]], axis=0)   # (4,)
    prep["head_wp"], prep["head_bp"] = _pad_weight(head_w, head_b)
    return prep


# ---------------------------------------------------------------------------
# Full forward pass (mirrors ActorCritic.forward), fully jitted
# ---------------------------------------------------------------------------
@jax.jit
def actor_critic_forward(prep, x_nhwc):
    B = x_nhwc.shape[0]
    h = conv2d_relu(x_nhwc, prep["c1_wp"], prep["c1_bp"],
                    kh=8, kw=8, stride=4, out_c=32)          # (B, 24, 24, 32)
    h = conv2d_relu(h, prep["c2_wp"], prep["c2_bp"],
                    kh=4, kw=4, stride=2, out_c=64)          # (B, 11, 11, 64)
    h = conv2d_relu(h, prep["c3_wp"], prep["c3_bp"],
                    kh=3, kw=3, stride=1, out_c=64)          # (B, 9, 9, 64)
    h = h.reshape(B, 9 * 9 * 64)     # NHWC flatten; fc_w rows were permuted to match
    out = fc_heads(h, prep["fc_wp"], prep["fc_bp"],
                   prep["head_wp"], prep["head_bp"])         # (M_pad, 128)
    alpha_beta = out[:B, :3]                                 # actor  (Softplus)
    value = out[:B, 3:4]                                     # critic (identity)
    return alpha_beta, value


if __name__ == "__main__":
    key = jax.random.PRNGKey(0)
    k_param, k_x = jax.random.split(key)
    params = init_params(k_param)
    prep = prepare_params(params)   # one-time weight transforms, off the hot path

    # Input spatial size must be 100x100 so the CNN output is 64*9*9 = 5184
    # (what the Linear(5184, 512) in the module expects).  Batch kept small.
    x = jax.random.uniform(k_x, (2, 100, 100, 3), jnp.float32)

    actor_out, critic_out = actor_critic_forward(prep, x)
    actor_out = jax.block_until_ready(actor_out)
    critic_out = jax.block_until_ready(critic_out)

    assert actor_out.shape == (2, 3)
    assert critic_out.shape == (2, 1)
    assert bool(jnp.all(actor_out > 0.0))  # Softplus output is strictly positive
    print("KERNEL_OK")
</pallas_src>

<mosaic_0001>
module attributes {stable_mosaic.version = 11 : i64} {
  func.func @_matmul_bias_act_kernel(%arg0: i32, %arg1: memref<576x256xbf16, #tpu.memory_space<vmem>>, %arg2: memref<256x128xbf16, #tpu.memory_space<vmem>>, %arg3: memref<1x128xf32, #tpu.memory_space<vmem>>, %arg4: memref<576x128xf32, #tpu.memory_space<vmem>>) attributes {dimension_semantics = [#tpu.dimension_semantics<parallel>], iteration_bounds = array<i64: 2>, scalar_prefetch = 0 : i64, scratch_operands = 0 : i64, tpu.core_type = #tpu.core_type<tc>, window_params = [{transform_indices = @transform_0, window_bounds = array<i64: 576, 256>}, {pipeline_mode = #tpu.pipeline_mode<synchronous>, transform_indices = @transform_1, window_bounds = array<i64: 256, 128>}, {pipeline_mode = #tpu.pipeline_mode<synchronous>, transform_indices = @transform_2, window_bounds = array<i64: 1, 128>}, {transform_indices = @transform_3, window_bounds = array<i64: 576, 128>}]} {
    %c0 = arith.constant 0 : index
    %c0_0 = arith.constant 0 : index
    %0 = vector.load %arg1[%c0, %c0_0] : memref<576x256xbf16, #tpu.memory_space<vmem>>, vector<576x256xbf16>
    %c0_1 = arith.constant 0 : index
    %c0_2 = arith.constant 0 : index
    %1 = vector.load %arg2[%c0_1, %c0_2] : memref<256x128xbf16, #tpu.memory_space<vmem>>, vector<256x128xbf16>
    %cst = arith.constant dense<0.000000e+00> : vector<576x128xf32>
    %2 = tpu.matmul %0, %1, %cst {dimension_numbers = #tpu.dot_dimension_numbers<[1], [0], [0], [1], [0, 0, 1, 1], [], []>} : vector<576x256xbf16>, vector<256x128xbf16>, vector<576x128xf32> -> vector<576x128xf32>
    %c0_3 = arith.constant 0 : index
    %c0_4 = arith.constant 0 : index
    %3 = vector.load %arg3[%c0_3, %c0_4] : memref<1x128xf32, #tpu.memory_space<vmem>>, vector<1x128xf32>
    %4 = vector.broadcast %3 : vector<1x128xf32> to vector<576x128xf32>
    %5 = arith.addf %2, %4 : vector<576x128xf32>
    %cst_5 = arith.constant 0.000000e+00 : f32
    %6 = vector.broadcast %cst_5 : f32 to vector<576x128xf32>
    %7 = arith.maximumf %5, %6 : vector<576x128xf32>
    %c0_6 = arith.constant 0 : index
    %c0_7 = arith.constant 0 : index
    %8 = vector.load %arg4[%c0_6, %c0_7] : memref<576x128xf32, #tpu.memory_space<vmem>>, vector<576x128xf32>
    tpu.vector_store %arg4[%c0_6, %c0_7], %7 {strides = array<i32>} : memref<576x128xf32, #tpu.memory_space<vmem>>, vector<576x128xf32>,
    return
  }
  func.func @transform_0(%arg0: i32) -> (i32, i32) {
    %c0_i32 = arith.constant 0 : i32
    %c0_i32_0 = arith.constant 0 : i32
    return %arg0, %c0_i32 : i32, i32
  }
  func.func @transform_1(%arg0: i32) -> (i32, i32) {
    %c0_i32 = arith.constant 0 : i32
    %c0_i32_0 = arith.constant 0 : i32
    %c0_i32_1 = arith.constant 0 : i32
    return %c0_i32, %c0_i32_0 : i32, i32
  }
  func.func @transform_2(%arg0: i32) -> (i32, i32) {
    %c0_i32 = arith.constant 0 : i32
    %c0_i32_0 = arith.constant 0 : i32
    %c0_i32_1 = arith.constant 0 : i32
    return %c0_i32, %c0_i32_0 : i32, i32
  }
  func.func @transform_3(%arg0: i32) -> (i32, i32) {
    %c0_i32 = arith.constant 0 : i32
    %c0_i32_0 = arith.constant 0 : i32
    return %arg0, %c0_i32 : i32, i32
  }
}

module attributes {stable_mosaic.version = 11 : i64} {
  func.func @_matmul_bias_act_kernel(%arg0: i32, %arg1: memref<256x512xbf16, #tpu.memory_space<vmem>>, %arg2: memref<512x128xbf16, #tpu.memory_space<vmem>>, %arg3: memref<1x128xf32, #tpu.memory_space<vmem>>, %arg4: memref<256x128xf32, #tpu.memory_space<vmem>>) attributes {dimension_semantics = [#tpu.dimension_semantics<parallel>], iteration_bounds = array<i64: 1>, scalar_prefetch = 0 : i64, scratch_operands = 0 : i64, tpu.core_type = #tpu.core_type<tc>, window_params = [{transform_indices = @transform_0, window_bounds = array<i64: 256, 512>}, {pipeline_mode = #tpu.pipeline_mode<synchronous>, transform_indices = @transform_1, window_bounds = array<i64: 512, 128>}, {pipeline_mode = #tpu.pipeline_mode<synchronous>, transform_indices = @transform_2, window_bounds = array<i64: 1, 128>}, {transform_indices = @transform_3, window_bounds = array<i64: 256, 128>}]} {
    %c0 = arith.constant 0 : index
    %c0_0 = arith.constant 0 : index
    %0 = vector.load %arg1[%c0, %c0_0] : memref<256x512xbf16, #tpu.memory_space<vmem>>, vector<256x512xbf16>
    %c0_1 = arith.constant 0 : index
    %c0_2 = arith.constant 0 : index
    %1 = vector.load %arg2[%c0_1, %c0_2] : memref<512x128xbf16, #tpu.memory_space<vmem>>, vector<512x128xbf16>
    %cst = arith.constant dense<0.000000e+00> : vector<256x128xf32>
    %2 = tpu.matmul %0, %1, %cst {dimension_numbers = #tpu.dot_dimension_numbers<[1], [0], [0], [1], [0, 0, 1, 1], [], []>} : vector<256x512xbf16>, vector<512x128xbf16>, vector<256x128xf32> -> vector<256x128xf32>
    %c0_3 = arith.constant 0 : index
    %c0_4 = arith.constant 0 : index
    %3 = vector.load %arg3[%c0_3, %c0_4] : memref<1x128xf32, #tpu.memory_space<vmem>>, vector<1x128xf32>
    %4 = vector.broadcast %3 : vector<1x128xf32> to vector<256x128xf32>
    %5 = arith.addf %2, %4 : vector<256x128xf32>
    %cst_5 = arith.constant 0.000000e+00 : f32
    %6 = vector.broadcast %cst_5 : f32 to vector<256x128xf32>
    %7 = arith.maximumf %5, %6 : vector<256x128xf32>
    %c0_6 = arith.constant 0 : index
    %c0_7 = arith.constant 0 : index
    %8 = vector.load %arg4[%c0_6, %c0_7] : memref<256x128xf32, #tpu.memory_space<vmem>>, vector<256x128xf32>
    tpu.vector_store %arg4[%c0_6, %c0_7], %7 {strides = array<i32>} : memref<256x128xf32, #tpu.memory_space<vmem>>, vector<256x128xf32>,
    return
  }
  func.func @transform_0(%arg0: i32) -> (i32, i32) {
    %c0_i32 = arith.constant 0 : i32
    %c0_i32_0 = arith.constant 0 : i32
    return %arg0, %c0_i32 : i32, i32
  }
  func.func @transform_1(%arg0: i32) -> (i32, i32) {
    %c0_i32 = arith.constant 0 : i32
    %c0_i32_0 = arith.constant 0 : i32
    %c0_i32_1 = arith.constant 0 : i32
    return %c0_i32, %c0_i32_0 : i32, i32
  }
  func.func @transform_2(%arg0: i32) -> (i32, i32) {
    %c0_i32 = arith.constant 0 : i32
    %c0_i32_0 = arith.constant 0 : i32
    %c0_i32_1 = arith.constant 0 : i32
    return %c0_i32, %c0_i32_0 : i32, i32
  }
  func.func @transform_3(%arg0: i32) -> (i32, i32) {
    %c0_i32 = arith.constant 0 : i32
    %c0_i32_0 = arith.constant 0 : i32
    return %arg0, %c0_i32 : i32, i32
  }
}

module attributes {stable_mosaic.version = 11 : i64} {
  func.func @_matmul_bias_act_kernel(%arg0: i32, %arg1: memref<176x640xbf16, #tpu.memory_space<vmem>>, %arg2: memref<640x128xbf16, #tpu.memory_space<vmem>>, %arg3: memref<1x128xf32, #tpu.memory_space<vmem>>, %arg4: memref<176x128xf32, #tpu.memory_space<vmem>>) attributes {dimension_semantics = [#tpu.dimension_semantics<parallel>], iteration_bounds = array<i64: 1>, scalar_prefetch = 0 : i64, scratch_operands = 0 : i64, tpu.core_type = #tpu.core_type<tc>, window_params = [{transform_indices = @transform_0, window_bounds = array<i64: 176, 640>}, {pipeline_mode = #tpu.pipeline_mode<synchronous>, transform_indices = @transform_1, window_bounds = array<i64: 640, 128>}, {pipeline_mode = #tpu.pipeline_mode<synchronous>, transform_indices = @transform_2, window_bounds = array<i64: 1, 128>}, {transform_indices = @transform_3, window_bounds = array<i64: 176, 128>}]} {
    %c0 = arith.constant 0 : index
    %c0_0 = arith.constant 0 : index
    %0 = vector.load %arg1[%c0, %c0_0] : memref<176x640xbf16, #tpu.memory_space<vmem>>, vector<176x640xbf16>
    %c0_1 = arith.constant 0 : index
    %c0_2 = arith.constant 0 : index
    %1 = vector.load %arg2[%c0_1, %c0_2] : memref<640x128xbf16, #tpu.memory_space<vmem>>, vector<640x128xbf16>
    %cst = arith.constant dense<0.000000e+00> : vector<176x128xf32>
    %2 = tpu.matmul %0, %1, %cst {dimension_numbers = #tpu.dot_dimension_numbers<[1], [0], [0], [1], [0, 0, 1, 1], [], []>} : vector<176x640xbf16>, vector<640x128xbf16>, vector<176x128xf32> -> vector<176x128xf32>
    %c0_3 = arith.constant 0 : index
    %c0_4 = arith.constant 0 : index
    %3 = vector.load %arg3[%c0_3, %c0_4] : memref<1x128xf32, #tpu.memory_space<vmem>>, vector<1x128xf32>
    %4 = vector.broadcast %3 : vector<1x128xf32> to vector<176x128xf32>
    %5 = arith.addf %2, %4 : vector<176x128xf32>
    %cst_5 = arith.constant 0.000000e+00 : f32
    %6 = vector.broadcast %cst_5 : f32 to vector<176x128xf32>
    %7 = arith.maximumf %5, %6 : vector<176x128xf32>
    %c0_6 = arith.constant 0 : index
    %c0_7 = arith.constant 0 : index
    %8 = vector.load %arg4[%c0_6, %c0_7] : memref<176x128xf32, #tpu.memory_space<vmem>>, vector<176x128xf32>
    tpu.vector_store %arg4[%c0_6, %c0_7], %7 {strides = array<i32>} : memref<176x128xf32, #tpu.memory_space<vmem>>, vector<176x128xf32>,
    return
  }
  func.func @transform_0(%arg0: i32) -> (i32, i32) {
    %c0_i32 = arith.constant 0 : i32
    %c0_i32_0 = arith.constant 0 : i32
    return %arg0, %c0_i32 : i32, i32
  }
  func.func @transform_1(%arg0: i32) -> (i32, i32) {
    %c0_i32 = arith.constant 0 : i32
    %c0_i32_0 = arith.constant 0 : i32
    %c0_i32_1 = arith.constant 0 : i32
    return %c0_i32, %c0_i32_0 : i32, i32
  }
  func.func @transform_2(%arg0: i32) -> (i32, i32) {
    %c0_i32 = arith.constant 0 : i32
    %c0_i32_0 = arith.constant 0 : i32
    %c0_i32_1 = arith.constant 0 : i32
    return %c0_i32, %c0_i32_0 : i32, i32
  }
  func.func @transform_3(%arg0: i32) -> (i32, i32) {
    %c0_i32 = arith.constant 0 : i32
    %c0_i32_0 = arith.constant 0 : i32
    return %arg0, %c0_i32 : i32, i32
  }
}

module attributes {stable_mosaic.version = 11 : i64} {
  func.func @_fc_heads_kernel(%arg0: i32, %arg1: memref<16x5248xbf16, #tpu.memory_space<vmem>>, %arg2: memref<5248x512xbf16, #tpu.memory_space<vmem>>, %arg3: memref<1x512xf32, #tpu.memory_space<vmem>>, %arg4: memref<512x128xbf16, #tpu.memory_space<vmem>>, %arg5: memref<1x128xf32, #tpu.memory_space<vmem>>, %arg6: memref<16x128xf32, #tpu.memory_space<vmem>>) attributes {dimension_semantics = [#tpu.dimension_semantics<arbitrary>], iteration_bounds = array<i64: 1>, scalar_prefetch = 0 : i64, scratch_operands = 0 : i64, tpu.core_type = #tpu.core_type<tc>, window_params = [{pipeline_mode = #tpu.pipeline_mode<synchronous>, transform_indices = @transform_0, window_bounds = array<i64: 16, 5248>}, {pipeline_mode = #tpu.pipeline_mode<synchronous>, transform_indices = @transform_1, window_bounds = array<i64: 5248, 512>}, {pipeline_mode = #tpu.pipeline_mode<synchronous>, transform_indices = @transform_2, window_bounds = array<i64: 1, 512>}, {pipeline_mode = #tpu.pipeline_mode<synchronous>, transform_indices = @transform_3, window_bounds = array<i64: 512, 128>}, {pipeline_mode = #tpu.pipeline_mode<synchronous>, transform_indices = @transform_4, window_bounds = array<i64: 1, 128>}, {pipeline_mode = #tpu.pipeline_mode<synchronous>, transform_indices = @transform_5, window_bounds = array<i64: 16, 128>}]} {
    %c0 = arith.constant 0 : index
    %c0_0 = arith.constant 0 : index
    %0 = vector.load %arg1[%c0, %c0_0] : memref<16x5248xbf16, #tpu.memory_space<vmem>>, vector<16x5248xbf16>
    %c0_1 = arith.constant 0 : index
    %c0_2 = arith.constant 0 : index
    %1 = vector.load %arg2[%c0_1, %c0_2] : memref<5248x512xbf16, #tpu.memory_space<vmem>>, vector<5248x512xbf16>
    %cst = arith.constant dense<0.000000e+00> : vector<16x512xf32>
    %2 = tpu.matmul %0, %1, %cst {dimension_numbers = #tpu.dot_dimension_numbers<[1], [0], [0], [1], [0, 0, 1, 1], [], []>} : vector<16x5248xbf16>, vector<5248x512xbf16>, vector<16x512xf32> -> vector<16x512xf32>
    %c0_3 = arith.constant 0 : index
    %c0_4 = arith.constant 0 : index
    %3 = vector.load %arg3[%c0_3, %c0_4] : memref<1x512xf32, #tpu.memory_space<vmem>>, vector<1x512xf32>
    %4 = vector.broadcast %3 : vector<1x512xf32> to vector<16x512xf32>
    %5 = arith.addf %2, %4 : vector<16x512xf32>
    %cst_5 = arith.constant 0.000000e+00 : f32
    %6 = vector.broadcast %cst_5 : f32 to vector<16x512xf32>
    %7 = arith.maximumf %5, %6 : vector<16x512xf32>
    %8 = arith.truncf %7 : vector<16x512xf32> to vector<16x512xbf16>
    %c0_6 = arith.constant 0 : index
    %c0_7 = arith.constant 0 : index
    %9 = vector.load %arg4[%c0_6, %c0_7] : memref<512x128xbf16, #tpu.memory_space<vmem>>, vector<512x128xbf16>
    %cst_8 = arith.constant dense<0.000000e+00> : vector<16x128xf32>
    %10 = tpu.matmul %8, %9, %cst_8 {dimension_numbers = #tpu.dot_dimension_numbers<[1], [0], [0], [1], [0, 0, 1, 1], [], []>} : vector<16x512xbf16>, vector<512x128xbf16>, vector<16x128xf32> -> vector<16x128xf32>
    %c0_9 = arith.constant 0 : index
    %c0_10 = arith.constant 0 : index
    %11 = vector.load %arg5[%c0_9, %c0_10] : memref<1x128xf32, #tpu.memory_space<vmem>>, vector<1x128xf32>
    %12 = vector.broadcast %11 : vector<1x128xf32> to vector<16x128xf32>
    %13 = arith.addf %10, %12 : vector<16x128xf32>
    %14 = tpu.iota {dimensions = array<i32: 1>} : vector<16x128xi32>
    %cst_11 = arith.constant 2.000000e+01 : f32
    %15 = vector.broadcast %cst_11 : f32 to vector<16x128xf32>
    %16 = arith.cmpf ogt, %13, %15 : vector<16x128xf32>
    %cst_12 = arith.constant 2.000000e+01 : f32
    %17 = vector.broadcast %cst_12 : f32 to vector<16x128xf32>
    %18 = arith.minimumf %13, %17 : vector<16x128xf32>
    %19 = math.exp %18 : vector<16x128xf32>
    %20 = math.log1p %19 : vector<16x128xf32>
    %21 = arith.select %16, %13, %20 : vector<16x128xi1>, vector<16x128xf32>
    %c3_i32 = arith.constant 3 : i32
    %22 = vector.broadcast %c3_i32 : i32 to vector<16x128xi32>
    %23 = arith.cmpi slt, %14, %22 : vector<16x128xi32>
    %24 = arith.select %23, %21, %13 : vector<16x128xi1>, vector<16x128xf32>
    %c0_13 = arith.constant 0 : index
    %c0_14 = arith.constant 0 : index
    %25 = vector.load %arg6[%c0_13, %c0_14] : memref<16x128xf32, #tpu.memory_space<vmem>>, vector<16x128xf32>
    tpu.vector_store %arg6[%c0_13, %c0_14], %24 {strides = array<i32>} : memref<16x128xf32, #tpu.memory_space<vmem>>, vector<16x128xf32>,
    return
  }
  func.func @transform_0(%arg0: i32) -> (i32, i32) {
    %c0_i32 = arith.constant 0 : i32
    %c0_i32_0 = arith.constant 0 : i32
    %c0_i32_1 = arith.constant 0 : i32
    return %c0_i32, %c0_i32_0 : i32, i32
  }
  func.func @transform_1(%arg0: i32) -> (i32, i32) {
    %c0_i32 = arith.constant 0 : i32
    %c0_i32_0 = arith.constant 0 : i32
    %c0_i32_1 = arith.constant 0 : i32
    return %c0_i32, %c0_i32_0 : i32, i32
  }
  func.func @transform_2(%arg0: i32) -> (i32, i32) {
    %c0_i32 = arith.constant 0 : i32
    %c0_i32_0 = arith.constant 0 : i32
    %c0_i32_1 = arith.constant 0 : i32
    return %c0_i32, %c0_i32_0 : i32, i32
  }
  func.func @transform_3(%arg0: i32) -> (i32, i32) {
    %c0_i32 = arith.constant 0 : i32
    %c0_i32_0 = arith.constant 0 : i32
    %c0_i32_1 = arith.constant 0 : i32
    return %c0_i32, %c0_i32_0 : i32, i32
  }
  func.func @transform_4(%arg0: i32) -> (i32, i32) {
    %c0_i32 = arith.constant 0 : i32
    %c0_i32_0 = arith.constant 0 : i32
    %c0_i32_1 = arith.constant 0 : i32
    return %c0_i32, %c0_i32_0 : i32, i32
  }
  func.func @transform_5(%arg0: i32) -> (i32, i32) {
    %c0_i32 = arith.constant 0 : i32
    %c0_i32_0 = arith.constant 0 : i32
    %c0_i32_1 = arith.constant 0 : i32
    return %c0_i32, %c0_i32_0 : i32, i32
  }
}

</mosaic_0001>

<llo_original>
// kernel: actor_critic_forward.4
$region0: #{actor_critic_forward.4}
  #allocation0 [shape = 'u32[]', space=smem, size = 0x4, offset = 0x4, fixed_abs, tag = 'smem constant byte address 0x4 - core index']
  #allocation1 [shape = 'u32[144,128]{1,0:T(1,128)}', space=vmem, size = 0x12000, scoped, tag = 'internal scratch']
  %s0 = inlined_call_operand.vmem [shape: bf16[1152,256], index: 0, kind: input, shape index: {}]
  %s1 = inlined_call_operand.vmem [shape: bf16[256,128], index: 1, kind: input, shape index: {}]
  %s2 = inlined_call_operand.vmem [shape: f32[1,128], index: 2, kind: input, shape index: {}]
  %s3 = inlined_call_operand.vmem [shape: f32[1152,128], index: 3, kind: output, shape index: {}]
  %s4 = sld [smem:[#allocation0]]
  $region45: #{actor_critic_forward.4} parent=0
    _
  %s6 = ssub.s32 1, %s4
  %s7 = scalar_select 0, %s6, %s4
  loop: start=0, step=1, limit=4
  $region2: #{actor_critic_forward.4} parent=0 // loop_pre_header
    _
  $region3: #{actor_critic_forward.4} parent=0 // loop_header
    %s9 = sphi 0, %s13
    %p10 = scmp.ge.s32.totalorder %s9, 4
    %s19 = sphi 0, %s21
    %s22 = sphi 0, %s19
    %s23 = sphi 0, %s22
    %s39 = sphi 0, %s23
    %s43 = sphi 0, %s43
    %s45 = sphi 0, %s43
    %s46 = sphi 0, %s45
    %s60 = sphi 0, %s46
    %s64 = sphi 0, %s64
    %s66 = sphi 0, %s64
    %s67 = sphi 0, %s66
    %s81 = sphi 0, %s67
    %s87 = sphi 0, %s89
    %s90 = sphi 0, %s87
    %s91 = sphi 0, %s90
    %s107 = sphi 0, %s91
  $region4: #{actor_critic_forward.4} parent=0 // loop_header_branch
    %12 = sbr.rel (%p10) target = $region8
  $region5: #{actor_critic_forward.4} parent=0 // loop_body
    %s14 = ssub.s32 %s9, 1
    %s15 = ssub.s32 %s9, 2
    %s16 = sadd.s32 %s9, 1
    %s17 = ssub.s32 %s9, %s16
    %p18 = scmp.eq.s32.totalorder %s17, 0
    %s20 = sadd.s32 %s19, 1
    %s21 = scalar_select %p18, %s19, %s20
    %p24 = pneg %p18
    %p25 = scmp.eq.s32.totalorder %s9, 1
    %p26 = por %p24, %p25
    %p27 = scmp.ne.s32.totalorder %s19, %s22
    %p28 = scmp.eq.s32.totalorder %s9, 0
    %p29 = por %p27, %p28
    %p30 = scmp.ne.s32.totalorder %s19, %s22
    %p31 = scmp.eq.s32.totalorder %s14, 1
    %p32 = por %p30, %p31
    %p33 = scmp.ne.s32.totalorder %s22, %s23
    %p34 = scmp.eq.s32.totalorder %s14, 0
    %p35 = por %p33, %p34
    %p36 = scmp.ne.s32.totalorder %s22, %s23
    %p37 = scmp.eq.s32.totalorder %s15, 1
    %p38 = por %p36, %p37
    %p40 = scmp.ne.s32.totalorder %s23, %s39
    %p41 = scmp.eq.s32.totalorder %s15, 0
    %p42 = por %p40, %p41
    %s44 = sadd.s32 %s43, 1
    %p47 = scmp.eq.s32.totalorder %s9, 1
    %p48 = scmp.ne.s32.totalorder %s43, %s45
    %p49 = scmp.eq.s32.totalorder %s9, 0
    %p50 = por %p48, %p49
    %p51 = scmp.ne.s32.totalorder %s43, %s45
    %p52 = scmp.eq.s32.totalorder %s14, 1
    %p53 = por %p51, %p52
    %p54 = scmp.ne.s32.totalorder %s45, %s46
    %p55 = scmp.eq.s32.totalorder %s14, 0
    %p56 = por %p54, %p55
    %p57 = scmp.ne.s32.totalorder %s45, %s46
    %p58 = scmp.eq.s32.totalorder %s15, 1
    %p59 = por %p57, %p58
    %p61 = scmp.ne.s32.totalorder %s46, %s60
    %p62 = scmp.eq.s32.totalorder %s15, 0
    %p63 = por %p61, %p62
    %s65 = sadd.s32 %s64, 1
    %p68 = scmp.eq.s32.totalorder %s9, 1
    %p69 = scmp.ne.s32.totalorder %s64, %s66
    %p70 = scmp.eq.s32.totalorder %s9, 0
    %p71 = por %p69, %p70
    %p72 = scmp.ne.s32.totalorder %s64, %s66
    %p73 = scmp.eq.s32.totalorder %s14, 1
    %p74 = por %p72, %p73
    %p75 = scmp.ne.s32.totalorder %s66, %s67
    %p76 = scmp.eq.s32.totalorder %s14, 0
    %p77 = por %p75, %p76
    %p78 = scmp.ne.s32.totalorder %s66, %s67
    %p79 = scmp.eq.s32.totalorder %s15, 1
    %p80 = por %p78, %p79
    %p82 = scmp.ne.s32.totalorder %s67, %s81
    %p83 = scmp.eq.s32.totalorder %s15, 0
    %p84 = por %p82, %p83
    %s85 = ssub.s32 %s9, %s16
    %p86 = scmp.eq.s32.totalorder %s85, 0
    %s88 = sadd.s32 %s87, 1
    %s89 = scalar_select %p86, %s87, %s88
    %p92 = pneg %p86
    %p93 = scmp.eq.s32.totalorder %s9, 1
    %p94 = por %p92, %p93
    %p95 = scmp.ne.s32.totalorder %s87, %s90
    %p96 = scmp.eq.s32.totalorder %s9, 0
    %p97 = por %p95, %p96
    %p98 = scmp.ne.s32.totalorder %s87, %s90
    %p99 = scmp.eq.s32.totalorder %s14, 1
    %p100 = por %p98, %p99
    %p101 = scmp.ne.s32.totalorder %s90, %s91
    %p102 = scmp.eq.s32.totalorder %s14, 0
    %p103 = por %p101, %p102
    %p104 = scmp.ne.s32.totalorder %s90, %s91
    %p105 = scmp.eq.s32.totalorder %s15, 1
    %p106 = por %p104, %p105
    %p108 = scmp.ne.s32.totalorder %s91, %s107
    %p109 = scmp.eq.s32.totalorder %s15, 0
    %p110 = por %p108, %p109
    %p111 = scmp.le.s32.totalorder 1, %s9
    %p112 = scmp.lt.s32.totalorder %s9, 3
    %p113 = pnand %p111, %p112
    %p114 = pneg %p113
    // Predicated region
    $region9: #{actor_critic_forward.4} parent=5 // pred_check
      _
    $region10: #{actor_critic_forward.4} parent=5 // pred_check_branch
      %116 = sbr.rel (%p113) target = $region12
    $region11: #{actor_critic_forward.4} parent=5 // pred_region
      %s117 = ssub.s32 %s9, 1
      // Predicated region
      $region13: #{actor_critic_forward.4} parent=11 // pred_check
        %p118 = pneg %p56
      $region14: #{actor_critic_forward.4} parent=11 // pred_check_branch
        %120 = sbr.rel (%p118) target = $region16
      $region15: #{actor_critic_forward.4} parent=11 // pred_region
        _
      $region16: #{actor_critic_forward.4} parent=11 // pred_fallthru
        _
      // Predicated region
      $region17: #{actor_critic_forward.4} parent=11 // pred_check
        %p121 = pneg %p77
      $region18: #{actor_critic_forward.4} parent=11 // pred_check_branch
        %123 = sbr.rel (%p121) target = $region20
      $region19: #{actor_critic_forward.4} parent=11 // pred_region
        _
      $region20: #{actor_critic_forward.4} parent=11 // pred_fallthru
        _
    $region12: #{actor_critic_forward.4} parent=5 // pred_fallthru
      _
    %p124 = scmp.lt.s32.totalorder %s9, 2
    // Predicated region
    $region21: #{actor_critic_forward.4} parent=5 // pred_check
      %p125 = pneg %p124
    $region22: #{actor_critic_forward.4} parent=5 // pred_check_branch
      %127 = sbr.rel (%p125) target = $region24
    $region23: #{actor_critic_forward.4} parent=5 // pred_region
      // Predicated region
      $region25: #{actor_critic_forward.4} parent=23 // pred_check
        %p128 = pneg %p29
      $region26: #{actor_critic_forward.4} parent=23 // pred_check_branch
        %130 = sbr.rel (%p128) target = $region28
      $region27: #{actor_critic_forward.4} parent=23 // pred_region
        %s131 = smul.u32 72, %s9
        %p132 = scmp.lt.s32.totalorder %s131, 143
        %s133 = scalar_select %p132, %s131, 143
        %s134 = smul.addr %s133, 2
        %s135 = smul.addr %s134, 4
        %s136 = scalar_lea.vmem %s0, %s135
        %s137 = smul.u32 72, %s9
      $region28: #{actor_critic_forward.4} parent=23 // pred_fallthru
        _
    $region24: #{actor_critic_forward.4} parent=5 // pred_fallthru
      _
    %p138 = scmp.le.s32.totalorder 1, %s9
    %p139 = scmp.lt.s32.totalorder %s9, 3
    %p140 = pnand %p138, %p139
    %p141 = pneg %p140
    // Predicated region
    $region29: #{actor_critic_forward.4} parent=5 // pred_check
      _
    $region30: #{actor_critic_forward.4} parent=5 // pred_check_branch
      %143 = sbr.rel (%p140) target = $region32
    $region31: #{actor_critic_forward.4} parent=5 // pred_region
      %s144 = ssub.s32 %s9, 1
      %s145 = smul.u32 72, %s14
      %p146 = scmp.lt.s32.totalorder %s145, 143
      %s147 = scalar_select %p146, %s145, 143
      %s148 = smul.addr %s147, 2
      %s149 = smul.addr %s148, 4
      %s150 = scalar_lea.vmem %s0, %s149
      %p151 = pneg %p35
      %p152 = pneg %p32
      %p153 = pneg %p56
      %p154 = pneg %p53
      %p155 = pneg %p77
      %p156 = pneg %p74
      %p157 = pneg %p103
      %p158 = pneg %p100
      %s159 = smul.u32 72, %s14
      %p160 = scmp.lt.s32.totalorder %s159, 143
      %s161 = scalar_select %p160, %s159, 143
      %s162 = smul.addr %s161, 8
      %s163 = scalar_lea.vmem %s3, %s162
      %s164 = smul.u32 72, %s14
      %p165 = scmp.lt.s32.totalorder %s164, 143
      %s166 = scalar_select %p165, %s164, 143
      %s167 = smul.addr %s166, 2
      %s168 = smul.addr %s167, 4
      %s169 = scalar_lea.vmem %s0, %s168
      %s170 = smul.u32 72, %s14
      %s171 = smul.u32 72, %s14
      %p172 = scmp.lt.s32.totalorder %s171, 143
      %s173 = scalar_select %p172, %s171, 143
      %s174 = smul.addr %s173, 8
      %s175 = scalar_lea.vmem %s3, %s174
      %s176 = smul.u32 72, %s14
      %v178 = vld [vmem:[%s169] sm:$0xff]
      %v179 = vld [vmem:[%s169 + $0x8] sm:$0xff]
      %v180 = vld [vmem:[%s169 + $0x10] sm:$0xff]
      %v181 = vld [vmem:[%s169 + $0x18] sm:$0xff]
      %v182 = vld [vmem:[%s169 + $0x20] sm:$0xff]
      %v183 = vld [vmem:[%s169 + $0x28] sm:$0xff]
      %v184 = vld [vmem:[%s169 + $0x30] sm:$0xff]
      %v185 = vld [vmem:[%s169 + $0x38] sm:$0xff]
      %v186 = vld [vmem:[%s169 + $0x40] sm:$0xff]
      %v187 = vld [vmem:[%s169 + $0x48] sm:$0xff]
      %v188 = vld [vmem:[%s169 + $0x50] sm:$0xff]
      %v189 = vld [vmem:[%s169 + $0x58] sm:$0xff]
      %v190 = vld [vmem:[%s169 + $0x60] sm:$0xff]
      %v191 = vld [vmem:[%s169 + $0x68] sm:$0xff]
      %v192 = vld [vmem:[%s169 + $0x70] sm:$0xff]
      %v193 = vld [vmem:[%s169 + $0x78] sm:$0xff]
      %v194 = vld [vmem:[%s169 + $0x80] sm:$0xff]
      %v195 = vld [vmem:[%s169 + $0x88] sm:$0xff]
      %v196 = vld [vmem:[%s169 + $0x90] sm:$0xff]
      %v197 = vld [vmem:[%s169 + $0x98] sm:$0xff]
      %v198 = vld [vmem:[%s169 + $0xa0] sm:$0xff]
      %v199 = vld [vmem:[%s169 + $0xa8] sm:$0xff]
      %v200 = vld [vmem:[%s169 + $0xb0] sm:$0xff]
      %v201 = vld [vmem:[%s169 + $0xb8] sm:$0xff]
      %v202 = vld [vmem:[%s169 + $0xc0] sm:$0xff]
      %v203 = vld [vmem:[%s169 + $0xc8] sm:$0xff]
      %v204 = vld [vmem:[%s169 + $0xd0] sm:$0xff]
      %v205 = vld [vmem:[%s169 + $0xd8] sm:$0xff]
      %v206 = vld [vmem:[%s169 + $0xe0] sm:$0xff]
      %v207 = vld [vmem:[%s169 + $0xe8] sm:$0xff]
      %v208 = vld [vmem:[%s169 + $0xf0] sm:$0xff]
      %v209 = vld [vmem:[%s169 + $0xf8] sm:$0xff]
      %v210 = vld [vmem:[%s169 + $0x100] sm:$0xff]
      %v211 = vld [vmem:[%s169 + $0x108] sm:$0xff]
      %v212 = vld [vmem:[%s169 + $0x110] sm:$0xff]
      %v213 = vld [vmem:[%s169 + $0x118] sm:$0xff]
      %v214 = vld [vmem:[%s169 + $0x120] sm:$0xff]
      %v215 = vld [vmem:[%s169 + $0x128] sm:$0xff]
      %v216 = vld [vmem:[%s169 + $0x130] sm:$0xff]
      %v217 = vld [vmem:[%s169 + $0x138] sm:$0xff]
      %v218 = vld [vmem:[%s169 + $0x140] sm:$0xff]
      %v219 = vld [vmem:[%s169 + $0x148] sm:$0xff]
      %v220 = vld [vmem:[%s169 + $0x150] sm:$0xff]
      %v221 = vld [vmem:[%s169 + $0x158] sm:$0xff]
      %v222 = vld [vmem:[%s169 + $0x160] sm:$0xff]
      %v223 = vld [vmem:[%s169 + $0x168] sm:$0xff]
      %v224 = vld [vmem:[%s169 + $0x170] sm:$0xff]
      %v225 = vld [vmem:[%s169 + $0x178] sm:$0xff]
      %v226 = vld [vmem:[%s169 + $0x180] sm:$0xff]
      %v227 = vld [vmem:[%s169 + $0x188] sm:$0xff]
      %v228 = vld [vmem:[%s169 + $0x190] sm:$0xff]
      %v229 = vld [vmem:[%s169 + $0x198] sm:$0xff]
      %v230 = vld [vmem:[%s169 + $0x1a0] sm:$0xff]
      %v231 = vld [vmem:[%s169 + $0x1a8] sm:$0xff]
      %v232 = vld [vmem:[%s169 + $0x1b0] sm:$0xff]
      %v233 = vld [vmem:[%s169 + $0x1b8] sm:$0xff]
      %v234 = vld [vmem:[%s169 + $0x1c0] sm:$0xff]
      %v235 = vld [vmem:[%s169 + $0x1c8] sm:$0xff]
      %v236 = vld [vmem:[%s169 + $0x1d0] sm:$0xff]
      %v237 = vld [vmem:[%s169 + $0x1d8] sm:$0xff]
      %v238 = vld [vmem:[%s169 + $0x1e0] sm:$0xff]
      %v239 = vld [vmem:[%s169 + $0x1e8] sm:$0xff]
      %v240 = vld [vmem:[%s169 + $0x1f0] sm:$0xff]
      %v241 = vld [vmem:[%s169 + $0x1f8] sm:$0xff]
      %v242 = vld [vmem:[%s169 + $0x200] sm:$0xff]
      %v243 = vld [vmem:[%s169 + $0x208] sm:$0xff]
      %v244 = vld [vmem:[%s169 + $0x210] sm:$0xff]
      %v245 = vld [vmem:[%s169 + $0x218] sm:$0xff]
      %v246 = vld [vmem:[%s169 + $0x220] sm:$0xff]
      %v247 = vld [vmem:[%s169 + $0x228] sm:$0xff]
      %v248 = vld [vmem:[%s169 + $0x230] sm:$0xff]
      %v249 = vld [vmem:[%s169 + $0x238] sm:$0xff]
      %v250 = vld [vmem:[%s1] sm:$0xf]
      %v251 = vld [vmem:[%s1 + $0x4] sm:$0xf]
      %v252 = vld [vmem:[%s1 + $0x8] sm:$0xf]
      %v253 = vld [vmem:[%s1 + $0xc] sm:$0xf]
      %v254 = vld [vmem:[%s1 + $0x10] sm:$0xf]
      %v255 = vld [vmem:[%s1 + $0x14] sm:$0xf]
      %v256 = vld [vmem:[%s1 + $0x18] sm:$0xf]
      %v257 = vld [vmem:[%s1 + $0x1c] sm:$0xf]
      %v258 = vld [vmem:[%s1 + $0x20] sm:$0xf]
      %v259 = vld [vmem:[%s1 + $0x24] sm:$0xf]
      %v260 = vld [vmem:[%s1 + $0x28] sm:$0xf]
      %v261 = vld [vmem:[%s1 + $0x2c] sm:$0xf]
      %v262 = vld [vmem:[%s1 + $0x30] sm:$0xf]
      %v263 = vld [vmem:[%s1 + $0x34] sm:$0xf]
      %v264 = vld [vmem:[%s1 + $0x38] sm:$0xf]
      %v265 = vld [vmem:[%s1 + $0x3c] sm:$0xf]
      %v266 = vld [vmem:[%s1 + $0x40] sm:$0xf]
      %v267 = vld [vmem:[%s1 + $0x44] sm:$0xf]
      %v268 = vld [vmem:[%s1 + $0x48] sm:$0xf]
      %v269 = vld [vmem:[%s1 + $0x4c] sm:$0xf]
      %v270 = vld [vmem:[%s1 + $0x50] sm:$0xf]
      %v271 = vld [vmem:[%s1 + $0x54] sm:$0xf]
      %v272 = vld [vmem:[%s1 + $0x58] sm:$0xf]
      %v273 = vld [vmem:[%s1 + $0x5c] sm:$0xf]
      %v274 = vld [vmem:[%s1 + $0x60] sm:$0xf]
      %v275 = vld [vmem:[%s1 + $0x64] sm:$0xf]
      %v276 = vld [vmem:[%s1 + $0x68] sm:$0xf]
      %v277 = vld [vmem:[%s1 + $0x6c] sm:$0xf]
      %v278 = vld [vmem:[%s1 + $0x70] sm:$0xf]
      %v279 = vld [vmem:[%s1 + $0x74] sm:$0xf]
      %v280 = vld [vmem:[%s1 + $0x78] sm:$0xf]
      %v281 = vld [vmem:[%s1 + $0x7c] sm:$0xf]
      %v282 = vld [vmem:[%s2] sm:$0x1]
      %v284 = vlaneseq
      %v285 = vshrl.u32 %v284, 7
      %v286 = vsub.s32 0, %v285
      %v287 = vrot.slane %v282, %v286
      %v361 = vunpack.c.l.b16 %v178
      %v362 = vunpack.c.h.b16 %v178
      %v363 = vunpack.c.l.b16 %v179
      %v364 = vunpack.c.h.b16 %v179
      %v365 = vunpack.c.l.b16 %v180
      %v366 = vunpack.c.h.b16 %v180
      %v367 = vunpack.c.l.b16 %v181
      %v368 = vunpack.c.h.b16 %v181
      %v369 = vunpack.c.l.b16 %v182
      %v370 = vunpack.c.h.b16 %v182
      %v371 = vunpack.c.l.b16 %v183
      %v372 = vunpack.c.h.b16 %v183
      %v373 = vunpack.c.l.b16 %v184
      %v374 = vunpack.c.h.b16 %v184
      %v375 = vunpack.c.l.b16 %v185
      %v376 = vunpack.c.h.b16 %v185
      %v377 = vunpack.c.l.b16 %v186
      %v378 = vunpack.c.h.b16 %v186
      %v379 = vunpack.c.l.b16 %v187
      %v380 = vunpack.c.h.b16 %v187
      %v381 = vunpack.c.l.b16 %v188
      %v382 = vunpack.c.h.b16 %v188
      %v383 = vunpack.c.l.b16 %v189
      %v384 = vunpack.c.h.b16 %v189
      %v385 = vunpack.c.l.b16 %v190
      %v386 = vunpack.c.h.b16 %v190
      %v387 = vunpack.c.l.b16 %v191
      %v388 = vunpack.c.h.b16 %v191
      %v389 = vunpack.c.l.b16 %v192
      %v390 = vunpack.c.h.b16 %v192
      %v391 = vunpack.c.l.b16 %v193
      %v392 = vunpack.c.h.b16 %v193
      %v393 = vunpack.c.l.b16 %v194
      %v394 = vunpack.c.h.b16 %v194
      %v395 = vunpack.c.l.b16 %v195
      %v396 = vunpack.c.h.b16 %v195
      %v397 = vunpack.c.l.b16 %v196
      %v398 = vunpack.c.h.b16 %v196
      %v399 = vunpack.c.l.b16 %v197
      %v400 = vunpack.c.h.b16 %v197
      %v401 = vunpack.c.l.b16 %v198
      %v402 = vunpack.c.h.b16 %v198
      %v403 = vunpack.c.l.b16 %v199
      %v404 = vunpack.c.h.b16 %v199
      %v405 = vunpack.c.l.b16 %v200
      %v406 = vunpack.c.h.b16 %v200
      %v407 = vunpack.c.l.b16 %v201
      %v408 = vunpack.c.h.b16 %v201
      %v409 = vunpack.c.l.b16 %v202
      %v410 = vunpack.c.h.b16 %v202
      %v411 = vunpack.c.l.b16 %v203
      %v412 = vunpack.c.h.b16 %v203
      %v413 = vunpack.c.l.b16 %v204
      %v414 = vunpack.c.h.b16 %v204
      %v415 = vunpack.c.l.b16 %v205
      %v416 = vunpack.c.h.b16 %v205
      %v417 = vunpack.c.l.b16 %v206
      %v418 = vunpack.c.h.b16 %v206
      %v419 = vunpack.c.l.b16 %v207
      %v420 = vunpack.c.h.b16 %v207
      %v421 = vunpack.c.l.b16 %v208
      %v422 = vunpack.c.h.b16 %v208
      %v423 = vunpack.c.l.b16 %v209
      %v424 = vunpack.c.h.b16 %v209
      %v425 = vunpack.c.l.b16 %v210
      %v426 = vunpack.c.h.b16 %v210
      %v427 = vunpack.c.l.b16 %v211
      %v428 = vunpack.c.h.b16 %v211
      %v429 = vunpack.c.l.b16 %v212
      %v430 = vunpack.c.h.b16 %v212
      %v431 = vunpack.c.l.b16 %v213
      %v432 = vunpack.c.h.b16 %v213
      %v433 = vunpack.c.l.b16 %v214
      %v434 = vunpack.c.h.b16 %v214
      %v435 = vunpack.c.l.b16 %v215
      %v436 = vunpack.c.h.b16 %v215
      %v437 = vunpack.c.l.b16 %v216
      %v438 = vunpack.c.h.b16 %v216
      %v439 = vunpack.c.l.b16 %v217
      %v440 = vunpack.c.h.b16 %v217
      %v441 = vunpack.c.l.b16 %v218
      %v442 = vunpack.c.h.b16 %v218
      %v443 = vunpack.c.l.b16 %v219
      %v444 = vunpack.c.h.b16 %v219
      %v445 = vunpack.c.l.b16 %v220
      %v446 = vunpack.c.h.b16 %v220
      %v447 = vunpack.c.l.b16 %v221
      %v448 = vunpack.c.h.b16 %v221
      %v449 = vunpack.c.l.b16 %v222
      %v450 = vunpack.c.h.b16 %v222
      %v451 = vunpack.c.l.b16 %v223
      %v452 = vunpack.c.h.b16 %v223
      %v453 = vunpack.c.l.b16 %v224
      %v454 = vunpack.c.h.b16 %v224
      %v455 = vunpack.c.l.b16 %v225
      %v456 = vunpack.c.h.b16 %v225
      %v457 = vunpack.c.l.b16 %v226
      %v458 = vunpack.c.h.b16 %v226
      %v459 = vunpack.c.l.b16 %v227
      %v460 = vunpack.c.h.b16 %v227
      %v461 = vunpack.c.l.b16 %v228
      %v462 = vunpack.c.h.b16 %v228
      %v463 = vunpack.c.l.b16 %v229
      %v464 = vunpack.c.h.b16 %v229
      %v465 = vunpack.c.l.b16 %v230
      %v466 = vunpack.c.h.b16 %v230
      %v467 = vunpack.c.l.b16 %v231
      %v468 = vunpack.c.h.b16 %v231
      %v469 = vunpack.c.l.b16 %v232
      %v470 = vunpack.c.h.b16 %v232
      %v471 = vunpack.c.l.b16 %v233
      %v472 = vunpack.c.h.b16 %v233
      %v473 = vunpack.c.l.b16 %v234
      %v474 = vunpack.c.h.b16 %v234
      %v475 = vunpack.c.l.b16 %v235
      %v476 = vunpack.c.h.b16 %v235
      %v477 = vunpack.c.l.b16 %v236
      %v478 = vunpack.c.h.b16 %v236
      %v479 = vunpack.c.l.b16 %v237
      %v480 = vunpack.c.h.b16 %v237
      %v481 = vunpack.c.l.b16 %v238
      %v482 = vunpack.c.h.b16 %v238
      %v483 = vunpack.c.l.b16 %v239
      %v484 = vunpack.c.h.b16 %v239
      %v485 = vunpack.c.l.b16 %v240
      %v486 = vunpack.c.h.b16 %v240
      %v487 = vunpack.c.l.b16 %v241
      %v488 = vunpack.c.h.b16 %v241
      %v489 = vunpack.c.l.b16 %v242
      %v490 = vunpack.c.h.b16 %v242
      %v491 = vunpack.c.l.b16 %v243
      %v492 = vunpack.c.h.b16 %v243
      %v493 = vunpack.c.l.b16 %v244
      %v494 = vunpack.c.h.b16 %v244
      %v495 = vunpack.c.l.b16 %v245
      %v496 = vunpack.c.h.b16 %v245
      %v497 = vunpack.c.l.b16 %v246
      %v498 = vunpack.c.h.b16 %v246
      %v499 = vunpack.c.l.b16 %v247
      %v500 = vunpack.c.h.b16 %v247
      %v501 = vunpack.c.l.b16 %v248
      %v502 = vunpack.c.h.b16 %v248
      %v503 = vunpack.c.l.b16 %v249
      %v504 = vunpack.c.h.b16 %v249
      %v505 = vpack.c.b16 %v363, %v361
      %v506 = vpack.c.b16 %v364, %v362
      %v507 = vpack.c.b16 %v367, %v365
      %v508 = vpack.c.b16 %v368, %v366
      %v509 = vpack.c.b16 %v371, %v369
      %v510 = vpack.c.b16 %v372, %v370
      %v511 = vpack.c.b16 %v375, %v373
      %v512 = vpack.c.b16 %v376, %v374
      %v513 = vpack.c.b16 %v379, %v377
      %v514 = vpack.c.b16 %v380, %v378
      %v515 = vpack.c.b16 %v383, %v381
      %v516 = vpack.c.b16 %v384, %v382
      %v517 = vpack.c.b16 %v387, %v385
      %v518 = vpack.c.b16 %v388, %v386
      %v519 = vpack.c.b16 %v391, %v389
      %v520 = vpack.c.b16 %v392, %v390
      %v521 = vpack.c.b16 %v395, %v393
      %v522 = vpack.c.b16 %v396, %v394
      %v523 = vpack.c.b16 %v399, %v397
      %v524 = vpack.c.b16 %v400, %v398
      %v525 = vpack.c.b16 %v403, %v401
      %v526 = vpack.c.b16 %v404, %v402
      %v527 = vpack.c.b16 %v407, %v405
      %v528 = vpack.c.b16 %v408, %v406
      %v529 = vpack.c.b16 %v411, %v409
      %v530 = vpack.c.b16 %v412, %v410
      %v531 = vpack.c.b16 %v415, %v413
      %v532 = vpack.c.b16 %v416, %v414
      %v533 = vpack.c.b16 %v419, %v417
      %v534 = vpack.c.b16 %v420, %v418
      %v535 = vpack.c.b16 %v423, %v421
      %v536 = vpack.c.b16 %v424, %v422
      %v537 = vpack.c.b16 %v427, %v425
      %v538 = vpack.c.b16 %v428, %v426
      %v539 = vpack.c.b16 %v431, %v429
      %v540 = vpack.c.b16 %v432, %v430
      %v541 = vpack.c.b16 %v435, %v433
      %v542 = vpack.c.b16 %v436, %v434
      %v543 = vpack.c.b16 %v439, %v437
      %v544 = vpack.c.b16 %v440, %v438
      %v545 = vpack.c.b16 %v443, %v441
      %v546 = vpack.c.b16 %v444, %v442
      %v547 = vpack.c.b16 %v447, %v445
      %v548 = vpack.c.b16 %v448, %v446
      %v549 = vpack.c.b16 %v451, %v449
      %v550 = vpack.c.b16 %v452, %v450
      %v551 = vpack.c.b16 %v455, %v453
      %v552 = vpack.c.b16 %v456, %v454
      %v553 = vpack.c.b16 %v459, %v457
      %v554 = vpack.c.b16 %v460, %v458
      %v555 = vpack.c.b16 %v463, %v461
      %v556 = vpack.c.b16 %v464, %v462
      %v557 = vpack.c.b16 %v467, %v465
      %v558 = vpack.c.b16 %v468, %v466
      %v559 = vpack.c.b16 %v471, %v469
      %v560 = vpack.c.b16 %v472, %v470
      %v561 = vpack.c.b16 %v475, %v473
      %v562 = vpack.c.b16 %v476, %v474
      %v563 = vpack.c.b16 %v479, %v477
      %v564 = vpack.c.b16 %v480, %v478
      %v565 = vpack.c.b16 %v483, %v481
      %v566 = vpack.c.b16 %v484, %v482
      %v567 = vpack.c.b16 %v487, %v485
      %v568 = vpack.c.b16 %v488, %v486
      %v569 = vpack.c.b16 %v491, %v489
      %v570 = vpack.c.b16 %v492, %v490
      %v571 = vpack.c.b16 %v495, %v493
      %v572 = vpack.c.b16 %v496, %v494
      %v573 = vpack.c.b16 %v499, %v497
      %v574 = vpack.c.b16 %v500, %v498
      %v575 = vpack.c.b16 %v503, %v501
      %v576 = vpack.c.b16 %v504, %v502
      %v681 = vunpack.c.l.b16 %v250
      %v682 = vunpack.c.l.b16 %v251
      %v683 = vunpack.c.l.b16 %v252
      %v684 = vunpack.c.l.b16 %v253
      %v685 = vunpack.c.l.b16 %v254
      %v686 = vunpack.c.l.b16 %v255
      %v687 = vunpack.c.l.b16 %v256
      %v688 = vunpack.c.l.b16 %v257
      %v689 = vunpack.c.l.b16 %v258
      %v690 = vunpack.c.l.b16 %v259
      %v691 = vunpack.c.l.b16 %v260
      %v692 = vunpack.c.l.b16 %v261
      %v693 = vunpack.c.l.b16 %v262
      %v694 = vunpack.c.l.b16 %v263
      %v695 = vunpack.c.l.b16 %v264
      %v696 = vunpack.c.l.b16 %v265
      %v697 = vunpack.c.l.b16 %v266
      %v698 = vunpack.c.l.b16 %v267
      %v699 = vunpack.c.l.b16 %v268
      %v700 = vunpack.c.l.b16 %v269
      %v701 = vunpack.c.l.b16 %v270
      %v702 = vunpack.c.l.b16 %v271
      %v703 = vunpack.c.l.b16 %v272
      %v704 = vunpack.c.l.b16 %v273
      %v705 = vunpack.c.l.b16 %v274
      %v706 = vunpack.c.l.b16 %v275
      %v707 = vunpack.c.l.b16 %v276
      %v708 = vunpack.c.l.b16 %v277
      %v709 = vunpack.c.l.b16 %v278
      %v710 = vunpack.c.l.b16 %v279
      %v711 = vunpack.c.l.b16 %v280
      %v712 = vunpack.c.l.b16 %v281
      %v713 = vpack.c.b16 %v682, %v681
      %v714 = vpack.c.b16 %v684, %v683
      %v715 = vpack.c.b16 %v686, %v685
      %v716 = vpack.c.b16 %v688, %v687
      %v717 = vpack.c.b16 %v690, %v689
      %v718 = vpack.c.b16 %v692, %v691
      %v719 = vpack.c.b16 %v694, %v693
      %v720 = vpack.c.b16 %v696, %v695
      %v721 = vpack.c.b16 %v698, %v697
      %v722 = vpack.c.b16 %v700, %v699
      %v723 = vpack.c.b16 %v702, %v701
      %v724 = vpack.c.b16 %v704, %v703
      %v725 = vpack.c.b16 %v706, %v705
      %v726 = vpack.c.b16 %v708, %v707
      %v727 = vpack.c.b16 %v710, %v709
      %v728 = vpack.c.b16 %v712, %v711
      %745 = vmatprep.subr.bf16.mxu0 0
      %746 = vmatpush1.bf16.msra.mxu0 %v713
      %747 = vmatprep.subr.bf16.mxu0 0
      %748 = vmatpush1.bf16.msra.mxu0 %v714
      %749 = vmatprep.subr.bf16.mxu0 0
      %750 = vmatpush1.bf16.msra.mxu0 %v715
      %751 = vmatprep.subr.bf16.mxu0 0
      %752 = vmatpush1.bf16.msra.mxu0 %v716
      %753 = vmatprep.subr.bf16.mxu0 0
      %754 = vmatpush1.bf16.msra.mxu0 %v717
      %755 = vmatprep.subr.bf16.mxu0 0
      %756 = vmatpush1.bf16.msra.mxu0 %v718
      %757 = vmatprep.subr.bf16.mxu0 0
      %758 = vmatpush1.bf16.msra.mxu0 %v719
      %759 = vmatprep.subr.bf16.mxu0 0
      %760 = vmatpush1.bf16.msra.mxu0 %v720
      %761 = vmatprep.subr.bf16.mxu0 0
      %762 = vmatpush1.bf16.msra.mxu0 %v721
      %763 = vmatprep.subr.bf16.mxu0 0
      %764 = vmatpush1.bf16.msra.mxu0 %v722
      %765 = vmatprep.subr.bf16.mxu0 0
      %766 = vmatpush1.bf16.msra.mxu0 %v723
      %767 = vmatprep.subr.bf16.mxu0 0
      %768 = vmatpush1.bf16.msra.mxu0 %v724
      %769 = vmatprep.subr.bf16.mxu0 0
      %770 = vmatpush1.bf16.msra.mxu0 %v725
      %771 = vmatprep.subr.bf16.mxu0 0
      %772 = vmatpush1.bf16.msra.mxu0 %v726
      %773 = vmatprep.subr.bf16.mxu0 0
      %774 = vmatpush1.bf16.msra.mxu0 %v727
      %775 = vmatprep.subr.bf16.mxu0 0
      %776 = vmatpush1.bf16.msra.mxu0 %v728
      %777 = vmatprep.mubr.bf16.mxu0 %v506
      %778 = vmatmul.mubr.bf16.gmra.mrb[0].mxu0 %v505
      %v779 = vpop.f32.mrb[0].mxu0
      %v780 = vadd.f32 %v287, %v779
      %v781 = vpop.f32.mrb[0].mxu0
      %v782 = vpop.f32.mrb[0].mxu0
      %v783 = vadd.f32 %v287, %v782
      %v784 = vpop.f32.mrb[0].mxu0
      %785 = vmatprep.mubr.bf16.mxu0 %v508
      %786 = vmatmul.mubr.bf16.gmra.mrb[0].mxu0 %v507
      %v787 = vpop.f32.mrb[0].mxu0
      %v788 = vadd.f32 %v287, %v787
      %v789 = vpop.f32.mrb[0].mxu0
      %v790 = vpop.f32.mrb[0].mxu0
      %v791 = vadd.f32 %v287, %v790
      %v792 = vpop.f32.mrb[0].mxu0
      %793 = vmatprep.mubr.bf16.mxu0 %v510
      %794 = vmatmul.mubr.bf16.gmra.mrb[0].mxu0 %v509
      %v795 = vpop.f32.mrb[0].mxu0
      %v796 = vadd.f32 %v287, %v795
      %v797 = vpop.f32.mrb[0].mxu0
      %v798 = vpop.f32.mrb[0].mxu0
      %v799 = vadd.f32 %v287, %v798
      %v800 = vpop.f32.mrb[0].mxu0
      %801 = vmatprep.mubr.bf16.mxu0 %v512
      %802 = vmatmul.mubr.bf16.gmra.mrb[0].mxu0 %v511
      %v803 = vpop.f32.mrb[0].mxu0
      %v804 = vadd.f32 %v287, %v803
      %v805 = vpop.f32.mrb[0].mxu0
      %v806 = vpop.f32.mrb[0].mxu0
      %v807 = vadd.f32 %v287, %v806
      %v808 = vpop.f32.mrb[0].mxu0
      %809 = vmatprep.mubr.bf16.mxu0 %v514
      %810 = vmatmul.mubr.bf16.gmra.mrb[0].mxu0 %v513
      %v811 = vpop.f32.mrb[0].mxu0
      %v812 = vadd.f32 %v287, %v811
      %v813 = vpop.f32.mrb[0].mxu0
      %v814 = vpop.f32.mrb[0].mxu0
      %v815 = vadd.f32 %v287, %v814
      %v816 = vpop.f32.mrb[0].mxu0
      %817 = vmatprep.mubr.bf16.mxu0 %v516
      %818 = vmatmul.mubr.bf16.gmra.mrb[0].mxu0 %v515
      %v819 = vpop.f32.mrb[0].mxu0
      %v820 = vadd.f32 %v287, %v819
      %v821 = vpop.f32.mrb[0].mxu0
      %v822 = vpop.f32.mrb[0].mxu0
      %v823 = vadd.f32 %v287, %v822
      %v824 = vpop.f32.mrb[0].mxu0
      %825 = vmatprep.mubr.bf16.mxu0 %v518
      %826 = vmatmul.mubr.bf16.gmra.mrb[0].mxu0 %v517
      %v827 = vpop.f32.mrb[0].mxu0
      %v828 = vadd.f32 %v287, %v827
      %v829 = vpop.f32.mrb[0].mxu0
      %v830 = vpop.f32.mrb[0].mxu0
      %v831 = vadd.f32 %v287, %v830
      %v832 = vpop.f32.mrb[0].mxu0
      %833 = vmatprep.mubr.bf16.mxu0 %v520
      %834 = vmatmul.mubr.bf16.gmra.mrb[0].mxu0 %v519
      %v835 = vpop.f32.mrb[0].mxu0
      %v836 = vadd.f32 %v287, %v835
      %v837 = vpop.f32.mrb[0].mxu0
      %v838 = vpop.f32.mrb[0].mxu0
      %v839 = vadd.f32 %v287, %v838
      %v840 = vpop.f32.mrb[0].mxu0
      %841 = vmatprep.mubr.bf16.mxu0 %v522
      %842 = vmatmul.mubr.bf16.gmra.mrb[0].mxu0 %v521
      %v843 = vpop.f32.mrb[0].mxu0
      %v844 = vadd.f32 %v287, %v843
      %v845 = vpop.f32.mrb[0].mxu0
      %v846 = vpop.f32.mrb[0].mxu0
      %v847 = vadd.f32 %v287, %v846
      %v848 = vpop.f32.mrb[0].mxu0
      %849 = vmatprep.mubr.bf16.mxu0 %v524
      %850 = vmatmul.mubr.bf16.gmra.mrb[0].mxu0 %v523
      %v851 = vpop.f32.mrb[0].mxu0
      %v852 = vadd.f32 %v287, %v851
      %v853 = vpop.f32.mrb[0].mxu0
      %v854 = vpop.f32.mrb[0].mxu0
      %v855 = vadd.f32 %v287, %v854
      %v856 = vpop.f32.mrb[0].mxu0
      %857 = vmatprep.mubr.bf16.mxu0 %v526
      %858 = vmatmul.mubr.bf16.gmra.mrb[0].mxu0 %v525
      %v859 = vpop.f32.mrb[0].mxu0
      %v860 = vadd.f32 %v287, %v859
      %v861 = vpop.f32.mrb[0].mxu0
      %v862 = vpop.f32.mrb[0].mxu0
      %v863 = vadd.f32 %v287, %v862
      %v864 = vpop.f32.mrb[0].mxu0
      %865 = vmatprep.mubr.bf16.mxu0 %v528
      %866 = vmatmul.mubr.bf16.gmra.mrb[0].mxu0 %v527
      %v867 = vpop.f32.mrb[0].mxu0
      %v868 = vadd.f32 %v287, %v867
      %v869 = vpop.f32.mrb[0].mxu0
      %v870 = vpop.f32.mrb[0].mxu0
      %v871 = vadd.f32 %v287, %v870
      %v872 = vpop.f32.mrb[0].mxu0
      %873 = vmatprep.mubr.bf16.mxu0 %v530
      %874 = vmatmul.mubr.bf16.gmra.mrb[0].mxu0 %v529
      %v875 = vpop.f32.mrb[0].mxu0
      %v876 = vadd.f32 %v287, %v875
      %v877 = vpop.f32.mrb[0].mxu0
      %v878 = vpop.f32.mrb[0].mxu0
      %v879 = vadd.f32 %v287, %v878
      %v880 = vpop.f32.mrb[0].mxu0
      %881 = vmatprep.mubr.bf16.mxu0 %v532
      %882 = vmatmul.mubr.bf16.gmra.mrb[0].mxu0 %v531
      %v883 = vpop.f32.mrb[0].mxu0
      %v884 = vadd.f32 %v287, %v883
      %v885 = vpop.f32.mrb[0].mxu0
      %v886 = vpop.f32.mrb[0].mxu0
      %v887 = vadd.f32 %v287, %v886
      %v888 = vpop.f32.mrb[0].mxu0
      %889 = vmatprep.mubr.bf16.mxu0 %v534
      %890 = vmatmul.mubr.bf16.gmra.mrb[0].mxu0 %v533
      %v891 = vpop.f32.mrb[0].mxu0
      %v892 = vadd.f32 %v287, %v891
      %v893 = vpop.f32.mrb[0].mxu0
      %v894 = vpop.f32.mrb[0].mxu0
      %v895 = vadd.f32 %v287, %v894
      %v896 = vpop.f32.mrb[0].mxu0
      %897 = vmatprep.mubr.bf16.mxu0 %v536
      %898 = vmatmul.mubr.bf16.gmra.mrb[0].mxu0 %v535
      %v899 = vpop.f32.mrb[0].mxu0
      %v900 = vadd.f32 %v287, %v899
      %v901 = vpop.f32.mrb[0].mxu0
      %v902 = vpop.f32.mrb[0].mxu0
      %v903 = vadd.f32 %v287, %v902
      %v904 = vpop.f32.mrb[0].mxu0
      %905 = vmatprep.mubr.bf16.mxu0 %v538
      %906 = vmatmul.mubr.bf16.gmra.mrb[0].mxu0 %v537
      %v907 = vpop.f32.mrb[0].mxu0
      %v908 = vadd.f32 %v287, %v907
      %v909 = vpop.f32.mrb[0].mxu0
      %v910 = vpop.f32.mrb[0].mxu0
      %v911 = vadd.f32 %v287, %v910
      %v912 = vpop.f32.mrb[0].mxu0
      %913 = vmatprep.mubr.bf16.mxu0 %v540
      %914 = vmatmul.mubr.bf16.gmra.mrb[0].mxu0 %v539
      %v915 = vpop.f32.mrb[0].mxu0
      %v916 = vadd.f32 %v287, %v915
      %v917 = vpop.f32.mrb[0].mxu0
      %v918 = vpop.f32.mrb[0].mxu0
      %v919 = vadd.f32 %v287, %v918
      %v920 = vpop.f32.mrb[0].mxu0
      %921 = vmatprep.mubr.bf16.mxu0 %v542
      %922 = vmatmul.mubr.bf16.gmra.mrb[0].mxu0 %v541
      %v923 = vpop.f32.mrb[0].mxu0
      %v924 = vadd.f32 %v287, %v923
      %v925 = vpop.f32.mrb[0].mxu0
      %v926 = vpop.f32.mrb[0].mxu0
      %v927 = vadd.f32 %v287, %v926
      %v928 = vpop.f32.mrb[0].mxu0
      %929 = vmatprep.mubr.bf16.mxu0 %v544
      %930 = vmatmul.mubr.bf16.gmra.mrb[0].mxu0 %v543
      %v931 = vpop.f32.mrb[0].mxu0
      %v932 = vadd.f32 %v287, %v931
      %v933 = vpop.f32.mrb[0].mxu0
      %v934 = vpop.f32.mrb[0].mxu0
      %v935 = vadd.f32 %v287, %v934
      %v936 = vpop.f32.mrb[0].mxu0
      %937 = vmatprep.mubr.bf16.mxu0 %v546
      %938 = vmatmul.mubr.bf16.gmra.mrb[0].mxu0 %v545
      %v939 = vpop.f32.mrb[0].mxu0
      %v940 = vadd.f32 %v287, %v939
      %v941 = vpop.f32.mrb[0].mxu0
      %v942 = vpop.f32.mrb[0].mxu0
      %v943 = vadd.f32 %v287, %v942
      %v944 = vpop.f32.mrb[0].mxu0
      %945 = vmatprep.mubr.bf16.mxu0 %v548
      %946 = vmatmul.mubr.bf16.gmra.mrb[0].mxu0 %v547
      %v947 = vpop.f32.mrb[0].mxu0
      %v948 = vadd.f32 %v287, %v947
      %v949 = vpop.f32.mrb[0].mxu0
      %v950 = vpop.f32.mrb[0].mxu0
      %v951 = vadd.f32 %v287, %v950
      %v952 = vpop.f32.mrb[0].mxu0
      %953 = vmatprep.mubr.bf16.mxu0 %v550
      %954 = vmatmul.mubr.bf16.gmra.mrb[0].mxu0 %v549
      %v955 = vpop.f32.mrb[0].mxu0
      %v956 = vadd.f32 %v287, %v955
      %v957 = vpop.f32.mrb[0].mxu0
      %v958 = vpop.f32.mrb[0].mxu0
      %v959 = vadd.f32 %v287, %v958
      %v960 = vpop.f32.mrb[0].mxu0
      %961 = vmatprep.mubr.bf16.mxu0 %v552
      %962 = vmatmul.mubr.bf16.gmra.mrb[0].mxu0 %v551
      %v963 = vpop.f32.mrb[0].mxu0
      %v964 = vadd.f32 %v287, %v963
      %v965 = vpop.f32.mrb[0].mxu0
      %v966 = vpop.f32.mrb[0].mxu0
      %v967 = vadd.f32 %v287, %v966
      %v968 = vpop.f32.mrb[0].mxu0
      %969 = vmatprep.mubr.bf16.mxu0 %v554
      %970 = vmatmul.mubr.bf16.gmra.mrb[0].mxu0 %v553
      %v971 = vpop.f32.mrb[0].mxu0
      %v972 = vadd.f32 %v287, %v971
      %v973 = vpop.f32.mrb[0].mxu0
      %v974 = vpop.f32.mrb[0].mxu0
      %v975 = vadd.f32 %v287, %v974
      %v976 = vpop.f32.mrb[0].mxu0
      %977 = vmatprep.mubr.bf16.mxu0 %v556
      %978 = vmatmul.mubr.bf16.gmra.mrb[0].mxu0 %v555
      %v979 = vpop.f32.mrb[0].mxu0
      %v980 = vadd.f32 %v287, %v979
      %v981 = vpop.f32.mrb[0].mxu0
      %v982 = vpop.f32.mrb[0].mxu0
      %v983 = vadd.f32 %v287, %v982
      %v984 = vpop.f32.mrb[0].mxu0
      %985 = vmatprep.mubr.bf16.mxu0 %v558
      %986 = vmatmul.mubr.bf16.gmra.mrb[0].mxu0 %v557
      %v987 = vpop.f32.mrb[0].mxu0
      %v988 = vadd.f32 %v287, %v987
      %v989 = vpop.f32.mrb[0].mxu0
      %v990 = vpop.f32.mrb[0].mxu0
      %v991 = vadd.f32 %v287, %v990
      %v992 = vpop.f32.mrb[0].mxu0
      %993 = vmatprep.mubr.bf16.mxu0 %v560
      %994 = vmatmul.mubr.bf16.gmra.mrb[0].mxu0 %v559
      %v995 = vpop.f32.mrb[0].mxu0
      %v996 = vadd.f32 %v287, %v995
      %v997 = vpop.f32.mrb[0].mxu0
      %v998 = vpop.f32.mrb[0].mxu0
      %v999 = vadd.f32 %v287, %v998
      %v1000 = vpop.f32.mrb[0].mxu0
      %1001 = vmatprep.mubr.bf16.mxu0 %v562
      %1002 = vmatmul.mubr.bf16.gmra.mrb[0].mxu0 %v561
      %v1003 = vpop.f32.mrb[0].mxu0
      %v1004 = vadd.f32 %v287, %v1003
      %v1005 = vpop.f32.mrb[0].mxu0
      %v1006 = vpop.f32.mrb[0].mxu0
      %v1007 = vadd.f32 %v287, %v1006
      %v1008 = vpop.f32.mrb[0].mxu0
      %1009 = vmatprep.mubr.bf16.mxu0 %v564
      %1010 = vmatmul.mubr.bf16.gmra.mrb[0].mxu0 %v563
      %v1011 = vpop.f32.mrb[0].mxu0
      %v1012 = vadd.f32 %v287, %v1011
      %v1013 = vpop.f32.mrb[0].mxu0
      %v1014 = vpop.f32.mrb[0].mxu0
      %v1015 = vadd.f32 %v287, %v1014
      %v1016 = vpop.f32.mrb[0].mxu0
      %1017 = vmatprep.mubr.bf16.mxu0 %v566
      %1018 = vmatmul.mubr.bf16.gmra.mrb[0].mxu0 %v565
      %v1019 = vpop.f32.mrb[0].mxu0
      %v1020 = vadd.f32 %v287, %v1019
      %v1021 = vpop.f32.mrb[0].mxu0
      %v1022 = vpop.f32.mrb[0].mxu0
      %v1023 = vadd.f32 %v287, %v1022
      %v1024 = vpop.f32.mrb[0].mxu0
      %1025 = vmatprep.mubr.bf16.mxu0 %v568
      %1026 = vmatmul.mubr.bf16.gmra.mrb[0].mxu0 %v567
      %v1027 = vpop.f32.mrb[0].mxu0
      %v1028 = vadd.f32 %v287, %v1027
      %v1029 = vpop.f32.mrb[0].mxu0
      %v1030 = vpop.f32.mrb[0].mxu0
      %v1031 = vadd.f32 %v287, %v1030
      %v1032 = vpop.f32.mrb[0].mxu0
      %1033 = vmatprep.mubr.bf16.mxu0 %v570
      %1034 = vmatmul.mubr.bf16.gmra.mrb[0].mxu0 %v569
      %v1035 = vpop.f32.mrb[0].mxu0
      %v1036 = vadd.f32 %v287, %v1035
      %v1037 = vpop.f32.mrb[0].mxu0
      %v1038 = vpop.f32.mrb[0].mxu0
      %v1039 = vadd.f32 %v287, %v1038
      %v1040 = vpop.f32.mrb[0].mxu0
      %1041 = vmatprep.mubr.bf16.mxu0 %v572
      %1042 = vmatmul.mubr.bf16.gmra.mrb[0].mxu0 %v571
      %v1043 = vpop.f32.mrb[0].mxu0
      %v1044 = vadd.f32 %v287, %v1043
      %v1045 = vpop.f32.mrb[0].mxu0
      %v1046 = vpop.f32.mrb[0].mxu0
      %v1047 = vadd.f32 %v287, %v1046
      %v1048 = vpop.f32.mrb[0].mxu0
      %1049 = vmatprep.mubr.bf16.mxu0 %v574
      %1050 = vmatmul.mubr.bf16.gmra.mrb[0].mxu0 %v573
      %v1051 = vpop.f32.mrb[0].mxu0
      %v1052 = vadd.f32 %v287, %v1051
      %v1053 = vpop.f32.mrb[0].mxu0
      %v1054 = vpop.f32.mrb[0].mxu0
      %v1055 = vadd.f32 %v287, %v1054
      %v1056 = vpop.f32.mrb[0].mxu0
      %1057 = vmatprep.mubr.bf16.mxu0 %v576
      %1058 = vmatmul.mubr.bf16.gmra.mrb[0].mxu0 %v575
      %v1059 = vpop.f32.mrb[0].mxu0
      %v1060 = vadd.f32 %v287, %v1059
      %v1061 = vpop.f32.mrb[0].mxu0
      %v1062 = vpop.f32.mrb[0].mxu0
      %v1063 = vadd.f32 %v287, %v1062
      %v1064 = vpop.f32.mrb[0].mxu0
      %1065 = vdwg.mxu0
      %v1066 = vmax.f32 %v780, 0.0
      %v1067 = vmax.f32 %v783, 0.0
      %v1068 = vmax.f32 %v788, 0.0
      %v1069 = vmax.f32 %v791, 0.0
      %v1070 = vmax.f32 %v796, 0.0
      %v1071 = vmax.f32 %v799, 0.0
      %v1072 = vmax.f32 %v804, 0.0
      %v1073 = vmax.f32 %v807, 0.0
      %v1074 = vmax.f32 %v812, 0.0
      %v1075 = vmax.f32 %v815, 0.0
      %v1076 = vmax.f32 %v820, 0.0
      %v1077 = vmax.f32 %v823, 0.0
      %v1078 = vmax.f32 %v828, 0.0
      %v1079 = vmax.f32 %v831, 0.0
      %v1080 = vmax.f32 %v836, 0.0
      %v1081 = vmax.f32 %v839, 0.0
      %v1082 = vmax.f32 %v844, 0.0
      %v1083 = vmax.f32 %v847, 0.0
      %v1084 = vmax.f32 %v852, 0.0
      %v1085 = vmax.f32 %v855, 0.0
      %v1086 = vmax.f32 %v860, 0.0
      %v1087 = vmax.f32 %v863, 0.0
      %v1088 = vmax.f32 %v868, 0.0
      %v1089 = vmax.f32 %v871, 0.0
      %v1090 = vmax.f32 %v876, 0.0
      %v1091 = vmax.f32 %v879, 0.0
      %v1092 = vmax.f32 %v884, 0.0
      %v1093 = vmax.f32 %v887, 0.0
      %v1094 = vmax.f32 %v892, 0.0
      %v1095 = vmax.f32 %v895, 0.0
      %v1096 = vmax.f32 %v900, 0.0
      %v1097 = vmax.f32 %v903, 0.0
      %v1098 = vmax.f32 %v908, 0.0
      %v1099 = vmax.f32 %v911, 0.0
      %v1100 = vmax.f32 %v916, 0.0
      %v1101 = vmax.f32 %v919, 0.0
      %v1102 = vmax.f32 %v924, 0.0
      %v1103 = vmax.f32 %v927, 0.0
      %v1104 = vmax.f32 %v932, 0.0
      %v1105 = vmax.f32 %v935, 0.0
      %v1106 = vmax.f32 %v940, 0.0
      %v1107 = vmax.f32 %v943, 0.0
      %v1108 = vmax.f32 %v948, 0.0
      %v1109 = vmax.f32 %v951, 0.0
      %v1110 = vmax.f32 %v956, 0.0
      %v1111 = vmax.f32 %v959, 0.0
      %v1112 = vmax.f32 %v964, 0.0
      %v1113 = vmax.f32 %v967, 0.0
      %v1114 = vmax.f32 %v972, 0.0
      %v1115 = vmax.f32 %v975, 0.0
      %v1116 = vmax.f32 %v980, 0.0
      %v1117 = vmax.f32 %v983, 0.0
      %v1118 = vmax.f32 %v988, 0.0
      %v1119 = vmax.f32 %v991, 0.0
      %v1120 = vmax.f32 %v996, 0.0
      %v1121 = vmax.f32 %v999, 0.0
      %v1122 = vmax.f32 %v1004, 0.0
      %v1123 = vmax.f32 %v1007, 0.0
      %v1124 = vmax.f32 %v1012, 0.0
      %v1125 = vmax.f32 %v1015, 0.0
      %v1126 = vmax.f32 %v1020, 0.0
      %v1127 = vmax.f32 %v1023, 0.0
      %v1128 = vmax.f32 %v1028, 0.0
      %v1129 = vmax.f32 %v1031, 0.0
      %v1130 = vmax.f32 %v1036, 0.0
      %v1131 = vmax.f32 %v1039, 0.0
      %v1132 = vmax.f32 %v1044, 0.0
      %v1133 = vmax.f32 %v1047, 0.0
      %v1134 = vmax.f32 %v1052, 0.0
      %v1135 = vmax.f32 %v1055, 0.0
      %v1136 = vmax.f32 %v1060, 0.0
      %v1137 = vmax.f32 %v1063, 0.0
      %1138 = vst [vmem:[%s175] sm:$0xff] %v1066
      %1139 = vst [vmem:[%s175 + $0x8] sm:$0xff] %v1067
      %1140 = vst [vmem:[%s175 + $0x10] sm:$0xff] %v1068
      %1141 = vst [vmem:[%s175 + $0x18] sm:$0xff] %v1069
      %1142 = vst [vmem:[%s175 + $0x20] sm:$0xff] %v1070
      %1143 = vst [vmem:[%s175 + $0x28] sm:$0xff] %v1071
      %1144 = vst [vmem:[%s175 + $0x30] sm:$0xff] %v1072
      %1145 = vst [vmem:[%s175 + $0x38] sm:$0xff] %v1073
      %1146 = vst [vmem:[%s175 + $0x40] sm:$0xff] %v1074
      %1147 = vst [vmem:[%s175 + $0x48] sm:$0xff] %v1075
      %1148 = vst [vmem:[%s175 + $0x50] sm:$0xff] %v1076
      %1149 = vst [vmem:[%s175 + $0x58] sm:$0xff] %v1077
      %1150 = vst [vmem:[%s175 + $0x60] sm:$0xff] %v1078
      %1151 = vst [vmem:[%s175 + $0x68] sm:$0xff] %v1079
      %1152 = vst [vmem:[%s175 + $0x70] sm:$0xff] %v1080
      %1153 = vst [vmem:[%s175 + $0x78] sm:$0xff] %v1081
      %1154 = vst [vmem:[%s175 + $0x80] sm:$0xff] %v1082
      %1155 = vst [vmem:[%s175 + $0x88] sm:$0xff] %v1083
      %1156 = vst [vmem:[%s175 + $0x90] sm:$0xff] %v1084
      %1157 = vst [vmem:[%s175 + $0x98] sm:$0xff] %v1085
      %1158 = vst [vmem:[%s175 + $0xa0] sm:$0xff] %v1086
      %1159 = vst [vmem:[%s175 + $0xa8] sm:$0xff] %v1087
      %1160 = vst [vmem:[%s175 + $0xb0] sm:$0xff] %v1088
      %1161 = vst [vmem:[%s175 + $0xb8] sm:$0xff] %v1089
      %1162 = vst [vmem:[%s175 + $0xc0] sm:$0xff] %v1090
      %1163 = vst [vmem:[%s175 + $0xc8] sm:$0xff] %v1091
      %1164 = vst [vmem:[%s175 + $0xd0] sm:$0xff] %v1092
      %1165 = vst [vmem:[%s175 + $0xd8] sm:$0xff] %v1093
      %1166 = vst [vmem:[%s175 + $0xe0] sm:$0xff] %v1094
      %1167 = vst [vmem:[%s175 + $0xe8] sm:$0xff] %v1095
      %1168 = vst [vmem:[%s175 + $0xf0] sm:$0xff] %v1096
      %1169 = vst [vmem:[%s175 + $0xf8] sm:$0xff] %v1097
      %1170 = vst [vmem:[%s175 + $0x100] sm:$0xff] %v1098
      %1171 = vst [vmem:[%s175 + $0x108] sm:$0xff] %v1099
      %1172 = vst [vmem:[%s175 + $0x110] sm:$0xff] %v1100
      %1173 = vst [vmem:[%s175 + $0x118] sm:$0xff] %v1101
      %1174 = vst [vmem:[%s175 + $0x120] sm:$0xff] %v1102
      %1175 = vst [vmem:[%s175 + $0x128] sm:$0xff] %v1103
      %1176 = vst [vmem:[%s175 + $0x130] sm:$0xff] %v1104
      %1177 = vst [vmem:[%s175 + $0x138] sm:$0xff] %v1105
      %1178 = vst [vmem:[%s175 + $0x140] sm:$0xff] %v1106
      %1179 = vst [vmem:[%s175 + $0x148] sm:$0xff] %v1107
      %1180 = vst [vmem:[%s175 + $0x150] sm:$0xff] %v1108
      %1181 = vst [vmem:[%s175 + $0x158] sm:$0xff] %v1109
      %1182 = vst [vmem:[%s175 + $0x160] sm:$0xff] %v1110
      %1183 = vst [vmem:[%s175 + $0x168] sm:$0xff] %v1111
      %1184 = vst [vmem:[%s175 + $0x170] sm:$0xff] %v1112
      %1185 = vst [vmem:[%s175 + $0x178] sm:$0xff] %v1113
      %1186 = vst [vmem:[%s175 + $0x180] sm:$0xff] %v1114
      %1187 = vst [vmem:[%s175 + $0x188] sm:$0xff] %v1115
      %1188 = vst [vmem:[%s175 + $0x190] sm:$0xff] %v1116
      %1189 = vst [vmem:[%s175 + $0x198] sm:$0xff] %v1117
      %1190 = vst [vmem:[%s175 + $0x1a0] sm:$0xff] %v1118
      %1191 = vst [vmem:[%s175 + $0x1a8] sm:$0xff] %v1119
      %1192 = vst [vmem:[%s175 + $0x1b0] sm:$0xff] %v1120
      %1193 = vst [vmem:[%s175 + $0x1b8] sm:$0xff] %v1121
      %1194 = vst [vmem:[%s175 + $0x1c0] sm:$0xff] %v1122
      %1195 = vst [vmem:[%s175 + $0x1c8] sm:$0xff] %v1123
      %1196 = vst [vmem:[%s175 + $0x1d0] sm:$0xff] %v1124
      %1197 = vst [vmem:[%s175 + $0x1d8] sm:$0xff] %v1125
      %1198 = vst [vmem:[%s175 + $0x1e0] sm:$0xff] %v1126
      %1199 = vst [vmem:[%s175 + $0x1e8] sm:$0xff] %v1127
      %1200 = vst [vmem:[%s175 + $0x1f0] sm:$0xff] %v1128
      %1201 = vst [vmem:[%s175 + $0x1f8] sm:$0xff] %v1129
      %1202 = vst [vmem:[%s175 + $0x200] sm:$0xff] %v1130
      %1203 = vst [vmem:[%s175 + $0x208] sm:$0xff] %v1131
      %1204 = vst [vmem:[%s175 + $0x210] sm:$0xff] %v1132
      %1205 = vst [vmem:[%s175 + $0x218] sm:$0xff] %v1133
      %1206 = vst [vmem:[%s175 + $0x220] sm:$0xff] %v1134
      %1207 = vst [vmem:[%s175 + $0x228] sm:$0xff] %v1135
      %1208 = vst [vmem:[%s175 + $0x230] sm:$0xff] %v1136
      %1209 = vst [vmem:[%s175 + $0x238] sm:$0xff] %v1137
      %s1210 = smul.u32 72, %s14
      %p1211 = scmp.lt.s32.totalorder %s1210, 143
      %s1212 = scalar_select %p1211, %s1210, 143
      %s1213 = smul.addr %s1212, 8
      %s1214 = scalar_lea.vmem %s3, %s1213
      // Predicated region
      $region33: #{actor_critic_forward.4} parent=31 // pred_check
        %p1215 = pneg %p100
      $region34: #{actor_critic_forward.4} parent=31 // pred_check_branch
        %1217 = sbr.rel (%p1215) target = $region36
      $region35: #{actor_critic_forward.4} parent=31 // pred_region
        %s1218 = smul.u32 72, %s14
      $region36: #{actor_critic_forward.4} parent=31 // pred_fallthru
        _
    $region32: #{actor_critic_forward.4} parent=5 // pred_fallthru
      _
    %p1219 = scmp.le.s32.totalorder 2, %s9
    // Predicated region
    $region37: #{actor_critic_forward.4} parent=5 // pred_check
      %p1220 = pneg %p1219
    $region38: #{actor_critic_forward.4} parent=5 // pred_check_branch
      %1222 = sbr.rel (%p1220) target = $region40
    $region39: #{actor_critic_forward.4} parent=5 // pred_region
      %s1223 = ssub.s32 %s9, 2
      // Predicated region
      $region41: #{actor_critic_forward.4} parent=39 // pred_check
        %p1224 = pneg %p106
      $region42: #{actor_critic_forward.4} parent=39 // pred_check_branch
        %1226 = sbr.rel (%p1224) target = $region44
      $region43: #{actor_critic_forward.4} parent=39 // pred_region
        %s1227 = smul.u32 72, %s15
        %p1228 = scmp.lt.s32.totalorder %s1227, 143
        %s1229 = scalar_select %p1228, %s1227, 143
        %s1230 = smul.addr %s1229, 8
        %s1231 = scalar_lea.vmem %s3, %s1230
      $region44: #{actor_critic_forward.4} parent=39 // pred_fallthru
        _
    $region40: #{actor_critic_forward.4} parent=5 // pred_fallthru
      _
  $region6: #{actor_critic_forward.4} parent=0 // loop_footer
    %s13 = sadd.s32 1, %s9
  $region7: #{actor_critic_forward.4} parent=0 // loop_footer_branch
    %8 = sbr.rel target = $region3
  $region8: #{actor_critic_forward.4} parent=0 // loop_exit
    _

// kernel: actor_critic_forward.5
$region0: #{actor_critic_forward.5}
  #allocation0 [shape = 'u32[]', space=smem, size = 0x4, offset = 0x4, fixed_abs, tag = 'smem constant byte address 0x4 - core index']
  #allocation1 [shape = 'u32[144,128]{1,0:T(1,128)}', space=vmem, size = 0x12000, scoped, tag = 'internal scratch']
  %s0 = inlined_call_operand.vmem [shape: bf16[256,512], index: 0, kind: input, shape index: {}]
  %s1 = inlined_call_operand.vmem [shape: bf16[512,128], index: 1, kind: input, shape index: {}]
  %s2 = inlined_call_operand.vmem [shape: f32[1,128], index: 2, kind: input, shape index: {}]
  %s3 = inlined_call_operand.vmem [shape: f32[256,128], index: 3, kind: output, shape index: {}]
  %s4 = sld [smem:[#allocation0]]
  $region22: #{actor_critic_forward.5} parent=0
    _
  %s6 = ssub.s32 1, %s4
  %s7 = scalar_select 0, %s6, %s4
  // Predicated region
  $region2: #{actor_critic_forward.5} parent=0 // pred_check
    _
  $region3: #{actor_critic_forward.5} parent=0 // pred_check_branch
    %9 = sbr.rel (0) target = $region5
  $region4: #{actor_critic_forward.5} parent=0 // pred_region
    _
  $region5: #{actor_critic_forward.5} parent=0 // pred_fallthru
    _
  // Predicated region
  $region6: #{actor_critic_forward.5} parent=0 // pred_check
    _
  $region7: #{actor_critic_forward.5} parent=0 // pred_check_branch
    %11 = sbr.rel (0) target = $region9
  $region8: #{actor_critic_forward.5} parent=0 // pred_region
    _
  $region9: #{actor_critic_forward.5} parent=0 // pred_fallthru
    _
  // Predicated region
  $region10: #{actor_critic_forward.5} parent=0 // pred_check
    _
  $region11: #{actor_critic_forward.5} parent=0 // pred_check_branch
    %13 = sbr.rel (0) target = $region13
  $region12: #{actor_critic_forward.5} parent=0 // pred_region
    _
  $region13: #{actor_critic_forward.5} parent=0 // pred_fallthru
    _
  %v15 = vld [vmem:[%s0] sm:$0xff]
  %v16 = vld [vmem:[%s0 + $0x8] sm:$0xff]
  %v17 = vld [vmem:[%s0 + $0x10] sm:$0xff]
  %v18 = vld [vmem:[%s0 + $0x18] sm:$0xff]
  %v19 = vld [vmem:[%s0 + $0x20] sm:$0xff]
  %v20 = vld [vmem:[%s0 + $0x28] sm:$0xff]
  %v21 = vld [vmem:[%s0 + $0x30] sm:$0xff]
  %v22 = vld [vmem:[%s0 + $0x38] sm:$0xff]
  %v23 = vld [vmem:[%s0 + $0x40] sm:$0xff]
  %v24 = vld [vmem:[%s0 + $0x48] sm:$0xff]
  %v25 = vld [vmem:[%s0 + $0x50] sm:$0xff]
  %v26 = vld [vmem:[%s0 + $0x58] sm:$0xff]
  %v27 = vld [vmem:[%s0 + $0x60] sm:$0xff]
  %v28 = vld [vmem:[%s0 + $0x68] sm:$0xff]
  %v29 = vld [vmem:[%s0 + $0x70] sm:$0xff]
  %v30 = vld [vmem:[%s0 + $0x78] sm:$0xff]
  %v31 = vld [vmem:[%s0 + $0x80] sm:$0xff]
  %v32 = vld [vmem:[%s0 + $0x88] sm:$0xff]
  %v33 = vld [vmem:[%s0 + $0x90] sm:$0xff]
  %v34 = vld [vmem:[%s0 + $0x98] sm:$0xff]
  %v35 = vld [vmem:[%s0 + $0xa0] sm:$0xff]
  %v36 = vld [vmem:[%s0 + $0xa8] sm:$0xff]
  %v37 = vld [vmem:[%s0 + $0xb0] sm:$0xff]
  %v38 = vld [vmem:[%s0 + $0xb8] sm:$0xff]
  %v39 = vld [vmem:[%s0 + $0xc0] sm:$0xff]
  %v40 = vld [vmem:[%s0 + $0xc8] sm:$0xff]
  %v41 = vld [vmem:[%s0 + $0xd0] sm:$0xff]
  %v42 = vld [vmem:[%s0 + $0xd8] sm:$0xff]
  %v43 = vld [vmem:[%s0 + $0xe0] sm:$0xff]
  %v44 = vld [vmem:[%s0 + $0xe8] sm:$0xff]
  %v45 = vld [vmem:[%s0 + $0xf0] sm:$0xff]
  %v46 = vld [vmem:[%s0 + $0xf8] sm:$0xff]
  %v47 = vld [vmem:[%s0 + $0x100] sm:$0xff]
  %v48 = vld [vmem:[%s0 + $0x108] sm:$0xff]
  %v49 = vld [vmem:[%s0 + $0x110] sm:$0xff]
  %v50 = vld [vmem:[%s0 + $0x118] sm:$0xff]
  %v51 = vld [vmem:[%s0 + $0x120] sm:$0xff]
  %v52 = vld [vmem:[%s0 + $0x128] sm:$0xff]
  %v53 = vld [vmem:[%s0 + $0x130] sm:$0xff]
  %v54 = vld [vmem:[%s0 + $0x138] sm:$0xff]
  %v55 = vld [vmem:[%s0 + $0x140] sm:$0xff]
  %v56 = vld [vmem:[%s0 + $0x148] sm:$0xff]
  %v57 = vld [vmem:[%s0 + $0x150] sm:$0xff]
  %v58 = vld [vmem:[%s0 + $0x158] sm:$0xff]
  %v59 = vld [vmem:[%s0 + $0x160] sm:$0xff]
  %v60 = vld [vmem:[%s0 + $0x168] sm:$0xff]
  %v61 = vld [vmem:[%s0 + $0x170] sm:$0xff]
  %v62 = vld [vmem:[%s0 + $0x178] sm:$0xff]
  %v63 = vld [vmem:[%s0 + $0x180] sm:$0xff]
  %v64 = vld [vmem:[%s0 + $0x188] sm:$0xff]
  %v65 = vld [vmem:[%s0 + $0x190] sm:$0xff]
  %v66 = vld [vmem:[%s0 + $0x198] sm:$0xff]
  %v67 = vld [vmem:[%s0 + $0x1a0] sm:$0xff]
  %v68 = vld [vmem:[%s0 + $0x1a8] sm:$0xff]
  %v69 = vld [vmem:[%s0 + $0x1b0] sm:$0xff]
  %v70 = vld [vmem:[%s0 + $0x1b8] sm:$0xff]
  %v71 = vld [vmem:[%s0 + $0x1c0] sm:$0xff]
  %v72 = vld [vmem:[%s0 + $0x1c8] sm:$0xff]
  %v73 = vld [vmem:[%s0 + $0x1d0] sm:$0xff]
  %v74 = vld [vmem:[%s0 + $0x1d8] sm:$0xff]
  %v75 = vld [vmem:[%s0 + $0x1e0] sm:$0xff]
  %v76 = vld [vmem:[%s0 + $0x1e8] sm:$0xff]
  %v77 = vld [vmem:[%s0 + $0x1f0] sm:$0xff]
  %v78 = vld [vmem:[%s0 + $0x1f8] sm:$0xff]
  %v79 = vld [vmem:[%s1] sm:$0xf]
  %v80 = vld [vmem:[%s1 + $0x4] sm:$0xf]
  %v81 = vld [vmem:[%s1 + $0x8] sm:$0xf]
  %v82 = vld [vmem:[%s1 + $0xc] sm:$0xf]
  %v83 = vld [vmem:[%s1 + $0x10] sm:$0xf]
  %v84 = vld [vmem:[%s1 + $0x14] sm:$0xf]
  %v85 = vld [vmem:[%s1 + $0x18] sm:$0xf]
  %v86 = vld [vmem:[%s1 + $0x1c] sm:$0xf]
  %v87 = vld [vmem:[%s1 + $0x20] sm:$0xf]
  %v88 = vld [vmem:[%s1 + $0x24] sm:$0xf]
  %v89 = vld [vmem:[%s1 + $0x28] sm:$0xf]
  %v90 = vld [vmem:[%s1 + $0x2c] sm:$0xf]
  %v91 = vld [vmem:[%s1 + $0x30] sm:$0xf]
  %v92 = vld [vmem:[%s1 + $0x34] sm:$0xf]
  %v93 = vld [vmem:[%s1 + $0x38] sm:$0xf]
  %v94 = vld [vmem:[%s1 + $0x3c] sm:$0xf]
  %v95 = vld [vmem:[%s1 + $0x40] sm:$0xf]
  %v96 = vld [vmem:[%s1 + $0x44] sm:$0xf]
  %v97 = vld [vmem:[%s1 + $0x48] sm:$0xf]
  %v98 = vld [vmem:[%s1 + $0x4c] sm:$0xf]
  %v99 = vld [vmem:[%s1 + $0x50] sm:$0xf]
  %v100 = vld [vmem:[%s1 + $0x54] sm:$0xf]
  %v101 = vld [vmem:[%s1 + $0x58] sm:$0xf]
  %v102 = vld [vmem:[%s1 + $0x5c] sm:$0xf]
  %v103 = vld [vmem:[%s1 + $0x60] sm:$0xf]
  %v104 = vld [vmem:[%s1 + $0x64] sm:$0xf]
  %v105 = vld [vmem:[%s1 + $0x68] sm:$0xf]
  %v106 = vld [vmem:[%s1 + $0x6c] sm:$0xf]
  %v107 = vld [vmem:[%s1 + $0x70] sm:$0xf]
  %v108 = vld [vmem:[%s1 + $0x74] sm:$0xf]
  %v109 = vld [vmem:[%s1 + $0x78] sm:$0xf]
  %v110 = vld [vmem:[%s1 + $0x7c] sm:$0xf]
  %v111 = vld [vmem:[%s1 + $0x80] sm:$0xf]
  %v112 = vld [vmem:[%s1 + $0x84] sm:$0xf]
  %v113 = vld [vmem:[%s1 + $0x88] sm:$0xf]
  %v114 = vld [vmem:[%s1 + $0x8c] sm:$0xf]
  %v115 = vld [vmem:[%s1 + $0x90] sm:$0xf]
  %v116 = vld [vmem:[%s1 + $0x94] sm:$0xf]
  %v117 = vld [vmem:[%s1 + $0x98] sm:$0xf]
  %v118 = vld [vmem:[%s1 + $0x9c] sm:$0xf]
  %v119 = vld [vmem:[%s1 + $0xa0] sm:$0xf]
  %v120 = vld [vmem:[%s1 + $0xa4] sm:$0xf]
  %v121 = vld [vmem:[%s1 + $0xa8] sm:$0xf]
  %v122 = vld [vmem:[%s1 + $0xac] sm:$0xf]
  %v123 = vld [vmem:[%s1 + $0xb0] sm:$0xf]
  %v124 = vld [vmem:[%s1 + $0xb4] sm:$0xf]
  %v125 = vld [vmem:[%s1 + $0xb8] sm:$0xf]
  %v126 = vld [vmem:[%s1 + $0xbc] sm:$0xf]
  %v127 = vld [vmem:[%s1 + $0xc0] sm:$0xf]
  %v128 = vld [vmem:[%s1 + $0xc4] sm:$0xf]
  %v129 = vld [vmem:[%s1 + $0xc8] sm:$0xf]
  %v130 = vld [vmem:[%s1 + $0xcc] sm:$0xf]
  %v131 = vld [vmem:[%s1 + $0xd0] sm:$0xf]
  %v132 = vld [vmem:[%s1 + $0xd4] sm:$0xf]
  %v133 = vld [vmem:[%s1 + $0xd8] sm:$0xf]
  %v134 = vld [vmem:[%s1 + $0xdc] sm:$0xf]
  %v135 = vld [vmem:[%s1 + $0xe0] sm:$0xf]
  %v136 = vld [vmem:[%s1 + $0xe4] sm:$0xf]
  %v137 = vld [vmem:[%s1 + $0xe8] sm:$0xf]
  %v138 = vld [vmem:[%s1 + $0xec] sm:$0xf]
  %v139 = vld [vmem:[%s1 + $0xf0] sm:$0xf]
  %v140 = vld [vmem:[%s1 + $0xf4] sm:$0xf]
  %v141 = vld [vmem:[%s1 + $0xf8] sm:$0xf]
  %v142 = vld [vmem:[%s1 + $0xfc] sm:$0xf]
  %v143 = vld [vmem:[%s2] sm:$0x1]
  %v145 = vlaneseq
  %v146 = vshrl.u32 %v145, 7
  %v147 = vsub.s32 0, %v146
  %v148 = vrot.slane %v143, %v147
  %v214 = vunpack.c.l.b16 %v15
  %v215 = vunpack.c.h.b16 %v15
  %v216 = vunpack.c.l.b16 %v16
  %v217 = vunpack.c.h.b16 %v16
  %v218 = vunpack.c.l.b16 %v17
  %v219 = vunpack.c.h.b16 %v17
  %v220 = vunpack.c.l.b16 %v18
  %v221 = vunpack.c.h.b16 %v18
  %v222 = vunpack.c.l.b16 %v19
  %v223 = vunpack.c.h.b16 %v19
  %v224 = vunpack.c.l.b16 %v20
  %v225 = vunpack.c.h.b16 %v20
  %v226 = vunpack.c.l.b16 %v21
  %v227 = vunpack.c.h.b16 %v21
  %v228 = vunpack.c.l.b16 %v22
  %v229 = vunpack.c.h.b16 %v22
  %v230 = vunpack.c.l.b16 %v23
  %v231 = vunpack.c.h.b16 %v23
  %v232 = vunpack.c.l.b16 %v24
  %v233 = vunpack.c.h.b16 %v24
  %v234 = vunpack.c.l.b16 %v25
  %v235 = vunpack.c.h.b16 %v25
  %v236 = vunpack.c.l.b16 %v26
  %v237 = vunpack.c.h.b16 %v26
  %v238 = vunpack.c.l.b16 %v27
  %v239 = vunpack.c.h.b16 %v27
  %v240 = vunpack.c.l.b16 %v28
  %v241 = vunpack.c.h.b16 %v28
  %v242 = vunpack.c.l.b16 %v29
  %v243 = vunpack.c.h.b16 %v29
  %v244 = vunpack.c.l.b16 %v30
  %v245 = vunpack.c.h.b16 %v30
  %v246 = vunpack.c.l.b16 %v31
  %v247 = vunpack.c.h.b16 %v31
  %v248 = vunpack.c.l.b16 %v32
  %v249 = vunpack.c.h.b16 %v32
  %v250 = vunpack.c.l.b16 %v33
  %v251 = vunpack.c.h.b16 %v33
  %v252 = vunpack.c.l.b16 %v34
  %v253 = vunpack.c.h.b16 %v34
  %v254 = vunpack.c.l.b16 %v35
  %v255 = vunpack.c.h.b16 %v35
  %v256 = vunpack.c.l.b16 %v36
  %v257 = vunpack.c.h.b16 %v36
  %v258 = vunpack.c.l.b16 %v37
  %v259 = vunpack.c.h.b16 %v37
  %v260 = vunpack.c.l.b16 %v38
  %v261 = vunpack.c.h.b16 %v38
  %v262 = vunpack.c.l.b16 %v39
  %v263 = vunpack.c.h.b16 %v39
  %v264 = vunpack.c.l.b16 %v40
  %v265 = vunpack.c.h.b16 %v40
  %v266 = vunpack.c.l.b16 %v41
  %v267 = vunpack.c.h.b16 %v41
  %v268 = vunpack.c.l.b16 %v42
  %v269 = vunpack.c.h.b16 %v42
  %v270 = vunpack.c.l.b16 %v43
  %v271 = vunpack.c.h.b16 %v43
  %v272 = vunpack.c.l.b16 %v44
  %v273 = vunpack.c.h.b16 %v44
  %v274 = vunpack.c.l.b16 %v45
  %v275 = vunpack.c.h.b16 %v45
  %v276 = vunpack.c.l.b16 %v46
  %v277 = vunpack.c.h.b16 %v46
  %v278 = vunpack.c.l.b16 %v47
  %v279 = vunpack.c.h.b16 %v47
  %v280 = vunpack.c.l.b16 %v48
  %v281 = vunpack.c.h.b16 %v48
  %v282 = vunpack.c.l.b16 %v49
  %v283 = vunpack.c.h.b16 %v49
  %v284 = vunpack.c.l.b16 %v50
  %v285 = vunpack.c.h.b16 %v50
  %v286 = vunpack.c.l.b16 %v51
  %v287 = vunpack.c.h.b16 %v51
  %v288 = vunpack.c.l.b16 %v52
  %v289 = vunpack.c.h.b16 %v52
  %v290 = vunpack.c.l.b16 %v53
  %v291 = vunpack.c.h.b16 %v53
  %v292 = vunpack.c.l.b16 %v54
  %v293 = vunpack.c.h.b16 %v54
  %v294 = vunpack.c.l.b16 %v55
  %v295 = vunpack.c.h.b16 %v55
  %v296 = vunpack.c.l.b16 %v56
  %v297 = vunpack.c.h.b16 %v56
  %v298 = vunpack.c.l.b16 %v57
  %v299 = vunpack.c.h.b16 %v57
  %v300 = vunpack.c.l.b16 %v58
  %v301 = vunpack.c.h.b16 %v58
  %v302 = vunpack.c.l.b16 %v59
  %v303 = vunpack.c.h.b16 %v59
  %v304 = vunpack.c.l.b16 %v60
  %v305 = vunpack.c.h.b16 %v60
  %v306 = vunpack.c.l.b16 %v61
  %v307 = vunpack.c.h.b16 %v61
  %v308 = vunpack.c.l.b16 %v62
  %v309 = vunpack.c.h.b16 %v62
  %v310 = vunpack.c.l.b16 %v63
  %v311 = vunpack.c.h.b16 %v63
  %v312 = vunpack.c.l.b16 %v64
  %v313 = vunpack.c.h.b16 %v64
  %v314 = vunpack.c.l.b16 %v65
  %v315 = vunpack.c.h.b16 %v65
  %v316 = vunpack.c.l.b16 %v66
  %v317 = vunpack.c.h.b16 %v66
  %v318 = vunpack.c.l.b16 %v67
  %v319 = vunpack.c.h.b16 %v67
  %v320 = vunpack.c.l.b16 %v68
  %v321 = vunpack.c.h.b16 %v68
  %v322 = vunpack.c.l.b16 %v69
  %v323 = vunpack.c.h.b16 %v69
  %v324 = vunpack.c.l.b16 %v70
  %v325 = vunpack.c.h.b16 %v70
  %v326 = vunpack.c.l.b16 %v71
  %v327 = vunpack.c.h.b16 %v71
  %v328 = vunpack.c.l.b16 %v72
  %v329 = vunpack.c.h.b16 %v72
  %v330 = vunpack.c.l.b16 %v73
  %v331 = vunpack.c.h.b16 %v73
  %v332 = vunpack.c.l.b16 %v74
  %v333 = vunpack.c.h.b16 %v74
  %v334 = vunpack.c.l.b16 %v75
  %v335 = vunpack.c.h.b16 %v75
  %v336 = vunpack.c.l.b16 %v76
  %v337 = vunpack.c.h.b16 %v76
  %v338 = vunpack.c.l.b16 %v77
  %v339 = vunpack.c.h.b16 %v77
  %v340 = vunpack.c.l.b16 %v78
  %v341 = vunpack.c.h.b16 %v78
  %v342 = vpack.c.b16 %v218, %v214
  %v343 = vpack.c.b16 %v219, %v215
  %v344 = vpack.c.b16 %v220, %v216
  %v345 = vpack.c.b16 %v221, %v217
  %v346 = vpack.c.b16 %v226, %v222
  %v347 = vpack.c.b16 %v227, %v223
  %v348 = vpack.c.b16 %v228, %v224
  %v349 = vpack.c.b16 %v229, %v225
  %v350 = vpack.c.b16 %v234, %v230
  %v351 = vpack.c.b16 %v235, %v231
  %v352 = vpack.c.b16 %v236, %v232
  %v353 = vpack.c.b16 %v237, %v233
  %v354 = vpack.c.b16 %v242, %v238
  %v355 = vpack.c.b16 %v243, %v239
  %v356 = vpack.c.b16 %v244, %v240
  %v357 = vpack.c.b16 %v245, %v241
  %v358 = vpack.c.b16 %v250, %v246
  %v359 = vpack.c.b16 %v251, %v247
  %v360 = vpack.c.b16 %v252, %v248
  %v361 = vpack.c.b16 %v253, %v249
  %v362 = vpack.c.b16 %v258, %v254
  %v363 = vpack.c.b16 %v259, %v255
  %v364 = vpack.c.b16 %v260, %v256
  %v365 = vpack.c.b16 %v261, %v257
  %v366 = vpack.c.b16 %v266, %v262
  %v367 = vpack.c.b16 %v267, %v263
  %v368 = vpack.c.b16 %v268, %v264
  %v369 = vpack.c.b16 %v269, %v265
  %v370 = vpack.c.b16 %v274, %v270
  %v371 = vpack.c.b16 %v275, %v271
  %v372 = vpack.c.b16 %v276, %v272
  %v373 = vpack.c.b16 %v277, %v273
  %v374 = vpack.c.b16 %v282, %v278
  %v375 = vpack.c.b16 %v283, %v279
  %v376 = vpack.c.b16 %v284, %v280
  %v377 = vpack.c.b16 %v285, %v281
  %v378 = vpack.c.b16 %v290, %v286
  %v379 = vpack.c.b16 %v291, %v287
  %v380 = vpack.c.b16 %v292, %v288
  %v381 = vpack.c.b16 %v293, %v289
  %v382 = vpack.c.b16 %v298, %v294
  %v383 = vpack.c.b16 %v299, %v295
  %v384 = vpack.c.b16 %v300, %v296
  %v385 = vpack.c.b16 %v301, %v297
  %v386 = vpack.c.b16 %v306, %v302
  %v387 = vpack.c.b16 %v307, %v303
  %v388 = vpack.c.b16 %v308, %v304
  %v389 = vpack.c.b16 %v309, %v305
  %v390 = vpack.c.b16 %v314, %v310
  %v391 = vpack.c.b16 %v315, %v311
  %v392 = vpack.c.b16 %v316, %v312
  %v393 = vpack.c.b16 %v317, %v313
  %v394 = vpack.c.b16 %v322, %v318
  %v395 = vpack.c.b16 %v323, %v319
  %v396 = vpack.c.b16 %v324, %v320
  %v397 = vpack.c.b16 %v325, %v321
  %v398 = vpack.c.b16 %v330, %v326
  %v399 = vpack.c.b16 %v331, %v327
  %v400 = vpack.c.b16 %v332, %v328
  %v401 = vpack.c.b16 %v333, %v329
  %v402 = vpack.c.b16 %v338, %v334
  %v403 = vpack.c.b16 %v339, %v335
  %v404 = vpack.c.b16 %v340, %v336
  %v405 = vpack.c.b16 %v341, %v337
  %v534 = vunpack.c.l.b16 %v79
  %v535 = vunpack.c.l.b16 %v80
  %v536 = vunpack.c.l.b16 %v81
  %v537 = vunpack.c.l.b16 %v82
  %v538 = vunpack.c.l.b16 %v83
  %v539 = vunpack.c.l.b16 %v84
  %v540 = vunpack.c.l.b16 %v85
  %v541 = vunpack.c.l.b16 %v86
  %v542 = vunpack.c.l.b16 %v87
  %v543 = vunpack.c.l.b16 %v88
  %v544 = vunpack.c.l.b16 %v89
  %v545 = vunpack.c.l.b16 %v90
  %v546 = vunpack.c.l.b16 %v91
  %v547 = vunpack.c.l.b16 %v92
  %v548 = vunpack.c.l.b16 %v93
  %v549 = vunpack.c.l.b16 %v94
  %v550 = vunpack.c.l.b16 %v95
  %v551 = vunpack.c.l.b16 %v96
  %v552 = vunpack.c.l.b16 %v97
  %v553 = vunpack.c.l.b16 %v98
  %v554 = vunpack.c.l.b16 %v99
  %v555 = vunpack.c.l.b16 %v100
  %v556 = vunpack.c.l.b16 %v101
  %v557 = vunpack.c.l.b16 %v102
  %v558 = vunpack.c.l.b16 %v103
  %v559 = vunpack.c.l.b16 %v104
  %v560 = vunpack.c.l.b16 %v105
  %v561 = vunpack.c.l.b16 %v106
  %v562 = vunpack.c.l.b16 %v107
  %v563 = vunpack.c.l.b16 %v108
  %v564 = vunpack.c.l.b16 %v109
  %v565 = vunpack.c.l.b16 %v110
  %v566 = vunpack.c.l.b16 %v111
  %v567 = vunpack.c.l.b16 %v112
  %v568 = vunpack.c.l.b16 %v113
  %v569 = vunpack.c.l.b16 %v114
  %v570 = vunpack.c.l.b16 %v115
  %v571 = vunpack.c.l.b16 %v116
  %v572 = vunpack.c.l.b16 %v117
  %v573 = vunpack.c.l.b16 %v118
  %v574 = vunpack.c.l.b16 %v119
  %v575 = vunpack.c.l.b16 %v120
  %v576 = vunpack.c.l.b16 %v121
  %v577 = vunpack.c.l.b16 %v122
  %v578 = vunpack.c.l.b16 %v123
  %v579 = vunpack.c.l.b16 %v124
  %v580 = vunpack.c.l.b16 %v125
  %v581 = vunpack.c.l.b16 %v126
  %v582 = vunpack.c.l.b16 %v127
  %v583 = vunpack.c.l.b16 %v128
  %v584 = vunpack.c.l.b16 %v129
  %v585 = vunpack.c.l.b16 %v130
  %v586 = vunpack.c.l.b16 %v131
  %v587 = vunpack.c.l.b16 %v132
  %v588 = vunpack.c.l.b16 %v133
  %v589 = vunpack.c.l.b16 %v134
  %v590 = vunpack.c.l.b16 %v135
  %v591 = vunpack.c.l.b16 %v136
  %v592 = vunpack.c.l.b16 %v137
  %v593 = vunpack.c.l.b16 %v138
  %v594 = vunpack.c.l.b16 %v139
  %v595 = vunpack.c.l.b16 %v140
  %v596 = vunpack.c.l.b16 %v141
  %v597 = vunpack.c.l.b16 %v142
  %v598 = vpack.c.b16 %v535, %v534
  %v599 = vpack.c.b16 %v537, %v536
  %v600 = vpack.c.b16 %v539, %v538
  %v601 = vpack.c.b16 %v541, %v540
  %v602 = vpack.c.b16 %v543, %v542
  %v603 = vpack.c.b16 %v545, %v544
  %v604 = vpack.c.b16 %v547, %v546
  %v605 = vpack.c.b16 %v549, %v548
  %v606 = vpack.c.b16 %v551, %v550
  %v607 = vpack.c.b16 %v553, %v552
  %v608 = vpack.c.b16 %v555, %v554
  %v609 = vpack.c.b16 %v557, %v556
  %v610 = vpack.c.b16 %v559, %v558
  %v611 = vpack.c.b16 %v561, %v560
  %v612 = vpack.c.b16 %v563, %v562
  %v613 = vpack.c.b16 %v565, %v564
  %v614 = vpack.c.b16 %v567, %v566
  %v615 = vpack.c.b16 %v569, %v568
  %v616 = vpack.c.b16 %v571, %v570
  %v617 = vpack.c.b16 %v573, %v572
  %v618 = vpack.c.b16 %v575, %v574
  %v619 = vpack.c.b16 %v577, %v576
  %v620 = vpack.c.b16 %v579, %v578
  %v621 = vpack.c.b16 %v581, %v580
  %v622 = vpack.c.b16 %v583, %v582
  %v623 = vpack.c.b16 %v585, %v584
  %v624 = vpack.c.b16 %v587, %v586
  %v625 = vpack.c.b16 %v589, %v588
  %v626 = vpack.c.b16 %v591, %v590
  %v627 = vpack.c.b16 %v593, %v592
  %v628 = vpack.c.b16 %v595, %v594
  %v629 = vpack.c.b16 %v597, %v596
  %662 = vmatprep.subr.bf16.mxu0 0
  %663 = vmatpush1.bf16.msra.mxu0 %v598
  %664 = vmatprep.subr.bf16.mxu0 0
  %665 = vmatpush1.bf16.msra.mxu0 %v599
  %666 = vmatprep.subr.bf16.mxu0 0
  %667 = vmatpush1.bf16.msra.mxu0 %v600
  %668 = vmatprep.subr.bf16.mxu0 0
  %669 = vmatpush1.bf16.msra.mxu0 %v601
  %670 = vmatprep.subr.bf16.mxu0 0
  %671 = vmatpush1.bf16.msra.mxu0 %v602
  %672 = vmatprep.subr.bf16.mxu0 0
  %673 = vmatpush1.bf16.msra.mxu0 %v603
  %674 = vmatprep.subr.bf16.mxu0 0
  %675 = vmatpush1.bf16.msra.mxu0 %v604
  %676 = vmatprep.subr.bf16.mxu0 0
  %677 = vmatpush1.bf16.msra.mxu0 %v605
  %678 = vmatprep.subr.bf16.mxu0 0
  %679 = vmatpush1.bf16.msra.mxu0 %v606
  %680 = vmatprep.subr.bf16.mxu0 0
  %681 = vmatpush1.bf16.msra.mxu0 %v607
  %682 = vmatprep.subr.bf16.mxu0 0
  %683 = vmatpush1.bf16.msra.mxu0 %v608
  %684 = vmatprep.subr.bf16.mxu0 0
  %685 = vmatpush1.bf16.msra.mxu0 %v609
  %686 = vmatprep.subr.bf16.mxu0 0
  %687 = vmatpush1.bf16.msra.mxu0 %v610
  %688 = vmatprep.subr.bf16.mxu0 0
  %689 = vmatpush1.bf16.msra.mxu0 %v611
  %690 = vmatprep.subr.bf16.mxu0 0
  %691 = vmatpush1.bf16.msra.mxu0 %v612
  %692 = vmatprep.subr.bf16.mxu0 0
  %693 = vmatpush1.bf16.msra.mxu0 %v613
  %694 = vmatprep.mubr.bf16.mxu0 %v343
  %695 = vmatmul.mubr.bf16.gmra.mrb[0].mxu0 %v342
  %v696 = vpop.f32.mrb[0].mxu0
  %v697 = vadd.f32 %v148, %v696
  %v698 = vpop.f32.mrb[0].mxu0
  %v699 = vpop.f32.mrb[0].mxu0
  %v700 = vadd.f32 %v148, %v699
  %v701 = vpop.f32.mrb[0].mxu0
  %702 = vmatprep.mubr.bf16.mxu0 %v347
  %703 = vmatmul.mubr.bf16.gmra.mrb[0].mxu0 %v346
  %v704 = vpop.f32.mrb[0].mxu0
  %v705 = vadd.f32 %v148, %v704
  %v706 = vpop.f32.mrb[0].mxu0
  %v707 = vpop.f32.mrb[0].mxu0
  %v708 = vadd.f32 %v148, %v707
  %v709 = vpop.f32.mrb[0].mxu0
  %710 = vmatprep.mubr.bf16.mxu0 %v351
  %711 = vmatmul.mubr.bf16.gmra.mrb[0].mxu0 %v350
  %v712 = vpop.f32.mrb[0].mxu0
  %v713 = vadd.f32 %v148, %v712
  %v714 = vpop.f32.mrb[0].mxu0
  %v715 = vpop.f32.mrb[0].mxu0
  %v716 = vadd.f32 %v148, %v715
  %v717 = vpop.f32.mrb[0].mxu0
  %718 = vmatprep.mubr.bf16.mxu0 %v355
  %719 = vmatmul.mubr.bf16.gmra.mrb[0].mxu0 %v354
  %v720 = vpop.f32.mrb[0].mxu0
  %v721 = vadd.f32 %v148, %v720
  %v722 = vpop.f32.mrb[0].mxu0
  %v723 = vpop.f32.mrb[0].mxu0
  %v724 = vadd.f32 %v148, %v723
  %v725 = vpop.f32.mrb[0].mxu0
  %726 = vmatprep.mubr.bf16.mxu0 %v359
  %727 = vmatmul.mubr.bf16.gmra.mrb[0].mxu0 %v358
  %v728 = vpop.f32.mrb[0].mxu0
  %v729 = vadd.f32 %v148, %v728
  %v730 = vpop.f32.mrb[0].mxu0
  %v731 = vpop.f32.mrb[0].mxu0
  %v732 = vadd.f32 %v148, %v731
  %v733 = vpop.f32.mrb[0].mxu0
  %734 = vmatprep.mubr.bf16.mxu0 %v363
  %735 = vmatmul.mubr.bf16.gmra.mrb[0].mxu0 %v362
  %v736 = vpop.f32.mrb[0].mxu0
  %v737 = vadd.f32 %v148, %v736
  %v738 = vpop.f32.mrb[0].mxu0
  %v739 = vpop.f32.mrb[0].mxu0
  %v740 = vadd.f32 %v148, %v739
  %v741 = vpop.f32.mrb[0].mxu0
  %742 = vmatprep.mubr.bf16.mxu0 %v367
  %743 = vmatmul.mubr.bf16.gmra.mrb[0].mxu0 %v366
  %v744 = vpop.f32.mrb[0].mxu0
  %v745 = vadd.f32 %v148, %v744
  %v746 = vpop.f32.mrb[0].mxu0
  %v747 = vpop.f32.mrb[0].mxu0
  %v748 = vadd.f32 %v148, %v747
  %v749 = vpop.f32.mrb[0].mxu0
  %750 = vmatprep.mubr.bf16.mxu0 %v371
  %751 = vmatmul.mubr.bf16.gmra.mrb[0].mxu0 %v370
  %v752 = vpop.f32.mrb[0].mxu0
  %v753 = vadd.f32 %v148, %v752
  %v754 = vpop.f32.mrb[0].mxu0
  %v755 = vpop.f32.mrb[0].mxu0
  %v756 = vadd.f32 %v148, %v755
  %v757 = vpop.f32.mrb[0].mxu0
  %758 = vmatprep.mubr.bf16.mxu0 %v375
  %759 = vmatmul.mubr.bf16.gmra.mrb[0].mxu0 %v374
  %v760 = vpop.f32.mrb[0].mxu0
  %v761 = vadd.f32 %v148, %v760
  %v762 = vpop.f32.mrb[0].mxu0
  %v763 = vpop.f32.mrb[0].mxu0
  %v764 = vadd.f32 %v148, %v763
  %v765 = vpop.f32.mrb[0].mxu0
  %766 = vmatprep.mubr.bf16.mxu0 %v379
  %767 = vmatmul.mubr.bf16.gmra.mrb[0].mxu0 %v378
  %v768 = vpop.f32.mrb[0].mxu0
  %v769 = vadd.f32 %v148, %v768
  %v770 = vpop.f32.mrb[0].mxu0
  %v771 = vpop.f32.mrb[0].mxu0
  %v772 = vadd.f32 %v148, %v771
  %v773 = vpop.f32.mrb[0].mxu0
  %774 = vmatprep.mubr.bf16.mxu0 %v383
  %775 = vmatmul.mubr.bf16.gmra.mrb[0].mxu0 %v382
  %v776 = vpop.f32.mrb[0].mxu0
  %v777 = vadd.f32 %v148, %v776
  %v778 = vpop.f32.mrb[0].mxu0
  %v779 = vpop.f32.mrb[0].mxu0
  %v780 = vadd.f32 %v148, %v779
  %v781 = vpop.f32.mrb[0].mxu0
  %782 = vmatprep.mubr.bf16.mxu0 %v387
  %783 = vmatmul.mubr.bf16.gmra.mrb[0].mxu0 %v386
  %v784 = vpop.f32.mrb[0].mxu0
  %v785 = vadd.f32 %v148, %v784
  %v786 = vpop.f32.mrb[0].mxu0
  %v787 = vpop.f32.mrb[0].mxu0
  %v788 = vadd.f32 %v148, %v787
  %v789 = vpop.f32.mrb[0].mxu0
  %790 = vmatprep.mubr.bf16.mxu0 %v391
  %791 = vmatmul.mubr.bf16.gmra.mrb[0].mxu0 %v390
  %v792 = vpop.f32.mrb[0].mxu0
  %v793 = vadd.f32 %v148, %v792
  %v794 = vpop.f32.mrb[0].mxu0
  %v795 = vpop.f32.mrb[0].mxu0
  %v796 = vadd.f32 %v148, %v795
  %v797 = vpop.f32.mrb[0].mxu0
  %798 = vmatprep.mubr.bf16.mxu0 %v395
  %799 = vmatmul.mubr.bf16.gmra.mrb[0].mxu0 %v394
  %v800 = vpop.f32.mrb[0].mxu0
  %v801 = vadd.f32 %v148, %v800
  %v802 = vpop.f32.mrb[0].mxu0
  %v803 = vpop.f32.mrb[0].mxu0
  %v804 = vadd.f32 %v148, %v803
  %v805 = vpop.f32.mrb[0].mxu0
  %806 = vmatprep.mubr.bf16.mxu0 %v399
  %807 = vmatmul.mubr.bf16.gmra.mrb[0].mxu0 %v398
  %v808 = vpop.f32.mrb[0].mxu0
  %v809 = vadd.f32 %v148, %v808
  %v810 = vpop.f32.mrb[0].mxu0
  %v811 = vpop.f32.mrb[0].mxu0
  %v812 = vadd.f32 %v148, %v811
  %v813 = vpop.f32.mrb[0].mxu0
  %814 = vmatprep.mubr.bf16.mxu0 %v403
  %815 = vmatmul.mubr.bf16.gmra.mrb[0].mxu0 %v402
  %v816 = vpop.f32.mrb[0].mxu0
  %v817 = vadd.f32 %v148, %v816
  %v818 = vpop.f32.mrb[0].mxu0
  %v819 = vpop.f32.mrb[0].mxu0
  %v820 = vadd.f32 %v148, %v819
  %v821 = vpop.f32.mrb[0].mxu0
  %822 = vdwg.mxu0
  %823 = vmatprep.subr.bf16.mxu0 0
  %824 = vmatpush1.bf16.msra.mxu0 %v614
  %825 = vmatprep.subr.bf16.mxu0 0
  %826 = vmatpush1.bf16.msra.mxu0 %v615
  %827 = vmatprep.subr.bf16.mxu0 0
  %828 = vmatpush1.bf16.msra.mxu0 %v616
  %829 = vmatprep.subr.bf16.mxu0 0
  %830 = vmatpush1.bf16.msra.mxu0 %v617
  %831 = vmatprep.subr.bf16.mxu0 0
  %832 = vmatpush1.bf16.msra.mxu0 %v618
  %833 = vmatprep.subr.bf16.mxu0 0
  %834 = vmatpush1.bf16.msra.mxu0 %v619
  %835 = vmatprep.subr.bf16.mxu0 0
  %836 = vmatpush1.bf16.msra.mxu0 %v620
  %837 = vmatprep.subr.bf16.mxu0 0
  %838 = vmatpush1.bf16.msra.mxu0 %v621
  %839 = vmatprep.subr.bf16.mxu0 0
  %840 = vmatpush1.bf16.msra.mxu0 %v622
  %841 = vmatprep.subr.bf16.mxu0 0
  %842 = vmatpush1.bf16.msra.mxu0 %v623
  %843 = vmatprep.subr.bf16.mxu0 0
  %844 = vmatpush1.bf16.msra.mxu0 %v624
  %845 = vmatprep.subr.bf16.mxu0 0
  %846 = vmatpush1.bf16.msra.mxu0 %v625
  %847 = vmatprep.subr.bf16.mxu0 0
  %848 = vmatpush1.bf16.msra.mxu0 %v626
  %849 = vmatprep.subr.bf16.mxu0 0
  %850 = vmatpush1.bf16.msra.mxu0 %v627
  %851 = vmatprep.subr.bf16.mxu0 0
  %852 = vmatpush1.bf16.msra.mxu0 %v628
  %853 = vmatprep.subr.bf16.mxu0 0
  %854 = vmatpush1.bf16.msra.mxu0 %v629
  %855 = vmatprep.mubr.bf16.mxu0 %v345
  %856 = vmatmul.mubr.bf16.gmra.mrb[0].mxu0 %v344
  %v857 = vpop.f32.mrb[0].mxu0
  %v858 = vadd.f32 %v697, %v857
  %v859 = vpop.f32.mrb[0].mxu0
  %v860 = vpop.f32.mrb[0].mxu0
  %v861 = vadd.f32 %v700, %v860
  %v862 = vpop.f32.mrb[0].mxu0
  %863 = vmatprep.mubr.bf16.mxu0 %v349
  %864 = vmatmul.mubr.bf16.gmra.mrb[0].mxu0 %v348
  %v865 = vpop.f32.mrb[0].mxu0
  %v866 = vadd.f32 %v705, %v865
  %v867 = vpop.f32.mrb[0].mxu0
  %v868 = vpop.f32.mrb[0].mxu0
  %v869 = vadd.f32 %v708, %v868
  %v870 = vpop.f32.mrb[0].mxu0
  %871 = vmatprep.mubr.bf16.mxu0 %v353
  %872 = vmatmul.mubr.bf16.gmra.mrb[0].mxu0 %v352
  %v873 = vpop.f32.mrb[0].mxu0
  %v874 = vadd.f32 %v713, %v873
  %v875 = vpop.f32.mrb[0].mxu0
  %v876 = vpop.f32.mrb[0].mxu0
  %v877 = vadd.f32 %v716, %v876
  %v878 = vpop.f32.mrb[0].mxu0
  %879 = vmatprep.mubr.bf16.mxu0 %v357
  %880 = vmatmul.mubr.bf16.gmra.mrb[0].mxu0 %v356
  %v881 = vpop.f32.mrb[0].mxu0
  %v882 = vadd.f32 %v721, %v881
  %v883 = vpop.f32.mrb[0].mxu0
  %v884 = vpop.f32.mrb[0].mxu0
  %v885 = vadd.f32 %v724, %v884
  %v886 = vpop.f32.mrb[0].mxu0
  %887 = vmatprep.mubr.bf16.mxu0 %v361
  %888 = vmatmul.mubr.bf16.gmra.mrb[0].mxu0 %v360
  %v889 = vpop.f32.mrb[0].mxu0
  %v890 = vadd.f32 %v729, %v889
  %v891 = vpop.f32.mrb[0].mxu0
  %v892 = vpop.f32.mrb[0].mxu0
  %v893 = vadd.f32 %v732, %v892
  %v894 = vpop.f32.mrb[0].mxu0
  %895 = vmatprep.mubr.bf16.mxu0 %v365
  %896 = vmatmul.mubr.bf16.gmra.mrb[0].mxu0 %v364
  %v897 = vpop.f32.mrb[0].mxu0
  %v898 = vadd.f32 %v737, %v897
  %v899 = vpop.f32.mrb[0].mxu0
  %v900 = vpop.f32.mrb[0].mxu0
  %v901 = vadd.f32 %v740, %v900
  %v902 = vpop.f32.mrb[0].mxu0
  %903 = vmatprep.mubr.bf16.mxu0 %v369
  %904 = vmatmul.mubr.bf16.gmra.mrb[0].mxu0 %v368
  %v905 = vpop.f32.mrb[0].mxu0
  %v906 = vadd.f32 %v745, %v905
  %v907 = vpop.f32.mrb[0].mxu0
  %v908 = vpop.f32.mrb[0].mxu0
  %v909 = vadd.f32 %v748, %v908
  %v910 = vpop.f32.mrb[0].mxu0
  %911 = vmatprep.mubr.bf16.mxu0 %v373
  %912 = vmatmul.mubr.bf16.gmra.mrb[0].mxu0 %v372
  %v913 = vpop.f32.mrb[0].mxu0
  %v914 = vadd.f32 %v753, %v913
  %v915 = vpop.f32.mrb[0].mxu0
  %v916 = vpop.f32.mrb[0].mxu0
  %v917 = vadd.f32 %v756, %v916
  %v918 = vpop.f32.mrb[0].mxu0
  %919 = vmatprep.mubr.bf16.mxu0 %v377
  %920 = vmatmul.mubr.bf16.gmra.mrb[0].mxu0 %v376
  %v921 = vpop.f32.mrb[0].mxu0
  %v922 = vadd.f32 %v761, %v921
  %v923 = vpop.f32.mrb[0].mxu0
  %v924 = vpop.f32.mrb[0].mxu0
  %v925 = vadd.f32 %v764, %v924
  %v926 = vpop.f32.mrb[0].mxu0
  %927 = vmatprep.mubr.bf16.mxu0 %v381
  %928 = vmatmul.mubr.bf16.gmra.mrb[0].mxu0 %v380
  %v929 = vpop.f32.mrb[0].mxu0
  %v930 = vadd.f32 %v769, %v929
  %v931 = vpop.f32.mrb[0].mxu0
  %v932 = vpop.f32.mrb[0].mxu0
  %v933 = vadd.f32 %v772, %v932
  %v934 = vpop.f32.mrb[0].mxu0
  %935 = vmatprep.mubr.bf16.mxu0 %v385
  %936 = vmatmul.mubr.bf16.gmra.mrb[0].mxu0 %v384
  %v937 = vpop.f32.mrb[0].mxu0
  %v938 = vadd.f32 %v777, %v937
  %v939 = vpop.f32.mrb[0].mxu0
  %v940 = vpop.f32.mrb[0].mxu0
  %v941 = vadd.f32 %v780, %v940
  %v942 = vpop.f32.mrb[0].mxu0
  %943 = vmatprep.mubr.bf16.mxu0 %v389
  %944 = vmatmul.mubr.bf16.gmra.mrb[0].mxu0 %v388
  %v945 = vpop.f32.mrb[0].mxu0
  %v946 = vadd.f32 %v785, %v945
  %v947 = vpop.f32.mrb[0].mxu0
  %v948 = vpop.f32.mrb[0].mxu0
  %v949 = vadd.f32 %v788, %v948
  %v950 = vpop.f32.mrb[0].mxu0
  %951 = vmatprep.mubr.bf16.mxu0 %v393
  %952 = vmatmul.mubr.bf16.gmra.mrb[0].mxu0 %v392
  %v953 = vpop.f32.mrb[0].mxu0
  %v954 = vadd.f32 %v793, %v953
  %v955 = vpop.f32.mrb[0].mxu0
  %v956 = vpop.f32.mrb[0].mxu0
  %v957 = vadd.f32 %v796, %v956
  %v958 = vpop.f32.mrb[0].mxu0
  %959 = vmatprep.mubr.bf16.mxu0 %v397
  %960 = vmatmul.mubr.bf16.gmra.mrb[0].mxu0 %v396
  %v961 = vpop.f32.mrb[0].mxu0
  %v962 = vadd.f32 %v801, %v961
  %v963 = vpop.f32.mrb[0].mxu0
  %v964 = vpop.f32.mrb[0].mxu0
  %v965 = vadd.f32 %v804, %v964
  %v966 = vpop.f32.mrb[0].mxu0
  %967 = vmatprep.mubr.bf16.mxu0 %v401
  %968 = vmatmul.mubr.bf16.gmra.mrb[0].mxu0 %v400
  %v969 = vpop.f32.mrb[0].mxu0
  %v970 = vadd.f32 %v809, %v969
  %v971 = vpop.f32.mrb[0].mxu0
  %v972 = vpop.f32.mrb[0].mxu0
  %v973 = vadd.f32 %v812, %v972
  %v974 = vpop.f32.mrb[0].mxu0
  %975 = vmatprep.mubr.bf16.mxu0 %v405
  %976 = vmatmul.mubr.bf16.gmra.mrb[0].mxu0 %v404
  %v977 = vpop.f32.mrb[0].mxu0
  %v978 = vadd.f32 %v817, %v977
  %v979 = vpop.f32.mrb[0].mxu0
  %v980 = vpop.f32.mrb[0].mxu0
  %v981 = vadd.f32 %v820, %v980
  %v982 = vpop.f32.mrb[0].mxu0
  %983 = vdwg.mxu0
  %v984 = vmax.f32 %v858, 0.0
  %v985 = vmax.f32 %v861, 0.0
  %v986 = vmax.f32 %v866, 0.0
  %v987 = vmax.f32 %v869, 0.0
  %v988 = vmax.f32 %v874, 0.0
  %v989 = vmax.f32 %v877, 0.0
  %v990 = vmax.f32 %v882, 0.0
  %v991 = vmax.f32 %v885, 0.0
  %v992 = vmax.f32 %v890, 0.0
  %v993 = vmax.f32 %v893, 0.0
  %v994 = vmax.f32 %v898, 0.0
  %v995 = vmax.f32 %v901, 0.0
  %v996 = vmax.f32 %v906, 0.0
  %v997 = vmax.f32 %v909, 0.0
  %v998 = vmax.f32 %v914, 0.0
  %v999 = vmax.f32 %v917, 0.0
  %v1000 = vmax.f32 %v922, 0.0
  %v1001 = vmax.f32 %v925, 0.0
  %v1002 = vmax.f32 %v930, 0.0
  %v1003 = vmax.f32 %v933, 0.0
  %v1004 = vmax.f32 %v938, 0.0
  %v1005 = vmax.f32 %v941, 0.0
  %v1006 = vmax.f32 %v946, 0.0
  %v1007 = vmax.f32 %v949, 0.0
  %v1008 = vmax.f32 %v954, 0.0
  %v1009 = vmax.f32 %v957, 0.0
  %v1010 = vmax.f32 %v962, 0.0
  %v1011 = vmax.f32 %v965, 0.0
  %v1012 = vmax.f32 %v970, 0.0
  %v1013 = vmax.f32 %v973, 0.0
  %v1014 = vmax.f32 %v978, 0.0
  %v1015 = vmax.f32 %v981, 0.0
  %1016 = vst [vmem:[%s3] sm:$0xff] %v984
  %1017 = vst [vmem:[%s3 + $0x8] sm:$0xff] %v985
  %1018 = vst [vmem:[%s3 + $0x10] sm:$0xff] %v986
  %1019 = vst [vmem:[%s3 + $0x18] sm:$0xff] %v987
  %1020 = vst [vmem:[%s3 + $0x20] sm:$0xff] %v988
  %1021 = vst [vmem:[%s3 + $0x28] sm:$0xff] %v989
  %1022 = vst [vmem:[%s3 + $0x30] sm:$0xff] %v990
  %1023 = vst [vmem:[%s3 + $0x38] sm:$0xff] %v991
  %1024 = vst [vmem:[%s3 + $0x40] sm:$0xff] %v992
  %1025 = vst [vmem:[%s3 + $0x48] sm:$0xff] %v993
  %1026 = vst [vmem:[%s3 + $0x50] sm:$0xff] %v994
  %1027 = vst [vmem:[%s3 + $0x58] sm:$0xff] %v995
  %1028 = vst [vmem:[%s3 + $0x60] sm:$0xff] %v996
  %1029 = vst [vmem:[%s3 + $0x68] sm:$0xff] %v997
  %1030 = vst [vmem:[%s3 + $0x70] sm:$0xff] %v998
  %1031 = vst [vmem:[%s3 + $0x78] sm:$0xff] %v999
  %1032 = vst [vmem:[%s3 + $0x80] sm:$0xff] %v1000
  %1033 = vst [vmem:[%s3 + $0x88] sm:$0xff] %v1001
  %1034 = vst [vmem:[%s3 + $0x90] sm:$0xff] %v1002
  %1035 = vst [vmem:[%s3 + $0x98] sm:$0xff] %v1003
  %1036 = vst [vmem:[%s3 + $0xa0] sm:$0xff] %v1004
  %1037 = vst [vmem:[%s3 + $0xa8] sm:$0xff] %v1005
  %1038 = vst [vmem:[%s3 + $0xb0] sm:$0xff] %v1006
  %1039 = vst [vmem:[%s3 + $0xb8] sm:$0xff] %v1007
  %1040 = vst [vmem:[%s3 + $0xc0] sm:$0xff] %v1008
  %1041 = vst [vmem:[%s3 + $0xc8] sm:$0xff] %v1009
  %1042 = vst [vmem:[%s3 + $0xd0] sm:$0xff] %v1010
  %1043 = vst [vmem:[%s3 + $0xd8] sm:$0xff] %v1011
  %1044 = vst [vmem:[%s3 + $0xe0] sm:$0xff] %v1012
  %1045 = vst [vmem:[%s3 + $0xe8] sm:$0xff] %v1013
  %1046 = vst [vmem:[%s3 + $0xf0] sm:$0xff] %v1014
  %1047 = vst [vmem:[%s3 + $0xf8] sm:$0xff] %v1015
  // Predicated region
  $region14: #{actor_critic_forward.5} parent=0 // pred_check
    _
  $region15: #{actor_critic_forward.5} parent=0 // pred_check_branch
    %1049 = sbr.rel (0) target = $region17
  $region16: #{actor_critic_forward.5} parent=0 // pred_region
    _
  $region17: #{actor_critic_forward.5} parent=0 // pred_fallthru
    _
  // Predicated region
  $region18: #{actor_critic_forward.5} parent=0 // pred_check
    _
  $region19: #{actor_critic_forward.5} parent=0 // pred_check_branch
    %1051 = sbr.rel (0) target = $region21
  $region20: #{actor_critic_forward.5} parent=0 // pred_region
    _
  $region21: #{actor_critic_forward.5} parent=0 // pred_fallthru
    _

// kernel: actor_critic_forward.6
$region0: #{actor_critic_forward.6}
  #allocation0 [shape = 'u32[]', space=smem, size = 0x4, offset = 0x4, fixed_abs, tag = 'smem constant byte address 0x4 - core index']
  #allocation1 [shape = 'u32[144,128]{1,0:T(1,128)}', space=vmem, size = 0x12000, scoped, tag = 'internal scratch']
  %s0 = inlined_call_operand.vmem [shape: bf16[176,640], index: 0, kind: input, shape index: {}]
  %s1 = inlined_call_operand.vmem [shape: bf16[640,128], index: 1, kind: input, shape index: {}]
  %s2 = inlined_call_operand.vmem [shape: f32[1,128], index: 2, kind: input, shape index: {}]
  %s3 = inlined_call_operand.vmem [shape: f32[176,128], index: 3, kind: output, shape index: {}]
  %s4 = sld [smem:[#allocation0]]
  $region22: #{actor_critic_forward.6} parent=0
    _
  %s6 = ssub.s32 1, %s4
  %s7 = scalar_select 0, %s6, %s4
  // Predicated region
  $region2: #{actor_critic_forward.6} parent=0 // pred_check
    _
  $region3: #{actor_critic_forward.6} parent=0 // pred_check_branch
    %9 = sbr.rel (0) target = $region5
  $region4: #{actor_critic_forward.6} parent=0 // pred_region
    _
  $region5: #{actor_critic_forward.6} parent=0 // pred_fallthru
    _
  // Predicated region
  $region6: #{actor_critic_forward.6} parent=0 // pred_check
    _
  $region7: #{actor_critic_forward.6} parent=0 // pred_check_branch
    %11 = sbr.rel (0) target = $region9
  $region8: #{actor_critic_forward.6} parent=0 // pred_region
    _
  $region9: #{actor_critic_forward.6} parent=0 // pred_fallthru
    _
  // Predicated region
  $region10: #{actor_critic_forward.6} parent=0 // pred_check
    _
  $region11: #{actor_critic_forward.6} parent=0 // pred_check_branch
    %13 = sbr.rel (0) target = $region13
  $region12: #{actor_critic_forward.6} parent=0 // pred_region
    _
  $region13: #{actor_critic_forward.6} parent=0 // pred_fallthru
    _
  %v15 = vld [vmem:[%s0] sm:$0xff]
  %v16 = vld [vmem:[%s0 + $0x8] sm:$0xff]
  %v17 = vld [vmem:[%s0 + $0x10] sm:$0xf]
  %v18 = vld [vmem:[%s0 + $0x14] sm:$0xff]
  %v19 = vld [vmem:[%s0 + $0x1c] sm:$0xff]
  %v20 = vld [vmem:[%s0 + $0x24] sm:$0xf]
  %v21 = vld [vmem:[%s0 + $0x28] sm:$0xff]
  %v22 = vld [vmem:[%s0 + $0x30] sm:$0xff]
  %v23 = vld [vmem:[%s0 + $0x38] sm:$0xf]
  %v24 = vld [vmem:[%s0 + $0x3c] sm:$0xff]
  %v25 = vld [vmem:[%s0 + $0x44] sm:$0xff]
  %v26 = vld [vmem:[%s0 + $0x4c] sm:$0xf]
  %v27 = vld [vmem:[%s0 + $0x50] sm:$0xff]
  %v28 = vld [vmem:[%s0 + $0x58] sm:$0xff]
  %v29 = vld [vmem:[%s0 + $0x60] sm:$0xf]
  %v30 = vld [vmem:[%s0 + $0x64] sm:$0xff]
  %v31 = vld [vmem:[%s0 + $0x6c] sm:$0xff]
  %v32 = vld [vmem:[%s0 + $0x74] sm:$0xf]
  %v33 = vld [vmem:[%s0 + $0x78] sm:$0xff]
  %v34 = vld [vmem:[%s0 + $0x80] sm:$0xff]
  %v35 = vld [vmem:[%s0 + $0x88] sm:$0xf]
  %v36 = vld [vmem:[%s0 + $0x8c] sm:$0xff]
  %v37 = vld [vmem:[%s0 + $0x94] sm:$0xff]
  %v38 = vld [vmem:[%s0 + $0x9c] sm:$0xf]
  %v39 = vld [vmem:[%s0 + $0xa0] sm:$0xff]
  %v40 = vld [vmem:[%s0 + $0xa8] sm:$0xff]
  %v41 = vld [vmem:[%s0 + $0xb0] sm:$0xf]
  %v42 = vld [vmem:[%s0 + $0xb4] sm:$0xff]
  %v43 = vld [vmem:[%s0 + $0xbc] sm:$0xff]
  %v44 = vld [vmem:[%s0 + $0xc4] sm:$0xf]
  %v45 = vld [vmem:[%s0 + $0xc8] sm:$0xff]
  %v46 = vld [vmem:[%s0 + $0xd0] sm:$0xff]
  %v47 = vld [vmem:[%s0 + $0xd8] sm:$0xf]
  %v48 = vld [vmem:[%s0 + $0xdc] sm:$0xff]
  %v49 = vld [vmem:[%s0 + $0xe4] sm:$0xff]
  %v50 = vld [vmem:[%s0 + $0xec] sm:$0xf]
  %v51 = vld [vmem:[%s0 + $0xf0] sm:$0xff]
  %v52 = vld [vmem:[%s0 + $0xf8] sm:$0xff]
  %v53 = vld [vmem:[%s0 + $0x100] sm:$0xf]
  %v54 = vld [vmem:[%s0 + $0x104] sm:$0xff]
  %v55 = vld [vmem:[%s0 + $0x10c] sm:$0xff]
  %v56 = vld [vmem:[%s0 + $0x114] sm:$0xf]
  %v57 = vld [vmem:[%s0 + $0x118] sm:$0xff]
  %v58 = vld [vmem:[%s0 + $0x120] sm:$0xff]
  %v59 = vld [vmem:[%s0 + $0x128] sm:$0xf]
  %v60 = vld [vmem:[%s0 + $0x12c] sm:$0xff]
  %v61 = vld [vmem:[%s0 + $0x134] sm:$0xff]
  %v62 = vld [vmem:[%s0 + $0x13c] sm:$0xf]
  %v63 = vld [vmem:[%s0 + $0x140] sm:$0xff]
  %v64 = vld [vmem:[%s0 + $0x148] sm:$0xff]
  %v65 = vld [vmem:[%s0 + $0x150] sm:$0xf]
  %v66 = vld [vmem:[%s0 + $0x154] sm:$0xff]
  %v67 = vld [vmem:[%s0 + $0x15c] sm:$0xff]
  %v68 = vld [vmem:[%s0 + $0x164] sm:$0xf]
  %v69 = vld [vmem:[%s0 + $0x168] sm:$0xff]
  %v70 = vld [vmem:[%s0 + $0x170] sm:$0xff]
  %v71 = vld [vmem:[%s0 + $0x178] sm:$0xf]
  %v72 = vld [vmem:[%s0 + $0x17c] sm:$0xff]
  %v73 = vld [vmem:[%s0 + $0x184] sm:$0xff]
  %v74 = vld [vmem:[%s0 + $0x18c] sm:$0xf]
  %v75 = vld [vmem:[%s0 + $0x190] sm:$0xff]
  %v76 = vld [vmem:[%s0 + $0x198] sm:$0xff]
  %v77 = vld [vmem:[%s0 + $0x1a0] sm:$0xf]
  %v78 = vld [vmem:[%s0 + $0x1a4] sm:$0xff]
  %v79 = vld [vmem:[%s0 + $0x1ac] sm:$0xff]
  %v80 = vld [vmem:[%s0 + $0x1b4] sm:$0xf]
  %v81 = vld [vmem:[%s1] sm:$0xf]
  %v82 = vld [vmem:[%s1 + $0x4] sm:$0xf]
  %v83 = vld [vmem:[%s1 + $0x8] sm:$0xf]
  %v84 = vld [vmem:[%s1 + $0xc] sm:$0xf]
  %v85 = vld [vmem:[%s1 + $0x10] sm:$0xf]
  %v86 = vld [vmem:[%s1 + $0x14] sm:$0xf]
  %v87 = vld [vmem:[%s1 + $0x18] sm:$0xf]
  %v88 = vld [vmem:[%s1 + $0x1c] sm:$0xf]
  %v89 = vld [vmem:[%s1 + $0x20] sm:$0xf]
  %v90 = vld [vmem:[%s1 + $0x24] sm:$0xf]
  %v91 = vld [vmem:[%s1 + $0x28] sm:$0xf]
  %v92 = vld [vmem:[%s1 + $0x2c] sm:$0xf]
  %v93 = vld [vmem:[%s1 + $0x30] sm:$0xf]
  %v94 = vld [vmem:[%s1 + $0x34] sm:$0xf]
  %v95 = vld [vmem:[%s1 + $0x38] sm:$0xf]
  %v96 = vld [vmem:[%s1 + $0x3c] sm:$0xf]
  %v97 = vld [vmem:[%s1 + $0x40] sm:$0xf]
  %v98 = vld [vmem:[%s1 + $0x44] sm:$0xf]
  %v99 = vld [vmem:[%s1 + $0x48] sm:$0xf]
  %v100 = vld [vmem:[%s1 + $0x4c] sm:$0xf]
  %v101 = vld [vmem:[%s1 + $0x50] sm:$0xf]
  %v102 = vld [vmem:[%s1 + $0x54] sm:$0xf]
  %v103 = vld [vmem:[%s1 + $0x58] sm:$0xf]
  %v104 = vld [vmem:[%s1 + $0x5c] sm:$0xf]
  %v105 = vld [vmem:[%s1 + $0x60] sm:$0xf]
  %v106 = vld [vmem:[%s1 + $0x64] sm:$0xf]
  %v107 = vld [vmem:[%s1 + $0x68] sm:$0xf]
  %v108 = vld [vmem:[%s1 + $0x6c] sm:$0xf]
  %v109 = vld [vmem:[%s1 + $0x70] sm:$0xf]
  %v110 = vld [vmem:[%s1 + $0x74] sm:$0xf]
  %v111 = vld [vmem:[%s1 + $0x78] sm:$0xf]
  %v112 = vld [vmem:[%s1 + $0x7c] sm:$0xf]
  %v113 = vld [vmem:[%s1 + $0x80] sm:$0xf]
  %v114 = vld [vmem:[%s1 + $0x84] sm:$0xf]
  %v115 = vld [vmem:[%s1 + $0x88] sm:$0xf]
  %v116 = vld [vmem:[%s1 + $0x8c] sm:$0xf]
  %v117 = vld [vmem:[%s1 + $0x90] sm:$0xf]
  %v118 = vld [vmem:[%s1 + $0x94] sm:$0xf]
  %v119 = vld [vmem:[%s1 + $0x98] sm:$0xf]
  %v120 = vld [vmem:[%s1 + $0x9c] sm:$0xf]
  %v121 = vld [vmem:[%s1 + $0xa0] sm:$0xf]
  %v122 = vld [vmem:[%s1 + $0xa4] sm:$0xf]
  %v123 = vld [vmem:[%s1 + $0xa8] sm:$0xf]
  %v124 = vld [vmem:[%s1 + $0xac] sm:$0xf]
  %v125 = vld [vmem:[%s1 + $0xb0] sm:$0xf]
  %v126 = vld [vmem:[%s1 + $0xb4] sm:$0xf]
  %v127 = vld [vmem:[%s1 + $0xb8] sm:$0xf]
  %v128 = vld [vmem:[%s1 + $0xbc] sm:$0xf]
  %v129 = vld [vmem:[%s1 + $0xc0] sm:$0xf]
  %v130 = vld [vmem:[%s1 + $0xc4] sm:$0xf]
  %v131 = vld [vmem:[%s1 + $0xc8] sm:$0xf]
  %v132 = vld [vmem:[%s1 + $0xcc] sm:$0xf]
  %v133 = vld [vmem:[%s1 + $0xd0] sm:$0xf]
  %v134 = vld [vmem:[%s1 + $0xd4] sm:$0xf]
  %v135 = vld [vmem:[%s1 + $0xd8] sm:$0xf]
  %v136 = vld [vmem:[%s1 + $0xdc] sm:$0xf]
  %v137 = vld [vmem:[%s1 + $0xe0] sm:$0xf]
  %v138 = vld [vmem:[%s1 + $0xe4] sm:$0xf]
  %v139 = vld [vmem:[%s1 + $0xe8] sm:$0xf]
  %v140 = vld [vmem:[%s1 + $0xec] sm:$0xf]
  %v141 = vld [vmem:[%s1 + $0xf0] sm:$0xf]
  %v142 = vld [vmem:[%s1 + $0xf4] sm:$0xf]
  %v143 = vld [vmem:[%s1 + $0xf8] sm:$0xf]
  %v144 = vld [vmem:[%s1 + $0xfc] sm:$0xf]
  %v145 = vld [vmem:[%s1 + $0x100] sm:$0xf]
  %v146 = vld [vmem:[%s1 + $0x104] sm:$0xf]
  %v147 = vld [vmem:[%s1 + $0x108] sm:$0xf]
  %v148 = vld [vmem:[%s1 + $0x10c] sm:$0xf]
  %v149 = vld [vmem:[%s1 + $0x110] sm:$0xf]
  %v150 = vld [vmem:[%s1 + $0x114] sm:$0xf]
  %v151 = vld [vmem:[%s1 + $0x118] sm:$0xf]
  %v152 = vld [vmem:[%s1 + $0x11c] sm:$0xf]
  %v153 = vld [vmem:[%s1 + $0x120] sm:$0xf]
  %v154 = vld [vmem:[%s1 + $0x124] sm:$0xf]
  %v155 = vld [vmem:[%s1 + $0x128] sm:$0xf]
  %v156 = vld [vmem:[%s1 + $0x12c] sm:$0xf]
  %v157 = vld [vmem:[%s1 + $0x130] sm:$0xf]
  %v158 = vld [vmem:[%s1 + $0x134] sm:$0xf]
  %v159 = vld [vmem:[%s1 + $0x138] sm:$0xf]
  %v160 = vld [vmem:[%s1 + $0x13c] sm:$0xf]
  %v161 = vld [vmem:[%s2] sm:$0x1]
  %v163 = vlaneseq
  %v164 = vshrl.u32 %v163, 7
  %v165 = vsub.s32 0, %v164
  %v166 = vrot.slane %v161, %v165
  %v234 = vunpack.c.l.b16 %v15
  %v235 = vunpack.c.h.b16 %v15
  %v236 = vunpack.c.l.b16 %v16
  %v237 = vunpack.c.h.b16 %v16
  %v238 = vunpack.c.l.b16 %v17
  %v239 = vunpack.c.l.b16 %v18
  %v240 = vunpack.c.h.b16 %v18
  %v241 = vunpack.c.l.b16 %v19
  %v242 = vunpack.c.h.b16 %v19
  %v243 = vunpack.c.l.b16 %v20
  %v244 = vunpack.c.l.b16 %v21
  %v245 = vunpack.c.h.b16 %v21
  %v246 = vunpack.c.l.b16 %v22
  %v247 = vunpack.c.h.b16 %v22
  %v248 = vunpack.c.l.b16 %v23
  %v249 = vunpack.c.l.b16 %v24
  %v250 = vunpack.c.h.b16 %v24
  %v251 = vunpack.c.l.b16 %v25
  %v252 = vunpack.c.h.b16 %v25
  %v253 = vunpack.c.l.b16 %v26
  %v254 = vunpack.c.l.b16 %v27
  %v255 = vunpack.c.h.b16 %v27
  %v256 = vunpack.c.l.b16 %v28
  %v257 = vunpack.c.h.b16 %v28
  %v258 = vunpack.c.l.b16 %v29
  %v259 = vunpack.c.l.b16 %v30
  %v260 = vunpack.c.h.b16 %v30
  %v261 = vunpack.c.l.b16 %v31
  %v262 = vunpack.c.h.b16 %v31
  %v263 = vunpack.c.l.b16 %v32
  %v264 = vunpack.c.l.b16 %v33
  %v265 = vunpack.c.h.b16 %v33
  %v266 = vunpack.c.l.b16 %v34
  %v267 = vunpack.c.h.b16 %v34
  %v268 = vunpack.c.l.b16 %v35
  %v269 = vunpack.c.l.b16 %v36
  %v270 = vunpack.c.h.b16 %v36
  %v271 = vunpack.c.l.b16 %v37
  %v272 = vunpack.c.h.b16 %v37
  %v273 = vunpack.c.l.b16 %v38
  %v274 = vunpack.c.l.b16 %v39
  %v275 = vunpack.c.h.b16 %v39
  %v276 = vunpack.c.l.b16 %v40
  %v277 = vunpack.c.h.b16 %v40
  %v278 = vunpack.c.l.b16 %v41
  %v279 = vunpack.c.l.b16 %v42
  %v280 = vunpack.c.h.b16 %v42
  %v281 = vunpack.c.l.b16 %v43
  %v282 = vunpack.c.h.b16 %v43
  %v283 = vunpack.c.l.b16 %v44
  %v284 = vunpack.c.l.b16 %v45
  %v285 = vunpack.c.h.b16 %v45
  %v286 = vunpack.c.l.b16 %v46
  %v287 = vunpack.c.h.b16 %v46
  %v288 = vunpack.c.l.b16 %v47
  %v289 = vunpack.c.l.b16 %v48
  %v290 = vunpack.c.h.b16 %v48
  %v291 = vunpack.c.l.b16 %v49
  %v292 = vunpack.c.h.b16 %v49
  %v293 = vunpack.c.l.b16 %v50
  %v294 = vunpack.c.l.b16 %v51
  %v295 = vunpack.c.h.b16 %v51
  %v296 = vunpack.c.l.b16 %v52
  %v297 = vunpack.c.h.b16 %v52
  %v298 = vunpack.c.l.b16 %v53
  %v299 = vunpack.c.l.b16 %v54
  %v300 = vunpack.c.h.b16 %v54
  %v301 = vunpack.c.l.b16 %v55
  %v302 = vunpack.c.h.b16 %v55
  %v303 = vunpack.c.l.b16 %v56
  %v304 = vunpack.c.l.b16 %v57
  %v305 = vunpack.c.h.b16 %v57
  %v306 = vunpack.c.l.b16 %v58
  %v307 = vunpack.c.h.b16 %v58
  %v308 = vunpack.c.l.b16 %v59
  %v309 = vunpack.c.l.b16 %v60
  %v310 = vunpack.c.h.b16 %v60
  %v311 = vunpack.c.l.b16 %v61
  %v312 = vunpack.c.h.b16 %v61
  %v313 = vunpack.c.l.b16 %v62
  %v314 = vunpack.c.l.b16 %v63
  %v315 = vunpack.c.h.b16 %v63
  %v316 = vunpack.c.l.b16 %v64
  %v317 = vunpack.c.h.b16 %v64
  %v318 = vunpack.c.l.b16 %v65
  %v319 = vunpack.c.l.b16 %v66
  %v320 = vunpack.c.h.b16 %v66
  %v321 = vunpack.c.l.b16 %v67
  %v322 = vunpack.c.h.b16 %v67
  %v323 = vunpack.c.l.b16 %v68
  %v324 = vunpack.c.l.b16 %v69
  %v325 = vunpack.c.h.b16 %v69
  %v326 = vunpack.c.l.b16 %v70
  %v327 = vunpack.c.h.b16 %v70
  %v328 = vunpack.c.l.b16 %v71
  %v329 = vunpack.c.l.b16 %v72
  %v330 = vunpack.c.h.b16 %v72
  %v331 = vunpack.c.l.b16 %v73
  %v332 = vunpack.c.h.b16 %v73
  %v333 = vunpack.c.l.b16 %v74
  %v334 = vunpack.c.l.b16 %v75
  %v335 = vunpack.c.h.b16 %v75
  %v336 = vunpack.c.l.b16 %v76
  %v337 = vunpack.c.h.b16 %v76
  %v338 = vunpack.c.l.b16 %v77
  %v339 = vunpack.c.l.b16 %v78
  %v340 = vunpack.c.h.b16 %v78
  %v341 = vunpack.c.l.b16 %v79
  %v342 = vunpack.c.h.b16 %v79
  %v343 = vunpack.c.l.b16 %v80
  %v344 = vpack.c.b16 %v239, %v234
  %v345 = vpack.c.b16 %v240, %v235
  %v346 = vpack.c.b16 %v241, %v236
  %v347 = vpack.c.b16 %v242, %v237
  %v348 = vpack.c.b16 %v243, %v238
  %v349 = vpack.c.b16 %v249, %v244
  %v350 = vpack.c.b16 %v250, %v245
  %v351 = vpack.c.b16 %v251, %v246
  %v352 = vpack.c.b16 %v252, %v247
  %v353 = vpack.c.b16 %v253, %v248
  %v354 = vpack.c.b16 %v259, %v254
  %v355 = vpack.c.b16 %v260, %v255
  %v356 = vpack.c.b16 %v261, %v256
  %v357 = vpack.c.b16 %v262, %v257
  %v358 = vpack.c.b16 %v263, %v258
  %v359 = vpack.c.b16 %v269, %v264
  %v360 = vpack.c.b16 %v270, %v265
  %v361 = vpack.c.b16 %v271, %v266
  %v362 = vpack.c.b16 %v272, %v267
  %v363 = vpack.c.b16 %v273, %v268
  %v364 = vpack.c.b16 %v279, %v274
  %v365 = vpack.c.b16 %v280, %v275
  %v366 = vpack.c.b16 %v281, %v276
  %v367 = vpack.c.b16 %v282, %v277
  %v368 = vpack.c.b16 %v283, %v278
  %v369 = vpack.c.b16 %v289, %v284
  %v370 = vpack.c.b16 %v290, %v285
  %v371 = vpack.c.b16 %v291, %v286
  %v372 = vpack.c.b16 %v292, %v287
  %v373 = vpack.c.b16 %v293, %v288
  %v374 = vpack.c.b16 %v299, %v294
  %v375 = vpack.c.b16 %v300, %v295
  %v376 = vpack.c.b16 %v301, %v296
  %v377 = vpack.c.b16 %v302, %v297
  %v378 = vpack.c.b16 %v303, %v298
  %v379 = vpack.c.b16 %v309, %v304
  %v380 = vpack.c.b16 %v310, %v305
  %v381 = vpack.c.b16 %v311, %v306
  %v382 = vpack.c.b16 %v312, %v307
  %v383 = vpack.c.b16 %v313, %v308
  %v384 = vpack.c.b16 %v319, %v314
  %v385 = vpack.c.b16 %v320, %v315
  %v386 = vpack.c.b16 %v321, %v316
  %v387 = vpack.c.b16 %v322, %v317
  %v388 = vpack.c.b16 %v323, %v318
  %v389 = vpack.c.b16 %v329, %v324
  %v390 = vpack.c.b16 %v330, %v325
  %v391 = vpack.c.b16 %v331, %v326
  %v392 = vpack.c.b16 %v332, %v327
  %v393 = vpack.c.b16 %v333, %v328
  %v394 = vpack.c.b16 %v339, %v334
  %v395 = vpack.c.b16 %v340, %v335
  %v396 = vpack.c.b16 %v341, %v336
  %v397 = vpack.c.b16 %v342, %v337
  %v398 = vpack.c.b16 %v343, %v338
  %v534 = vunpack.c.l.b16 %v81
  %v535 = vunpack.c.l.b16 %v82
  %v536 = vunpack.c.l.b16 %v83
  %v537 = vunpack.c.l.b16 %v84
  %v538 = vunpack.c.l.b16 %v85
  %v539 = vunpack.c.l.b16 %v86
  %v540 = vunpack.c.l.b16 %v87
  %v541 = vunpack.c.l.b16 %v88
  %v542 = vunpack.c.l.b16 %v89
  %v543 = vunpack.c.l.b16 %v90
  %v544 = vunpack.c.l.b16 %v91
  %v545 = vunpack.c.l.b16 %v92
  %v546 = vunpack.c.l.b16 %v93
  %v547 = vunpack.c.l.b16 %v94
  %v548 = vunpack.c.l.b16 %v95
  %v549 = vunpack.c.l.b16 %v96
  %v550 = vunpack.c.l.b16 %v97
  %v551 = vunpack.c.l.b16 %v98
  %v552 = vunpack.c.l.b16 %v99
  %v553 = vunpack.c.l.b16 %v100
  %v554 = vunpack.c.l.b16 %v101
  %v555 = vunpack.c.l.b16 %v102
  %v556 = vunpack.c.l.b16 %v103
  %v557 = vunpack.c.l.b16 %v104
  %v558 = vunpack.c.l.b16 %v105
  %v559 = vunpack.c.l.b16 %v106
  %v560 = vunpack.c.l.b16 %v107
  %v561 = vunpack.c.l.b16 %v108
  %v562 = vunpack.c.l.b16 %v109
  %v563 = vunpack.c.l.b16 %v110
  %v564 = vunpack.c.l.b16 %v111
  %v565 = vunpack.c.l.b16 %v112
  %v566 = vunpack.c.l.b16 %v113
  %v567 = vunpack.c.l.b16 %v114
  %v568 = vunpack.c.l.b16 %v115
  %v569 = vunpack.c.l.b16 %v116
  %v570 = vunpack.c.l.b16 %v117
  %v571 = vunpack.c.l.b16 %v118
  %v572 = vunpack.c.l.b16 %v119
  %v573 = vunpack.c.l.b16 %v120
  %v574 = vunpack.c.l.b16 %v121
  %v575 = vunpack.c.l.b16 %v122
  %v576 = vunpack.c.l.b16 %v123
  %v577 = vunpack.c.l.b16 %v124
  %v578 = vunpack.c.l.b16 %v125
  %v579 = vunpack.c.l.b16 %v126
  %v580 = vunpack.c.l.b16 %v127
  %v581 = vunpack.c.l.b16 %v128
  %v582 = vunpack.c.l.b16 %v129
  %v583 = vunpack.c.l.b16 %v130
  %v584 = vunpack.c.l.b16 %v131
  %v585 = vunpack.c.l.b16 %v132
  %v586 = vunpack.c.l.b16 %v133
  %v587 = vunpack.c.l.b16 %v134
  %v588 = vunpack.c.l.b16 %v135
  %v589 = vunpack.c.l.b16 %v136
  %v590 = vunpack.c.l.b16 %v137
  %v591 = vunpack.c.l.b16 %v138
  %v592 = vunpack.c.l.b16 %v139
  %v593 = vunpack.c.l.b16 %v140
  %v594 = vunpack.c.l.b16 %v141
  %v595 = vunpack.c.l.b16 %v142
  %v596 = vunpack.c.l.b16 %v143
  %v597 = vunpack.c.l.b16 %v144
  %v598 = vunpack.c.l.b16 %v145
  %v599 = vunpack.c.l.b16 %v146
  %v600 = vunpack.c.l.b16 %v147
  %v601 = vunpack.c.l.b16 %v148
  %v602 = vunpack.c.l.b16 %v149
  %v603 = vunpack.c.l.b16 %v150
  %v604 = vunpack.c.l.b16 %v151
  %v605 = vunpack.c.l.b16 %v152
  %v606 = vunpack.c.l.b16 %v153
  %v607 = vunpack.c.l.b16 %v154
  %v608 = vunpack.c.l.b16 %v155
  %v609 = vunpack.c.l.b16 %v156
  %v610 = vunpack.c.l.b16 %v157
  %v611 = vunpack.c.l.b16 %v158
  %v612 = vunpack.c.l.b16 %v159
  %v613 = vunpack.c.l.b16 %v160
  %v614 = vpack.c.b16 %v535, %v534
  %v615 = vpack.c.b16 %v537, %v536
  %v616 = vpack.c.b16 %v539, %v538
  %v617 = vpack.c.b16 %v541, %v540
  %v618 = vpack.c.b16 %v543, %v542
  %v619 = vpack.c.b16 %v545, %v544
  %v620 = vpack.c.b16 %v547, %v546
  %v621 = vpack.c.b16 %v549, %v548
  %v622 = vpack.c.b16 %v551, %v550
  %v623 = vpack.c.b16 %v553, %v552
  %v624 = vpack.c.b16 %v555, %v554
  %v625 = vpack.c.b16 %v557, %v556
  %v626 = vpack.c.b16 %v559, %v558
  %v627 = vpack.c.b16 %v561, %v560
  %v628 = vpack.c.b16 %v563, %v562
  %v629 = vpack.c.b16 %v565, %v564
  %v630 = vpack.c.b16 %v567, %v566
  %v631 = vpack.c.b16 %v569, %v568
  %v632 = vpack.c.b16 %v571, %v570
  %v633 = vpack.c.b16 %v573, %v572
  %v634 = vpack.c.b16 %v575, %v574
  %v635 = vpack.c.b16 %v577, %v576
  %v636 = vpack.c.b16 %v579, %v578
  %v637 = vpack.c.b16 %v581, %v580
  %v638 = vpack.c.b16 %v583, %v582
  %v639 = vpack.c.b16 %v585, %v584
  %v640 = vpack.c.b16 %v587, %v586
  %v641 = vpack.c.b16 %v589, %v588
  %v642 = vpack.c.b16 %v591, %v590
  %v643 = vpack.c.b16 %v593, %v592
  %v644 = vpack.c.b16 %v595, %v594
  %v645 = vpack.c.b16 %v597, %v596
  %v646 = vpack.c.b16 %v599, %v598
  %v647 = vpack.c.b16 %v601, %v600
  %v648 = vpack.c.b16 %v603, %v602
  %v649 = vpack.c.b16 %v605, %v604
  %v650 = vpack.c.b16 %v607, %v606
  %v651 = vpack.c.b16 %v609, %v608
  %v652 = vpack.c.b16 %v611, %v610
  %v653 = vpack.c.b16 %v613, %v612
  %694 = vmatprep.subr.bf16.mxu0 0
  %695 = vmatpush1.bf16.msra.mxu0 %v614
  %696 = vmatprep.subr.bf16.mxu0 0
  %697 = vmatpush1.bf16.msra.mxu0 %v615
  %698 = vmatprep.subr.bf16.mxu0 0
  %699 = vmatpush1.bf16.msra.mxu0 %v616
  %700 = vmatprep.subr.bf16.mxu0 0
  %701 = vmatpush1.bf16.msra.mxu0 %v617
  %702 = vmatprep.subr.bf16.mxu0 0
  %703 = vmatpush1.bf16.msra.mxu0 %v618
  %704 = vmatprep.subr.bf16.mxu0 0
  %705 = vmatpush1.bf16.msra.mxu0 %v619
  %706 = vmatprep.subr.bf16.mxu0 0
  %707 = vmatpush1.bf16.msra.mxu0 %v620
  %708 = vmatprep.subr.bf16.mxu0 0
  %709 = vmatpush1.bf16.msra.mxu0 %v621
  %710 = vmatprep.subr.bf16.mxu0 0
  %711 = vmatpush1.bf16.msra.mxu0 %v622
  %712 = vmatprep.subr.bf16.mxu0 0
  %713 = vmatpush1.bf16.msra.mxu0 %v623
  %714 = vmatprep.subr.bf16.mxu0 0
  %715 = vmatpush1.bf16.msra.mxu0 %v624
  %716 = vmatprep.subr.bf16.mxu0 0
  %717 = vmatpush1.bf16.msra.mxu0 %v625
  %718 = vmatprep.subr.bf16.mxu0 0
  %719 = vmatpush1.bf16.msra.mxu0 %v626
  %720 = vmatprep.subr.bf16.mxu0 0
  %721 = vmatpush1.bf16.msra.mxu0 %v627
  %722 = vmatprep.subr.bf16.mxu0 0
  %723 = vmatpush1.bf16.msra.mxu0 %v628
  %724 = vmatprep.subr.bf16.mxu0 0
  %725 = vmatpush1.bf16.msra.mxu0 %v629
  %726 = vmatprep.mubr.bf16.mxu0 %v345
  %727 = vmatmul.mubr.bf16.gmra.mrb[0].mxu0 %v344
  %v728 = vpop.f32.mrb[0].mxu0
  %v729 = vadd.f32 %v166, %v728
  %v730 = vpop.f32.mrb[0].mxu0
  %v731 = vpop.f32.mrb[0].mxu0
  %v732 = vadd.f32 %v166, %v731
  %v733 = vpop.f32.mrb[0].mxu0
  %734 = vmatprep.mubr.bf16.mxu0 %v350
  %735 = vmatmul.mubr.bf16.gmra.mrb[0].mxu0 %v349
  %v736 = vpop.f32.mrb[0].mxu0
  %v737 = vadd.f32 %v166, %v736
  %v738 = vpop.f32.mrb[0].mxu0
  %v739 = vpop.f32.mrb[0].mxu0
  %v740 = vadd.f32 %v166, %v739
  %v741 = vpop.f32.mrb[0].mxu0
  %742 = vmatprep.mubr.bf16.mxu0 %v355
  %743 = vmatmul.mubr.bf16.gmra.mrb[0].mxu0 %v354
  %v744 = vpop.f32.mrb[0].mxu0
  %v745 = vadd.f32 %v166, %v744
  %v746 = vpop.f32.mrb[0].mxu0
  %v747 = vpop.f32.mrb[0].mxu0
  %v748 = vadd.f32 %v166, %v747
  %v749 = vpop.f32.mrb[0].mxu0
  %750 = vmatprep.mubr.bf16.mxu0 %v360
  %751 = vmatmul.mubr.bf16.gmra.mrb[0].mxu0 %v359
  %v752 = vpop.f32.mrb[0].mxu0
  %v753 = vadd.f32 %v166, %v752
  %v754 = vpop.f32.mrb[0].mxu0
  %v755 = vpop.f32.mrb[0].mxu0
  %v756 = vadd.f32 %v166, %v755
  %v757 = vpop.f32.mrb[0].mxu0
  %758 = vmatprep.mubr.bf16.mxu0 %v365
  %759 = vmatmul.mubr.bf16.gmra.mrb[0].mxu0 %v364
  %v760 = vpop.f32.mrb[0].mxu0
  %v761 = vadd.f32 %v166, %v760
  %v762 = vpop.f32.mrb[0].mxu0
  %v763 = vpop.f32.mrb[0].mxu0
  %v764 = vadd.f32 %v166, %v763
  %v765 = vpop.f32.mrb[0].mxu0
  %766 = vmatprep.mubr.bf16.mxu0 %v370
  %767 = vmatmul.mubr.bf16.gmra.mrb[0].mxu0 %v369
  %v768 = vpop.f32.mrb[0].mxu0
  %v769 = vadd.f32 %v166, %v768
  %v770 = vpop.f32.mrb[0].mxu0
  %v771 = vpop.f32.mrb[0].mxu0
  %v772 = vadd.f32 %v166, %v771
  %v773 = vpop.f32.mrb[0].mxu0
  %774 = vmatprep.mubr.bf16.mxu0 %v375
  %775 = vmatmul.mubr.bf16.gmra.mrb[0].mxu0 %v374
  %v776 = vpop.f32.mrb[0].mxu0
  %v777 = vadd.f32 %v166, %v776
  %v778 = vpop.f32.mrb[0].mxu0
  %v779 = vpop.f32.mrb[0].mxu0
  %v780 = vadd.f32 %v166, %v779
  %v781 = vpop.f32.mrb[0].mxu0
  %782 = vmatprep.mubr.bf16.mxu0 %v380
  %783 = vmatmul.mubr.bf16.gmra.mrb[0].mxu0 %v379
  %v784 = vpop.f32.mrb[0].mxu0
  %v785 = vadd.f32 %v166, %v784
  %v786 = vpop.f32.mrb[0].mxu0
  %v787 = vpop.f32.mrb[0].mxu0
  %v788 = vadd.f32 %v166, %v787
  %v789 = vpop.f32.mrb[0].mxu0
  %790 = vmatprep.mubr.bf16.mxu0 %v385
  %791 = vmatmul.mubr.bf16.gmra.mrb[0].mxu0 %v384
  %v792 = vpop.f32.mrb[0].mxu0
  %v793 = vadd.f32 %v166, %v792
  %v794 = vpop.f32.mrb[0].mxu0
  %v795 = vpop.f32.mrb[0].mxu0
  %v796 = vadd.f32 %v166, %v795
  %v797 = vpop.f32.mrb[0].mxu0
  %798 = vmatprep.mubr.bf16.mxu0 %v390
  %799 = vmatmul.mubr.bf16.gmra.mrb[0].mxu0 %v389
  %v800 = vpop.f32.mrb[0].mxu0
  %v801 = vadd.f32 %v166, %v800
  %v802 = vpop.f32.mrb[0].mxu0
  %v803 = vpop.f32.mrb[0].mxu0
  %v804 = vadd.f32 %v166, %v803
  %v805 = vpop.f32.mrb[0].mxu0
  %806 = vmatprep.mubr.bf16.mxu0 %v395
  %807 = vmatmul.mubr.bf16.gmra.mrb[0].mxu0 %v394
  %v808 = vpop.f32.mrb[0].mxu0
  %v809 = vadd.f32 %v166, %v808
  %v810 = vpop.f32.mrb[0].mxu0
  %v811 = vpop.f32.mrb[0].mxu0
  %v812 = vadd.f32 %v166, %v811
  %v813 = vpop.f32.mrb[0].mxu0
  %814 = vdwg.mxu0
  %815 = vmatprep.subr.bf16.mxu0 0
  %816 = vmatpush1.bf16.msra.mxu0 %v630
  %817 = vmatprep.subr.bf16.mxu0 0
  %818 = vmatpush1.bf16.msra.mxu0 %v631
  %819 = vmatprep.subr.bf16.mxu0 0
  %820 = vmatpush1.bf16.msra.mxu0 %v632
  %821 = vmatprep.subr.bf16.mxu0 0
  %822 = vmatpush1.bf16.msra.mxu0 %v633
  %823 = vmatprep.subr.bf16.mxu0 0
  %824 = vmatpush1.bf16.msra.mxu0 %v634
  %825 = vmatprep.subr.bf16.mxu0 0
  %826 = vmatpush1.bf16.msra.mxu0 %v635
  %827 = vmatprep.subr.bf16.mxu0 0
  %828 = vmatpush1.bf16.msra.mxu0 %v636
  %829 = vmatprep.subr.bf16.mxu0 0
  %830 = vmatpush1.bf16.msra.mxu0 %v637
  %831 = vmatprep.subr.bf16.mxu0 0
  %832 = vmatpush1.bf16.msra.mxu0 %v638
  %833 = vmatprep.subr.bf16.mxu0 0
  %834 = vmatpush1.bf16.msra.mxu0 %v639
  %835 = vmatprep.subr.bf16.mxu0 0
  %836 = vmatpush1.bf16.msra.mxu0 %v640
  %837 = vmatprep.subr.bf16.mxu0 0
  %838 = vmatpush1.bf16.msra.mxu0 %v641
  %839 = vmatprep.subr.bf16.mxu0 0
  %840 = vmatpush1.bf16.msra.mxu0 %v642
  %841 = vmatprep.subr.bf16.mxu0 0
  %842 = vmatpush1.bf16.msra.mxu0 %v643
  %843 = vmatprep.subr.bf16.mxu0 0
  %844 = vmatpush1.bf16.msra.mxu0 %v644
  %845 = vmatprep.subr.bf16.mxu0 0
  %846 = vmatpush1.bf16.msra.mxu0 %v645
  %847 = vmatprep.mubr.bf16.mxu0 %v347
  %848 = vmatmul.mubr.bf16.gmra.mrb[0].mxu0 %v346
  %v849 = vpop.f32.mrb[0].mxu0
  %v850 = vadd.f32 %v729, %v849
  %v851 = vpop.f32.mrb[0].mxu0
  %v852 = vpop.f32.mrb[0].mxu0
  %v853 = vadd.f32 %v732, %v852
  %v854 = vpop.f32.mrb[0].mxu0
  %855 = vmatprep.mubr.bf16.mxu0 %v352
  %856 = vmatmul.mubr.bf16.gmra.mrb[0].mxu0 %v351
  %v857 = vpop.f32.mrb[0].mxu0
  %v858 = vadd.f32 %v737, %v857
  %v859 = vpop.f32.mrb[0].mxu0
  %v860 = vpop.f32.mrb[0].mxu0
  %v861 = vadd.f32 %v740, %v860
  %v862 = vpop.f32.mrb[0].mxu0
  %863 = vmatprep.mubr.bf16.mxu0 %v357
  %864 = vmatmul.mubr.bf16.gmra.mrb[0].mxu0 %v356
  %v865 = vpop.f32.mrb[0].mxu0
  %v866 = vadd.f32 %v745, %v865
  %v867 = vpop.f32.mrb[0].mxu0
  %v868 = vpop.f32.mrb[0].mxu0
  %v869 = vadd.f32 %v748, %v868
  %v870 = vpop.f32.mrb[0].mxu0
  %871 = vmatprep.mubr.bf16.mxu0 %v362
  %872 = vmatmul.mubr.bf16.gmra.mrb[0].mxu0 %v361
  %v873 = vpop.f32.mrb[0].mxu0
  %v874 = vadd.f32 %v753, %v873
  %v875 = vpop.f32.mrb[0].mxu0
  %v876 = vpop.f32.mrb[0].mxu0
  %v877 = vadd.f32 %v756, %v876
  %v878 = vpop.f32.mrb[0].mxu0
  %879 = vmatprep.mubr.bf16.mxu0 %v367
  %880 = vmatmul.mubr.bf16.gmra.mrb[0].mxu0 %v366
  %v881 = vpop.f32.mrb[0].mxu0
  %v882 = vadd.f32 %v761, %v881
  %v883 = vpop.f32.mrb[0].mxu0
  %v884 = vpop.f32.mrb[0].mxu0
  %v885 = vadd.f32 %v764, %v884
  %v886 = vpop.f32.mrb[0].mxu0
  %887 = vmatprep.mubr.bf16.mxu0 %v372
  %888 = vmatmul.mubr.bf16.gmra.mrb[0].mxu0 %v371
  %v889 = vpop.f32.mrb[0].mxu0
  %v890 = vadd.f32 %v769, %v889
  %v891 = vpop.f32.mrb[0].mxu0
  %v892 = vpop.f32.mrb[0].mxu0
  %v893 = vadd.f32 %v772, %v892
  %v894 = vpop.f32.mrb[0].mxu0
  %895 = vmatprep.mubr.bf16.mxu0 %v377
  %896 = vmatmul.mubr.bf16.gmra.mrb[0].mxu0 %v376
  %v897 = vpop.f32.mrb[0].mxu0
  %v898 = vadd.f32 %v777, %v897
  %v899 = vpop.f32.mrb[0].mxu0
  %v900 = vpop.f32.mrb[0].mxu0
  %v901 = vadd.f32 %v780, %v900
  %v902 = vpop.f32.mrb[0].mxu0
  %903 = vmatprep.mubr.bf16.mxu0 %v382
  %904 = vmatmul.mubr.bf16.gmra.mrb[0].mxu0 %v381
  %v905 = vpop.f32.mrb[0].mxu0
  %v906 = vadd.f32 %v785, %v905
  %v907 = vpop.f32.mrb[0].mxu0
  %v908 = vpop.f32.mrb[0].mxu0
  %v909 = vadd.f32 %v788, %v908
  %v910 = vpop.f32.mrb[0].mxu0
  %911 = vmatprep.mubr.bf16.mxu0 %v387
  %912 = vmatmul.mubr.bf16.gmra.mrb[0].mxu0 %v386
  %v913 = vpop.f32.mrb[0].mxu0
  %v914 = vadd.f32 %v793, %v913
  %v915 = vpop.f32.mrb[0].mxu0
  %v916 = vpop.f32.mrb[0].mxu0
  %v917 = vadd.f32 %v796, %v916
  %v918 = vpop.f32.mrb[0].mxu0
  %919 = vmatprep.mubr.bf16.mxu0 %v392
  %920 = vmatmul.mubr.bf16.gmra.mrb[0].mxu0 %v391
  %v921 = vpop.f32.mrb[0].mxu0
  %v922 = vadd.f32 %v801, %v921
  %v923 = vpop.f32.mrb[0].mxu0
  %v924 = vpop.f32.mrb[0].mxu0
  %v925 = vadd.f32 %v804, %v924
  %v926 = vpop.f32.mrb[0].mxu0
  %927 = vmatprep.mubr.bf16.mxu0 %v397
  %928 = vmatmul.mubr.bf16.gmra.mrb[0].mxu0 %v396
  %v929 = vpop.f32.mrb[0].mxu0
  %v930 = vadd.f32 %v809, %v929
  %v931 = vpop.f32.mrb[0].mxu0
  %v932 = vpop.f32.mrb[0].mxu0
  %v933 = vadd.f32 %v812, %v932
  %v934 = vpop.f32.mrb[0].mxu0
  %935 = vdwg.mxu0
  %936 = vmatprep.subr.bf16.mxu0 0
  %937 = vmatpush1.bf16.msra.mxu0 %v646
  %938 = vmatprep.subr.bf16.mxu0 0
  %939 = vmatpush1.bf16.msra.mxu0 %v647
  %940 = vmatprep.subr.bf16.mxu0 0
  %941 = vmatpush1.bf16.msra.mxu0 %v648
  %942 = vmatprep.subr.bf16.mxu0 0
  %943 = vmatpush1.bf16.msra.mxu0 %v649
  %944 = vmatprep.subr.bf16.mxu0 0
  %945 = vmatpush1.bf16.msra.mxu0 %v650
  %946 = vmatprep.subr.bf16.mxu0 0
  %947 = vmatpush1.bf16.msra.mxu0 %v651
  %948 = vmatprep.subr.bf16.mxu0 0
  %949 = vmatpush1.bf16.msra.mxu0 %v652
  %950 = vmatprep.subr.bf16.mxu0 0
  %951 = vmatpush1.bf16.msra.mxu0 %v653
  %952 = vmatprep.subr.bf16.mxu0 0
  %953 = vmatpush1.bf16.msra.mxu0 0
  %954 = vmatprep.subr.bf16.mxu0 0
  %955 = vmatpush1.bf16.msra.mxu0 0
  %956 = vmatprep.subr.bf16.mxu0 0
  %957 = vmatpush1.bf16.msra.mxu0 0
  %958 = vmatprep.subr.bf16.mxu0 0
  %959 = vmatpush1.bf16.msra.mxu0 0
  %960 = vmatprep.subr.bf16.mxu0 0
  %961 = vmatpush1.bf16.msra.mxu0 0
  %962 = vmatprep.subr.bf16.mxu0 0
  %963 = vmatpush1.bf16.msra.mxu0 0
  %964 = vmatprep.subr.bf16.mxu0 0
  %965 = vmatpush1.bf16.msra.mxu0 0
  %966 = vmatprep.subr.bf16.mxu0 0
  %967 = vmatpush1.bf16.msra.mxu0 0
  %968 = vmatprep.mubr.bf16.mxu0 0
  %969 = vmatmul.mubr.bf16.gmra.mrb[0].mxu0 %v348
  %v970 = vpop.f32.mrb[0].mxu0
  %v971 = vadd.f32 %v850, %v970
  %v972 = vpop.f32.mrb[0].mxu0
  %v973 = vpop.f32.mrb[0].mxu0
  %v974 = vadd.f32 %v853, %v973
  %v975 = vpop.f32.mrb[0].mxu0
  %976 = vmatprep.mubr.bf16.mxu0 0
  %977 = vmatmul.mubr.bf16.gmra.mrb[0].mxu0 %v353
  %v978 = vpop.f32.mrb[0].mxu0
  %v979 = vadd.f32 %v858, %v978
  %v980 = vpop.f32.mrb[0].mxu0
  %v981 = vpop.f32.mrb[0].mxu0
  %v982 = vadd.f32 %v861, %v981
  %v983 = vpop.f32.mrb[0].mxu0
  %984 = vmatprep.mubr.bf16.mxu0 0
  %985 = vmatmul.mubr.bf16.gmra.mrb[0].mxu0 %v358
  %v986 = vpop.f32.mrb[0].mxu0
  %v987 = vadd.f32 %v866, %v986
  %v988 = vpop.f32.mrb[0].mxu0
  %v989 = vpop.f32.mrb[0].mxu0
  %v990 = vadd.f32 %v869, %v989
  %v991 = vpop.f32.mrb[0].mxu0
  %992 = vmatprep.mubr.bf16.mxu0 0
  %993 = vmatmul.mubr.bf16.gmra.mrb[0].mxu0 %v363
  %v994 = vpop.f32.mrb[0].mxu0
  %v995 = vadd.f32 %v874, %v994
  %v996 = vpop.f32.mrb[0].mxu0
  %v997 = vpop.f32.mrb[0].mxu0
  %v998 = vadd.f32 %v877, %v997
  %v999 = vpop.f32.mrb[0].mxu0
  %1000 = vmatprep.mubr.bf16.mxu0 0
  %1001 = vmatmul.mubr.bf16.gmra.mrb[0].mxu0 %v368
  %v1002 = vpop.f32.mrb[0].mxu0
  %v1003 = vadd.f32 %v882, %v1002
  %v1004 = vpop.f32.mrb[0].mxu0
  %v1005 = vpop.f32.mrb[0].mxu0
  %v1006 = vadd.f32 %v885, %v1005
  %v1007 = vpop.f32.mrb[0].mxu0
  %1008 = vmatprep.mubr.bf16.mxu0 0
  %1009 = vmatmul.mubr.bf16.gmra.mrb[0].mxu0 %v373
  %v1010 = vpop.f32.mrb[0].mxu0
  %v1011 = vadd.f32 %v890, %v1010
  %v1012 = vpop.f32.mrb[0].mxu0
  %v1013 = vpop.f32.mrb[0].mxu0
  %v1014 = vadd.f32 %v893, %v1013
  %v1015 = vpop.f32.mrb[0].mxu0
  %1016 = vmatprep.mubr.bf16.mxu0 0
  %1017 = vmatmul.mubr.bf16.gmra.mrb[0].mxu0 %v378
  %v1018 = vpop.f32.mrb[0].mxu0
  %v1019 = vadd.f32 %v898, %v1018
  %v1020 = vpop.f32.mrb[0].mxu0
  %v1021 = vpop.f32.mrb[0].mxu0
  %v1022 = vadd.f32 %v901, %v1021
  %v1023 = vpop.f32.mrb[0].mxu0
  %1024 = vmatprep.mubr.bf16.mxu0 0
  %1025 = vmatmul.mubr.bf16.gmra.mrb[0].mxu0 %v383
  %v1026 = vpop.f32.mrb[0].mxu0
  %v1027 = vadd.f32 %v906, %v1026
  %v1028 = vpop.f32.mrb[0].mxu0
  %v1029 = vpop.f32.mrb[0].mxu0
  %v1030 = vadd.f32 %v909, %v1029
  %v1031 = vpop.f32.mrb[0].mxu0
  %1032 = vmatprep.mubr.bf16.mxu0 0
  %1033 = vmatmul.mubr.bf16.gmra.mrb[0].mxu0 %v388
  %v1034 = vpop.f32.mrb[0].mxu0
  %v1035 = vadd.f32 %v914, %v1034
  %v1036 = vpop.f32.mrb[0].mxu0
  %v1037 = vpop.f32.mrb[0].mxu0
  %v1038 = vadd.f32 %v917, %v1037
  %v1039 = vpop.f32.mrb[0].mxu0
  %1040 = vmatprep.mubr.bf16.mxu0 0
  %1041 = vmatmul.mubr.bf16.gmra.mrb[0].mxu0 %v393
  %v1042 = vpop.f32.mrb[0].mxu0
  %v1043 = vadd.f32 %v922, %v1042
  %v1044 = vpop.f32.mrb[0].mxu0
  %v1045 = vpop.f32.mrb[0].mxu0
  %v1046 = vadd.f32 %v925, %v1045
  %v1047 = vpop.f32.mrb[0].mxu0
  %1048 = vmatprep.mubr.bf16.mxu0 0
  %1049 = vmatmul.mubr.bf16.gmra.mrb[0].mxu0 %v398
  %v1050 = vpop.f32.mrb[0].mxu0
  %v1051 = vadd.f32 %v930, %v1050
  %v1052 = vpop.f32.mrb[0].mxu0
  %v1053 = vpop.f32.mrb[0].mxu0
  %v1054 = vadd.f32 %v933, %v1053
  %v1055 = vpop.f32.mrb[0].mxu0
  %1056 = vdwg.mxu0
  %v1057 = vmax.f32 %v971, 0.0
  %v1058 = vmax.f32 %v974, 0.0
  %v1059 = vmax.f32 %v979, 0.0
  %v1060 = vmax.f32 %v982, 0.0
  %v1061 = vmax.f32 %v987, 0.0
  %v1062 = vmax.f32 %v990, 0.0
  %v1063 = vmax.f32 %v995, 0.0
  %v1064 = vmax.f32 %v998, 0.0
  %v1065 = vmax.f32 %v1003, 0.0
  %v1066 = vmax.f32 %v1006, 0.0
  %v1067 = vmax.f32 %v1011, 0.0
  %v1068 = vmax.f32 %v1014, 0.0
  %v1069 = vmax.f32 %v1019, 0.0
  %v1070 = vmax.f32 %v1022, 0.0
  %v1071 = vmax.f32 %v1027, 0.0
  %v1072 = vmax.f32 %v1030, 0.0
  %v1073 = vmax.f32 %v1035, 0.0
  %v1074 = vmax.f32 %v1038, 0.0
  %v1075 = vmax.f32 %v1043, 0.0
  %v1076 = vmax.f32 %v1046, 0.0
  %v1077 = vmax.f32 %v1051, 0.0
  %v1078 = vmax.f32 %v1054, 0.0
  %1079 = vst [vmem:[%s3] sm:$0xff] %v1057
  %1080 = vst [vmem:[%s3 + $0x8] sm:$0xff] %v1058
  %1081 = vst [vmem:[%s3 + $0x10] sm:$0xff] %v1059
  %1082 = vst [vmem:[%s3 + $0x18] sm:$0xff] %v1060
  %1083 = vst [vmem:[%s3 + $0x20] sm:$0xff] %v1061
  %1084 = vst [vmem:[%s3 + $0x28] sm:$0xff] %v1062
  %1085 = vst [vmem:[%s3 + $0x30] sm:$0xff] %v1063
  %1086 = vst [vmem:[%s3 + $0x38] sm:$0xff] %v1064
  %1087 = vst [vmem:[%s3 + $0x40] sm:$0xff] %v1065
  %1088 = vst [vmem:[%s3 + $0x48] sm:$0xff] %v1066
  %1089 = vst [vmem:[%s3 + $0x50] sm:$0xff] %v1067
  %1090 = vst [vmem:[%s3 + $0x58] sm:$0xff] %v1068
  %1091 = vst [vmem:[%s3 + $0x60] sm:$0xff] %v1069
  %1092 = vst [vmem:[%s3 + $0x68] sm:$0xff] %v1070
  %1093 = vst [vmem:[%s3 + $0x70] sm:$0xff] %v1071
  %1094 = vst [vmem:[%s3 + $0x78] sm:$0xff] %v1072
  %1095 = vst [vmem:[%s3 + $0x80] sm:$0xff] %v1073
  %1096 = vst [vmem:[%s3 + $0x88] sm:$0xff] %v1074
  %1097 = vst [vmem:[%s3 + $0x90] sm:$0xff] %v1075
  %1098 = vst [vmem:[%s3 + $0x98] sm:$0xff] %v1076
  %1099 = vst [vmem:[%s3 + $0xa0] sm:$0xff] %v1077
  %1100 = vst [vmem:[%s3 + $0xa8] sm:$0xff] %v1078
  // Predicated region
  $region14: #{actor_critic_forward.6} parent=0 // pred_check
    _
  $region15: #{actor_critic_forward.6} parent=0 // pred_check_branch
    %1102 = sbr.rel (0) target = $region17
  $region16: #{actor_critic_forward.6} parent=0 // pred_region
    _
  $region17: #{actor_critic_forward.6} parent=0 // pred_fallthru
    _
  // Predicated region
  $region18: #{actor_critic_forward.6} parent=0 // pred_check
    _
  $region19: #{actor_critic_forward.6} parent=0 // pred_check_branch
    %1104 = sbr.rel (0) target = $region21
  $region20: #{actor_critic_forward.6} parent=0 // pred_region
    _
  $region21: #{actor_critic_forward.6} parent=0 // pred_fallthru
    _

// kernel: actor_critic_forward.7
$region0: #{actor_critic_forward.7}
  #allocation0 [shape = 'u32[]', space=smem, size = 0x4, offset = 0x4, fixed_abs, tag = 'smem constant byte address 0x4 - core index']
  #allocation1 [shape = 'u32[144,128]{1,0:T(1,128)}', space=vmem, size = 0x12000, scoped, tag = 'internal scratch']
  %s0 = inlined_call_operand.vmem [shape: bf16[16,5248], index: 0, kind: input, shape index: {}]
  %s1 = inlined_call_operand.vmem [shape: bf16[5248,512], index: 1, kind: input, shape index: {}]
  %s2 = inlined_call_operand.vmem [shape: f32[1,512], index: 2, kind: input, shape index: {}]
  %s3 = inlined_call_operand.vmem [shape: bf16[512,128], index: 3, kind: input, shape index: {}]
  %s4 = inlined_call_operand.vmem [shape: f32[1,128], index: 4, kind: input, shape index: {}]
  %s5 = inlined_call_operand.vmem [shape: f32[16,128], index: 5, kind: output, shape index: {}]
  %s6 = sld [smem:[#allocation0]]
  $region30: #{actor_critic_forward.7} parent=0
    _
  %s8 = ssub.s32 1, %s6
  %s9 = scalar_select 0, %s8, %s6
  // Predicated region
  $region2: #{actor_critic_forward.7} parent=0 // pred_check
    _
  $region3: #{actor_critic_forward.7} parent=0 // pred_check_branch
    %11 = sbr.rel (0) target = $region5
  $region4: #{actor_critic_forward.7} parent=0 // pred_region
    _
  $region5: #{actor_critic_forward.7} parent=0 // pred_fallthru
    _
  // Predicated region
  $region6: #{actor_critic_forward.7} parent=0 // pred_check
    _
  $region7: #{actor_critic_forward.7} parent=0 // pred_check_branch
    %13 = sbr.rel (0) target = $region9
  $region8: #{actor_critic_forward.7} parent=0 // pred_region
    _
  $region9: #{actor_critic_forward.7} parent=0 // pred_fallthru
    _
  // Predicated region
  $region10: #{actor_critic_forward.7} parent=0 // pred_check
    _
  $region11: #{actor_critic_forward.7} parent=0 // pred_check_branch
    %15 = sbr.rel (0) target = $region13
  $region12: #{actor_critic_forward.7} parent=0 // pred_region
    _
  $region13: #{actor_critic_forward.7} parent=0 // pred_fallthru
    _
  // Predicated region
  $region14: #{actor_critic_forward.7} parent=0 // pred_check
    _
  $region15: #{actor_critic_forward.7} parent=0 // pred_check_branch
    %17 = sbr.rel (0) target = $region17
  $region16: #{actor_critic_forward.7} parent=0 // pred_region
    _
  $region17: #{actor_critic_forward.7} parent=0 // pred_fallthru
    _
  // Predicated region
  $region18: #{actor_critic_forward.7} parent=0 // pred_check
    _
  $region19: #{actor_critic_forward.7} parent=0 // pred_check_branch
    %19 = sbr.rel (0) target = $region21
  $region20: #{actor_critic_forward.7} parent=0 // pred_region
    _
  $region21: #{actor_critic_forward.7} parent=0 // pred_fallthru
    _
  %v21 = vld [vmem:[%s0] sm:$0xff]
  %v22 = vld [vmem:[%s0 + $0x8] sm:$0xff]
  %v23 = vld [vmem:[%s0 + $0x10] sm:$0xff]
  %v24 = vld [vmem:[%s0 + $0x18] sm:$0xff]
  %v25 = vld [vmem:[%s0 + $0x20] sm:$0xff]
  %v26 = vld [vmem:[%s0 + $0x28] sm:$0xff]
  %v27 = vld [vmem:[%s0 + $0x30] sm:$0xff]
  %v28 = vld [vmem:[%s0 + $0x38] sm:$0xff]
  %v29 = vld [vmem:[%s0 + $0x40] sm:$0xff]
  %v30 = vld [vmem:[%s0 + $0x48] sm:$0xff]
  %v31 = vld [vmem:[%s0 + $0x50] sm:$0xff]
  %v32 = vld [vmem:[%s0 + $0x58] sm:$0xff]
  %v33 = vld [vmem:[%s0 + $0x60] sm:$0xff]
  %v34 = vld [vmem:[%s0 + $0x68] sm:$0xff]
  %v35 = vld [vmem:[%s0 + $0x70] sm:$0xff]
  %v36 = vld [vmem:[%s0 + $0x78] sm:$0xff]
  %v37 = vld [vmem:[%s0 + $0x80] sm:$0xff]
  %v38 = vld [vmem:[%s0 + $0x88] sm:$0xff]
  %v39 = vld [vmem:[%s0 + $0x90] sm:$0xff]
  %v40 = vld [vmem:[%s0 + $0x98] sm:$0xff]
  %v41 = vld [vmem:[%s0 + $0xa0] sm:$0xf]
  %v42 = vld [vmem:[%s0 + $0xa4] sm:$0xff]
  %v43 = vld [vmem:[%s0 + $0xac] sm:$0xff]
  %v44 = vld [vmem:[%s0 + $0xb4] sm:$0xff]
  %v45 = vld [vmem:[%s0 + $0xbc] sm:$0xff]
  %v46 = vld [vmem:[%s0 + $0xc4] sm:$0xff]
  %v47 = vld [vmem:[%s0 + $0xcc] sm:$0xff]
  %v48 = vld [vmem:[%s0 + $0xd4] sm:$0xff]
  %v49 = vld [vmem:[%s0 + $0xdc] sm:$0xff]
  %v50 = vld [vmem:[%s0 + $0xe4] sm:$0xff]
  %v51 = vld [vmem:[%s0 + $0xec] sm:$0xff]
  %v52 = vld [vmem:[%s0 + $0xf4] sm:$0xff]
  %v53 = vld [vmem:[%s0 + $0xfc] sm:$0xff]
  %v54 = vld [vmem:[%s0 + $0x104] sm:$0xff]
  %v55 = vld [vmem:[%s0 + $0x10c] sm:$0xff]
  %v56 = vld [vmem:[%s0 + $0x114] sm:$0xff]
  %v57 = vld [vmem:[%s0 + $0x11c] sm:$0xff]
  %v58 = vld [vmem:[%s0 + $0x124] sm:$0xff]
  %v59 = vld [vmem:[%s0 + $0x12c] sm:$0xff]
  %v60 = vld [vmem:[%s0 + $0x134] sm:$0xff]
  %v61 = vld [vmem:[%s0 + $0x13c] sm:$0xff]
  %v62 = vld [vmem:[%s0 + $0x144] sm:$0xf]
  %v63 = vld [vmem:[%s1] sm:$0xff]
  %v64 = vld [vmem:[%s1 + $0x8] sm:$0xff]
  %v65 = vld [vmem:[%s1 + $0x10] sm:$0xff]
  %v66 = vld [vmem:[%s1 + $0x18] sm:$0xff]
  %v67 = vld [vmem:[%s1 + $0x20] sm:$0xff]
  %v68 = vld [vmem:[%s1 + $0x28] sm:$0xff]
  %v69 = vld [vmem:[%s1 + $0x30] sm:$0xff]
  %v70 = vld [vmem:[%s1 + $0x38] sm:$0xff]
  %v71 = vld [vmem:[%s1 + $0x40] sm:$0xff]
  %v72 = vld [vmem:[%s1 + $0x48] sm:$0xff]
  %v73 = vld [vmem:[%s1 + $0x50] sm:$0xff]
  %v74 = vld [vmem:[%s1 + $0x58] sm:$0xff]
  %v75 = vld [vmem:[%s1 + $0x60] sm:$0xff]
  %v76 = vld [vmem:[%s1 + $0x68] sm:$0xff]
  %v77 = vld [vmem:[%s1 + $0x70] sm:$0xff]
  %v78 = vld [vmem:[%s1 + $0x78] sm:$0xff]
  %v79 = vld [vmem:[%s1 + $0x80] sm:$0xff]
  %v80 = vld [vmem:[%s1 + $0x88] sm:$0xff]
  %v81 = vld [vmem:[%s1 + $0x90] sm:$0xff]
  %v82 = vld [vmem:[%s1 + $0x98] sm:$0xff]
  %v83 = vld [vmem:[%s1 + $0xa0] sm:$0xff]
  %v84 = vld [vmem:[%s1 + $0xa8] sm:$0xff]
  %v85 = vld [vmem:[%s1 + $0xb0] sm:$0xff]
  %v86 = vld [vmem:[%s1 + $0xb8] sm:$0xff]
  %v87 = vld [vmem:[%s1 + $0xc0] sm:$0xff]
  %v88 = vld [vmem:[%s1 + $0xc8] sm:$0xff]
  %v89 = vld [vmem:[%s1 + $0xd0] sm:$0xff]
  %v90 = vld [vmem:[%s1 + $0xd8] sm:$0xff]
  %v91 = vld [vmem:[%s1 + $0xe0] sm:$0xff]
  %v92 = vld [vmem:[%s1 + $0xe8] sm:$0xff]
  %v93 = vld [vmem:[%s1 + $0xf0] sm:$0xff]
  %v94 = vld [vmem:[%s1 + $0xf8] sm:$0xff]
  %v95 = vld [vmem:[%s1 + $0x100] sm:$0xff]
  %v96 = vld [vmem:[%s1 + $0x108] sm:$0xff]
  %v97 = vld [vmem:[%s1 + $0x110] sm:$0xff]
  %v98 = vld [vmem:[%s1 + $0x118] sm:$0xff]
  %v99 = vld [vmem:[%s1 + $0x120] sm:$0xff]
  %v100 = vld [vmem:[%s1 + $0x128] sm:$0xff]
  %v101 = vld [vmem:[%s1 + $0x130] sm:$0xff]
  %v102 = vld [vmem:[%s1 + $0x138] sm:$0xff]
  %v103 = vld [vmem:[%s1 + $0x140] sm:$0xff]
  %v104 = vld [vmem:[%s1 + $0x148] sm:$0xff]
  %v105 = vld [vmem:[%s1 + $0x150] sm:$0xff]
  %v106 = vld [vmem:[%s1 + $0x158] sm:$0xff]
  %v107 = vld [vmem:[%s1 + $0x160] sm:$0xff]
  %v108 = vld [vmem:[%s1 + $0x168] sm:$0xff]
  %v109 = vld [vmem:[%s1 + $0x170] sm:$0xff]
  %v110 = vld [vmem:[%s1 + $0x178] sm:$0xff]
  %v111 = vld [vmem:[%s1 + $0x180] sm:$0xff]
  %v112 = vld [vmem:[%s1 + $0x188] sm:$0xff]
  %v113 = vld [vmem:[%s1 + $0x190] sm:$0xff]
  %v114 = vld [vmem:[%s1 + $0x198] sm:$0xff]
  %v115 = vld [vmem:[%s1 + $0x1a0] sm:$0xff]
  %v116 = vld [vmem:[%s1 + $0x1a8] sm:$0xff]
  %v117 = vld [vmem:[%s1 + $0x1b0] sm:$0xff]
  %v118 = vld [vmem:[%s1 + $0x1b8] sm:$0xff]
  %v119 = vld [vmem:[%s1 + $0x1c0] sm:$0xff]
  %v120 = vld [vmem:[%s1 + $0x1c8] sm:$0xff]
  %v121 = vld [vmem:[%s1 + $0x1d0] sm:$0xff]
  %v122 = vld [vmem:[%s1 + $0x1d8] sm:$0xff]
  %v123 = vld [vmem:[%s1 + $0x1e0] sm:$0xff]
  %v124 = vld [vmem:[%s1 + $0x1e8] sm:$0xff]
  %v125 = vld [vmem:[%s1 + $0x1f0] sm:$0xff]
  %v126 = vld [vmem:[%s1 + $0x1f8] sm:$0xff]
  %v127 = vld [vmem:[%s1 + $0x200] sm:$0xff]
  %v128 = vld [vmem:[%s1 + $0x208] sm:$0xff]
  %v129 = vld [vmem:[%s1 + $0x210] sm:$0xff]
  %v130 = vld [vmem:[%s1 + $0x218] sm:$0xff]
  %v131 = vld [vmem:[%s1 + $0x220] sm:$0xff]
  %v132 = vld [vmem:[%s1 + $0x228] sm:$0xff]
  %v133 = vld [vmem:[%s1 + $0x230] sm:$0xff]
  %v134 = vld [vmem:[%s1 + $0x238] sm:$0xff]
  %v135 = vld [vmem:[%s1 + $0x240] sm:$0xff]
  %v136 = vld [vmem:[%s1 + $0x248] sm:$0xff]
  %v137 = vld [vmem:[%s1 + $0x250] sm:$0xff]
  %v138 = vld [vmem:[%s1 + $0x258] sm:$0xff]
  %v139 = vld [vmem:[%s1 + $0x260] sm:$0xff]
  %v140 = vld [vmem:[%s1 + $0x268] sm:$0xff]
  %v141 = vld [vmem:[%s1 + $0x270] sm:$0xff]
  %v142 = vld [vmem:[%s1 + $0x278] sm:$0xff]
  %v143 = vld [vmem:[%s1 + $0x280] sm:$0xff]
  %v144 = vld [vmem:[%s1 + $0x288] sm:$0xff]
  %v145 = vld [vmem:[%s1 + $0x290] sm:$0xff]
  %v146 = vld [vmem:[%s1 + $0x298] sm:$0xff]
  %v147 = vld [vmem:[%s1 + $0x2a0] sm:$0xff]
  %v148 = vld [vmem:[%s1 + $0x2a8] sm:$0xff]
  %v149 = vld [vmem:[%s1 + $0x2b0] sm:$0xff]
  %v150 = vld [vmem:[%s1 + $0x2b8] sm:$0xff]
  %v151 = vld [vmem:[%s1 + $0x2c0] sm:$0xff]
  %v152 = vld [vmem:[%s1 + $0x2c8] sm:$0xff]
  %v153 = vld [vmem:[%s1 + $0x2d0] sm:$0xff]
  %v154 = vld [vmem:[%s1 + $0x2d8] sm:$0xff]
  %v155 = vld [vmem:[%s1 + $0x2e0] sm:$0xff]
  %v156 = vld [vmem:[%s1 + $0x2e8] sm:$0xff]
  %v157 = vld [vmem:[%s1 + $0x2f0] sm:$0xff]
  %v158 = vld [vmem:[%s1 + $0x2f8] sm:$0xff]
  %v159 = vld [vmem:[%s1 + $0x300] sm:$0xff]
  %v160 = vld [vmem:[%s1 + $0x308] sm:$0xff]
  %v161 = vld [vmem:[%s1 + $0x310] sm:$0xff]
  %v162 = vld [vmem:[%s1 + $0x318] sm:$0xff]
  %v163 = vld [vmem:[%s1 + $0x320] sm:$0xff]
  %v164 = vld [vmem:[%s1 + $0x328] sm:$0xff]
  %v165 = vld [vmem:[%s1 + $0x330] sm:$0xff]
  %v166 = vld [vmem:[%s1 + $0x338] sm:$0xff]
  %v167 = vld [vmem:[%s1 + $0x340] sm:$0xff]
  %v168 = vld [vmem:[%s1 + $0x348] sm:$0xff]
  %v169 = vld [vmem:[%s1 + $0x350] sm:$0xff]
  %v170 = vld [vmem:[%s1 + $0x358] sm:$0xff]
  %v171 = vld [vmem:[%s1 + $0x360] sm:$0xff]
  %v172 = vld [vmem:[%s1 + $0x368] sm:$0xff]
  %v173 = vld [vmem:[%s1 + $0x370] sm:$0xff]
  %v174 = vld [vmem:[%s1 + $0x378] sm:$0xff]
  %v175 = vld [vmem:[%s1 + $0x380] sm:$0xff]
  %v176 = vld [vmem:[%s1 + $0x388] sm:$0xff]
  %v177 = vld [vmem:[%s1 + $0x390] sm:$0xff]
  %v178 = vld [vmem:[%s1 + $0x398] sm:$0xff]
  %v179 = vld [vmem:[%s1 + $0x3a0] sm:$0xff]
  %v180 = vld [vmem:[%s1 + $0x3a8] sm:$0xff]
  %v181 = vld [vmem:[%s1 + $0x3b0] sm:$0xff]
  %v182 = vld [vmem:[%s1 + $0x3b8] sm:$0xff]
  %v183 = vld [vmem:[%s1 + $0x3c0] sm:$0xff]
  %v184 = vld [vmem:[%s1 + $0x3c8] sm:$0xff]
  %v185 = vld [vmem:[%s1 + $0x3d0] sm:$0xff]
  %v186 = vld [vmem:[%s1 + $0x3d8] sm:$0xff]
  %v187 = vld [vmem:[%s1 + $0x3e0] sm:$0xff]
  %v188 = vld [vmem:[%s1 + $0x3e8] sm:$0xff]
  %v189 = vld [vmem:[%s1 + $0x3f0] sm:$0xff]
  %v190 = vld [vmem:[%s1 + $0x3f8] sm:$0xff]
  %v191 = vld [vmem:[%s1 + $0x400] sm:$0xff]
  %v192 = vld [vmem:[%s1 + $0x408] sm:$0xff]
  %v193 = vld [vmem:[%s1 + $0x410] sm:$0xff]
  %v194 = vld [vmem:[%s1 + $0x418] sm:$0xff]
  %v195 = vld [vmem:[%s1 + $0x420] sm:$0xff]
  %v196 = vld [vmem:[%s1 + $0x428] sm:$0xff]
  %v197 = vld [vmem:[%s1 + $0x430] sm:$0xff]
  %v198 = vld [vmem:[%s1 + $0x438] sm:$0xff]
  %v199 = vld [vmem:[%s1 + $0x440] sm:$0xff]
  %v200 = vld [vmem:[%s1 + $0x448] sm:$0xff]
  %v201 = vld [vmem:[%s1 + $0x450] sm:$0xff]
  %v202 = vld [vmem:[%s1 + $0x458] sm:$0xff]
  %v203 = vld [vmem:[%s1 + $0x460] sm:$0xff]
  %v204 = vld [vmem:[%s1 + $0x468] sm:$0xff]
  %v205 = vld [vmem:[%s1 + $0x470] sm:$0xff]
  %v206 = vld [vmem:[%s1 + $0x478] sm:$0xff]
  %v207 = vld [vmem:[%s1 + $0x480] sm:$0xff]
  %v208 = vld [vmem:[%s1 + $0x488] sm:$0xff]
  %v209 = vld [vmem:[%s1 + $0x490] sm:$0xff]
  %v210 = vld [vmem:[%s1 + $0x498] sm:$0xff]
  %v211 = vld [vmem:[%s1 + $0x4a0] sm:$0xff]
  %v212 = vld [vmem:[%s1 + $0x4a8] sm:$0xff]
  %v213 = vld [vmem:[%s1 + $0x4b0] sm:$0xff]
  %v214 = vld [vmem:[%s1 + $0x4b8] sm:$0xff]
  %v215 = vld [vmem:[%s1 + $0x4c0] sm:$0xff]
  %v216 = vld [vmem:[%s1 + $0x4c8] sm:$0xff]
  %v217 = vld [vmem:[%s1 + $0x4d0] sm:$0xff]
  %v218 = vld [vmem:[%s1 + $0x4d8] sm:$0xff]
  %v219 = vld [vmem:[%s1 + $0x4e0] sm:$0xff]
  %v220 = vld [vmem:[%s1 + $0x4e8] sm:$0xff]
  %v221 = vld [vmem:[%s1 + $0x4f0] sm:$0xff]
  %v222 = vld [vmem:[%s1 + $0x4f8] sm:$0xff]
  %v223 = vld [vmem:[%s1 + $0x500] sm:$0xff]
  %v224 = vld [vmem:[%s1 + $0x508] sm:$0xff]
  %v225 = vld [vmem:[%s1 + $0x510] sm:$0xff]
  %v226 = vld [vmem:[%s1 + $0x518] sm:$0xff]
  %v227 = vld [vmem:[%s1 + $0x520] sm:$0xff]
  %v228 = vld [vmem:[%s1 + $0x528] sm:$0xff]
  %v229 = vld [vmem:[%s1 + $0x530] sm:$0xff]
  %v230 = vld [vmem:[%s1 + $0x538] sm:$0xff]
  %v231 = vld [vmem:[%s1 + $0x540] sm:$0xff]
  %v232 = vld [vmem:[%s1 + $0x548] sm:$0xff]
  %v233 = vld [vmem:[%s1 + $0x550] sm:$0xff]
  %v234 = vld [vmem:[%s1 + $0x558] sm:$0xff]
  %v235 = vld [vmem:[%s1 + $0x560] sm:$0xff]
  %v236 = vld [vmem:[%s1 + $0x568] sm:$0xff]
  %v237 = vld [vmem:[%s1 + $0x570] sm:$0xff]
  %v238 = vld [vmem:[%s1 + $0x578] sm:$0xff]
  %v239 = vld [vmem:[%s1 + $0x580] sm:$0xff]
  %v240 = vld [vmem:[%s1 + $0x588] sm:$0xff]
  %v241 = vld [vmem:[%s1 + $0x590] sm:$0xff]
  %v242 = vld [vmem:[%s1 + $0x598] sm:$0xff]
  %v243 = vld [vmem:[%s1 + $0x5a0] sm:$0xff]
  %v244 = vld [vmem:[%s1 + $0x5a8] sm:$0xff]
  %v245 = vld [vmem:[%s1 + $0x5b0] sm:$0xff]
  %v246 = vld [vmem:[%s1 + $0x5b8] sm:$0xff]
  %v247 = vld [vmem:[%s1 + $0x5c0] sm:$0xff]
  %v248 = vld [vmem:[%s1 + $0x5c8] sm:$0xff]
  %v249 = vld [vmem:[%s1 + $0x5d0] sm:$0xff]
  %v250 = vld [vmem:[%s1 + $0x5d8] sm:$0xff]
  %v251 = vld [vmem:[%s1 + $0x5e0] sm:$0xff]
  %v252 = vld [vmem:[%s1 + $0x5e8] sm:$0xff]
  %v253 = vld [vmem:[%s1 + $0x5f0] sm:$0xff]
  %v254 = vld [vmem:[%s1 + $0x5f8] sm:$0xff]
  %v255 = vld [vmem:[%s1 + $0x600] sm:$0xff]
  %v256 = vld [vmem:[%s1 + $0x608] sm:$0xff]
  %v257 = vld [vmem:[%s1 + $0x610] sm:$0xff]
  %v258 = vld [vmem:[%s1 + $0x618] sm:$0xff]
  %v259 = vld [vmem:[%s1 + $0x620] sm:$0xff]
  %v260 = vld [vmem:[%s1 + $0x628] sm:$0xff]
  %v261 = vld [vmem:[%s1 + $0x630] sm:$0xff]
  %v262 = vld [vmem:[%s1 + $0x638] sm:$0xff]
  %v263 = vld [vmem:[%s1 + $0x640] sm:$0xff]
  %v264 = vld [vmem:[%s1 + $0x648] sm:$0xff]
  %v265 = vld [vmem:[%s1 + $0x650] sm:$0xff]
  %v266 = vld [vmem:[%s1 + $0x658] sm:$0xff]
  %v267 = vld [vmem:[%s1 + $0x660] sm:$0xff]
  %v268 = vld [vmem:[%s1 + $0x668] sm:$0xff]
  %v269 = vld [vmem:[%s1 + $0x670] sm:$0xff]
  %v270 = vld [vmem:[%s1 + $0x678] sm:$0xff]
  %v271 = vld [vmem:[%s1 + $0x680] sm:$0xff]
  %v272 = vld [vmem:[%s1 + $0x688] sm:$0xff]
  %v273 = vld [vmem:[%s1 + $0x690] sm:$0xff]
  %v274 = vld [vmem:[%s1 + $0x698] sm:$0xff]
  %v275 = vld [vmem:[%s1 + $0x6a0] sm:$0xff]
  %v276 = vld [vmem:[%s1 + $0x6a8] sm:$0xff]
  %v277 = vld [vmem:[%s1 + $0x6b0] sm:$0xff]
  %v278 = vld [vmem:[%s1 + $0x6b8] sm:$0xff]
  %v279 = vld [vmem:[%s1 + $0x6c0] sm:$0xff]
  %v280 = vld [vmem:[%s1 + $0x6c8] sm:$0xff]
  %v281 = vld [vmem:[%s1 + $0x6d0] sm:$0xff]
  %v282 = vld [vmem:[%s1 + $0x6d8] sm:$0xff]
  %v283 = vld [vmem:[%s1 + $0x6e0] sm:$0xff]
  %v284 = vld [vmem:[%s1 + $0x6e8] sm:$0xff]
  %v285 = vld [vmem:[%s1 + $0x6f0] sm:$0xff]
  %v286 = vld [vmem:[%s1 + $0x6f8] sm:$0xff]
  %v287 = vld [vmem:[%s1 + $0x700] sm:$0xff]
  %v288 = vld [vmem:[%s1 + $0x708] sm:$0xff]
  %v289 = vld [vmem:[%s1 + $0x710] sm:$0xff]
  %v290 = vld [vmem:[%s1 + $0x718] sm:$0xff]
  %v291 = vld [vmem:[%s1 + $0x720] sm:$0xff]
  %v292 = vld [vmem:[%s1 + $0x728] sm:$0xff]
  %v293 = vld [vmem:[%s1 + $0x730] sm:$0xff]
  %v294 = vld [vmem:[%s1 + $0x738] sm:$0xff]
  %v295 = vld [vmem:[%s1 + $0x740] sm:$0xff]
  %v296 = vld [vmem:[%s1 + $0x748] sm:$0xff]
  %v297 = vld [vmem:[%s1 + $0x750] sm:$0xff]
  %v298 = vld [vmem:[%s1 + $0x758] sm:$0xff]
  %v299 = vld [vmem:[%s1 + $0x760] sm:$0xff]
  %v300 = vld [vmem:[%s1 + $0x768] sm:$0xff]
  %v301 = vld [vmem:[%s1 + $0x770] sm:$0xff]
  %v302 = vld [vmem:[%s1 + $0x778] sm:$0xff]
  %v303 = vld [vmem:[%s1 + $0x780] sm:$0xff]
  %v304 = vld [vmem:[%s1 + $0x788] sm:$0xff]
  %v305 = vld [vmem:[%s1 + $0x790] sm:$0xff]
  %v306 = vld [vmem:[%s1 + $0x798] sm:$0xff]
  %v307 = vld [vmem:[%s1 + $0x7a0] sm:$0xff]
  %v308 = vld [vmem:[%s1 + $0x7a8] sm:$0xff]
  %v309 = vld [vmem:[%s1 + $0x7b0] sm:$0xff]
  %v310 = vld [vmem:[%s1 + $0x7b8] sm:$0xff]
  %v311 = vld [vmem:[%s1 + $0x7c0] sm:$0xff]
  %v312 = vld [vmem:[%s1 + $0x7c8] sm:$0xff]
  %v313 = vld [vmem:[%s1 + $0x7d0] sm:$0xff]
  %v314 = vld [vmem:[%s1 + $0x7d8] sm:$0xff]
  %v315 = vld [vmem:[%s1 + $0x7e0] sm:$0xff]
  %v316 = vld [vmem:[%s1 + $0x7e8] sm:$0xff]
  %v317 = vld [vmem:[%s1 + $0x7f0] sm:$0xff]
  %v318 = vld [vmem:[%s1 + $0x7f8] sm:$0xff]
  %v319 = vld [vmem:[%s1 + $0x800] sm:$0xff]
  %v320 = vld [vmem:[%s1 + $0x808] sm:$0xff]
  %v321 = vld [vmem:[%s1 + $0x810] sm:$0xff]
  %v322 = vld [vmem:[%s1 + $0x818] sm:$0xff]
  %v323 = vld [vmem:[%s1 + $0x820] sm:$0xff]
  %v324 = vld [vmem:[%s1 + $0x828] sm:$0xff]
  %v325 = vld [vmem:[%s1 + $0x830] sm:$0xff]
  %v326 = vld [vmem:[%s1 + $0x838] sm:$0xff]
  %v327 = vld [vmem:[%s1 + $0x840] sm:$0xff]
  %v328 = vld [vmem:[%s1 + $0x848] sm:$0xff]
  %v329 = vld [vmem:[%s1 + $0x850] sm:$0xff]
  %v330 = vld [vmem:[%s1 + $0x858] sm:$0xff]
  %v331 = vld [vmem:[%s1 + $0x860] sm:$0xff]
  %v332 = vld [vmem:[%s1 + $0x868] sm:$0xff]
  %v333 = vld [vmem:[%s1 + $0x870] sm:$0xff]
  %v334 = vld [vmem:[%s1 + $0x878] sm:$0xff]
  %v335 = vld [vmem:[%s1 + $0x880] sm:$0xff]
  %v336 = vld [vmem:[%s1 + $0x888] sm:$0xff]
  %v337 = vld [vmem:[%s1 + $0x890] sm:$0xff]
  %v338 = vld [vmem:[%s1 + $0x898] sm:$0xff]
  %v339 = vld [vmem:[%s1 + $0x8a0] sm:$0xff]
  %v340 = vld [vmem:[%s1 + $0x8a8] sm:$0xff]
  %v341 = vld [vmem:[%s1 + $0x8b0] sm:$0xff]
  %v342 = vld [vmem:[%s1 + $0x8b8] sm:$0xff]
  %v343 = vld [vmem:[%s1 + $0x8c0] sm:$0xff]
  %v344 = vld [vmem:[%s1 + $0x8c8] sm:$0xff]
  %v345 = vld [vmem:[%s1 + $0x8d0] sm:$0xff]
  %v346 = vld [vmem:[%s1 + $0x8d8] sm:$0xff]
  %v347 = vld [vmem:[%s1 + $0x8e0] sm:$0xff]
  %v348 = vld [vmem:[%s1 + $0x8e8] sm:$0xff]
  %v349 = vld [vmem:[%s1 + $0x8f0] sm:$0xff]
  %v350 = vld [vmem:[%s1 + $0x8f8] sm:$0xff]
  %v351 = vld [vmem:[%s1 + $0x900] sm:$0xff]
  %v352 = vld [vmem:[%s1 + $0x908] sm:$0xff]
  %v353 = vld [vmem:[%s1 + $0x910] sm:$0xff]
  %v354 = vld [vmem:[%s1 + $0x918] sm:$0xff]
  %v355 = vld [vmem:[%s1 + $0x920] sm:$0xff]
  %v356 = vld [vmem:[%s1 + $0x928] sm:$0xff]
  %v357 = vld [vmem:[%s1 + $0x930] sm:$0xff]
  %v358 = vld [vmem:[%s1 + $0x938] sm:$0xff]
  %v359 = vld [vmem:[%s1 + $0x940] sm:$0xff]
  %v360 = vld [vmem:[%s1 + $0x948] sm:$0xff]
  %v361 = vld [vmem:[%s1 + $0x950] sm:$0xff]
  %v362 = vld [vmem:[%s1 + $0x958] sm:$0xff]
  %v363 = vld [vmem:[%s1 + $0x960] sm:$0xff]
  %v364 = vld [vmem:[%s1 + $0x968] sm:$0xff]
  %v365 = vld [vmem:[%s1 + $0x970] sm:$0xff]
  %v366 = vld [vmem:[%s1 + $0x978] sm:$0xff]
  %v367 = vld [vmem:[%s1 + $0x980] sm:$0xff]
  %v368 = vld [vmem:[%s1 + $0x988] sm:$0xff]
  %v369 = vld [vmem:[%s1 + $0x990] sm:$0xff]
  %v370 = vld [vmem:[%s1 + $0x998] sm:$0xff]
  %v371 = vld [vmem:[%s1 + $0x9a0] sm:$0xff]
  %v372 = vld [vmem:[%s1 + $0x9a8] sm:$0xff]
  %v373 = vld [vmem:[%s1 + $0x9b0] sm:$0xff]
  %v374 = vld [vmem:[%s1 + $0x9b8] sm:$0xff]
  %v375 = vld [vmem:[%s1 + $0x9c0] sm:$0xff]
  %v376 = vld [vmem:[%s1 + $0x9c8] sm:$0xff]
  %v377 = vld [vmem:[%s1 + $0x9d0] sm:$0xff]
  %v378 = vld [vmem:[%s1 + $0x9d8] sm:$0xff]
  %v379 = vld [vmem:[%s1 + $0x9e0] sm:$0xff]
  %v380 = vld [vmem:[%s1 + $0x9e8] sm:$0xff]
  %v381 = vld [vmem:[%s1 + $0x9f0] sm:$0xff]
  %v382 = vld [vmem:[%s1 + $0x9f8] sm:$0xff]
  %v383 = vld [vmem:[%s1 + $0xa00] sm:$0xff]
  %v384 = vld [vmem:[%s1 + $0xa08] sm:$0xff]
  %v385 = vld [vmem:[%s1 + $0xa10] sm:$0xff]
  %v386 = vld [vmem:[%s1 + $0xa18] sm:$0xff]
  %v387 = vld [vmem:[%s1 + $0xa20] sm:$0xff]
  %v388 = vld [vmem:[%s1 + $0xa28] sm:$0xff]
  %v389 = vld [vmem:[%s1 + $0xa30] sm:$0xff]
  %v390 = vld [vmem:[%s1 + $0xa38] sm:$0xff]
  %v391 = vld [vmem:[%s1 + $0xa40] sm:$0xff]
  %v392 = vld [vmem:[%s1 + $0xa48] sm:$0xff]
  %v393 = vld [vmem:[%s1 + $0xa50] sm:$0xff]
  %v394 = vld [vmem:[%s1 + $0xa58] sm:$0xff]
  %v395 = vld [vmem:[%s1 + $0xa60] sm:$0xff]
  %v396 = vld [vmem:[%s1 + $0xa68] sm:$0xff]
  %v397 = vld [vmem:[%s1 + $0xa70] sm:$0xff]
  %v398 = vld [vmem:[%s1 + $0xa78] sm:$0xff]
  %v399 = vld [vmem:[%s1 + $0xa80] sm:$0xff]
  %v400 = vld [vmem:[%s1 + $0xa88] sm:$0xff]
  %v401 = vld [vmem:[%s1 + $0xa90] sm:$0xff]
  %v402 = vld [vmem:[%s1 + $0xa98] sm:$0xff]
  %v403 = vld [vmem:[%s1 + $0xaa0] sm:$0xff]
  %v404 = vld [vmem:[%s1 + $0xaa8] sm:$0xff]
  %v405 = vld [vmem:[%s1 + $0xab0] sm:$0xff]
  %v406 = vld [vmem:[%s1 + $0xab8] sm:$0xff]
  %v407 = vld [vmem:[%s1 + $0xac0] sm:$0xff]
  %v408 = vld [vmem:[%s1 + $0xac8] sm:$0xff]
  %v409 = vld [vmem:[%s1 + $0xad0] sm:$0xff]
  %v410 = vld [vmem:[%s1 + $0xad8] sm:$0xff]
  %v411 = vld [vmem:[%s1 + $0xae0] sm:$0xff]
  %v412 = vld [vmem:[%s1 + $0xae8] sm:$0xff]
  %v413 = vld [vmem:[%s1 + $0xaf0] sm:$0xff]
  %v414 = vld [vmem:[%s1 + $0xaf8] sm:$0xff]
  %v415 = vld [vmem:[%s1 + $0xb00] sm:$0xff]
  %v416 = vld [vmem:[%s1 + $0xb08] sm:$0xff]
  %v417 = vld [vmem:[%s1 + $0xb10] sm:$0xff]
  %v418 = vld [vmem:[%s1 + $0xb18] sm:$0xff]
  %v419 = vld [vmem:[%s1 + $0xb20] sm:$0xff]
  %v420 = vld [vmem:[%s1 + $0xb28] sm:$0xff]
  %v421 = vld [vmem:[%s1 + $0xb30] sm:$0xff]
  %v422 = vld [vmem:[%s1 + $0xb38] sm:$0xff]
  %v423 = vld [vmem:[%s1 + $0xb40] sm:$0xff]
  %v424 = vld [vmem:[%s1 + $0xb48] sm:$0xff]
  %v425 = vld [vmem:[%s1 + $0xb50] sm:$0xff]
  %v426 = vld [vmem:[%s1 + $0xb58] sm:$0xff]
  %v427 = vld [vmem:[%s1 + $0xb60] sm:$0xff]
  %v428 = vld [vmem:[%s1 + $0xb68] sm:$0xff]
  %v429 = vld [vmem:[%s1 + $0xb70] sm:$0xff]
  %v430 = vld [vmem:[%s1 + $0xb78] sm:$0xff]
  %v431 = vld [vmem:[%s1 + $0xb80] sm:$0xff]
  %v432 = vld [vmem:[%s1 + $0xb88] sm:$0xff]
  %v433 = vld [vmem:[%s1 + $0xb90] sm:$0xff]
  %v434 = vld [vmem:[%s1 + $0xb98] sm:$0xff]
  %v435 = vld [vmem:[%s1 + $0xba0] sm:$0xff]
  %v436 = vld [vmem:[%s1 + $0xba8] sm:$0xff]
  %v437 = vld [vmem:[%s1 + $0xbb0] sm:$0xff]
  %v438 = vld [vmem:[%s1 + $0xbb8] sm:$0xff]
  %v439 = vld [vmem:[%s1 + $0xbc0] sm:$0xff]
  %v440 = vld [vmem:[%s1 + $0xbc8] sm:$0xff]
  %v441 = vld [vmem:[%s1 + $0xbd0] sm:$0xff]
  %v442 = vld [vmem:[%s1 + $0xbd8] sm:$0xff]
  %v443 = vld [vmem:[%s1 + $0xbe0] sm:$0xff]
  %v444 = vld [vmem:[%s1 + $0xbe8] sm:$0xff]
  %v445 = vld [vmem:[%s1 + $0xbf0] sm:$0xff]
  %v446 = vld [vmem:[%s1 + $0xbf8] sm:$0xff]
  %v447 = vld [vmem:[%s1 + $0xc00] sm:$0xff]
  %v448 = vld [vmem:[%s1 + $0xc08] sm:$0xff]
  %v449 = vld [vmem:[%s1 + $0xc10] sm:$0xff]
  %v450 = vld [vmem:[%s1 + $0xc18] sm:$0xff]
  %v451 = vld [vmem:[%s1 + $0xc20] sm:$0xff]
  %v452 = vld [vmem:[%s1 + $0xc28] sm:$0xff]
  %v453 = vld [vmem:[%s1 + $0xc30] sm:$0xff]
  %v454 = vld [vmem:[%s1 + $0xc38] sm:$0xff]
  %v455 = vld [vmem:[%s1 + $0xc40] sm:$0xff]
  %v456 = vld [vmem:[%s1 + $0xc48] sm:$0xff]
  %v457 = vld [vmem:[%s1 + $0xc50] sm:$0xff]
  %v458 = vld [vmem:[%s1 + $0xc58] sm:$0xff]
  %v459 = vld [vmem:[%s1 + $0xc60] sm:$0xff]
  %v460 = vld [vmem:[%s1 + $0xc68] sm:$0xff]
  %v461 = vld [vmem:[%s1 + $0xc70] sm:$0xff]
  %v462 = vld [vmem:[%s1 + $0xc78] sm:$0xff]
  %v463 = vld [vmem:[%s1 + $0xc80] sm:$0xff]
  %v464 = vld [vmem:[%s1 + $0xc88] sm:$0xff]
  %v465 = vld [vmem:[%s1 + $0xc90] sm:$0xff]
  %v466 = vld [vmem:[%s1 + $0xc98] sm:$0xff]
  %v467 = vld [vmem:[%s1 + $0xca0] sm:$0xff]
  %v468 = vld [vmem:[%s1 + $0xca8] sm:$0xff]
  %v469 = vld [vmem:[%s1 + $0xcb0] sm:$0xff]
  %v470 = vld [vmem:[%s1 + $0xcb8] sm:$0xff]
  %v471 = vld [vmem:[%s1 + $0xcc0] sm:$0xff]
  %v472 = vld [vmem:[%s1 + $0xcc8] sm:$0xff]
  %v473 = vld [vmem:[%s1 + $0xcd0] sm:$0xff]
  %v474 = vld [vmem:[%s1 + $0xcd8] sm:$0xff]
  %v475 = vld [vmem:[%s1 + $0xce0] sm:$0xff]
  %v476 = vld [vmem:[%s1 + $0xce8] sm:$0xff]
  %v477 = vld [vmem:[%s1 + $0xcf0] sm:$0xff]
  %v478 = vld [vmem:[%s1 + $0xcf8] sm:$0xff]
  %v479 = vld [vmem:[%s1 + $0xd00] sm:$0xff]
  %v480 = vld [vmem:[%s1 + $0xd08] sm:$0xff]
  %v481 = vld [vmem:[%s1 + $0xd10] sm:$0xff]
  %v482 = vld [vmem:[%s1 + $0xd18] sm:$0xff]
  %v483 = vld [vmem:[%s1 + $0xd20] sm:$0xff]
  %v484 = vld [vmem:[%s1 + $0xd28] sm:$0xff]
  %v485 = vld [vmem:[%s1 + $0xd30] sm:$0xff]
  %v486 = vld [vmem:[%s1 + $0xd38] sm:$0xff]
  %v487 = vld [vmem:[%s1 + $0xd40] sm:$0xff]
  %v488 = vld [vmem:[%s1 + $0xd48] sm:$0xff]
  %v489 = vld [vmem:[%s1 + $0xd50] sm:$0xff]
  %v490 = vld [vmem:[%s1 + $0xd58] sm:$0xff]
  %v491 = vld [vmem:[%s1 + $0xd60] sm:$0xff]
  %v492 = vld [vmem:[%s1 + $0xd68] sm:$0xff]
  %v493 = vld [vmem:[%s1 + $0xd70] sm:$0xff]
  %v494 = vld [vmem:[%s1 + $0xd78] sm:$0xff]
  %v495 = vld [vmem:[%s1 + $0xd80] sm:$0xff]
  %v496 = vld [vmem:[%s1 + $0xd88] sm:$0xff]
  %v497 = vld [vmem:[%s1 + $0xd90] sm:$0xff]
  %v498 = vld [vmem:[%s1 + $0xd98] sm:$0xff]
  %v499 = vld [vmem:[%s1 + $0xda0] sm:$0xff]
  %v500 = vld [vmem:[%s1 + $0xda8] sm:$0xff]
  %v501 = vld [vmem:[%s1 + $0xdb0] sm:$0xff]
  %v502 = vld [vmem:[%s1 + $0xdb8] sm:$0xff]
  %v503 = vld [vmem:[%s1 + $0xdc0] sm:$0xff]
  %v504 = vld [vmem:[%s1 + $0xdc8] sm:$0xff]
  %v505 = vld [vmem:[%s1 + $0xdd0] sm:$0xff]
  %v506 = vld [vmem:[%s1 + $0xdd8] sm:$0xff]
  %v507 = vld [vmem:[%s1 + $0xde0] sm:$0xff]
  %v508 = vld [vmem:[%s1 + $0xde8] sm:$0xff]
  %v509 = vld [vmem:[%s1 + $0xdf0] sm:$0xff]
  %v510 = vld [vmem:[%s1 + $0xdf8] sm:$0xff]
  %v511 = vld [vmem:[%s1 + $0xe00] sm:$0xff]
  %v512 = vld [vmem:[%s1 + $0xe08] sm:$0xff]
  %v513 = vld [vmem:[%s1 + $0xe10] sm:$0xff]
  %v514 = vld [vmem:[%s1 + $0xe18] sm:$0xff]
  %v515 = vld [vmem:[%s1 + $0xe20] sm:$0xff]
  %v516 = vld [vmem:[%s1 + $0xe28] sm:$0xff]
  %v517 = vld [vmem:[%s1 + $0xe30] sm:$0xff]
  %v518 = vld [vmem:[%s1 + $0xe38] sm:$0xff]
  %v519 = vld [vmem:[%s1 + $0xe40] sm:$0xff]
  %v520 = vld [vmem:[%s1 + $0xe48] sm:$0xff]
  %v521 = vld [vmem:[%s1 + $0xe50] sm:$0xff]
  %v522 = vld [vmem:[%s1 + $0xe58] sm:$0xff]
  %v523 = vld [vmem:[%s1 + $0xe60] sm:$0xff]
  %v524 = vld [vmem:[%s1 + $0xe68] sm:$0xff]
  %v525 = vld [vmem:[%s1 + $0xe70] sm:$0xff]
  %v526 = vld [vmem:[%s1 + $0xe78] sm:$0xff]
  %v527 = vld [vmem:[%s1 + $0xe80] sm:$0xff]
  %v528 = vld [vmem:[%s1 + $0xe88] sm:$0xff]
  %v529 = vld [vmem:[%s1 + $0xe90] sm:$0xff]
  %v530 = vld [vmem:[%s1 + $0xe98] sm:$0xff]
  %v531 = vld [vmem:[%s1 + $0xea0] sm:$0xff]
  %v532 = vld [vmem:[%s1 + $0xea8] sm:$0xff]
  %v533 = vld [vmem:[%s1 + $0xeb0] sm:$0xff]
  %v534 = vld [vmem:[%s1 + $0xeb8] sm:$0xff]
  %v535 = vld [vmem:[%s1 + $0xec0] sm:$0xff]
  %v536 = vld [vmem:[%s1 + $0xec8] sm:$0xff]
  %v537 = vld [vmem:[%s1 + $0xed0] sm:$0xff]
  %v538 = vld [vmem:[%s1 + $0xed8] sm:$0xff]
  %v539 = vld [vmem:[%s1 + $0xee0] sm:$0xff]
  %v540 = vld [vmem:[%s1 + $0xee8] sm:$0xff]
  %v541 = vld [vmem:[%s1 + $0xef0] sm:$0xff]
  %v542 = vld [vmem:[%s1 + $0xef8] sm:$0xff]
  %v543 = vld [vmem:[%s1 + $0xf00] sm:$0xff]
  %v544 = vld [vmem:[%s1 + $0xf08] sm:$0xff]
  %v545 = vld [vmem:[%s1 + $0xf10] sm:$0xff]
  %v546 = vld [vmem:[%s1 + $0xf18] sm:$0xff]
  %v547 = vld [vmem:[%s1 + $0xf20] sm:$0xff]
  %v548 = vld [vmem:[%s1 + $0xf28] sm:$0xff]
  %v549 = vld [vmem:[%s1 + $0xf30] sm:$0xff]
  %v550 = vld [vmem:[%s1 + $0xf38] sm:$0xff]
  %v551 = vld [vmem:[%s1 + $0xf40] sm:$0xff]
  %v552 = vld [vmem:[%s1 + $0xf48] sm:$0xff]
  %v553 = vld [vmem:[%s1 + $0xf50] sm:$0xff]
  %v554 = vld [vmem:[%s1 + $0xf58] sm:$0xff]
  %v555 = vld [vmem:[%s1 + $0xf60] sm:$0xff]
  %v556 = vld [vmem:[%s1 + $0xf68] sm:$0xff]
  %v557 = vld [vmem:[%s1 + $0xf70] sm:$0xff]
  %v558 = vld [vmem:[%s1 + $0xf78] sm:$0xff]
  %v559 = vld [vmem:[%s1 + $0xf80] sm:$0xff]
  %v560 = vld [vmem:[%s1 + $0xf88] sm:$0xff]
  %v561 = vld [vmem:[%s1 + $0xf90] sm:$0xff]
  %v562 = vld [vmem:[%s1 + $0xf98] sm:$0xff]
  %v563 = vld [vmem:[%s1 + $0xfa0] sm:$0xff]
  %v564 = vld [vmem:[%s1 + $0xfa8] sm:$0xff]
  %v565 = vld [vmem:[%s1 + $0xfb0] sm:$0xff]
  %v566 = vld [vmem:[%s1 + $0xfb8] sm:$0xff]
  %v567 = vld [vmem:[%s1 + $0xfc0] sm:$0xff]
  %v568 = vld [vmem:[%s1 + $0xfc8] sm:$0xff]
  %v569 = vld [vmem:[%s1 + $0xfd0] sm:$0xff]
  %v570 = vld [vmem:[%s1 + $0xfd8] sm:$0xff]
  %v571 = vld [vmem:[%s1 + $0xfe0] sm:$0xff]
  %v572 = vld [vmem:[%s1 + $0xfe8] sm:$0xff]
  %v573 = vld [vmem:[%s1 + $0xff0] sm:$0xff]
  %v574 = vld [vmem:[%s1 + $0xff8] sm:$0xff]
  %v575 = vld [vmem:[%s1 + $0x1000] sm:$0xff]
  %v576 = vld [vmem:[%s1 + $0x1008] sm:$0xff]
  %v577 = vld [vmem:[%s1 + $0x1010] sm:$0xff]
  %v578 = vld [vmem:[%s1 + $0x1018] sm:$0xff]
  %v579 = vld [vmem:[%s1 + $0x1020] sm:$0xff]
  %v580 = vld [vmem:[%s1 + $0x1028] sm:$0xff]
  %v581 = vld [vmem:[%s1 + $0x1030] sm:$0xff]
  %v582 = vld [vmem:[%s1 + $0x1038] sm:$0xff]
  %v583 = vld [vmem:[%s1 + $0x1040] sm:$0xff]
  %v584 = vld [vmem:[%s1 + $0x1048] sm:$0xff]
  %v585 = vld [vmem:[%s1 + $0x1050] sm:$0xff]
  %v586 = vld [vmem:[%s1 + $0x1058] sm:$0xff]
  %v587 = vld [vmem:[%s1 + $0x1060] sm:$0xff]
  %v588 = vld [vmem:[%s1 + $0x1068] sm:$0xff]
  %v589 = vld [vmem:[%s1 + $0x1070] sm:$0xff]
  %v590 = vld [vmem:[%s1 + $0x1078] sm:$0xff]
  %v591 = vld [vmem:[%s1 + $0x1080] sm:$0xff]
  %v592 = vld [vmem:[%s1 + $0x1088] sm:$0xff]
  %v593 = vld [vmem:[%s1 + $0x1090] sm:$0xff]
  %v594 = vld [vmem:[%s1 + $0x1098] sm:$0xff]
  %v595 = vld [vmem:[%s1 + $0x10a0] sm:$0xff]
  %v596 = vld [vmem:[%s1 + $0x10a8] sm:$0xff]
  %v597 = vld [vmem:[%s1 + $0x10b0] sm:$0xff]
  %v598 = vld [vmem:[%s1 + $0x10b8] sm:$0xff]
  %v599 = vld [vmem:[%s1 + $0x10c0] sm:$0xff]
  %v600 = vld [vmem:[%s1 + $0x10c8] sm:$0xff]
  %v601 = vld [vmem:[%s1 + $0x10d0] sm:$0xff]
  %v602 = vld [vmem:[%s1 + $0x10d8] sm:$0xff]
  %v603 = vld [vmem:[%s1 + $0x10e0] sm:$0xff]
  %v604 = vld [vmem:[%s1 + $0x10e8] sm:$0xff]
  %v605 = vld [vmem:[%s1 + $0x10f0] sm:$0xff]
  %v606 = vld [vmem:[%s1 + $0x10f8] sm:$0xff]
  %v607 = vld [vmem:[%s1 + $0x1100] sm:$0xff]
  %v608 = vld [vmem:[%s1 + $0x1108] sm:$0xff]
  %v609 = vld [vmem:[%s1 + $0x1110] sm:$0xff]
  %v610 = vld [vmem:[%s1 + $0x1118] sm:$0xff]
  %v611 = vld [vmem:[%s1 + $0x1120] sm:$0xff]
  %v612 = vld [vmem:[%s1 + $0x1128] sm:$0xff]
  %v613 = vld [vmem:[%s1 + $0x1130] sm:$0xff]
  %v614 = vld [vmem:[%s1 + $0x1138] sm:$0xff]
  %v615 = vld [vmem:[%s1 + $0x1140] sm:$0xff]
  %v616 = vld [vmem:[%s1 + $0x1148] sm:$0xff]
  %v617 = vld [vmem:[%s1 + $0x1150] sm:$0xff]
  %v618 = vld [vmem:[%s1 + $0x1158] sm:$0xff]
  %v619 = vld [vmem:[%s1 + $0x1160] sm:$0xff]
  %v620 = vld [vmem:[%s1 + $0x1168] sm:$0xff]
  %v621 = vld [vmem:[%s1 + $0x1170] sm:$0xff]
  %v622 = vld [vmem:[%s1 + $0x1178] sm:$0xff]
  %v623 = vld [vmem:[%s1 + $0x1180] sm:$0xff]
  %v624 = vld [vmem:[%s1 + $0x1188] sm:$0xff]
  %v625 = vld [vmem:[%s1 + $0x1190] sm:$0xff]
  %v626 = vld [vmem:[%s1 + $0x1198] sm:$0xff]
  %v627 = vld [vmem:[%s1 + $0x11a0] sm:$0xff]
  %v628 = vld [vmem:[%s1 + $0x11a8] sm:$0xff]
  %v629 = vld [vmem:[%s1 + $0x11b0] sm:$0xff]
  %v630 = vld [vmem:[%s1 + $0x11b8] sm:$0xff]
  %v631 = vld [vmem:[%s1 + $0x11c0] sm:$0xff]
  %v632 = vld [vmem:[%s1 + $0x11c8] sm:$0xff]
  %v633 = vld [vmem:[%s1 + $0x11d0] sm:$0xff]
  %v634 = vld [vmem:[%s1 + $0x11d8] sm:$0xff]
  %v635 = vld [vmem:[%s1 + $0x11e0] sm:$0xff]
  %v636 = vld [vmem:[%s1 + $0x11e8] sm:$0xff]
  %v637 = vld [vmem:[%s1 + $0x11f0] sm:$0xff]
  %v638 = vld [vmem:[%s1 + $0x11f8] sm:$0xff]
  %v639 = vld [vmem:[%s1 + $0x1200] sm:$0xff]
  %v640 = vld [vmem:[%s1 + $0x1208] sm:$0xff]
  %v641 = vld [vmem:[%s1 + $0x1210] sm:$0xff]
  %v642 = vld [vmem:[%s1 + $0x1218] sm:$0xff]
  %v643 = vld [vmem:[%s1 + $0x1220] sm:$0xff]
  %v644 = vld [vmem:[%s1 + $0x1228] sm:$0xff]
  %v645 = vld [vmem:[%s1 + $0x1230] sm:$0xff]
  %v646 = vld [vmem:[%s1 + $0x1238] sm:$0xff]
  %v647 = vld [vmem:[%s1 + $0x1240] sm:$0xff]
  %v648 = vld [vmem:[%s1 + $0x1248] sm:$0xff]
  %v649 = vld [vmem:[%s1 + $0x1250] sm:$0xff]
  %v650 = vld [vmem:[%s1 + $0x1258] sm:$0xff]
  %v651 = vld [vmem:[%s1 + $0x1260] sm:$0xff]
  %v652 = vld [vmem:[%s1 + $0x1268] sm:$0xff]
  %v653 = vld [vmem:[%s1 + $0x1270] sm:$0xff]
  %v654 = vld [vmem:[%s1 + $0x1278] sm:$0xff]
  %v655 = vld [vmem:[%s1 + $0x1280] sm:$0xff]
  %v656 = vld [vmem:[%s1 + $0x1288] sm:$0xff]
  %v657 = vld [vmem:[%s1 + $0x1290] sm:$0xff]
  %v658 = vld [vmem:[%s1 + $0x1298] sm:$0xff]
  %v659 = vld [vmem:[%s1 + $0x12a0] sm:$0xff]
  %v660 = vld [vmem:[%s1 + $0x12a8] sm:$0xff]
  %v661 = vld [vmem:[%s1 + $0x12b0] sm:$0xff]
  %v662 = vld [vmem:[%s1 + $0x12b8] sm:$0xff]
  %v663 = vld [vmem:[%s1 + $0x12c0] sm:$0xff]
  %v664 = vld [vmem:[%s1 + $0x12c8] sm:$0xff]
  %v665 = vld [vmem:[%s1 + $0x12d0] sm:$0xff]
  %v666 = vld [vmem:[%s1 + $0x12d8] sm:$0xff]
  %v667 = vld [vmem:[%s1 + $0x12e0] sm:$0xff]
  %v668 = vld [vmem:[%s1 + $0x12e8] sm:$0xff]
  %v669 = vld [vmem:[%s1 + $0x12f0] sm:$0xff]
  %v670 = vld [vmem:[%s1 + $0x12f8] sm:$0xff]
  %v671 = vld [vmem:[%s1 + $0x1300] sm:$0xff]
  %v672 = vld [vmem:[%s1 + $0x1308] sm:$0xff]
  %v673 = vld [vmem:[%s1 + $0x1310] sm:$0xff]
  %v674 = vld [vmem:[%s1 + $0x1318] sm:$0xff]
  %v675 = vld [vmem:[%s1 + $0x1320] sm:$0xff]
  %v676 = vld [vmem:[%s1 + $0x1328] sm:$0xff]
  %v677 = vld [vmem:[%s1 + $0x1330] sm:$0xff]
  %v678 = vld [vmem:[%s1 + $0x1338] sm:$0xff]
  %v679 = vld [vmem:[%s1 + $0x1340] sm:$0xff]
  %v680 = vld [vmem:[%s1 + $0x1348] sm:$0xff]
  %v681 = vld [vmem:[%s1 + $0x1350] sm:$0xff]
  %v682 = vld [vmem:[%s1 + $0x1358] sm:$0xff]
  %v683 = vld [vmem:[%s1 + $0x1360] sm:$0xff]
  %v684 = vld [vmem:[%s1 + $0x1368] sm:$0xff]
  %v685 = vld [vmem:[%s1 + $0x1370] sm:$0xff]
  %v686 = vld [vmem:[%s1 + $0x1378] sm:$0xff]
  %v687 = vld [vmem:[%s1 + $0x1380] sm:$0xff]
  %v688 = vld [vmem:[%s1 + $0x1388] sm:$0xff]
  %v689 = vld [vmem:[%s1 + $0x1390] sm:$0xff]
  %v690 = vld [vmem:[%s1 + $0x1398] sm:$0xff]
  %v691 = vld [vmem:[%s1 + $0x13a0] sm:$0xff]
  %v692 = vld [vmem:[%s1 + $0x13a8] sm:$0xff]
  %v693 = vld [vmem:[%s1 + $0x13b0] sm:$0xff]
  %v694 = vld [vmem:[%s1 + $0x13b8] sm:$0xff]
  %v695 = vld [vmem:[%s1 + $0x13c0] sm:$0xff]
  %v696 = vld [vmem:[%s1 + $0x13c8] sm:$0xff]
  %v697 = vld [vmem:[%s1 + $0x13d0] sm:$0xff]
  %v698 = vld [vmem:[%s1 + $0x13d8] sm:$0xff]
  %v699 = vld [vmem:[%s1 + $0x13e0] sm:$0xff]
  %v700 = vld [vmem:[%s1 + $0x13e8] sm:$0xff]
  %v701 = vld [vmem:[%s1 + $0x13f0] sm:$0xff]
  %v702 = vld [vmem:[%s1 + $0x13f8] sm:$0xff]
  %v703 = vld [vmem:[%s1 + $0x1400] sm:$0xff]
  %v704 = vld [vmem:[%s1 + $0x1408] sm:$0xff]
  %v705 = vld [vmem:[%s1 + $0x1410] sm:$0xff]
  %v706 = vld [vmem:[%s1 + $0x1418] sm:$0xff]
  %v707 = vld [vmem:[%s1 + $0x1420] sm:$0xff]
  %v708 = vld [vmem:[%s1 + $0x1428] sm:$0xff]
  %v709 = vld [vmem:[%s1 + $0x1430] sm:$0xff]
  %v710 = vld [vmem:[%s1 + $0x1438] sm:$0xff]
  %v711 = vld [vmem:[%s1 + $0x1440] sm:$0xff]
  %v712 = vld [vmem:[%s1 + $0x1448] sm:$0xff]
  %v713 = vld [vmem:[%s1 + $0x1450] sm:$0xff]
  %v714 = vld [vmem:[%s1 + $0x1458] sm:$0xff]
  %v715 = vld [vmem:[%s1 + $0x1460] sm:$0xff]
  %v716 = vld [vmem:[%s1 + $0x1468] sm:$0xff]
  %v717 = vld [vmem:[%s1 + $0x1470] sm:$0xff]
  %v718 = vld [vmem:[%s1 + $0x1478] sm:$0xff]
  %v719 = vld [vmem:[%s1 + $0x1480] sm:$0xff]
  %v720 = vld [vmem:[%s1 + $0x1488] sm:$0xff]
  %v721 = vld [vmem:[%s1 + $0x1490] sm:$0xff]
  %v722 = vld [vmem:[%s1 + $0x1498] sm:$0xff]
  %v723 = vld [vmem:[%s1 + $0x14a0] sm:$0xff]
  %v724 = vld [vmem:[%s1 + $0x14a8] sm:$0xff]
  %v725 = vld [vmem:[%s1 + $0x14b0] sm:$0xff]
  %v726 = vld [vmem:[%s1 + $0x14b8] sm:$0xff]
  %v727 = vld [vmem:[%s1 + $0x14c0] sm:$0xff]
  %v728 = vld [vmem:[%s1 + $0x14c8] sm:$0xff]
  %v729 = vld [vmem:[%s1 + $0x14d0] sm:$0xff]
  %v730 = vld [vmem:[%s1 + $0x14d8] sm:$0xff]
  %v731 = vld [vmem:[%s1 + $0x14e0] sm:$0xff]
  %v732 = vld [vmem:[%s1 + $0x14e8] sm:$0xff]
  %v733 = vld [vmem:[%s1 + $0x14f0] sm:$0xff]
  %v734 = vld [vmem:[%s1 + $0x14f8] sm:$0xff]
  %v735 = vld [vmem:[%s1 + $0x1500] sm:$0xff]
  %v736 = vld [vmem:[%s1 + $0x1508] sm:$0xff]
  %v737 = vld [vmem:[%s1 + $0x1510] sm:$0xff]
  %v738 = vld [vmem:[%s1 + $0x1518] sm:$0xff]
  %v739 = vld [vmem:[%s1 + $0x1520] sm:$0xff]
  %v740 = vld [vmem:[%s1 + $0x1528] sm:$0xff]
  %v741 = vld [vmem:[%s1 + $0x1530] sm:$0xff]
  %v742 = vld [vmem:[%s1 + $0x1538] sm:$0xff]
  %v743 = vld [vmem:[%s1 + $0x1540] sm:$0xff]
  %v744 = vld [vmem:[%s1 + $0x1548] sm:$0xff]
  %v745 = vld [vmem:[%s1 + $0x1550] sm:$0xff]
  %v746 = vld [vmem:[%s1 + $0x1558] sm:$0xff]
  %v747 = vld [vmem:[%s1 + $0x1560] sm:$0xff]
  %v748 = vld [vmem:[%s1 + $0x1568] sm:$0xff]
  %v749 = vld [vmem:[%s1 + $0x1570] sm:$0xff]
  %v750 = vld [vmem:[%s1 + $0x1578] sm:$0xff]
  %v751 = vld [vmem:[%s1 + $0x1580] sm:$0xff]
  %v752 = vld [vmem:[%s1 + $0x1588] sm:$0xff]
  %v753 = vld [vmem:[%s1 + $0x1590] sm:$0xff]
  %v754 = vld [vmem:[%s1 + $0x1598] sm:$0xff]
  %v755 = vld [vmem:[%s1 + $0x15a0] sm:$0xff]
  %v756 = vld [vmem:[%s1 + $0x15a8] sm:$0xff]
  %v757 = vld [vmem:[%s1 + $0x15b0] sm:$0xff]
  %v758 = vld [vmem:[%s1 + $0x15b8] sm:$0xff]
  %v759 = vld [vmem:[%s1 + $0x15c0] sm:$0xff]
  %v760 = vld [vmem:[%s1 + $0x15c8] sm:$0xff]
  %v761 = vld [vmem:[%s1 + $0x15d0] sm:$0xff]
  %v762 = vld [vmem:[%s1 + $0x15d8] sm:$0xff]
  %v763 = vld [vmem:[%s1 + $0x15e0] sm:$0xff]
  %v764 = vld [vmem:[%s1 + $0x15e8] sm:$0xff]
  %v765 = vld [vmem:[%s1 + $0x15f0] sm:$0xff]
  %v766 = vld [vmem:[%s1 + $0x15f8] sm:$0xff]
  %v767 = vld [vmem:[%s1 + $0x1600] sm:$0xff]
  %v768 = vld [vmem:[%s1 + $0x1608] sm:$0xff]
  %v769 = vld [vmem:[%s1 + $0x1610] sm:$0xff]
  %v770 = vld [vmem:[%s1 + $0x1618] sm:$0xff]
  %v771 = vld [vmem:[%s1 + $0x1620] sm:$0xff]
  %v772 = vld [vmem:[%s1 + $0x1628] sm:$0xff]
  %v773 = vld [vmem:[%s1 + $0x1630] sm:$0xff]
  %v774 = vld [vmem:[%s1 + $0x1638] sm:$0xff]
  %v775 = vld [vmem:[%s1 + $0x1640] sm:$0xff]
  %v776 = vld [vmem:[%s1 + $0x1648] sm:$0xff]
  %v777 = vld [vmem:[%s1 + $0x1650] sm:$0xff]
  %v778 = vld [vmem:[%s1 + $0x1658] sm:$0xff]
  %v779 = vld [vmem:[%s1 + $0x1660] sm:$0xff]
  %v780 = vld [vmem:[%s1 + $0x1668] sm:$0xff]
  %v781 = vld [vmem:[%s1 + $0x1670] sm:$0xff]
  %v782 = vld [vmem:[%s1 + $0x1678] sm:$0xff]
  %v783 = vld [vmem:[%s1 + $0x1680] sm:$0xff]
  %v784 = vld [vmem:[%s1 + $0x1688] sm:$0xff]
  %v785 = vld [vmem:[%s1 + $0x1690] sm:$0xff]
  %v786 = vld [vmem:[%s1 + $0x1698] sm:$0xff]
  %v787 = vld [vmem:[%s1 + $0x16a0] sm:$0xff]
  %v788 = vld [vmem:[%s1 + $0x16a8] sm:$0xff]
  %v789 = vld [vmem:[%s1 + $0x16b0] sm:$0xff]
  %v790 = vld [vmem:[%s1 + $0x16b8] sm:$0xff]
  %v791 = vld [vmem:[%s1 + $0x16c0] sm:$0xff]
  %v792 = vld [vmem:[%s1 + $0x16c8] sm:$0xff]
  %v793 = vld [vmem:[%s1 + $0x16d0] sm:$0xff]
  %v794 = vld [vmem:[%s1 + $0x16d8] sm:$0xff]
  %v795 = vld [vmem:[%s1 + $0x16e0] sm:$0xff]
  %v796 = vld [vmem:[%s1 + $0x16e8] sm:$0xff]
  %v797 = vld [vmem:[%s1 + $0x16f0] sm:$0xff]
  %v798 = vld [vmem:[%s1 + $0x16f8] sm:$0xff]
  %v799 = vld [vmem:[%s1 + $0x1700] sm:$0xff]
  %v800 = vld [vmem:[%s1 + $0x1708] sm:$0xff]
  %v801 = vld [vmem:[%s1 + $0x1710] sm:$0xff]
  %v802 = vld [vmem:[%s1 + $0x1718] sm:$0xff]
  %v803 = vld [vmem:[%s1 + $0x1720] sm:$0xff]
  %v804 = vld [vmem:[%s1 + $0x1728] sm:$0xff]
  %v805 = vld [vmem:[%s1 + $0x1730] sm:$0xff]
  %v806 = vld [vmem:[%s1 + $0x1738] sm:$0xff]
  %v807 = vld [vmem:[%s1 + $0x1740] sm:$0xff]
  %v808 = vld [vmem:[%s1 + $0x1748] sm:$0xff]
  %v809 = vld [vmem:[%s1 + $0x1750] sm:$0xff]
  %v810 = vld [vmem:[%s1 + $0x1758] sm:$0xff]
  %v811 = vld [vmem:[%s1 + $0x1760] sm:$0xff]
  %v812 = vld [vmem:[%s1 + $0x1768] sm:$0xff]
  %v813 = vld [vmem:[%s1 + $0x1770] sm:$0xff]
  %v814 = vld [vmem:[%s1 + $0x1778] sm:$0xff]
  %v815 = vld [vmem:[%s1 + $0x1780] sm:$0xff]
  %v816 = vld [vmem:[%s1 + $0x1788] sm:$0xff]
  %v817 = vld [vmem:[%s1 + $0x1790] sm:$0xff]
  %v818 = vld [vmem:[%s1 + $0x1798] sm:$0xff]
  %v819 = vld [vmem:[%s1 + $0x17a0] sm:$0xff]
  %v820 = vld [vmem:[%s1 + $0x17a8] sm:$0xff]
  %v821 = vld [vmem:[%s1 + $0x17b0] sm:$0xff]
  %v822 = vld [vmem:[%s1 + $0x17b8] sm:$0xff]
  %v823 = vld [vmem:[%s1 + $0x17c0] sm:$0xff]
  %v824 = vld [vmem:[%s1 + $0x17c8] sm:$0xff]
  %v825 = vld [vmem:[%s1 + $0x17d0] sm:$0xff]
  %v826 = vld [vmem:[%s1 + $0x17d8] sm:$0xff]
  %v827 = vld [vmem:[%s1 + $0x17e0] sm:$0xff]
  %v828 = vld [vmem:[%s1 + $0x17e8] sm:$0xff]
  %v829 = vld [vmem:[%s1 + $0x17f0] sm:$0xff]
  %v830 = vld [vmem:[%s1 + $0x17f8] sm:$0xff]
  %v831 = vld [vmem:[%s1 + $0x1800] sm:$0xff]
  %v832 = vld [vmem:[%s1 + $0x1808] sm:$0xff]
  %v833 = vld [vmem:[%s1 + $0x1810] sm:$0xff]
  %v834 = vld [vmem:[%s1 + $0x1818] sm:$0xff]
  %v835 = vld [vmem:[%s1 + $0x1820] sm:$0xff]
  %v836 = vld [vmem:[%s1 + $0x1828] sm:$0xff]
  %v837 = vld [vmem:[%s1 + $0x1830] sm:$0xff]
  %v838 = vld [vmem:[%s1 + $0x1838] sm:$0xff]
  %v839 = vld [vmem:[%s1 + $0x1840] sm:$0xff]
  %v840 = vld [vmem:[%s1 + $0x1848] sm:$0xff]
  %v841 = vld [vmem:[%s1 + $0x1850] sm:$0xff]
  %v842 = vld [vmem:[%s1 + $0x1858] sm:$0xff]
  %v843 = vld [vmem:[%s1 + $0x1860] sm:$0xff]
  %v844 = vld [vmem:[%s1 + $0x1868] sm:$0xff]
  %v845 = vld [vmem:[%s1 + $0x1870] sm:$0xff]
  %v846 = vld [vmem:[%s1 + $0x1878] sm:$0xff]
  %v847 = vld [vmem:[%s1 + $0x1880] sm:$0xff]
  %v848 = vld [vmem:[%s1 + $0x1888] sm:$0xff]
  %v849 = vld [vmem:[%s1 + $0x1890] sm:$0xff]
  %v850 = vld [vmem:[%s1 + $0x1898] sm:$0xff]
  %v851 = vld [vmem:[%s1 + $0x18a0] sm:$0xff]
  %v852 = vld [vmem:[%s1 + $0x18a8] sm:$0xff]
  %v853 = vld [vmem:[%s1 + $0x18b0] sm:$0xff]
  %v854 = vld [vmem:[%s1 + $0x18b8] sm:$0xff]
  %v855 = vld [vmem:[%s1 + $0x18c0] sm:$0xff]
  %v856 = vld [vmem:[%s1 + $0x18c8] sm:$0xff]
  %v857 = vld [vmem:[%s1 + $0x18d0] sm:$0xff]
  %v858 = vld [vmem:[%s1 + $0x18d8] sm:$0xff]
  %v859 = vld [vmem:[%s1 + $0x18e0] sm:$0xff]
  %v860 = vld [vmem:[%s1 + $0x18e8] sm:$0xff]
  %v861 = vld [vmem:[%s1 + $0x18f0] sm:$0xff]
  %v862 = vld [vmem:[%s1 + $0x18f8] sm:$0xff]
  %v863 = vld [vmem:[%s1 + $0x1900] sm:$0xff]
  %v864 = vld [vmem:[%s1 + $0x1908] sm:$0xff]
  %v865 = vld [vmem:[%s1 + $0x1910] sm:$0xff]
  %v866 = vld [vmem:[%s1 + $0x1918] sm:$0xff]
  %v867 = vld [vmem:[%s1 + $0x1920] sm:$0xff]
  %v868 = vld [vmem:[%s1 + $0x1928] sm:$0xff]
  %v869 = vld [vmem:[%s1 + $0x1930] sm:$0xff]
  %v870 = vld [vmem:[%s1 + $0x1938] sm:$0xff]
  %v871 = vld [vmem:[%s1 + $0x1940] sm:$0xff]
  %v872 = vld [vmem:[%s1 + $0x1948] sm:$0xff]
  %v873 = vld [vmem:[%s1 + $0x1950] sm:$0xff]
  %v874 = vld [vmem:[%s1 + $0x1958] sm:$0xff]
  %v875 = vld [vmem:[%s1 + $0x1960] sm:$0xff]
  %v876 = vld [vmem:[%s1 + $0x1968] sm:$0xff]
  %v877 = vld [vmem:[%s1 + $0x1970] sm:$0xff]
  %v878 = vld [vmem:[%s1 + $0x1978] sm:$0xff]
  %v879 = vld [vmem:[%s1 + $0x1980] sm:$0xff]
  %v880 = vld [vmem:[%s1 + $0x1988] sm:$0xff]
  %v881 = vld [vmem:[%s1 + $0x1990] sm:$0xff]
  %v882 = vld [vmem:[%s1 + $0x1998] sm:$0xff]
  %v883 = vld [vmem:[%s1 + $0x19a0] sm:$0xff]
  %v884 = vld [vmem:[%s1 + $0x19a8] sm:$0xff]
  %v885 = vld [vmem:[%s1 + $0x19b0] sm:$0xff]
  %v886 = vld [vmem:[%s1 + $0x19b8] sm:$0xff]
  %v887 = vld [vmem:[%s1 + $0x19c0] sm:$0xff]
  %v888 = vld [vmem:[%s1 + $0x19c8] sm:$0xff]
  %v889 = vld [vmem:[%s1 + $0x19d0] sm:$0xff]
  %v890 = vld [vmem:[%s1 + $0x19d8] sm:$0xff]
  %v891 = vld [vmem:[%s1 + $0x19e0] sm:$0xff]
  %v892 = vld [vmem:[%s1 + $0x19e8] sm:$0xff]
  %v893 = vld [vmem:[%s1 + $0x19f0] sm:$0xff]
  %v894 = vld [vmem:[%s1 + $0x19f8] sm:$0xff]
  %v895 = vld [vmem:[%s1 + $0x1a00] sm:$0xff]
  %v896 = vld [vmem:[%s1 + $0x1a08] sm:$0xff]
  %v897 = vld [vmem:[%s1 + $0x1a10] sm:$0xff]
  %v898 = vld [vmem:[%s1 + $0x1a18] sm:$0xff]
  %v899 = vld [vmem:[%s1 + $0x1a20] sm:$0xff]
  %v900 = vld [vmem:[%s1 + $0x1a28] sm:$0xff]
  %v901 = vld [vmem:[%s1 + $0x1a30] sm:$0xff]
  %v902 = vld [vmem:[%s1 + $0x1a38] sm:$0xff]
  %v903 = vld [vmem:[%s1 + $0x1a40] sm:$0xff]
  %v904 = vld [vmem:[%s1 + $0x1a48] sm:$0xff]
  %v905 = vld [vmem:[%s1 + $0x1a50] sm:$0xff]
  %v906 = vld [vmem:[%s1 + $0x1a58] sm:$0xff]
  %v907 = vld [vmem:[%s1 + $0x1a60] sm:$0xff]
  %v908 = vld [vmem:[%s1 + $0x1a68] sm:$0xff]
  %v909 = vld [vmem:[%s1 + $0x1a70] sm:$0xff]
  %v910 = vld [vmem:[%s1 + $0x1a78] sm:$0xff]
  %v911 = vld [vmem:[%s1 + $0x1a80] sm:$0xff]
  %v912 = vld [vmem:[%s1 + $0x1a88] sm:$0xff]
  %v913 = vld [vmem:[%s1 + $0x1a90] sm:$0xff]
  %v914 = vld [vmem:[%s1 + $0x1a98] sm:$0xff]
  %v915 = vld [vmem:[%s1 + $0x1aa0] sm:$0xff]
  %v916 = vld [vmem:[%s1 + $0x1aa8] sm:$0xff]
  %v917 = vld [vmem:[%s1 + $0x1ab0] sm:$0xff]
  %v918 = vld [vmem:[%s1 + $0x1ab8] sm:$0xff]
  %v919 = vld [vmem:[%s1 + $0x1ac0] sm:$0xff]
  %v920 = vld [vmem:[%s1 + $0x1ac8] sm:$0xff]
  %v921 = vld [vmem:[%s1 + $0x1ad0] sm:$0xff]
  %v922 = vld [vmem:[%s1 + $0x1ad8] sm:$0xff]
  %v923 = vld [vmem:[%s1 + $0x1ae0] sm:$0xff]
  %v924 = vld [vmem:[%s1 + $0x1ae8] sm:$0xff]
  %v925 = vld [vmem:[%s1 + $0x1af0] sm:$0xff]
  %v926 = vld [vmem:[%s1 + $0x1af8] sm:$0xff]
  %v927 = vld [vmem:[%s1 + $0x1b00] sm:$0xff]
  %v928 = vld [vmem:[%s1 + $0x1b08] sm:$0xff]
  %v929 = vld [vmem:[%s1 + $0x1b10] sm:$0xff]
  %v930 = vld [vmem:[%s1 + $0x1b18] sm:$0xff]
  %v931 = vld [vmem:[%s1 + $0x1b20] sm:$0xff]
  %v932 = vld [vmem:[%s1 + $0x1b28] sm:$0xff]
  %v933 = vld [vmem:[%s1 + $0x1b30] sm:$0xff]
  %v934 = vld [vmem:[%s1 + $0x1b38] sm:$0xff]
  %v935 = vld [vmem:[%s1 + $0x1b40] sm:$0xff]
  %v936 = vld [vmem:[%s1 + $0x1b48] sm:$0xff]
  %v937 = vld [vmem:[%s1 + $0x1b50] sm:$0xff]
  %v938 = vld [vmem:[%s1 + $0x1b58] sm:$0xff]
  %v939 = vld [vmem:[%s1 + $0x1b60] sm:$0xff]
  %v940 = vld [vmem:[%s1 + $0x1b68] sm:$0xff]
  %v941 = vld [vmem:[%s1 + $0x1b70] sm:$0xff]
  %v942 = vld [vmem:[%s1 + $0x1b78] sm:$0xff]
  %v943 = vld [vmem:[%s1 + $0x1b80] sm:$0xff]
  %v944 = vld [vmem:[%s1 + $0x1b88] sm:$0xff]
  %v945 = vld [vmem:[%s1 + $0x1b90] sm:$0xff]
  %v946 = vld [vmem:[%s1 + $0x1b98] sm:$0xff]
  %v947 = vld [vmem:[%s1 + $0x1ba0] sm:$0xff]
  %v948 = vld [vmem:[%s1 + $0x1ba8] sm:$0xff]
  %v949 = vld [vmem:[%s1 + $0x1bb0] sm:$0xff]
  %v950 = vld [vmem:[%s1 + $0x1bb8] sm:$0xff]
  %v951 = vld [vmem:[%s1 + $0x1bc0] sm:$0xff]
  %v952 = vld [vmem:[%s1 + $0x1bc8] sm:$0xff]
  %v953 = vld [vmem:[%s1 + $0x1bd0] sm:$0xff]
  %v954 = vld [vmem:[%s1 + $0x1bd8] sm:$0xff]
  %v955 = vld [vmem:[%s1 + $0x1be0] sm:$0xff]
  %v956 = vld [vmem:[%s1 + $0x1be8] sm:$0xff]
  %v957 = vld [vmem:[%s1 + $0x1bf0] sm:$0xff]
  %v958 = vld [vmem:[%s1 + $0x1bf8] sm:$0xff]
  %v959 = vld [vmem:[%s1 + $0x1c00] sm:$0xff]
  %v960 = vld [vmem:[%s1 + $0x1c08] sm:$0xff]
  %v961 = vld [vmem:[%s1 + $0x1c10] sm:$0xff]
  %v962 = vld [vmem:[%s1 + $0x1c18] sm:$0xff]
  %v963 = vld [vmem:[%s1 + $0x1c20] sm:$0xff]
  %v964 = vld [vmem:[%s1 + $0x1c28] sm:$0xff]
  %v965 = vld [vmem:[%s1 + $0x1c30] sm:$0xff]
  %v966 = vld [vmem:[%s1 + $0x1c38] sm:$0xff]
  %v967 = vld [vmem:[%s1 + $0x1c40] sm:$0xff]
  %v968 = vld [vmem:[%s1 + $0x1c48] sm:$0xff]
  %v969 = vld [vmem:[%s1 + $0x1c50] sm:$0xff]
  %v970 = vld [vmem:[%s1 + $0x1c58] sm:$0xff]
  %v971 = vld [vmem:[%s1 + $0x1c60] sm:$0xff]
  %v972 = vld [vmem:[%s1 + $0x1c68] sm:$0xff]
  %v973 = vld [vmem:[%s1 + $0x1c70] sm:$0xff]
  %v974 = vld [vmem:[%s1 + $0x1c78] sm:$0xff]
  %v975 = vld [vmem:[%s1 + $0x1c80] sm:$0xff]
  %v976 = vld [vmem:[%s1 + $0x1c88] sm:$0xff]
  %v977 = vld [vmem:[%s1 + $0x1c90] sm:$0xff]
  %v978 = vld [vmem:[%s1 + $0x1c98] sm:$0xff]
  %v979 = vld [vmem:[%s1 + $0x1ca0] sm:$0xff]
  %v980 = vld [vmem:[%s1 + $0x1ca8] sm:$0xff]
  %v981 = vld [vmem:[%s1 + $0x1cb0] sm:$0xff]
  %v982 = vld [vmem:[%s1 + $0x1cb8] sm:$0xff]
  %v983 = vld [vmem:[%s1 + $0x1cc0] sm:$0xff]
  %v984 = vld [vmem:[%s1 + $0x1cc8] sm:$0xff]
  %v985 = vld [vmem:[%s1 + $0x1cd0] sm:$0xff]
  %v986 = vld [vmem:[%s1 + $0x1cd8] sm:$0xff]
  %v987 = vld [vmem:[%s1 + $0x1ce0] sm:$0xff]
  %v988 = vld [vmem:[%s1 + $0x1ce8] sm:$0xff]
  %v989 = vld [vmem:[%s1 + $0x1cf0] sm:$0xff]
  %v990 = vld [vmem:[%s1 + $0x1cf8] sm:$0xff]
  %v991 = vld [vmem:[%s1 + $0x1d00] sm:$0xff]
  %v992 = vld [vmem:[%s1 + $0x1d08] sm:$0xff]
  %v993 = vld [vmem:[%s1 + $0x1d10] sm:$0xff]
  %v994 = vld [vmem:[%s1 + $0x1d18] sm:$0xff]
  %v995 = vld [vmem:[%s1 + $0x1d20] sm:$0xff]
  %v996 = vld [vmem:[%s1 + $0x1d28] sm:$0xff]
  %v997 = vld [vmem:[%s1 + $0x1d30] sm:$0xff]
  %v998 = vld [vmem:[%s1 + $0x1d38] sm:$0xff]
  %v999 = vld [vmem:[%s1 + $0x1d40] sm:$0xff]
  %v1000 = vld [vmem:[%s1 + $0x1d48] sm:$0xff]
  %v1001 = vld [vmem:[%s1 + $0x1d50] sm:$0xff]
  %v1002 = vld [vmem:[%s1 + $0x1d58] sm:$0xff]
  %v1003 = vld [vmem:[%s1 + $0x1d60] sm:$0xff]
  %v1004 = vld [vmem:[%s1 + $0x1d68] sm:$0xff]
  %v1005 = vld [vmem:[%s1 + $0x1d70] sm:$0xff]
  %v1006 = vld [vmem:[%s1 + $0x1d78] sm:$0xff]
  %v1007 = vld [vmem:[%s1 + $0x1d80] sm:$0xff]
  %v1008 = vld [vmem:[%s1 + $0x1d88] sm:$0xff]
  %v1009 = vld [vmem:[%s1 + $0x1d90] sm:$0xff]
  %v1010 = vld [vmem:[%s1 + $0x1d98] sm:$0xff]
  %v1011 = vld [vmem:[%s1 + $0x1da0] sm:$0xff]
  %v1012 = vld [vmem:[%s1 + $0x1da8] sm:$0xff]
  %v1013 = vld [vmem:[%s1 + $0x1db0] sm:$0xff]
  %v1014 = vld [vmem:[%s1 + $0x1db8] sm:$0xff]
  %v1015 = vld [vmem:[%s1 + $0x1dc0] sm:$0xff]
  %v1016 = vld [vmem:[%s1 + $0x1dc8] sm:$0xff]
  %v1017 = vld [vmem:[%s1 + $0x1dd0] sm:$0xff]
  %v1018 = vld [vmem:[%s1 + $0x1dd8] sm:$0xff]
  %v1019 = vld [vmem:[%s1 + $0x1de0] sm:$0xff]
  %v1020 = vld [vmem:[%s1 + $0x1de8] sm:$0xff]
  %v1021 = vld [vmem:[%s1 + $0x1df0] sm:$0xff]
  %v1022 = vld [vmem:[%s1 + $0x1df8] sm:$0xff]
  %v1023 = vld [vmem:[%s1 + $0x1e00] sm:$0xff]
  %v1024 = vld [vmem:[%s1 + $0x1e08] sm:$0xff]
  %v1025 = vld [vmem:[%s1 + $0x1e10] sm:$0xff]
  %v1026 = vld [vmem:[%s1 + $0x1e18] sm:$0xff]
  %v1027 = vld [vmem:[%s1 + $0x1e20] sm:$0xff]
  %v1028 = vld [vmem:[%s1 + $0x1e28] sm:$0xff]
  %v1029 = vld [vmem:[%s1 + $0x1e30] sm:$0xff]
  %v1030 = vld [vmem:[%s1 + $0x1e38] sm:$0xff]
  %v1031 = vld [vmem:[%s1 + $0x1e40] sm:$0xff]
  %v1032 = vld [vmem:[%s1 + $0x1e48] sm:$0xff]
  %v1033 = vld [vmem:[%s1 + $0x1e50] sm:$0xff]
  %v1034 = vld [vmem:[%s1 + $0x1e58] sm:$0xff]
  %v1035 = vld [vmem:[%s1 + $0x1e60] sm:$0xff]
  %v1036 = vld [vmem:[%s1 + $0x1e68] sm:$0xff]
  %v1037 = vld [vmem:[%s1 + $0x1e70] sm:$0xff]
  %v1038 = vld [vmem:[%s1 + $0x1e78] sm:$0xff]
  %v1039 = vld [vmem:[%s1 + $0x1e80] sm:$0xff]
  %v1040 = vld [vmem:[%s1 + $0x1e88] sm:$0xff]
  %v1041 = vld [vmem:[%s1 + $0x1e90] sm:$0xff]
  %v1042 = vld [vmem:[%s1 + $0x1e98] sm:$0xff]
  %v1043 = vld [vmem:[%s1 + $0x1ea0] sm:$0xff]
  %v1044 = vld [vmem:[%s1 + $0x1ea8] sm:$0xff]
  %v1045 = vld [vmem:[%s1 + $0x1eb0] sm:$0xff]
  %v1046 = vld [vmem:[%s1 + $0x1eb8] sm:$0xff]
  %v1047 = vld [vmem:[%s1 + $0x1ec0] sm:$0xff]
  %v1048 = vld [vmem:[%s1 + $0x1ec8] sm:$0xff]
  %v1049 = vld [vmem:[%s1 + $0x1ed0] sm:$0xff]
  %v1050 = vld [vmem:[%s1 + $0x1ed8] sm:$0xff]
  %v1051 = vld [vmem:[%s1 + $0x1ee0] sm:$0xff]
  %v1052 = vld [vmem:[%s1 + $0x1ee8] sm:$0xff]
  %v1053 = vld [vmem:[%s1 + $0x1ef0] sm:$0xff]
  %v1054 = vld [vmem:[%s1 + $0x1ef8] sm:$0xff]
  %v1055 = vld [vmem:[%s1 + $0x1f00] sm:$0xff]
  %v1056 = vld [vmem:[%s1 + $0x1f08] sm:$0xff]
  %v1057 = vld [vmem:[%s1 + $0x1f10] sm:$0xff]
  %v1058 = vld [vmem:[%s1 + $0x1f18] sm:$0xff]
  %v1059 = vld [vmem:[%s1 + $0x1f20] sm:$0xff]
  %v1060 = vld [vmem:[%s1 + $0x1f28] sm:$0xff]
  %v1061 = vld [vmem:[%s1 + $0x1f30] sm:$0xff]
  %v1062 = vld [vmem:[%s1 + $0x1f38] sm:$0xff]
  %v1063 = vld [vmem:[%s1 + $0x1f40] sm:$0xff]
  %v1064 = vld [vmem:[%s1 + $0x1f48] sm:$0xff]
  %v1065 = vld [vmem:[%s1 + $0x1f50] sm:$0xff]
  %v1066 = vld [vmem:[%s1 + $0x1f58] sm:$0xff]
  %v1067 = vld [vmem:[%s1 + $0x1f60] sm:$0xff]
  %v1068 = vld [vmem:[%s1 + $0x1f68] sm:$0xff]
  %v1069 = vld [vmem:[%s1 + $0x1f70] sm:$0xff]
  %v1070 = vld [vmem:[%s1 + $0x1f78] sm:$0xff]
  %v1071 = vld [vmem:[%s1 + $0x1f80] sm:$0xff]
  %v1072 = vld [vmem:[%s1 + $0x1f88] sm:$0xff]
  %v1073 = vld [vmem:[%s1 + $0x1f90] sm:$0xff]
  %v1074 = vld [vmem:[%s1 + $0x1f98] sm:$0xff]
  %v1075 = vld [vmem:[%s1 + $0x1fa0] sm:$0xff]
  %v1076 = vld [vmem:[%s1 + $0x1fa8] sm:$0xff]
  %v1077 = vld [vmem:[%s1 + $0x1fb0] sm:$0xff]
  %v1078 = vld [vmem:[%s1 + $0x1fb8] sm:$0xff]
  %v1079 = vld [vmem:[%s1 + $0x1fc0] sm:$0xff]
  %v1080 = vld [vmem:[%s1 + $0x1fc8] sm:$0xff]
  %v1081 = vld [vmem:[%s1 + $0x1fd0] sm:$0xff]
  %v1082 = vld [vmem:[%s1 + $0x1fd8] sm:$0xff]
  %v1083 = vld [vmem:[%s1 + $0x1fe0] sm:$0xff]
  %v1084 = vld [vmem:[%s1 + $0x1fe8] sm:$0xff]
  %v1085 = vld [vmem:[%s1 + $0x1ff0] sm:$0xff]
  %v1086 = vld [vmem:[%s1 + $0x1ff8] sm:$0xff]
  %v1087 = vld [vmem:[%s1 + $0x2000] sm:$0xff]
  %v1088 = vld [vmem:[%s1 + $0x2008] sm:$0xff]
  %v1089 = vld [vmem:[%s1 + $0x2010] sm:$0xff]
  %v1090 = vld [vmem:[%s1 + $0x2018] sm:$0xff]
  %v1091 = vld [vmem:[%s1 + $0x2020] sm:$0xff]
  %v1092 = vld [vmem:[%s1 + $0x2028] sm:$0xff]
  %v1093 = vld [vmem:[%s1 + $0x2030] sm:$0xff]
  %v1094 = vld [vmem:[%s1 + $0x2038] sm:$0xff]
  %v1095 = vld [vmem:[%s1 + $0x2040] sm:$0xff]
  %v1096 = vld [vmem:[%s1 + $0x2048] sm:$0xff]
  %v1097 = vld [vmem:[%s1 + $0x2050] sm:$0xff]
  %v1098 = vld [vmem:[%s1 + $0x2058] sm:$0xff]
  %v1099 = vld [vmem:[%s1 + $0x2060] sm:$0xff]
  %v1100 = vld [vmem:[%s1 + $0x2068] sm:$0xff]
  %v1101 = vld [vmem:[%s1 + $0x2070] sm:$0xff]
  %v1102 = vld [vmem:[%s1 + $0x2078] sm:$0xff]
  %v1103 = vld [vmem:[%s1 + $0x2080] sm:$0xff]
  %v1104 = vld [vmem:[%s1 + $0x2088] sm:$0xff]
  %v1105 = vld [vmem:[%s1 + $0x2090] sm:$0xff]
  %v1106 = vld [vmem:[%s1 + $0x2098] sm:$0xff]
  %v1107 = vld [vmem:[%s1 + $0x20a0] sm:$0xff]
  %v1108 = vld [vmem:[%s1 + $0x20a8] sm:$0xff]
  %v1109 = vld [vmem:[%s1 + $0x20b0] sm:$0xff]
  %v1110 = vld [vmem:[%s1 + $0x20b8] sm:$0xff]
  %v1111 = vld [vmem:[%s1 + $0x20c0] sm:$0xff]
  %v1112 = vld [vmem:[%s1 + $0x20c8] sm:$0xff]
  %v1113 = vld [vmem:[%s1 + $0x20d0] sm:$0xff]
  %v1114 = vld [vmem:[%s1 + $0x20d8] sm:$0xff]
  %v1115 = vld [vmem:[%s1 + $0x20e0] sm:$0xff]
  %v1116 = vld [vmem:[%s1 + $0x20e8] sm:$0xff]
  %v1117 = vld [vmem:[%s1 + $0x20f0] sm:$0xff]
  %v1118 = vld [vmem:[%s1 + $0x20f8] sm:$0xff]
  %v1119 = vld [vmem:[%s1 + $0x2100] sm:$0xff]
  %v1120 = vld [vmem:[%s1 + $0x2108] sm:$0xff]
  %v1121 = vld [vmem:[%s1 + $0x2110] sm:$0xff]
  %v1122 = vld [vmem:[%s1 + $0x2118] sm:$0xff]
  %v1123 = vld [vmem:[%s1 + $0x2120] sm:$0xff]
  %v1124 = vld [vmem:[%s1 + $0x2128] sm:$0xff]
  %v1125 = vld [vmem:[%s1 + $0x2130] sm:$0xff]
  %v1126 = vld [vmem:[%s1 + $0x2138] sm:$0xff]
  %v1127 = vld [vmem:[%s1 + $0x2140] sm:$0xff]
  %v1128 = vld [vmem:[%s1 + $0x2148] sm:$0xff]
  %v1129 = vld [vmem:[%s1 + $0x2150] sm:$0xff]
  %v1130 = vld [vmem:[%s1 + $0x2158] sm:$0xff]
  %v1131 = vld [vmem:[%s1 + $0x2160] sm:$0xff]
  %v1132 = vld [vmem:[%s1 + $0x2168] sm:$0xff]
  %v1133 = vld [vmem:[%s1 + $0x2170] sm:$0xff]
  %v1134 = vld [vmem:[%s1 + $0x2178] sm:$0xff]
  %v1135 = vld [vmem:[%s1 + $0x2180] sm:$0xff]
  %v1136 = vld [vmem:[%s1 + $0x2188] sm:$0xff]
  %v1137 = vld [vmem:[%s1 + $0x2190] sm:$0xff]
  %v1138 = vld [vmem:[%s1 + $0x2198] sm:$0xff]
  %v1139 = vld [vmem:[%s1 + $0x21a0] sm:$0xff]
  %v1140 = vld [vmem:[%s1 + $0x21a8] sm:$0xff]
  %v1141 = vld [vmem:[%s1 + $0x21b0] sm:$0xff]
  %v1142 = vld [vmem:[%s1 + $0x21b8] sm:$0xff]
  %v1143 = vld [vmem:[%s1 + $0x21c0] sm:$0xff]
  %v1144 = vld [vmem:[%s1 + $0x21c8] sm:$0xff]
  %v1145 = vld [vmem:[%s1 + $0x21d0] sm:$0xff]
  %v1146 = vld [vmem:[%s1 + $0x21d8] sm:$0xff]
  %v1147 = vld [vmem:[%s1 + $0x21e0] sm:$0xff]
  %v1148 = vld [vmem:[%s1 + $0x21e8] sm:$0xff]
  %v1149 = vld [vmem:[%s1 + $0x21f0] sm:$0xff]
  %v1150 = vld [vmem:[%s1 + $0x21f8] sm:$0xff]
  %v1151 = vld [vmem:[%s1 + $0x2200] sm:$0xff]
  %v1152 = vld [vmem:[%s1 + $0x2208] sm:$0xff]
  %v1153 = vld [vmem:[%s1 + $0x2210] sm:$0xff]
  %v1154 = vld [vmem:[%s1 + $0x2218] sm:$0xff]
  %v1155 = vld [vmem:[%s1 + $0x2220] sm:$0xff]
  %v1156 = vld [vmem:[%s1 + $0x2228] sm:$0xff]
  %v1157 = vld [vmem:[%s1 + $0x2230] sm:$0xff]
  %v1158 = vld [vmem:[%s1 + $0x2238] sm:$0xff]
  %v1159 = vld [vmem:[%s1 + $0x2240] sm:$0xff]
  %v1160 = vld [vmem:[%s1 + $0x2248] sm:$0xff]
  %v1161 = vld [vmem:[%s1 + $0x2250] sm:$0xff]
  %v1162 = vld [vmem:[%s1 + $0x2258] sm:$0xff]
  %v1163 = vld [vmem:[%s1 + $0x2260] sm:$0xff]
  %v1164 = vld [vmem:[%s1 + $0x2268] sm:$0xff]
  %v1165 = vld [vmem:[%s1 + $0x2270] sm:$0xff]
  %v1166 = vld [vmem:[%s1 + $0x2278] sm:$0xff]
  %v1167 = vld [vmem:[%s1 + $0x2280] sm:$0xff]
  %v1168 = vld [vmem:[%s1 + $0x2288] sm:$0xff]
  %v1169 = vld [vmem:[%s1 + $0x2290] sm:$0xff]
  %v1170 = vld [vmem:[%s1 + $0x2298] sm:$0xff]
  %v1171 = vld [vmem:[%s1 + $0x22a0] sm:$0xff]
  %v1172 = vld [vmem:[%s1 + $0x22a8] sm:$0xff]
  %v1173 = vld [vmem:[%s1 + $0x22b0] sm:$0xff]
  %v1174 = vld [vmem:[%s1 + $0x22b8] sm:$0xff]
  %v1175 = vld [vmem:[%s1 + $0x22c0] sm:$0xff]
  %v1176 = vld [vmem:[%s1 + $0x22c8] sm:$0xff]
  %v1177 = vld [vmem:[%s1 + $0x22d0] sm:$0xff]
  %v1178 = vld [vmem:[%s1 + $0x22d8] sm:$0xff]
  %v1179 = vld [vmem:[%s1 + $0x22e0] sm:$0xff]
  %v1180 = vld [vmem:[%s1 + $0x22e8] sm:$0xff]
  %v1181 = vld [vmem:[%s1 + $0x22f0] sm:$0xff]
  %v1182 = vld [vmem:[%s1 + $0x22f8] sm:$0xff]
  %v1183 = vld [vmem:[%s1 + $0x2300] sm:$0xff]
  %v1184 = vld [vmem:[%s1 + $0x2308] sm:$0xff]
  %v1185 = vld [vmem:[%s1 + $0x2310] sm:$0xff]
  %v1186 = vld [vmem:[%s1 + $0x2318] sm:$0xff]
  %v1187 = vld [vmem:[%s1 + $0x2320] sm:$0xff]
  %v1188 = vld [vmem:[%s1 + $0x2328] sm:$0xff]
  %v1189 = vld [vmem:[%s1 + $0x2330] sm:$0xff]
  %v1190 = vld [vmem:[%s1 + $0x2338] sm:$0xff]
  %v1191 = vld [vmem:[%s1 + $0x2340] sm:$0xff]
  %v1192 = vld [vmem:[%s1 + $0x2348] sm:$0xff]
  %v1193 = vld [vmem:[%s1 + $0x2350] sm:$0xff]
  %v1194 = vld [vmem:[%s1 + $0x2358] sm:$0xff]
  %v1195 = vld [vmem:[%s1 + $0x2360] sm:$0xff]
  %v1196 = vld [vmem:[%s1 + $0x2368] sm:$0xff]
  %v1197 = vld [vmem:[%s1 + $0x2370] sm:$0xff]
  %v1198 = vld [vmem:[%s1 + $0x2378] sm:$0xff]
  %v1199 = vld [vmem:[%s1 + $0x2380] sm:$0xff]
  %v1200 = vld [vmem:[%s1 + $0x2388] sm:$0xff]
  %v1201 = vld [vmem:[%s1 + $0x2390] sm:$0xff]
  %v1202 = vld [vmem:[%s1 + $0x2398] sm:$0xff]
  %v1203 = vld [vmem:[%s1 + $0x23a0] sm:$0xff]
  %v1204 = vld [vmem:[%s1 + $0x23a8] sm:$0xff]
  %v1205 = vld [vmem:[%s1 + $0x23b0] sm:$0xff]
  %v1206 = vld [vmem:[%s1 + $0x23b8] sm:$0xff]
  %v1207 = vld [vmem:[%s1 + $0x23c0] sm:$0xff]
  %v1208 = vld [vmem:[%s1 + $0x23c8] sm:$0xff]
  %v1209 = vld [vmem:[%s1 + $0x23d0] sm:$0xff]
  %v1210 = vld [vmem:[%s1 + $0x23d8] sm:$0xff]
  %v1211 = vld [vmem:[%s1 + $0x23e0] sm:$0xff]
  %v1212 = vld [vmem:[%s1 + $0x23e8] sm:$0xff]
  %v1213 = vld [vmem:[%s1 + $0x23f0] sm:$0xff]
  %v1214 = vld [vmem:[%s1 + $0x23f8] sm:$0xff]
  %v1215 = vld [vmem:[%s1 + $0x2400] sm:$0xff]
  %v1216 = vld [vmem:[%s1 + $0x2408] sm:$0xff]
  %v1217 = vld [vmem:[%s1 + $0x2410] sm:$0xff]
  %v1218 = vld [vmem:[%s1 + $0x2418] sm:$0xff]
  %v1219 = vld [vmem:[%s1 + $0x2420] sm:$0xff]
  %v1220 = vld [vmem:[%s1 + $0x2428] sm:$0xff]
  %v1221 = vld [vmem:[%s1 + $0x2430] sm:$0xff]
  %v1222 = vld [vmem:[%s1 + $0x2438] sm:$0xff]
  %v1223 = vld [vmem:[%s1 + $0x2440] sm:$0xff]
  %v1224 = vld [vmem:[%s1 + $0x2448] sm:$0xff]
  %v1225 = vld [vmem:[%s1 + $0x2450] sm:$0xff]
  %v1226 = vld [vmem:[%s1 + $0x2458] sm:$0xff]
  %v1227 = vld [vmem:[%s1 + $0x2460] sm:$0xff]
  %v1228 = vld [vmem:[%s1 + $0x2468] sm:$0xff]
  %v1229 = vld [vmem:[%s1 + $0x2470] sm:$0xff]
  %v1230 = vld [vmem:[%s1 + $0x2478] sm:$0xff]
  %v1231 = vld [vmem:[%s1 + $0x2480] sm:$0xff]
  %v1232 = vld [vmem:[%s1 + $0x2488] sm:$0xff]
  %v1233 = vld [vmem:[%s1 + $0x2490] sm:$0xff]
  %v1234 = vld [vmem:[%s1 + $0x2498] sm:$0xff]
  %v1235 = vld [vmem:[%s1 + $0x24a0] sm:$0xff]
  %v1236 = vld [vmem:[%s1 + $0x24a8] sm:$0xff]
  %v1237 = vld [vmem:[%s1 + $0x24b0] sm:$0xff]
  %v1238 = vld [vmem:[%s1 + $0x24b8] sm:$0xff]
  %v1239 = vld [vmem:[%s1 + $0x24c0] sm:$0xff]
  %v1240 = vld [vmem:[%s1 + $0x24c8] sm:$0xff]
  %v1241 = vld [vmem:[%s1 + $0x24d0] sm:$0xff]
  %v1242 = vld [vmem:[%s1 + $0x24d8] sm:$0xff]
  %v1243 = vld [vmem:[%s1 + $0x24e0] sm:$0xff]
  %v1244 = vld [vmem:[%s1 + $0x24e8] sm:$0xff]
  %v1245 = vld [vmem:[%s1 + $0x24f0] sm:$0xff]
  %v1246 = vld [vmem:[%s1 + $0x24f8] sm:$0xff]
  %v1247 = vld [vmem:[%s1 + $0x2500] sm:$0xff]
  %v1248 = vld [vmem:[%s1 + $0x2508] sm:$0xff]
  %v1249 = vld [vmem:[%s1 + $0x2510] sm:$0xff]
  %v1250 = vld [vmem:[%s1 + $0x2518] sm:$0xff]
  %v1251 = vld [vmem:[%s1 + $0x2520] sm:$0xff]
  %v1252 = vld [vmem:[%s1 + $0x2528] sm:$0xff]
  %v1253 = vld [vmem:[%s1 + $0x2530] sm:$0xff]
  %v1254 = vld [vmem:[%s1 + $0x2538] sm:$0xff]
  %v1255 = vld [vmem:[%s1 + $0x2540] sm:$0xff]
  %v1256 = vld [vmem:[%s1 + $0x2548] sm:$0xff]
  %v1257 = vld [vmem:[%s1 + $0x2550] sm:$0xff]
  %v1258 = vld [vmem:[%s1 + $0x2558] sm:$0xff]
  %v1259 = vld [vmem:[%s1 + $0x2560] sm:$0xff]
  %v1260 = vld [vmem:[%s1 + $0x2568] sm:$0xff]
  %v1261 = vld [vmem:[%s1 + $0x2570] sm:$0xff]
  %v1262 = vld [vmem:[%s1 + $0x2578] sm:$0xff]
  %v1263 = vld [vmem:[%s1 + $0x2580] sm:$0xff]
  %v1264 = vld [vmem:[%s1 + $0x2588] sm:$0xff]
  %v1265 = vld [vmem:[%s1 + $0x2590] sm:$0xff]
  %v1266 = vld [vmem:[%s1 + $0x2598] sm:$0xff]
  %v1267 = vld [vmem:[%s1 + $0x25a0] sm:$0xff]
  %v1268 = vld [vmem:[%s1 + $0x25a8] sm:$0xff]
  %v1269 = vld [vmem:[%s1 + $0x25b0] sm:$0xff]
  %v1270 = vld [vmem:[%s1 + $0x25b8] sm:$0xff]
  %v1271 = vld [vmem:[%s1 + $0x25c0] sm:$0xff]
  %v1272 = vld [vmem:[%s1 + $0x25c8] sm:$0xff]
  %v1273 = vld [vmem:[%s1 + $0x25d0] sm:$0xff]
  %v1274 = vld [vmem:[%s1 + $0x25d8] sm:$0xff]
  %v1275 = vld [vmem:[%s1 + $0x25e0] sm:$0xff]
  %v1276 = vld [vmem:[%s1 + $0x25e8] sm:$0xff]
  %v1277 = vld [vmem:[%s1 + $0x25f0] sm:$0xff]
  %v1278 = vld [vmem:[%s1 + $0x25f8] sm:$0xff]
  %v1279 = vld [vmem:[%s1 + $0x2600] sm:$0xff]
  %v1280 = vld [vmem:[%s1 + $0x2608] sm:$0xff]
  %v1281 = vld [vmem:[%s1 + $0x2610] sm:$0xff]
  %v1282 = vld [vmem:[%s1 + $0x2618] sm:$0xff]
  %v1283 = vld [vmem:[%s1 + $0x2620] sm:$0xff]
  %v1284 = vld [vmem:[%s1 + $0x2628] sm:$0xff]
  %v1285 = vld [vmem:[%s1 + $0x2630] sm:$0xff]
  %v1286 = vld [vmem:[%s1 + $0x2638] sm:$0xff]
  %v1287 = vld [vmem:[%s1 + $0x2640] sm:$0xff]
  %v1288 = vld [vmem:[%s1 + $0x2648] sm:$0xff]
  %v1289 = vld [vmem:[%s1 + $0x2650] sm:$0xff]
  %v1290 = vld [vmem:[%s1 + $0x2658] sm:$0xff]
  %v1291 = vld [vmem:[%s1 + $0x2660] sm:$0xff]
  %v1292 = vld [vmem:[%s1 + $0x2668] sm:$0xff]
  %v1293 = vld [vmem:[%s1 + $0x2670] sm:$0xff]
  %v1294 = vld [vmem:[%s1 + $0x2678] sm:$0xff]
  %v1295 = vld [vmem:[%s1 + $0x2680] sm:$0xff]
  %v1296 = vld [vmem:[%s1 + $0x2688] sm:$0xff]
  %v1297 = vld [vmem:[%s1 + $0x2690] sm:$0xff]
  %v1298 = vld [vmem:[%s1 + $0x2698] sm:$0xff]
  %v1299 = vld [vmem:[%s1 + $0x26a0] sm:$0xff]
  %v1300 = vld [vmem:[%s1 + $0x26a8] sm:$0xff]
  %v1301 = vld [vmem:[%s1 + $0x26b0] sm:$0xff]
  %v1302 = vld [vmem:[%s1 + $0x26b8] sm:$0xff]
  %v1303 = vld [vmem:[%s1 + $0x26c0] sm:$0xff]
  %v1304 = vld [vmem:[%s1 + $0x26c8] sm:$0xff]
  %v1305 = vld [vmem:[%s1 + $0x26d0] sm:$0xff]
  %v1306 = vld [vmem:[%s1 + $0x26d8] sm:$0xff]
  %v1307 = vld [vmem:[%s1 + $0x26e0] sm:$0xff]
  %v1308 = vld [vmem:[%s1 + $0x26e8] sm:$0xff]
  %v1309 = vld [vmem:[%s1 + $0x26f0] sm:$0xff]
  %v1310 = vld [vmem:[%s1 + $0x26f8] sm:$0xff]
  %v1311 = vld [vmem:[%s1 + $0x2700] sm:$0xff]
  %v1312 = vld [vmem:[%s1 + $0x2708] sm:$0xff]
  %v1313 = vld [vmem:[%s1 + $0x2710] sm:$0xff]
  %v1314 = vld [vmem:[%s1 + $0x2718] sm:$0xff]
  %v1315 = vld [vmem:[%s1 + $0x2720] sm:$0xff]
  %v1316 = vld [vmem:[%s1 + $0x2728] sm:$0xff]
  %v1317 = vld [vmem:[%s1 + $0x2730] sm:$0xff]
  %v1318 = vld [vmem:[%s1 + $0x2738] sm:$0xff]
  %v1319 = vld [vmem:[%s1 + $0x2740] sm:$0xff]
  %v1320 = vld [vmem:[%s1 + $0x2748] sm:$0xff]
  %v1321 = vld [vmem:[%s1 + $0x2750] sm:$0xff]
  %v1322 = vld [vmem:[%s1 + $0x2758] sm:$0xff]
  %v1323 = vld [vmem:[%s1 + $0x2760] sm:$0xff]
  %v1324 = vld [vmem:[%s1 + $0x2768] sm:$0xff]
  %v1325 = vld [vmem:[%s1 + $0x2770] sm:$0xff]
  %v1326 = vld [vmem:[%s1 + $0x2778] sm:$0xff]
  %v1327 = vld [vmem:[%s1 + $0x2780] sm:$0xff]
  %v1328 = vld [vmem:[%s1 + $0x2788] sm:$0xff]
  %v1329 = vld [vmem:[%s1 + $0x2790] sm:$0xff]
  %v1330 = vld [vmem:[%s1 + $0x2798] sm:$0xff]
  %v1331 = vld [vmem:[%s1 + $0x27a0] sm:$0xff]
  %v1332 = vld [vmem:[%s1 + $0x27a8] sm:$0xff]
  %v1333 = vld [vmem:[%s1 + $0x27b0] sm:$0xff]
  %v1334 = vld [vmem:[%s1 + $0x27b8] sm:$0xff]
  %v1335 = vld [vmem:[%s1 + $0x27c0] sm:$0xff]
  %v1336 = vld [vmem:[%s1 + $0x27c8] sm:$0xff]
  %v1337 = vld [vmem:[%s1 + $0x27d0] sm:$0xff]
  %v1338 = vld [vmem:[%s1 + $0x27d8] sm:$0xff]
  %v1339 = vld [vmem:[%s1 + $0x27e0] sm:$0xff]
  %v1340 = vld [vmem:[%s1 + $0x27e8] sm:$0xff]
  %v1341 = vld [vmem:[%s1 + $0x27f0] sm:$0xff]
  %v1342 = vld [vmem:[%s1 + $0x27f8] sm:$0xff]
  %v1343 = vld [vmem:[%s1 + $0x2800] sm:$0xff]
  %v1344 = vld [vmem:[%s1 + $0x2808] sm:$0xff]
  %v1345 = vld [vmem:[%s1 + $0x2810] sm:$0xff]
  %v1346 = vld [vmem:[%s1 + $0x2818] sm:$0xff]
  %v1347 = vld [vmem:[%s1 + $0x2820] sm:$0xff]
  %v1348 = vld [vmem:[%s1 + $0x2828] sm:$0xff]
  %v1349 = vld [vmem:[%s1 + $0x2830] sm:$0xff]
  %v1350 = vld [vmem:[%s1 + $0x2838] sm:$0xff]
  %v1351 = vld [vmem:[%s1 + $0x2840] sm:$0xff]
  %v1352 = vld [vmem:[%s1 + $0x2848] sm:$0xff]
  %v1353 = vld [vmem:[%s1 + $0x2850] sm:$0xff]
  %v1354 = vld [vmem:[%s1 + $0x2858] sm:$0xff]
  %v1355 = vld [vmem:[%s1 + $0x2860] sm:$0xff]
  %v1356 = vld [vmem:[%s1 + $0x2868] sm:$0xff]
  %v1357 = vld [vmem:[%s1 + $0x2870] sm:$0xff]
  %v1358 = vld [vmem:[%s1 + $0x2878] sm:$0xff]
  %v1359 = vld [vmem:[%s1 + $0x2880] sm:$0xff]
  %v1360 = vld [vmem:[%s1 + $0x2888] sm:$0xff]
  %v1361 = vld [vmem:[%s1 + $0x2890] sm:$0xff]
  %v1362 = vld [vmem:[%s1 + $0x2898] sm:$0xff]
  %v1363 = vld [vmem:[%s1 + $0x28a0] sm:$0xff]
  %v1364 = vld [vmem:[%s1 + $0x28a8] sm:$0xff]
  %v1365 = vld [vmem:[%s1 + $0x28b0] sm:$0xff]
  %v1366 = vld [vmem:[%s1 + $0x28b8] sm:$0xff]
  %v1367 = vld [vmem:[%s1 + $0x28c0] sm:$0xff]
  %v1368 = vld [vmem:[%s1 + $0x28c8] sm:$0xff]
  %v1369 = vld [vmem:[%s1 + $0x28d0] sm:$0xff]
  %v1370 = vld [vmem:[%s1 + $0x28d8] sm:$0xff]
  %v1371 = vld [vmem:[%s1 + $0x28e0] sm:$0xff]
  %v1372 = vld [vmem:[%s1 + $0x28e8] sm:$0xff]
  %v1373 = vld [vmem:[%s1 + $0x28f0] sm:$0xff]
  %v1374 = vld [vmem:[%s1 + $0x28f8] sm:$0xff]
  %v1375 = vld [vmem:[%s2] sm:$0xf]
  %v1377 = vlaneseq
  %v1378 = vshrl.u32 %v1377, 7
  %v1379 = vsub.s32 0, %v1378
  %v1380 = vrot.slane %v1375, %v1379
  %v1381 = vlaneseq
  %v1382 = vshrl.u32 %v1381, 7
  %v1383 = vsub.s32 1, %v1382
  %v1384 = vrot.slane %v1375, %v1383
  %v1385 = vlaneseq
  %v1386 = vshrl.u32 %v1385, 7
  %v1387 = vsub.s32 2, %v1386
  %v1388 = vrot.slane %v1375, %v1387
  %v1389 = vlaneseq
  %v1390 = vshrl.u32 %v1389, 7
  %v1391 = vsub.s32 3, %v1390
  %v1392 = vrot.slane %v1375, %v1391
  %v1439 = vunpack.c.l.b16 %v21
  %v1440 = vunpack.c.h.b16 %v21
  %v1441 = vunpack.c.l.b16 %v22
  %v1442 = vunpack.c.h.b16 %v22
  %v1443 = vunpack.c.l.b16 %v23
  %v1444 = vunpack.c.h.b16 %v23
  %v1445 = vunpack.c.l.b16 %v24
  %v1446 = vunpack.c.h.b16 %v24
  %v1447 = vunpack.c.l.b16 %v25
  %v1448 = vunpack.c.h.b16 %v25
  %v1449 = vunpack.c.l.b16 %v26
  %v1450 = vunpack.c.h.b16 %v26
  %v1451 = vunpack.c.l.b16 %v27
  %v1452 = vunpack.c.h.b16 %v27
  %v1453 = vunpack.c.l.b16 %v28
  %v1454 = vunpack.c.h.b16 %v28
  %v1455 = vunpack.c.l.b16 %v29
  %v1456 = vunpack.c.h.b16 %v29
  %v1457 = vunpack.c.l.b16 %v30
  %v1458 = vunpack.c.h.b16 %v30
  %v1459 = vunpack.c.l.b16 %v31
  %v1460 = vunpack.c.h.b16 %v31
  %v1461 = vunpack.c.l.b16 %v32
  %v1462 = vunpack.c.h.b16 %v32
  %v1463 = vunpack.c.l.b16 %v33
  %v1464 = vunpack.c.h.b16 %v33
  %v1465 = vunpack.c.l.b16 %v34
  %v1466 = vunpack.c.h.b16 %v34
  %v1467 = vunpack.c.l.b16 %v35
  %v1468 = vunpack.c.h.b16 %v35
  %v1469 = vunpack.c.l.b16 %v36
  %v1470 = vunpack.c.h.b16 %v36
  %v1471 = vunpack.c.l.b16 %v37
  %v1472 = vunpack.c.h.b16 %v37
  %v1473 = vunpack.c.l.b16 %v38
  %v1474 = vunpack.c.h.b16 %v38
  %v1475 = vunpack.c.l.b16 %v39
  %v1476 = vunpack.c.h.b16 %v39
  %v1477 = vunpack.c.l.b16 %v40
  %v1478 = vunpack.c.h.b16 %v40
  %v1479 = vunpack.c.l.b16 %v41
  %v1480 = vunpack.c.l.b16 %v42
  %v1481 = vunpack.c.h.b16 %v42
  %v1482 = vunpack.c.l.b16 %v43
  %v1483 = vunpack.c.h.b16 %v43
  %v1484 = vunpack.c.l.b16 %v44
  %v1485 = vunpack.c.h.b16 %v44
  %v1486 = vunpack.c.l.b16 %v45
  %v1487 = vunpack.c.h.b16 %v45
  %v1488 = vunpack.c.l.b16 %v46
  %v1489 = vunpack.c.h.b16 %v46
  %v1490 = vunpack.c.l.b16 %v47
  %v1491 = vunpack.c.h.b16 %v47
  %v1492 = vunpack.c.l.b16 %v48
  %v1493 = vunpack.c.h.b16 %v48
  %v1494 = vunpack.c.l.b16 %v49
  %v1495 = vunpack.c.h.b16 %v49
  %v1496 = vunpack.c.l.b16 %v50
  %v1497 = vunpack.c.h.b16 %v50
  %v1498 = vunpack.c.l.b16 %v51
  %v1499 = vunpack.c.h.b16 %v51
  %v1500 = vunpack.c.l.b16 %v52
  %v1501 = vunpack.c.h.b16 %v52
  %v1502 = vunpack.c.l.b16 %v53
  %v1503 = vunpack.c.h.b16 %v53
  %v1504 = vunpack.c.l.b16 %v54
  %v1505 = vunpack.c.h.b16 %v54
  %v1506 = vunpack.c.l.b16 %v55
  %v1507 = vunpack.c.h.b16 %v55
  %v1508 = vunpack.c.l.b16 %v56
  %v1509 = vunpack.c.h.b16 %v56
  %v1510 = vunpack.c.l.b16 %v57
  %v1511 = vunpack.c.h.b16 %v57
  %v1512 = vunpack.c.l.b16 %v58
  %v1513 = vunpack.c.h.b16 %v58
  %v1514 = vunpack.c.l.b16 %v59
  %v1515 = vunpack.c.h.b16 %v59
  %v1516 = vunpack.c.l.b16 %v60
  %v1517 = vunpack.c.h.b16 %v60
  %v1518 = vunpack.c.l.b16 %v61
  %v1519 = vunpack.c.h.b16 %v61
  %v1520 = vunpack.c.l.b16 %v62
  %v1521 = vpack.c.b16 %v1480, %v1439
  %v1522 = vpack.c.b16 %v1481, %v1440
  %v1523 = vpack.c.b16 %v1482, %v1441
  %v1524 = vpack.c.b16 %v1483, %v1442
  %v1525 = vpack.c.b16 %v1484, %v1443
  %v1526 = vpack.c.b16 %v1485, %v1444
  %v1527 = vpack.c.b16 %v1486, %v1445
  %v1528 = vpack.c.b16 %v1487, %v1446
  %v1529 = vpack.c.b16 %v1488, %v1447
  %v1530 = vpack.c.b16 %v1489, %v1448
  %v1531 = vpack.c.b16 %v1490, %v1449
  %v1532 = vpack.c.b16 %v1491, %v1450
  %v1533 = vpack.c.b16 %v1492, %v1451
  %v1534 = vpack.c.b16 %v1493, %v1452
  %v1535 = vpack.c.b16 %v1494, %v1453
  %v1536 = vpack.c.b16 %v1495, %v1454
  %v1537 = vpack.c.b16 %v1496, %v1455
  %v1538 = vpack.c.b16 %v1497, %v1456
  %v1539 = vpack.c.b16 %v1498, %v1457
  %v1540 = vpack.c.b16 %v1499, %v1458
  %v1541 = vpack.c.b16 %v1500, %v1459
  %v1542 = vpack.c.b16 %v1501, %v1460
  %v1543 = vpack.c.b16 %v1502, %v1461
  %v1544 = vpack.c.b16 %v1503, %v1462
  %v1545 = vpack.c.b16 %v1504, %v1463
  %v1546 = vpack.c.b16 %v1505, %v1464
  %v1547 = vpack.c.b16 %v1506, %v1465
  %v1548 = vpack.c.b16 %v1507, %v1466
  %v1549 = vpack.c.b16 %v1508, %v1467
  %v1550 = vpack.c.b16 %v1509, %v1468
  %v1551 = vpack.c.b16 %v1510, %v1469
  %v1552 = vpack.c.b16 %v1511, %v1470
  %v1553 = vpack.c.b16 %v1512, %v1471
  %v1554 = vpack.c.b16 %v1513, %v1472
  %v1555 = vpack.c.b16 %v1514, %v1473
  %v1556 = vpack.c.b16 %v1515, %v1474
  %v1557 = vpack.c.b16 %v1516, %v1475
  %v1558 = vpack.c.b16 %v1517, %v1476
  %v1559 = vpack.c.b16 %v1518, %v1477
  %v1560 = vpack.c.b16 %v1519, %v1478
  %v1561 = vpack.c.b16 %v1520, %v1479
  %v2915 = vunpack.c.l.b16 %v63
  %v2916 = vunpack.c.h.b16 %v63
  %v2917 = vunpack.c.l.b16 %v64
  %v2918 = vunpack.c.h.b16 %v64
  %v2919 = vunpack.c.l.b16 %v65
  %v2920 = vunpack.c.h.b16 %v65
  %v2921 = vunpack.c.l.b16 %v66
  %v2922 = vunpack.c.h.b16 %v66
  %v2923 = vunpack.c.l.b16 %v67
  %v2924 = vunpack.c.h.b16 %v67
  %v2925 = vunpack.c.l.b16 %v68
  %v2926 = vunpack.c.h.b16 %v68
  %v2927 = vunpack.c.l.b16 %v69
  %v2928 = vunpack.c.h.b16 %v69
  %v2929 = vunpack.c.l.b16 %v70
  %v2930 = vunpack.c.h.b16 %v70
  %v2931 = vunpack.c.l.b16 %v71
  %v2932 = vunpack.c.h.b16 %v71
  %v2933 = vunpack.c.l.b16 %v72
  %v2934 = vunpack.c.h.b16 %v72
  %v2935 = vunpack.c.l.b16 %v73
  %v2936 = vunpack.c.h.b16 %v73
  %v2937 = vunpack.c.l.b16 %v74
  %v2938 = vunpack.c.h.b16 %v74
  %v2939 = vunpack.c.l.b16 %v75
  %v2940 = vunpack.c.h.b16 %v75
  %v2941 = vunpack.c.l.b16 %v76
  %v2942 = vunpack.c.h.b16 %v76
  %v2943 = vunpack.c.l.b16 %v77
  %v2944 = vunpack.c.h.b16 %v77
  %v2945 = vunpack.c.l.b16 %v78
  %v2946 = vunpack.c.h.b16 %v78
  %v2947 = vunpack.c.l.b16 %v79
  %v2948 = vunpack.c.h.b16 %v79
  %v2949 = vunpack.c.l.b16 %v80
  %v2950 = vunpack.c.h.b16 %v80
  %v2951 = vunpack.c.l.b16 %v81
  %v2952 = vunpack.c.h.b16 %v81
  %v2953 = vunpack.c.l.b16 %v82
  %v2954 = vunpack.c.h.b16 %v82
  %v2955 = vunpack.c.l.b16 %v83
  %v2956 = vunpack.c.h.b16 %v83
  %v2957 = vunpack.c.l.b16 %v84
  %v2958 = vunpack.c.h.b16 %v84
  %v2959 = vunpack.c.l.b16 %v85
  %v2960 = vunpack.c.h.b16 %v85
  %v2961 = vunpack.c.l.b16 %v86
  %v2962 = vunpack.c.h.b16 %v86
  %v2963 = vunpack.c.l.b16 %v87
  %v2964 = vunpack.c.h.b16 %v87
  %v2965 = vunpack.c.l.b16 %v88
  %v2966 = vunpack.c.h.b16 %v88
  %v2967 = vunpack.c.l.b16 %v89
  %v2968 = vunpack.c.h.b16 %v89
  %v2969 = vunpack.c.l.b16 %v90
  %v2970 = vunpack.c.h.b16 %v90
  %v2971 = vunpack.c.l.b16 %v91
  %v2972 = vunpack.c.h.b16 %v91
  %v2973 = vunpack.c.l.b16 %v92
  %v2974 = vunpack.c.h.b16 %v92
  %v2975 = vunpack.c.l.b16 %v93
  %v2976 = vunpack.c.h.b16 %v93
  %v2977 = vunpack.c.l.b16 %v94
  %v2978 = vunpack.c.h.b16 %v94
  %v2979 = vunpack.c.l.b16 %v95
  %v2980 = vunpack.c.h.b16 %v95
  %v2981 = vunpack.c.l.b16 %v96
  %v2982 = vunpack.c.h.b16 %v96
  %v2983 = vunpack.c.l.b16 %v97
  %v2984 = vunpack.c.h.b16 %v97
  %v2985 = vunpack.c.l.b16 %v98
  %v2986 = vunpack.c.h.b16 %v98
  %v2987 = vunpack.c.l.b16 %v99
  %v2988 = vunpack.c.h.b16 %v99
  %v2989 = vunpack.c.l.b16 %v100
  %v2990 = vunpack.c.h.b16 %v100
  %v2991 = vunpack.c.l.b16 %v101
  %v2992 = vunpack.c.h.b16 %v101
  %v2993 = vunpack.c.l.b16 %v102
  %v2994 = vunpack.c.h.b16 %v102
  %v2995 = vunpack.c.l.b16 %v103
  %v2996 = vunpack.c.h.b16 %v103
  %v2997 = vunpack.c.l.b16 %v104
  %v2998 = vunpack.c.h.b16 %v104
  %v2999 = vunpack.c.l.b16 %v105
  %v3000 = vunpack.c.h.b16 %v105
  %v3001 = vunpack.c.l.b16 %v106
  %v3002 = vunpack.c.h.b16 %v106
  %v3003 = vunpack.c.l.b16 %v107
  %v3004 = vunpack.c.h.b16 %v107
  %v3005 = vunpack.c.l.b16 %v108
  %v3006 = vunpack.c.h.b16 %v108
  %v3007 = vunpack.c.l.b16 %v109
  %v3008 = vunpack.c.h.b16 %v109
  %v3009 = vunpack.c.l.b16 %v110
  %v3010 = vunpack.c.h.b16 %v110
  %v3011 = vunpack.c.l.b16 %v111
  %v3012 = vunpack.c.h.b16 %v111
  %v3013 = vunpack.c.l.b16 %v112
  %v3014 = vunpack.c.h.b16 %v112
  %v3015 = vunpack.c.l.b16 %v113
  %v3016 = vunpack.c.h.b16 %v113
  %v3017 = vunpack.c.l.b16 %v114
  %v3018 = vunpack.c.h.b16 %v114
  %v3019 = vunpack.c.l.b16 %v115
  %v3020 = vunpack.c.h.b16 %v115
  %v3021 = vunpack.c.l.b16 %v116
  %v3022 = vunpack.c.h.b16 %v116
  %v3023 = vunpack.c.l.b16 %v117
  %v3024 = vunpack.c.h.b16 %v117
  %v3025 = vunpack.c.l.b16 %v118
  %v3026 = vunpack.c.h.b16 %v118
  %v3027 = vunpack.c.l.b16 %v119
  %v3028 = vunpack.c.h.b16 %v119
  %v3029 = vunpack.c.l.b16 %v120
  %v3030 = vunpack.c.h.b16 %v120
  %v3031 = vunpack.c.l.b16 %v121
  %v3032 = vunpack.c.h.b16 %v121
  %v3033 = vunpack.c.l.b16 %v122
  %v3034 = vunpack.c.h.b16 %v122
  %v3035 = vunpack.c.l.b16 %v123
  %v3036 = vunpack.c.h.b16 %v123
  %v3037 = vunpack.c.l.b16 %v124
  %v3038 = vunpack.c.h.b16 %v124
  %v3039 = vunpack.c.l.b16 %v125
  %v3040 = vunpack.c.h.b16 %v125
  %v3041 = vunpack.c.l.b16 %v126
  %v3042 = vunpack.c.h.b16 %v126
  %v3043 = vunpack.c.l.b16 %v127
  %v3044 = vunpack.c.h.b16 %v127
  %v3045 = vunpack.c.l.b16 %v128
  %v3046 = vunpack.c.h.b16 %v128
  %v3047 = vunpack.c.l.b16 %v129
  %v3048 = vunpack.c.h.b16 %v129
  %v3049 = vunpack.c.l.b16 %v130
  %v3050 = vunpack.c.h.b16 %v130
  %v3051 = vunpack.c.l.b16 %v131
  %v3052 = vunpack.c.h.b16 %v131
  %v3053 = vunpack.c.l.b16 %v132
  %v3054 = vunpack.c.h.b16 %v132
  %v3055 = vunpack.c.l.b16 %v133
  %v3056 = vunpack.c.h.b16 %v133
  %v3057 = vunpack.c.l.b16 %v134
  %v3058 = vunpack.c.h.b16 %v134
  %v3059 = vunpack.c.l.b16 %v135
  %v3060 = vunpack.c.h.b16 %v135
  %v3061 = vunpack.c.l.b16 %v136
  %v3062 = vunpack.c.h.b16 %v136
  %v3063 = vunpack.c.l.b16 %v137
  %v3064 = vunpack.c.h.b16 %v137
  %v3065 = vunpack.c.l.b16 %v138
  %v3066 = vunpack.c.h.b16 %v138
  %v3067 = vunpack.c.l.b16 %v139
  %v3068 = vunpack.c.h.b16 %v139
  %v3069 = vunpack.c.l.b16 %v140
  %v3070 = vunpack.c.h.b16 %v140
  %v3071 = vunpack.c.l.b16 %v141
  %v3072 = vunpack.c.h.b16 %v141
  %v3073 = vunpack.c.l.b16 %v142
  %v3074 = vunpack.c.h.b16 %v142
  %v3075 = vunpack.c.l.b16 %v143
  %v3076 = vunpack.c.h.b16 %v143
  %v3077 = vunpack.c.l.b16 %v144
  %v3078 = vunpack.c.h.b16 %v144
  %v3079 = vunpack.c.l.b16 %v145
  %v3080 = vunpack.c.h.b16 %v145
  %v3081 = vunpack.c.l.b16 %v146
  %v3082 = vunpack.c.h.b16 %v146
  %v3083 = vunpack.c.l.b16 %v147
  %v3084 = vunpack.c.h.b16 %v147
  %v3085 = vunpack.c.l.b16 %v148
  %v3086 = vunpack.c.h.b16 %v148
  %v3087 = vunpack.c.l.b16 %v149
  %v3088 = vunpack.c.h.b16 %v149
  %v3089 = vunpack.c.l.b16 %v150
  %v3090 = vunpack.c.h.b16 %v150
  %v3091 = vunpack.c.l.b16 %v151
  %v3092 = vunpack.c.h.b16 %v151
  %v3093 = vunpack.c.l.b16 %v152
  %v3094 = vunpack.c.h.b16 %v152
  %v3095 = vunpack.c.l.b16 %v153
  %v3096 = vunpack.c.h.b16 %v153
  %v3097 = vunpack.c.l.b16 %v154
  %v3098 = vunpack.c.h.b16 %v154
  %v3099 = vunpack.c.l.b16 %v155
  %v3100 = vunpack.c.h.b16 %v155
  %v3101 = vunpack.c.l.b16 %v156
  %v3102 = vunpack.c.h.b16 %v156
  %v3103 = vunpack.c.l.b16 %v157
  %v3104 = vunpack.c.h.b16 %v157
  %v3105 = vunpack.c.l.b16 %v158
  %v3106 = vunpack.c.h.b16 %v158
  %v3107 = vunpack.c.l.b16 %v159
  %v3108 = vunpack.c.h.b16 %v159
  %v3109 = vunpack.c.l.b16 %v160
  %v3110 = vunpack.c.h.b16 %v160
  %v3111 = vunpack.c.l.b16 %v161
  %v3112 = vunpack.c.h.b16 %v161
  %v3113 = vunpack.c.l.b16 %v162
  %v3114 = vunpack.c.h.b16 %v162
  %v3115 = vunpack.c.l.b16 %v163
  %v3116 = vunpack.c.h.b16 %v163
  %v3117 = vunpack.c.l.b16 %v164
  %v3118 = vunpack.c.h.b16 %v164
  %v3119 = vunpack.c.l.b16 %v165
  %v3120 = vunpack.c.h.b16 %v165
  %v3121 = vunpack.c.l.b16 %v166
  %v3122 = vunpack.c.h.b16 %v166
  %v3123 = vunpack.c.l.b16 %v167
  %v3124 = vunpack.c.h.b16 %v167
  %v3125 = vunpack.c.l.b16 %v168
  %v3126 = vunpack.c.h.b16 %v168
  %v3127 = vunpack.c.l.b16 %v169
  %v3128 = vunpack.c.h.b16 %v169
  %v3129 = vunpack.c.l.b16 %v170
  %v3130 = vunpack.c.h.b16 %v170
  %v3131 = vunpack.c.l.b16 %v171
  %v3132 = vunpack.c.h.b16 %v171
  %v3133 = vunpack.c.l.b16 %v172
  %v3134 = vunpack.c.h.b16 %v172
  %v3135 = vunpack.c.l.b16 %v173
  %v3136 = vunpack.c.h.b16 %v173
  %v3137 = vunpack.c.l.b16 %v174
  %v3138 = vunpack.c.h.b16 %v174
  %v3139 = vunpack.c.l.b16 %v175
  %v3140 = vunpack.c.h.b16 %v175
  %v3141 = vunpack.c.l.b16 %v176
  %v3142 = vunpack.c.h.b16 %v176
  %v3143 = vunpack.c.l.b16 %v177
  %v3144 = vunpack.c.h.b16 %v177
  %v3145 = vunpack.c.l.b16 %v178
  %v3146 = vunpack.c.h.b16 %v178
  %v3147 = vunpack.c.l.b16 %v179
  %v3148 = vunpack.c.h.b16 %v179
  %v3149 = vunpack.c.l.b16 %v180
  %v3150 = vunpack.c.h.b16 %v180
  %v3151 = vunpack.c.l.b16 %v181
  %v3152 = vunpack.c.h.b16 %v181
  %v3153 = vunpack.c.l.b16 %v182
  %v3154 = vunpack.c.h.b16 %v182
  %v3155 = vunpack.c.l.b16 %v183
  %v3156 = vunpack.c.h.b16 %v183
  %v3157 = vunpack.c.l.b16 %v184
  %v3158 = vunpack.c.h.b16 %v184
  %v3159 = vunpack.c.l.b16 %v185
  %v3160 = vunpack.c.h.b16 %v185
  %v3161 = vunpack.c.l.b16 %v186
  %v3162 = vunpack.c.h.b16 %v186
  %v3163 = vunpack.c.l.b16 %v187
  %v3164 = vunpack.c.h.b16 %v187
  %v3165 = vunpack.c.l.b16 %v188
  %v3166 = vunpack.c.h.b16 %v188
  %v3167 = vunpack.c.l.b16 %v189
  %v3168 = vunpack.c.h.b16 %v189
  %v3169 = vunpack.c.l.b16 %v190
  %v3170 = vunpack.c.h.b16 %v190
  %v3171 = vunpack.c.l.b16 %v191
  %v3172 = vunpack.c.h.b16 %v191
  %v3173 = vunpack.c.l.b16 %v192
  %v3174 = vunpack.c.h.b16 %v192
  %v3175 = vunpack.c.l.b16 %v193
  %v3176 = vunpack.c.h.b16 %v193
  %v3177 = vunpack.c.l.b16 %v194
  %v3178 = vunpack.c.h.b16 %v194
  %v3179 = vunpack.c.l.b16 %v195
  %v3180 = vunpack.c.h.b16 %v195
  %v3181 = vunpack.c.l.b16 %v196
  %v3182 = vunpack.c.h.b16 %v196
  %v3183 = vunpack.c.l.b16 %v197
  %v3184 = vunpack.c.h.b16 %v197
  %v3185 = vunpack.c.l.b16 %v198
  %v3186 = vunpack.c.h.b16 %v198
  %v3187 = vunpack.c.l.b16 %v199
  %v3188 = vunpack.c.h.b16 %v199
  %v3189 = vunpack.c.l.b16 %v200
  %v3190 = vunpack.c.h.b16 %v200
  %v3191 = vunpack.c.l.b16 %v201
  %v3192 = vunpack.c.h.b16 %v201
  %v3193 = vunpack.c.l.b16 %v202
  %v3194 = vunpack.c.h.b16 %v202
  %v3195 = vunpack.c.l.b16 %v203
  %v3196 = vunpack.c.h.b16 %v203
  %v3197 = vunpack.c.l.b16 %v204
  %v3198 = vunpack.c.h.b16 %v204
  %v3199 = vunpack.c.l.b16 %v205
  %v3200 = vunpack.c.h.b16 %v205
  %v3201 = vunpack.c.l.b16 %v206
  %v3202 = vunpack.c.h.b16 %v206
  %v3203 = vunpack.c.l.b16 %v207
  %v3204 = vunpack.c.h.b16 %v207
  %v3205 = vunpack.c.l.b16 %v208
  %v3206 = vunpack.c.h.b16 %v208
  %v3207 = vunpack.c.l.b16 %v209
  %v3208 = vunpack.c.h.b16 %v209
  %v3209 = vunpack.c.l.b16 %v210
  %v3210 = vunpack.c.h.b16 %v210
  %v3211 = vunpack.c.l.b16 %v211
  %v3212 = vunpack.c.h.b16 %v211
  %v3213 = vunpack.c.l.b16 %v212
  %v3214 = vunpack.c.h.b16 %v212
  %v3215 = vunpack.c.l.b16 %v213
  %v3216 = vunpack.c.h.b16 %v213
  %v3217 = vunpack.c.l.b16 %v214
  %v3218 = vunpack.c.h.b16 %v214
  %v3219 = vunpack.c.l.b16 %v215
  %v3220 = vunpack.c.h.b16 %v215
  %v3221 = vunpack.c.l.b16 %v216
  %v3222 = vunpack.c.h.b16 %v216
  %v3223 = vunpack.c.l.b16 %v217
  %v3224 = vunpack.c.h.b16 %v217
  %v3225 = vunpack.c.l.b16 %v218
  %v3226 = vunpack.c.h.b16 %v218
  %v3227 = vunpack.c.l.b16 %v219
  %v3228 = vunpack.c.h.b16 %v219
  %v3229 = vunpack.c.l.b16 %v220
  %v3230 = vunpack.c.h.b16 %v220
  %v3231 = vunpack.c.l.b16 %v221
  %v3232 = vunpack.c.h.b16 %v221
  %v3233 = vunpack.c.l.b16 %v222
  %v3234 = vunpack.c.h.b16 %v222
  %v3235 = vunpack.c.l.b16 %v223
  %v3236 = vunpack.c.h.b16 %v223
  %v3237 = vunpack.c.l.b16 %v224
  %v3238 = vunpack.c.h.b16 %v224
  %v3239 = vunpack.c.l.b16 %v225
  %v3240 = vunpack.c.h.b16 %v225
  %v3241 = vunpack.c.l.b16 %v226
  %v3242 = vunpack.c.h.b16 %v226
  %v3243 = vunpack.c.l.b16 %v227
  %v3244 = vunpack.c.h.b16 %v227
  %v3245 = vunpack.c.l.b16 %v228
  %v3246 = vunpack.c.h.b16 %v228
  %v3247 = vunpack.c.l.b16 %v229
  %v3248 = vunpack.c.h.b16 %v229
  %v3249 = vunpack.c.l.b16 %v230
  %v3250 = vunpack.c.h.b16 %v230
  %v3251 = vunpack.c.l.b16 %v231
  %v3252 = vunpack.c.h.b16 %v231
  %v3253 = vunpack.c.l.b16 %v232
  %v3254 = vunpack.c.h.b16 %v232
  %v3255 = vunpack.c.l.b16 %v233
  %v3256 = vunpack.c.h.b16 %v233
  %v3257 = vunpack.c.l.b16 %v234
  %v3258 = vunpack.c.h.b16 %v234
  %v3259 = vunpack.c.l.b16 %v235
  %v3260 = vunpack.c.h.b16 %v235
  %v3261 = vunpack.c.l.b16 %v236
  %v3262 = vunpack.c.h.b16 %v236
  %v3263 = vunpack.c.l.b16 %v237
  %v3264 = vunpack.c.h.b16 %v237
  %v3265 = vunpack.c.l.b16 %v238
  %v3266 = vunpack.c.h.b16 %v238
  %v3267 = vunpack.c.l.b16 %v239
  %v3268 = vunpack.c.h.b16 %v239
  %v3269 = vunpack.c.l.b16 %v240
  %v3270 = vunpack.c.h.b16 %v240
  %v3271 = vunpack.c.l.b16 %v241
  %v3272 = vunpack.c.h.b16 %v241
  %v3273 = vunpack.c.l.b16 %v242
  %v3274 = vunpack.c.h.b16 %v242
  %v3275 = vunpack.c.l.b16 %v243
  %v3276 = vunpack.c.h.b16 %v243
  %v3277 = vunpack.c.l.b16 %v244
  %v3278 = vunpack.c.h.b16 %v244
  %v3279 = vunpack.c.l.b16 %v245
  %v3280 = vunpack.c.h.b16 %v245
  %v3281 = vunpack.c.l.b16 %v246
  %v3282 = vunpack.c.h.b16 %v246
  %v3283 = vunpack.c.l.b16 %v247
  %v3284 = vunpack.c.h.b16 %v247
  %v3285 = vunpack.c.l.b16 %v248
  %v3286 = vunpack.c.h.b16 %v248
  %v3287 = vunpack.c.l.b16 %v249
  %v3288 = vunpack.c.h.b16 %v249
  %v3289 = vunpack.c.l.b16 %v250
  %v3290 = vunpack.c.h.b16 %v250
  %v3291 = vunpack.c.l.b16 %v251
  %v3292 = vunpack.c.h.b16 %v251
  %v3293 = vunpack.c.l.b16 %v252
  %v3294 = vunpack.c.h.b16 %v252
  %v3295 = vunpack.c.l.b16 %v253
  %v3296 = vunpack.c.h.b16 %v253
  %v3297 = vunpack.c.l.b16 %v254
  %v3298 = vunpack.c.h.b16 %v254
  %v3299 = vunpack.c.l.b16 %v255
  %v3300 = vunpack.c.h.b16 %v255
  %v3301 = vunpack.c.l.b16 %v256
  %v3302 = vunpack.c.h.b16 %v256
  %v3303 = vunpack.c.l.b16 %v257
  %v3304 = vunpack.c.h.b16 %v257
  %v3305 = vunpack.c.l.b16 %v258
  %v3306 = vunpack.c.h.b16 %v258
  %v3307 = vunpack.c.l.b16 %v259
  %v3308 = vunpack.c.h.b16 %v259
  %v3309 = vunpack.c.l.b16 %v260
  %v3310 = vunpack.c.h.b16 %v260
  %v3311 = vunpack.c.l.b16 %v261
  %v3312 = vunpack.c.h.b16 %v261
  %v3313 = vunpack.c.l.b16 %v262
  %v3314 = vunpack.c.h.b16 %v262
  %v3315 = vunpack.c.l.b16 %v263
  %v3316 = vunpack.c.h.b16 %v263
  %v3317 = vunpack.c.l.b16 %v264
  %v3318 = vunpack.c.h.b16 %v264
  %v3319 = vunpack.c.l.b16 %v265
  %v3320 = vunpack.c.h.b16 %v265
  %v3321 = vunpack.c.l.b16 %v266
  %v3322 = vunpack.c.h.b16 %v266
  %v3323 = vunpack.c.l.b16 %v267
  %v3324 = vunpack.c.h.b16 %v267
  %v3325 = vunpack.c.l.b16 %v268
  %v3326 = vunpack.c.h.b16 %v268
  %v3327 = vunpack.c.l.b16 %v269
  %v3328 = vunpack.c.h.b16 %v269
  %v3329 = vunpack.c.l.b16 %v270
  %v3330 = vunpack.c.h.b16 %v270
  %v3331 = vunpack.c.l.b16 %v271
  %v3332 = vunpack.c.h.b16 %v271
  %v3333 = vunpack.c.l.b16 %v272
  %v3334 = vunpack.c.h.b16 %v272
  %v3335 = vunpack.c.l.b16 %v273
  %v3336 = vunpack.c.h.b16 %v273
  %v3337 = vunpack.c.l.b16 %v274
  %v3338 = vunpack.c.h.b16 %v274
  %v3339 = vunpack.c.l.b16 %v275
  %v3340 = vunpack.c.h.b16 %v275
  %v3341 = vunpack.c.l.b16 %v276
  %v3342 = vunpack.c.h.b16 %v276
  %v3343 = vunpack.c.l.b16 %v277
  %v3344 = vunpack.c.h.b16 %v277
  %v3345 = vunpack.c.l.b16 %v278
  %v3346 = vunpack.c.h.b16 %v278
  %v3347 = vunpack.c.l.b16 %v279
  %v3348 = vunpack.c.h.b16 %v279
  %v3349 = vunpack.c.l.b16 %v280
  %v3350 = vunpack.c.h.b16 %v280
  %v3351 = vunpack.c.l.b16 %v281
  %v3352 = vunpack.c.h.b16 %v281
  %v3353 = vunpack.c.l.b16 %v282
  %v3354 = vunpack.c.h.b16 %v282
  %v3355 = vunpack.c.l.b16 %v283
  %v3356 = vunpack.c.h.b16 %v283
  %v3357 = vunpack.c.l.b16 %v284
  %v3358 = vunpack.c.h.b16 %v284
  %v3359 = vunpack.c.l.b16 %v285
  %v3360 = vunpack.c.h.b16 %v285
  %v3361 = vunpack.c.l.b16 %v286
  %v3362 = vunpack.c.h.b16 %v286
  %v3363 = vunpack.c.l.b16 %v287
  %v3364 = vunpack.c.h.b16 %v287
  %v3365 = vunpack.c.l.b16 %v288
  %v3366 = vunpack.c.h.b16 %v288
  %v3367 = vunpack.c.l.b16 %v289
  %v3368 = vunpack.c.h.b16 %v289
  %v3369 = vunpack.c.l.b16 %v290
  %v3370 = vunpack.c.h.b16 %v290
  %v3371 = vunpack.c.l.b16 %v291
  %v3372 = vunpack.c.h.b16 %v291
  %v3373 = vunpack.c.l.b16 %v292
  %v3374 = vunpack.c.h.b16 %v292
  %v3375 = vunpack.c.l.b16 %v293
  %v3376 = vunpack.c.h.b16 %v293
  %v3377 = vunpack.c.l.b16 %v294
  %v3378 = vunpack.c.h.b16 %v294
  %v3379 = vunpack.c.l.b16 %v295
  %v3380 = vunpack.c.h.b16 %v295
  %v3381 = vunpack.c.l.b16 %v296
  %v3382 = vunpack.c.h.b16 %v296
  %v3383 = vunpack.c.l.b16 %v297
  %v3384 = vunpack.c.h.b16 %v297
  %v3385 = vunpack.c.l.b16 %v298
  %v3386 = vunpack.c.h.b16 %v298
  %v3387 = vunpack.c.l.b16 %v299
  %v3388 = vunpack.c.h.b16 %v299
  %v3389 = vunpack.c.l.b16 %v300
  %v3390 = vunpack.c.h.b16 %v300
  %v3391 = vunpack.c.l.b16 %v301
  %v3392 = vunpack.c.h.b16 %v301
  %v3393 = vunpack.c.l.b16 %v302
  %v3394 = vunpack.c.h.b16 %v302
  %v3395 = vunpack.c.l.b16 %v303
  %v3396 = vunpack.c.h.b16 %v303
  %v3397 = vunpack.c.l.b16 %v304
  %v3398 = vunpack.c.h.b16 %v304
  %v3399 = vunpack.c.l.b16 %v305
  %v3400 = vunpack.c.h.b16 %v305
  %v3401 = vunpack.c.l.b16 %v306
  %v3402 = vunpack.c.h.b16 %v306
  %v3403 = vunpack.c.l.b16 %v307
  %v3404 = vunpack.c.h.b16 %v307
  %v3405 = vunpack.c.l.b16 %v308
  %v3406 = vunpack.c.h.b16 %v308
  %v3407 = vunpack.c.l.b16 %v309
  %v3408 = vunpack.c.h.b16 %v309
  %v3409 = vunpack.c.l.b16 %v310
  %v3410 = vunpack.c.h.b16 %v310
  %v3411 = vunpack.c.l.b16 %v311
  %v3412 = vunpack.c.h.b16 %v311
  %v3413 = vunpack.c.l.b16 %v312
  %v3414 = vunpack.c.h.b16 %v312
  %v3415 = vunpack.c.l.b16 %v313
  %v3416 = vunpack.c.h.b16 %v313
  %v3417 = vunpack.c.l.b16 %v314
  %v3418 = vunpack.c.h.b16 %v314
  %v3419 = vunpack.c.l.b16 %v315
  %v3420 = vunpack.c.h.b16 %v315
  %v3421 = vunpack.c.l.b16 %v316
  %v3422 = vunpack.c.h.b16 %v316
  %v3423 = vunpack.c.l.b16 %v317
  %v3424 = vunpack.c.h.b16 %v317
  %v3425 = vunpack.c.l.b16 %v318
  %v3426 = vunpack.c.h.b16 %v318
  %v3427 = vunpack.c.l.b16 %v319
  %v3428 = vunpack.c.h.b16 %v319
  %v3429 = vunpack.c.l.b16 %v320
  %v3430 = vunpack.c.h.b16 %v320
  %v3431 = vunpack.c.l.b16 %v321
  %v3432 = vunpack.c.h.b16 %v321
  %v3433 = vunpack.c.l.b16 %v322
  %v3434 = vunpack.c.h.b16 %v322
  %v3435 = vunpack.c.l.b16 %v323
  %v3436 = vunpack.c.h.b16 %v323
  %v3437 = vunpack.c.l.b16 %v324
  %v3438 = vunpack.c.h.b16 %v324
  %v3439 = vunpack.c.l.b16 %v325
  %v3440 = vunpack.c.h.b16 %v325
  %v3441 = vunpack.c.l.b16 %v326
  %v3442 = vunpack.c.h.b16 %v326
  %v3443 = vunpack.c.l.b16 %v327
  %v3444 = vunpack.c.h.b16 %v327
  %v3445 = vunpack.c.l.b16 %v328
  %v3446 = vunpack.c.h.b16 %v328
  %v3447 = vunpack.c.l.b16 %v329
  %v3448 = vunpack.c.h.b16 %v329
  %v3449 = vunpack.c.l.b16 %v330
  %v3450 = vunpack.c.h.b16 %v330
  %v3451 = vunpack.c.l.b16 %v331
  %v3452 = vunpack.c.h.b16 %v331
  %v3453 = vunpack.c.l.b16 %v332
  %v3454 = vunpack.c.h.b16 %v332
  %v3455 = vunpack.c.l.b16 %v333
  %v3456 = vunpack.c.h.b16 %v333
  %v3457 = vunpack.c.l.b16 %v334
  %v3458 = vunpack.c.h.b16 %v334
  %v3459 = vunpack.c.l.b16 %v335
  %v3460 = vunpack.c.h.b16 %v335
  %v3461 = vunpack.c.l.b16 %v336
  %v3462 = vunpack.c.h.b16 %v336
  %v3463 = vunpack.c.l.b16 %v337
  %v3464 = vunpack.c.h.b16 %v337
  %v3465 = vunpack.c.l.b16 %v338
  %v3466 = vunpack.c.h.b16 %v338
  %v3467 = vunpack.c.l.b16 %v339
  %v3468 = vunpack.c.h.b16 %v339
  %v3469 = vunpack.c.l.b16 %v340
  %v3470 = vunpack.c.h.b16 %v340
  %v3471 = vunpack.c.l.b16 %v341
  %v3472 = vunpack.c.h.b16 %v341
  %v3473 = vunpack.c.l.b16 %v342
  %v3474 = vunpack.c.h.b16 %v342
  %v3475 = vunpack.c.l.b16 %v343
  %v3476 = vunpack.c.h.b16 %v343
  %v3477 = vunpack.c.l.b16 %v344
  %v3478 = vunpack.c.h.b16 %v344
  %v3479 = vunpack.c.l.b16 %v345
  %v3480 = vunpack.c.h.b16 %v345
  %v3481 = vunpack.c.l.b16 %v346
  %v3482 = vunpack.c.h.b16 %v346
  %v3483 = vunpack.c.l.b16 %v347
  %v3484 = vunpack.c.h.b16 %v347
  %v3485 = vunpack.c.l.b16 %v348
  %v3486 = vunpack.c.h.b16 %v348
  %v3487 = vunpack.c.l.b16 %v349
  %v3488 = vunpack.c.h.b16 %v349
  %v3489 = vunpack.c.l.b16 %v350
  %v3490 = vunpack.c.h.b16 %v350
  %v3491 = vunpack.c.l.b16 %v351
  %v3492 = vunpack.c.h.b16 %v351
  %v3493 = vunpack.c.l.b16 %v352
  %v3494 = vunpack.c.h.b16 %v352
  %v3495 = vunpack.c.l.b16 %v353
  %v3496 = vunpack.c.h.b16 %v353
  %v3497 = vunpack.c.l.b16 %v354
  %v3498 = vunpack.c.h.b16 %v354
  %v3499 = vunpack.c.l.b16 %v355
  %v3500 = vunpack.c.h.b16 %v355
  %v3501 = vunpack.c.l.b16 %v356
  %v3502 = vunpack.c.h.b16 %v356
  %v3503 = vunpack.c.l.b16 %v357
  %v3504 = vunpack.c.h.b16 %v357
  %v3505 = vunpack.c.l.b16 %v358
  %v3506 = vunpack.c.h.b16 %v358
  %v3507 = vunpack.c.l.b16 %v359
  %v3508 = vunpack.c.h.b16 %v359
  %v3509 = vunpack.c.l.b16 %v360
  %v3510 = vunpack.c.h.b16 %v360
  %v3511 = vunpack.c.l.b16 %v361
  %v3512 = vunpack.c.h.b16 %v361
  %v3513 = vunpack.c.l.b16 %v362
  %v3514 = vunpack.c.h.b16 %v362
  %v3515 = vunpack.c.l.b16 %v363
  %v3516 = vunpack.c.h.b16 %v363
  %v3517 = vunpack.c.l.b16 %v364
  %v3518 = vunpack.c.h.b16 %v364
  %v3519 = vunpack.c.l.b16 %v365
  %v3520 = vunpack.c.h.b16 %v365
  %v3521 = vunpack.c.l.b16 %v366
  %v3522 = vunpack.c.h.b16 %v366
  %v3523 = vunpack.c.l.b16 %v367
  %v3524 = vunpack.c.h.b16 %v367
  %v3525 = vunpack.c.l.b16 %v368
  %v3526 = vunpack.c.h.b16 %v368
  %v3527 = vunpack.c.l.b16 %v369
  %v3528 = vunpack.c.h.b16 %v369
  %v3529 = vunpack.c.l.b16 %v370
  %v3530 = vunpack.c.h.b16 %v370
  %v3531 = vunpack.c.l.b16 %v371
  %v3532 = vunpack.c.h.b16 %v371
  %v3533 = vunpack.c.l.b16 %v372
  %v3534 = vunpack.c.h.b16 %v372
  %v3535 = vunpack.c.l.b16 %v373
  %v3536 = vunpack.c.h.b16 %v373
  %v3537 = vunpack.c.l.b16 %v374
  %v3538 = vunpack.c.h.b16 %v374
  %v3539 = vunpack.c.l.b16 %v375
  %v3540 = vunpack.c.h.b16 %v375
  %v3541 = vunpack.c.l.b16 %v376
  %v3542 = vunpack.c.h.b16 %v376
  %v3543 = vunpack.c.l.b16 %v377
  %v3544 = vunpack.c.h.b16 %v377
  %v3545 = vunpack.c.l.b16 %v378
  %v3546 = vunpack.c.h.b16 %v378
  %v3547 = vunpack.c.l.b16 %v379
  %v3548 = vunpack.c.h.b16 %v379
  %v3549 = vunpack.c.l.b16 %v380
  %v3550 = vunpack.c.h.b16 %v380
  %v3551 = vunpack.c.l.b16 %v381
  %v3552 = vunpack.c.h.b16 %v381
  %v3553 = vunpack.c.l.b16 %v382
  %v3554 = vunpack.c.h.b16 %v382
  %v3555 = vunpack.c.l.b16 %v383
  %v3556 = vunpack.c.h.b16 %v383
  %v3557 = vunpack.c.l.b16 %v384
  %v3558 = vunpack.c.h.b16 %v384
  %v3559 = vunpack.c.l.b16 %v385
  %v3560 = vunpack.c.h.b16 %v385
  %v3561 = vunpack.c.l.b16 %v386
  %v3562 = vunpack.c.h.b16 %v386
  %v3563 = vunpack.c.l.b16 %v387
  %v3564 = vunpack.c.h.b16 %v387
  %v3565 = vunpack.c.l.b16 %v388
  %v3566 = vunpack.c.h.b16 %v388
  %v3567 = vunpack.c.l.b16 %v389
  %v3568 = vunpack.c.h.b16 %v389
  %v3569 = vunpack.c.l.b16 %v390
  %v3570 = vunpack.c.h.b16 %v390
  %v3571 = vunpack.c.l.b16 %v391
  %v3572 = vunpack.c.h.b16 %v391
  %v3573 = vunpack.c.l.b16 %v392
  %v3574 = vunpack.c.h.b16 %v392
  %v3575 = vunpack.c.l.b16 %v393
  %v3576 = vunpack.c.h.b16 %v393
  %v3577 = vunpack.c.l.b16 %v394
  %v3578 = vunpack.c.h.b16 %v394
  %v3579 = vunpack.c.l.b16 %v395
  %v3580 = vunpack.c.h.b16 %v395
  %v3581 = vunpack.c.l.b16 %v396
  %v3582 = vunpack.c.h.b16 %v396
  %v3583 = vunpack.c.l.b16 %v397
  %v3584 = vunpack.c.h.b16 %v397
  %v3585 = vunpack.c.l.b16 %v398
  %v3586 = vunpack.c.h.b16 %v398
  %v3587 = vunpack.c.l.b16 %v399
  %v3588 = vunpack.c.h.b16 %v399
  %v3589 = vunpack.c.l.b16 %v400
  %v3590 = vunpack.c.h.b16 %v400
  %v3591 = vunpack.c.l.b16 %v401
  %v3592 = vunpack.c.h.b16 %v401
  %v3593 = vunpack.c.l.b16 %v402
  %v3594 = vunpack.c.h.b16 %v402
  %v3595 = vunpack.c.l.b16 %v403
  %v3596 = vunpack.c.h.b16 %v403
  %v3597 = vunpack.c.l.b16 %v404
  %v3598 = vunpack.c.h.b16 %v404
  %v3599 = vunpack.c.l.b16 %v405
  %v3600 = vunpack.c.h.b16 %v405
  %v3601 = vunpack.c.l.b16 %v406
  %v3602 = vunpack.c.h.b16 %v406
  %v3603 = vunpack.c.l.b16 %v407
  %v3604 = vunpack.c.h.b16 %v407
  %v3605 = vunpack.c.l.b16 %v408
  %v3606 = vunpack.c.h.b16 %v408
  %v3607 = vunpack.c.l.b16 %v409
  %v3608 = vunpack.c.h.b16 %v409
  %v3609 = vunpack.c.l.b16 %v410
  %v3610 = vunpack.c.h.b16 %v410
  %v3611 = vunpack.c.l.b16 %v411
  %v3612 = vunpack.c.h.b16 %v411
  %v3613 = vunpack.c.l.b16 %v412
  %v3614 = vunpack.c.h.b16 %v412
  %v3615 = vunpack.c.l.b16 %v413
  %v3616 = vunpack.c.h.b16 %v413
  %v3617 = vunpack.c.l.b16 %v414
  %v3618 = vunpack.c.h.b16 %v414
  %v3619 = vunpack.c.l.b16 %v415
  %v3620 = vunpack.c.h.b16 %v415
  %v3621 = vunpack.c.l.b16 %v416
  %v3622 = vunpack.c.h.b16 %v416
  %v3623 = vunpack.c.l.b16 %v417
  %v3624 = vunpack.c.h.b16 %v417
  %v3625 = vunpack.c.l.b16 %v418
  %v3626 = vunpack.c.h.b16 %v418
  %v3627 = vunpack.c.l.b16 %v419
  %v3628 = vunpack.c.h.b16 %v419
  %v3629 = vunpack.c.l.b16 %v420
  %v3630 = vunpack.c.h.b16 %v420
  %v3631 = vunpack.c.l.b16 %v421
  %v3632 = vunpack.c.h.b16 %v421
  %v3633 = vunpack.c.l.b16 %v422
  %v3634 = vunpack.c.h.b16 %v422
  %v3635 = vunpack.c.l.b16 %v423
  %v3636 = vunpack.c.h.b16 %v423
  %v3637 = vunpack.c.l.b16 %v424
  %v3638 = vunpack.c.h.b16 %v424
  %v3639 = vunpack.c.l.b16 %v425
  %v3640 = vunpack.c.h.b16 %v425
  %v3641 = vunpack.c.l.b16 %v426
  %v3642 = vunpack.c.h.b16 %v426
  %v3643 = vunpack.c.l.b16 %v427
  %v3644 = vunpack.c.h.b16 %v427
  %v3645 = vunpack.c.l.b16 %v428
  %v3646 = vunpack.c.h.b16 %v428
  %v3647 = vunpack.c.l.b16 %v429
  %v3648 = vunpack.c.h.b16 %v429
  %v3649 = vunpack.c.l.b16 %v430
  %v3650 = vunpack.c.h.b16 %v430
  %v3651 = vunpack.c.l.b16 %v431
  %v3652 = vunpack.c.h.b16 %v431
  %v3653 = vunpack.c.l.b16 %v432
  %v3654 = vunpack.c.h.b16 %v432
  %v3655 = vunpack.c.l.b16 %v433
  %v3656 = vunpack.c.h.b16 %v433
  %v3657 = vunpack.c.l.b16 %v434
  %v3658 = vunpack.c.h.b16 %v434
  %v3659 = vunpack.c.l.b16 %v435
  %v3660 = vunpack.c.h.b16 %v435
  %v3661 = vunpack.c.l.b16 %v436
  %v3662 = vunpack.c.h.b16 %v436
  %v3663 = vunpack.c.l.b16 %v437
  %v3664 = vunpack.c.h.b16 %v437
  %v3665 = vunpack.c.l.b16 %v438
  %v3666 = vunpack.c.h.b16 %v438
  %v3667 = vunpack.c.l.b16 %v439
  %v3668 = vunpack.c.h.b16 %v439
  %v3669 = vunpack.c.l.b16 %v440
  %v3670 = vunpack.c.h.b16 %v440
  %v3671 = vunpack.c.l.b16 %v441
  %v3672 = vunpack.c.h.b16 %v441
  %v3673 = vunpack.c.l.b16 %v442
  %v3674 = vunpack.c.h.b16 %v442
  %v3675 = vunpack.c.l.b16 %v443
  %v3676 = vunpack.c.h.b16 %v443
  %v3677 = vunpack.c.l.b16 %v444
  %v3678 = vunpack.c.h.b16 %v444
  %v3679 = vunpack.c.l.b16 %v445
  %v3680 = vunpack.c.h.b16 %v445
  %v3681 = vunpack.c.l.b16 %v446
  %v3682 = vunpack.c.h.b16 %v446
  %v3683 = vunpack.c.l.b16 %v447
  %v3684 = vunpack.c.h.b16 %v447
  %v3685 = vunpack.c.l.b16 %v448
  %v3686 = vunpack.c.h.b16 %v448
  %v3687 = vunpack.c.l.b16 %v449
  %v3688 = vunpack.c.h.b16 %v449
  %v3689 = vunpack.c.l.b16 %v450
  %v3690 = vunpack.c.h.b16 %v450
  %v3691 = vunpack.c.l.b16 %v451
  %v3692 = vunpack.c.h.b16 %v451
  %v3693 = vunpack.c.l.b16 %v452
  %v3694 = vunpack.c.h.b16 %v452
  %v3695 = vunpack.c.l.b16 %v453
  %v3696 = vunpack.c.h.b16 %v453
  %v3697 = vunpack.c.l.b16 %v454
  %v3698 = vunpack.c.h.b16 %v454
  %v3699 = vunpack.c.l.b16 %v455
  %v3700 = vunpack.c.h.b16 %v455
  %v3701 = vunpack.c.l.b16 %v456
  %v3702 = vunpack.c.h.b16 %v456
  %v3703 = vunpack.c.l.b16 %v457
  %v3704 = vunpack.c.h.b16 %v457
  %v3705 = vunpack.c.l.b16 %v458
  %v3706 = vunpack.c.h.b16 %v458
  %v3707 = vunpack.c.l.b16 %v459
  %v3708 = vunpack.c.h.b16 %v459
  %v3709 = vunpack.c.l.b16 %v460
  %v3710 = vunpack.c.h.b16 %v460
  %v3711 = vunpack.c.l.b16 %v461
  %v3712 = vunpack.c.h.b16 %v461
  %v3713 = vunpack.c.l.b16 %v462
  %v3714 = vunpack.c.h.b16 %v462
  %v3715 = vunpack.c.l.b16 %v463
  %v3716 = vunpack.c.h.b16 %v463
  %v3717 = vunpack.c.l.b16 %v464
  %v3718 = vunpack.c.h.b16 %v464
  %v3719 = vunpack.c.l.b16 %v465
  %v3720 = vunpack.c.h.b16 %v465
  %v3721 = vunpack.c.l.b16 %v466
  %v3722 = vunpack.c.h.b16 %v466
  %v3723 = vunpack.c.l.b16 %v467
  %v3724 = vunpack.c.h.b16 %v467
  %v3725 = vunpack.c.l.b16 %v468
  %v3726 = vunpack.c.h.b16 %v468
  %v3727 = vunpack.c.l.b16 %v469
  %v3728 = vunpack.c.h.b16 %v469
  %v3729 = vunpack.c.l.b16 %v470
  %v3730 = vunpack.c.h.b16 %v470
  %v3731 = vunpack.c.l.b16 %v471
  %v3732 = vunpack.c.h.b16 %v471
  %v3733 = vunpack.c.l.b16 %v472
  %v3734 = vunpack.c.h.b16 %v472
  %v3735 = vunpack.c.l.b16 %v473
  %v3736 = vunpack.c.h.b16 %v473
  %v3737 = vunpack.c.l.b16 %v474
  %v3738 = vunpack.c.h.b16 %v474
  %v3739 = vunpack.c.l.b16 %v475
  %v3740 = vunpack.c.h.b16 %v475
  %v3741 = vunpack.c.l.b16 %v476
  %v3742 = vunpack.c.h.b16 %v476
  %v3743 = vunpack.c.l.b16 %v477
  %v3744 = vunpack.c.h.b16 %v477
  %v3745 = vunpack.c.l.b16 %v478
  %v3746 = vunpack.c.h.b16 %v478
  %v3747 = vunpack.c.l.b16 %v479
  %v3748 = vunpack.c.h.b16 %v479
  %v3749 = vunpack.c.l.b16 %v480
  %v3750 = vunpack.c.h.b16 %v480
  %v3751 = vunpack.c.l.b16 %v481
  %v3752 = vunpack.c.h.b16 %v481
  %v3753 = vunpack.c.l.b16 %v482
  %v3754 = vunpack.c.h.b16 %v482
  %v3755 = vunpack.c.l.b16 %v483
  %v3756 = vunpack.c.h.b16 %v483
  %v3757 = vunpack.c.l.b16 %v484
  %v3758 = vunpack.c.h.b16 %v484
  %v3759 = vunpack.c.l.b16 %v485
  %v3760 = vunpack.c.h.b16 %v485
  %v3761 = vunpack.c.l.b16 %v486
  %v3762 = vunpack.c.h.b16 %v486
  %v3763 = vunpack.c.l.b16 %v487
  %v3764 = vunpack.c.h.b16 %v487
  %v3765 = vunpack.c.l.b16 %v488
  %v3766 = vunpack.c.h.b16 %v488
  %v3767 = vunpack.c.l.b16 %v489
  %v3768 = vunpack.c.h.b16 %v489
  %v3769 = vunpack.c.l.b16 %v490
  %v3770 = vunpack.c.h.b16 %v490
  %v3771 = vunpack.c.l.b16 %v491
  %v3772 = vunpack.c.h.b16 %v491
  %v3773 = vunpack.c.l.b16 %v492
  %v3774 = vunpack.c.h.b16 %v492
  %v3775 = vunpack.c.l.b16 %v493
  %v3776 = vunpack.c.h.b16 %v493
  %v3777 = vunpack.c.l.b16 %v494
  %v3778 = vunpack.c.h.b16 %v494
  %v3779 = vunpack.c.l.b16 %v495
  %v3780 = vunpack.c.h.b16 %v495
  %v3781 = vunpack.c.l.b16 %v496
  %v3782 = vunpack.c.h.b16 %v496
  %v3783 = vunpack.c.l.b16 %v497
  %v3784 = vunpack.c.h.b16 %v497
  %v3785 = vunpack.c.l.b16 %v498
  %v3786 = vunpack.c.h.b16 %v498
  %v3787 = vunpack.c.l.b16 %v499
  %v3788 = vunpack.c.h.b16 %v499
  %v3789 = vunpack.c.l.b16 %v500
  %v3790 = vunpack.c.h.b16 %v500
  %v3791 = vunpack.c.l.b16 %v501
  %v3792 = vunpack.c.h.b16 %v501
  %v3793 = vunpack.c.l.b16 %v502
  %v3794 = vunpack.c.h.b16 %v502
  %v3795 = vunpack.c.l.b16 %v503
  %v3796 = vunpack.c.h.b16 %v503
  %v3797 = vunpack.c.l.b16 %v504
  %v3798 = vunpack.c.h.b16 %v504
  %v3799 = vunpack.c.l.b16 %v505
  %v3800 = vunpack.c.h.b16 %v505
  %v3801 = vunpack.c.l.b16 %v506
  %v3802 = vunpack.c.h.b16 %v506
  %v3803 = vunpack.c.l.b16 %v507
  %v3804 = vunpack.c.h.b16 %v507
  %v3805 = vunpack.c.l.b16 %v508
  %v3806 = vunpack.c.h.b16 %v508
  %v3807 = vunpack.c.l.b16 %v509
  %v3808 = vunpack.c.h.b16 %v509
  %v3809 = vunpack.c.l.b16 %v510
  %v3810 = vunpack.c.h.b16 %v510
  %v3811 = vunpack.c.l.b16 %v511
  %v3812 = vunpack.c.h.b16 %v511
  %v3813 = vunpack.c.l.b16 %v512
  %v3814 = vunpack.c.h.b16 %v512
  %v3815 = vunpack.c.l.b16 %v513
  %v3816 = vunpack.c.h.b16 %v513
  %v3817 = vunpack.c.l.b16 %v514
  %v3818 = vunpack.c.h.b16 %v514
  %v3819 = vunpack.c.l.b16 %v515
  %v3820 = vunpack.c.h.b16 %v515
  %v3821 = vunpack.c.l.b16 %v516
  %v3822 = vunpack.c.h.b16 %v516
  %v3823 = vunpack.c.l.b16 %v517
  %v3824 = vunpack.c.h.b16 %v517
  %v3825 = vunpack.c.l.b16 %v518
  %v3826 = vunpack.c.h.b16 %v518
  %v3827 = vunpack.c.l.b16 %v519
  %v3828 = vunpack.c.h.b16 %v519
  %v3829 = vunpack.c.l.b16 %v520
  %v3830 = vunpack.c.h.b16 %v520
  %v3831 = vunpack.c.l.b16 %v521
  %v3832 = vunpack.c.h.b16 %v521
  %v3833 = vunpack.c.l.b16 %v522
  %v3834 = vunpack.c.h.b16 %v522
  %v3835 = vunpack.c.l.b16 %v523
  %v3836 = vunpack.c.h.b16 %v523
  %v3837 = vunpack.c.l.b16 %v524
  %v3838 = vunpack.c.h.b16 %v524
  %v3839 = vunpack.c.l.b16 %v525
  %v3840 = vunpack.c.h.b16 %v525
  %v3841 = vunpack.c.l.b16 %v526
  %v3842 = vunpack.c.h.b16 %v526
  %v3843 = vunpack.c.l.b16 %v527
  %v3844 = vunpack.c.h.b16 %v527
  %v3845 = vunpack.c.l.b16 %v528
  %v3846 = vunpack.c.h.b16 %v528
  %v3847 = vunpack.c.l.b16 %v529
  %v3848 = vunpack.c.h.b16 %v529
  %v3849 = vunpack.c.l.b16 %v530
  %v3850 = vunpack.c.h.b16 %v530
  %v3851 = vunpack.c.l.b16 %v531
  %v3852 = vunpack.c.h.b16 %v531
  %v3853 = vunpack.c.l.b16 %v532
  %v3854 = vunpack.c.h.b16 %v532
  %v3855 = vunpack.c.l.b16 %v533
  %v3856 = vunpack.c.h.b16 %v533
  %v3857 = vunpack.c.l.b16 %v534
  %v3858 = vunpack.c.h.b16 %v534
  %v3859 = vunpack.c.l.b16 %v535
  %v3860 = vunpack.c.h.b16 %v535
  %v3861 = vunpack.c.l.b16 %v536
  %v3862 = vunpack.c.h.b16 %v536
  %v3863 = vunpack.c.l.b16 %v537
  %v3864 = vunpack.c.h.b16 %v537
  %v3865 = vunpack.c.l.b16 %v538
  %v3866 = vunpack.c.h.b16 %v538
  %v3867 = vunpack.c.l.b16 %v539
  %v3868 = vunpack.c.h.b16 %v539
  %v3869 = vunpack.c.l.b16 %v540
  %v3870 = vunpack.c.h.b16 %v540
  %v3871 = vunpack.c.l.b16 %v541
  %v3872 = vunpack.c.h.b16 %v541
  %v3873 = vunpack.c.l.b16 %v542
  %v3874 = vunpack.c.h.b16 %v542
  %v3875 = vunpack.c.l.b16 %v543
  %v3876 = vunpack.c.h.b16 %v543
  %v3877 = vunpack.c.l.b16 %v544
  %v3878 = vunpack.c.h.b16 %v544
  %v3879 = vunpack.c.l.b16 %v545
  %v3880 = vunpack.c.h.b16 %v545
  %v3881 = vunpack.c.l.b16 %v546
  %v3882 = vunpack.c.h.b16 %v546
  %v3883 = vunpack.c.l.b16 %v547
  %v3884 = vunpack.c.h.b16 %v547
  %v3885 = vunpack.c.l.b16 %v548
  %v3886 = vunpack.c.h.b16 %v548
  %v3887 = vunpack.c.l.b16 %v549
  %v3888 = vunpack.c.h.b16 %v549
  %v3889 = vunpack.c.l.b16 %v550
  %v3890 = vunpack.c.h.b16 %v550
  %v3891 = vunpack.c.l.b16 %v551
  %v3892 = vunpack.c.h.b16 %v551
  %v3893 = vunpack.c.l.b16 %v552
  %v3894 = vunpack.c.h.b16 %v552
  %v3895 = vunpack.c.l.b16 %v553
  %v3896 = vunpack.c.h.b16 %v553
  %v3897 = vunpack.c.l.b16 %v554
  %v3898 = vunpack.c.h.b16 %v554
  %v3899 = vunpack.c.l.b16 %v555
  %v3900 = vunpack.c.h.b16 %v555
  %v3901 = vunpack.c.l.b16 %v556
  %v3902 = vunpack.c.h.b16 %v556
  %v3903 = vunpack.c.l.b16 %v557
  %v3904 = vunpack.c.h.b16 %v557
  %v3905 = vunpack.c.l.b16 %v558
  %v3906 = vunpack.c.h.b16 %v558
  %v3907 = vunpack.c.l.b16 %v559
  %v3908 = vunpack.c.h.b16 %v559
  %v3909 = vunpack.c.l.b16 %v560
  %v3910 = vunpack.c.h.b16 %v560
  %v3911 = vunpack.c.l.b16 %v561
  %v3912 = vunpack.c.h.b16 %v561
  %v3913 = vunpack.c.l.b16 %v562
  %v3914 = vunpack.c.h.b16 %v562
  %v3915 = vunpack.c.l.b16 %v563
  %v3916 = vunpack.c.h.b16 %v563
  %v3917 = vunpack.c.l.b16 %v564
  %v3918 = vunpack.c.h.b16 %v564
  %v3919 = vunpack.c.l.b16 %v565
  %v3920 = vunpack.c.h.b16 %v565
  %v3921 = vunpack.c.l.b16 %v566
  %v3922 = vunpack.c.h.b16 %v566
  %v3923 = vunpack.c.l.b16 %v567
  %v3924 = vunpack.c.h.b16 %v567
  %v3925 = vunpack.c.l.b16 %v568
  %v3926 = vunpack.c.h.b16 %v568
  %v3927 = vunpack.c.l.b16 %v569
  %v3928 = vunpack.c.h.b16 %v569
  %v3929 = vunpack.c.l.b16 %v570
  %v3930 = vunpack.c.h.b16 %v570
  %v3931 = vunpack.c.l.b16 %v571
  %v3932 = vunpack.c.h.b16 %v571
  %v3933 = vunpack.c.l.b16 %v572
  %v3934 = vunpack.c.h.b16 %v572
  %v3935 = vunpack.c.l.b16 %v573
  %v3936 = vunpack.c.h.b16 %v573
  %v3937 = vunpack.c.l.b16 %v574
  %v3938 = vunpack.c.h.b16 %v574
  %v3939 = vunpack.c.l.b16 %v575
  %v3940 = vunpack.c.h.b16 %v575
  %v3941 = vunpack.c.l.b16 %v576
  %v3942 = vunpack.c.h.b16 %v576
  %v3943 = vunpack.c.l.b16 %v577
  %v3944 = vunpack.c.h.b16 %v577
  %v3945 = vunpack.c.l.b16 %v578
  %v3946 = vunpack.c.h.b16 %v578
  %v3947 = vunpack.c.l.b16 %v579
  %v3948 = vunpack.c.h.b16 %v579
  %v3949 = vunpack.c.l.b16 %v580
  %v3950 = vunpack.c.h.b16 %v580
  %v3951 = vunpack.c.l.b16 %v581
  %v3952 = vunpack.c.h.b16 %v581
  %v3953 = vunpack.c.l.b16 %v582
  %v3954 = vunpack.c.h.b16 %v582
  %v3955 = vunpack.c.l.b16 %v583
  %v3956 = vunpack.c.h.b16 %v583
  %v3957 = vunpack.c.l.b16 %v584
  %v3958 = vunpack.c.h.b16 %v584
  %v3959 = vunpack.c.l.b16 %v585
  %v3960 = vunpack.c.h.b16 %v585
  %v3961 = vunpack.c.l.b16 %v586
  %v3962 = vunpack.c.h.b16 %v586
  %v3963 = vunpack.c.l.b16 %v587
  %v3964 = vunpack.c.h.b16 %v587
  %v3965 = vunpack.c.l.b16 %v588
  %v3966 = vunpack.c.h.b16 %v588
  %v3967 = vunpack.c.l.b16 %v589
  %v3968 = vunpack.c.h.b16 %v589
  %v3969 = vunpack.c.l.b16 %v590
  %v3970 = vunpack.c.h.b16 %v590
  %v3971 = vunpack.c.l.b16 %v591
  %v3972 = vunpack.c.h.b16 %v591
  %v3973 = vunpack.c.l.b16 %v592
  %v3974 = vunpack.c.h.b16 %v592
  %v3975 = vunpack.c.l.b16 %v593
  %v3976 = vunpack.c.h.b16 %v593
  %v3977 = vunpack.c.l.b16 %v594
  %v3978 = vunpack.c.h.b16 %v594
  %v3979 = vunpack.c.l.b16 %v595
  %v3980 = vunpack.c.h.b16 %v595
  %v3981 = vunpack.c.l.b16 %v596
  %v3982 = vunpack.c.h.b16 %v596
  %v3983 = vunpack.c.l.b16 %v597
  %v3984 = vunpack.c.h.b16 %v597
  %v3985 = vunpack.c.l.b16 %v598
  %v3986 = vunpack.c.h.b16 %v598
  %v3987 = vunpack.c.l.b16 %v599
  %v3988 = vunpack.c.h.b16 %v599
  %v3989 = vunpack.c.l.b16 %v600
  %v3990 = vunpack.c.h.b16 %v600
  %v3991 = vunpack.c.l.b16 %v601
  %v3992 = vunpack.c.h.b16 %v601
  %v3993 = vunpack.c.l.b16 %v602
  %v3994 = vunpack.c.h.b16 %v602
  %v3995 = vunpack.c.l.b16 %v603
  %v3996 = vunpack.c.h.b16 %v603
  %v3997 = vunpack.c.l.b16 %v604
  %v3998 = vunpack.c.h.b16 %v604
  %v3999 = vunpack.c.l.b16 %v605
  %v4000 = vunpack.c.h.b16 %v605
  %v4001 = vunpack.c.l.b16 %v606
  %v4002 = vunpack.c.h.b16 %v606
  %v4003 = vunpack.c.l.b16 %v607
  %v4004 = vunpack.c.h.b16 %v607
  %v4005 = vunpack.c.l.b16 %v608
  %v4006 = vunpack.c.h.b16 %v608
  %v4007 = vunpack.c.l.b16 %v609
  %v4008 = vunpack.c.h.b16 %v609
  %v4009 = vunpack.c.l.b16 %v610
  %v4010 = vunpack.c.h.b16 %v610
  %v4011 = vunpack.c.l.b16 %v611
  %v4012 = vunpack.c.h.b16 %v611
  %v4013 = vunpack.c.l.b16 %v612
  %v4014 = vunpack.c.h.b16 %v612
  %v4015 = vunpack.c.l.b16 %v613
  %v4016 = vunpack.c.h.b16 %v613
  %v4017 = vunpack.c.l.b16 %v614
  %v4018 = vunpack.c.h.b16 %v614
  %v4019 = vunpack.c.l.b16 %v615
  %v4020 = vunpack.c.h.b16 %v615
  %v4021 = vunpack.c.l.b16 %v616
  %v4022 = vunpack.c.h.b16 %v616
  %v4023 = vunpack.c.l.b16 %v617
  %v4024 = vunpack.c.h.b16 %v617
  %v4025 = vunpack.c.l.b16 %v618
  %v4026 = vunpack.c.h.b16 %v618
  %v4027 = vunpack.c.l.b16 %v619
  %v4028 = vunpack.c.h.b16 %v619
  %v4029 = vunpack.c.l.b16 %v620
  %v4030 = vunpack.c.h.b16 %v620
  %v4031 = vunpack.c.l.b16 %v621
  %v4032 = vunpack.c.h.b16 %v621
  %v4033 = vunpack.c.l.b16 %v622
  %v4034 = vunpack.c.h.b16 %v622
  %v4035 = vunpack.c.l.b16 %v623
  %v4036 = vunpack.c.h.b16 %v623
  %v4037 = vunpack.c.l.b16 %v624
  %v4038 = vunpack.c.h.b16 %v624
  %v4039 = vunpack.c.l.b16 %v625
  %v4040 = vunpack.c.h.b16 %v625
  %v4041 = vunpack.c.l.b16 %v626
  %v4042 = vunpack.c.h.b16 %v626
  %v4043 = vunpack.c.l.b16 %v627
  %v4044 = vunpack.c.h.b16 %v627
  %v4045 = vunpack.c.l.b16 %v628
  %v4046 = vunpack.c.h.b16 %v628
  %v4047 = vunpack.c.l.b16 %v629
  %v4048 = vunpack.c.h.b16 %v629
  %v4049 = vunpack.c.l.b16 %v630
  %v4050 = vunpack.c.h.b16 %v630
  %v4051 = vunpack.c.l.b16 %v631
  %v4052 = vunpack.c.h.b16 %v631
  %v4053 = vunpack.c.l.b16 %v632
  %v4054 = vunpack.c.h.b16 %v632
  %v4055 = vunpack.c.l.b16 %v633
  %v4056 = vunpack.c.h.b16 %v633
  %v4057 = vunpack.c.l.b16 %v634
  %v4058 = vunpack.c.h.b16 %v634
  %v4059 = vunpack.c.l.b16 %v635
  %v4060 = vunpack.c.h.b16 %v635
  %v4061 = vunpack.c.l.b16 %v636
  %v4062 = vunpack.c.h.b16 %v636
  %v4063 = vunpack.c.l.b16 %v637
  %v4064 = vunpack.c.h.b16 %v637
  %v4065 = vunpack.c.l.b16 %v638
  %v4066 = vunpack.c.h.b16 %v638
  %v4067 = vunpack.c.l.b16 %v639
  %v4068 = vunpack.c.h.b16 %v639
  %v4069 = vunpack.c.l.b16 %v640
  %v4070 = vunpack.c.h.b16 %v640
  %v4071 = vunpack.c.l.b16 %v641
  %v4072 = vunpack.c.h.b16 %v641
  %v4073 = vunpack.c.l.b16 %v642
  %v4074 = vunpack.c.h.b16 %v642
  %v4075 = vunpack.c.l.b16 %v643
  %v4076 = vunpack.c.h.b16 %v643
  %v4077 = vunpack.c.l.b16 %v644
  %v4078 = vunpack.c.h.b16 %v644
  %v4079 = vunpack.c.l.b16 %v645
  %v4080 = vunpack.c.h.b16 %v645
  %v4081 = vunpack.c.l.b16 %v646
  %v4082 = vunpack.c.h.b16 %v646
  %v4083 = vunpack.c.l.b16 %v647
  %v4084 = vunpack.c.h.b16 %v647
  %v4085 = vunpack.c.l.b16 %v648
  %v4086 = vunpack.c.h.b16 %v648
  %v4087 = vunpack.c.l.b16 %v649
  %v4088 = vunpack.c.h.b16 %v649
  %v4089 = vunpack.c.l.b16 %v650
  %v4090 = vunpack.c.h.b16 %v650
  %v4091 = vunpack.c.l.b16 %v651
  %v4092 = vunpack.c.h.b16 %v651
  %v4093 = vunpack.c.l.b16 %v652
  %v4094 = vunpack.c.h.b16 %v652
  %v4095 = vunpack.c.l.b16 %v653
  %v4096 = vunpack.c.h.b16 %v653
  %v4097 = vunpack.c.l.b16 %v654
  %v4098 = vunpack.c.h.b16 %v654
  %v4099 = vunpack.c.l.b16 %v655
  %v4100 = vunpack.c.h.b16 %v655
  %v4101 = vunpack.c.l.b16 %v656
  %v4102 = vunpack.c.h.b16 %v656
  %v4103 = vunpack.c.l.b16 %v657
  %v4104 = vunpack.c.h.b16 %v657
  %v4105 = vunpack.c.l.b16 %v658
  %v4106 = vunpack.c.h.b16 %v658
  %v4107 = vunpack.c.l.b16 %v659
  %v4108 = vunpack.c.h.b16 %v659
  %v4109 = vunpack.c.l.b16 %v660
  %v4110 = vunpack.c.h.b16 %v660
  %v4111 = vunpack.c.l.b16 %v661
  %v4112 = vunpack.c.h.b16 %v661
  %v4113 = vunpack.c.l.b16 %v662
  %v4114 = vunpack.c.h.b16 %v662
  %v4115 = vunpack.c.l.b16 %v663
  %v4116 = vunpack.c.h.b16 %v663
  %v4117 = vunpack.c.l.b16 %v664
  %v4118 = vunpack.c.h.b16 %v664
  %v4119 = vunpack.c.l.b16 %v665
  %v4120 = vunpack.c.h.b16 %v665
  %v4121 = vunpack.c.l.b16 %v666
  %v4122 = vunpack.c.h.b16 %v666
  %v4123 = vunpack.c.l.b16 %v667
  %v4124 = vunpack.c.h.b16 %v667
  %v4125 = vunpack.c.l.b16 %v668
  %v4126 = vunpack.c.h.b16 %v668
  %v4127 = vunpack.c.l.b16 %v669
  %v4128 = vunpack.c.h.b16 %v669
  %v4129 = vunpack.c.l.b16 %v670
  %v4130 = vunpack.c.h.b16 %v670
  %v4131 = vunpack.c.l.b16 %v671
  %v4132 = vunpack.c.h.b16 %v671
  %v4133 = vunpack.c.l.b16 %v672
  %v4134 = vunpack.c.h.b16 %v672
  %v4135 = vunpack.c.l.b16 %v673
  %v4136 = vunpack.c.h.b16 %v673
  %v4137 = vunpack.c.l.b16 %v674
  %v4138 = vunpack.c.h.b16 %v674
  %v4139 = vunpack.c.l.b16 %v675
  %v4140 = vunpack.c.h.b16 %v675
  %v4141 = vunpack.c.l.b16 %v676
  %v4142 = vunpack.c.h.b16 %v676
  %v4143 = vunpack.c.l.b16 %v677
  %v4144 = vunpack.c.h.b16 %v677
  %v4145 = vunpack.c.l.b16 %v678
  %v4146 = vunpack.c.h.b16 %v678
  %v4147 = vunpack.c.l.b16 %v679
  %v4148 = vunpack.c.h.b16 %v679
  %v4149 = vunpack.c.l.b16 %v680
  %v4150 = vunpack.c.h.b16 %v680
  %v4151 = vunpack.c.l.b16 %v681
  %v4152 = vunpack.c.h.b16 %v681
  %v4153 = vunpack.c.l.b16 %v682
  %v4154 = vunpack.c.h.b16 %v682
  %v4155 = vunpack.c.l.b16 %v683
  %v4156 = vunpack.c.h.b16 %v683
  %v4157 = vunpack.c.l.b16 %v684
  %v4158 = vunpack.c.h.b16 %v684
  %v4159 = vunpack.c.l.b16 %v685
  %v4160 = vunpack.c.h.b16 %v685
  %v4161 = vunpack.c.l.b16 %v686
  %v4162 = vunpack.c.h.b16 %v686
  %v4163 = vunpack.c.l.b16 %v687
  %v4164 = vunpack.c.h.b16 %v687
  %v4165 = vunpack.c.l.b16 %v688
  %v4166 = vunpack.c.h.b16 %v688
  %v4167 = vunpack.c.l.b16 %v689
  %v4168 = vunpack.c.h.b16 %v689
  %v4169 = vunpack.c.l.b16 %v690
  %v4170 = vunpack.c.h.b16 %v690
  %v4171 = vunpack.c.l.b16 %v691
  %v4172 = vunpack.c.h.b16 %v691
  %v4173 = vunpack.c.l.b16 %v692
  %v4174 = vunpack.c.h.b16 %v692
  %v4175 = vunpack.c.l.b16 %v693
  %v4176 = vunpack.c.h.b16 %v693
  %v4177 = vunpack.c.l.b16 %v694
  %v4178 = vunpack.c.h.b16 %v694
  %v4179 = vunpack.c.l.b16 %v695
  %v4180 = vunpack.c.h.b16 %v695
  %v4181 = vunpack.c.l.b16 %v696
  %v4182 = vunpack.c.h.b16 %v696
  %v4183 = vunpack.c.l.b16 %v697
  %v4184 = vunpack.c.h.b16 %v697
  %v4185 = vunpack.c.l.b16 %v698
  %v4186 = vunpack.c.h.b16 %v698
  %v4187 = vunpack.c.l.b16 %v699
  %v4188 = vunpack.c.h.b16 %v699
  %v4189 = vunpack.c.l.b16 %v700
  %v4190 = vunpack.c.h.b16 %v700
  %v4191 = vunpack.c.l.b16 %v701
  %v4192 = vunpack.c.h.b16 %v701
  %v4193 = vunpack.c.l.b16 %v702
  %v4194 = vunpack.c.h.b16 %v702
  %v4195 = vunpack.c.l.b16 %v703
  %v4196 = vunpack.c.h.b16 %v703
  %v4197 = vunpack.c.l.b16 %v704
  %v4198 = vunpack.c.h.b16 %v704
  %v4199 = vunpack.c.l.b16 %v705
  %v4200 = vunpack.c.h.b16 %v705
  %v4201 = vunpack.c.l.b16 %v706
  %v4202 = vunpack.c.h.b16 %v706
  %v4203 = vunpack.c.l.b16 %v707
  %v4204 = vunpack.c.h.b16 %v707
  %v4205 = vunpack.c.l.b16 %v708
  %v4206 = vunpack.c.h.b16 %v708
  %v4207 = vunpack.c.l.b16 %v709
  %v4208 = vunpack.c.h.b16 %v709
  %v4209 = vunpack.c.l.b16 %v710
  %v4210 = vunpack.c.h.b16 %v710
  %v4211 = vunpack.c.l.b16 %v711
  %v4212 = vunpack.c.h.b16 %v711
  %v4213 = vunpack.c.l.b16 %v712
  %v4214 = vunpack.c.h.b16 %v712
  %v4215 = vunpack.c.l.b16 %v713
  %v4216 = vunpack.c.h.b16 %v713
  %v4217 = vunpack.c.l.b16 %v714
  %v4218 = vunpack.c.h.b16 %v714
  %v4219 = vunpack.c.l.b16 %v715
  %v4220 = vunpack.c.h.b16 %v715
  %v4221 = vunpack.c.l.b16 %v716
  %v4222 = vunpack.c.h.b16 %v716
  %v4223 = vunpack.c.l.b16 %v717
  %v4224 = vunpack.c.h.b16 %v717
  %v4225 = vunpack.c.l.b16 %v718
  %v4226 = vunpack.c.h.b16 %v718
  %v4227 = vunpack.c.l.b16 %v719
  %v4228 = vunpack.c.h.b16 %v719
  %v4229 = vunpack.c.l.b16 %v720
  %v4230 = vunpack.c.h.b16 %v720
  %v4231 = vunpack.c.l.b16 %v721
  %v4232 = vunpack.c.h.b16 %v721
  %v4233 = vunpack.c.l.b16 %v722
  %v4234 = vunpack.c.h.b16 %v722
  %v4235 = vunpack.c.l.b16 %v723
  %v4236 = vunpack.c.h.b16 %v723
  %v4237 = vunpack.c.l.b16 %v724
  %v4238 = vunpack.c.h.b16 %v724
  %v4239 = vunpack.c.l.b16 %v725
  %v4240 = vunpack.c.h.b16 %v725
  %v4241 = vunpack.c.l.b16 %v726
  %v4242 = vunpack.c.h.b16 %v726
  %v4243 = vunpack.c.l.b16 %v727
  %v4244 = vunpack.c.h.b16 %v727
  %v4245 = vunpack.c.l.b16 %v728
  %v4246 = vunpack.c.h.b16 %v728
  %v4247 = vunpack.c.l.b16 %v729
  %v4248 = vunpack.c.h.b16 %v729
  %v4249 = vunpack.c.l.b16 %v730
  %v4250 = vunpack.c.h.b16 %v730
  %v4251 = vunpack.c.l.b16 %v731
  %v4252 = vunpack.c.h.b16 %v731
  %v4253 = vunpack.c.l.b16 %v732
  %v4254 = vunpack.c.h.b16 %v732
  %v4255 = vunpack.c.l.b16 %v733
  %v4256 = vunpack.c.h.b16 %v733
  %v4257 = vunpack.c.l.b16 %v734
  %v4258 = vunpack.c.h.b16 %v734
  %v4259 = vunpack.c.l.b16 %v735
  %v4260 = vunpack.c.h.b16 %v735
  %v4261 = vunpack.c.l.b16 %v736
  %v4262 = vunpack.c.h.b16 %v736
  %v4263 = vunpack.c.l.b16 %v737
  %v4264 = vunpack.c.h.b16 %v737
  %v4265 = vunpack.c.l.b16 %v738
  %v4266 = vunpack.c.h.b16 %v738
  %v4267 = vunpack.c.l.b16 %v739
  %v4268 = vunpack.c.h.b16 %v739
  %v4269 = vunpack.c.l.b16 %v740
  %v4270 = vunpack.c.h.b16 %v740
  %v4271 = vunpack.c.l.b16 %v741
  %v4272 = vunpack.c.h.b16 %v741
  %v4273 = vunpack.c.l.b16 %v742
  %v4274 = vunpack.c.h.b16 %v742
  %v4275 = vunpack.c.l.b16 %v743
  %v4276 = vunpack.c.h.b16 %v743
  %v4277 = vunpack.c.l.b16 %v744
  %v4278 = vunpack.c.h.b16 %v744
  %v4279 = vunpack.c.l.b16 %v745
  %v4280 = vunpack.c.h.b16 %v745
  %v4281 = vunpack.c.l.b16 %v746
  %v4282 = vunpack.c.h.b16 %v746
  %v4283 = vunpack.c.l.b16 %v747
  %v4284 = vunpack.c.h.b16 %v747
  %v4285 = vunpack.c.l.b16 %v748
  %v4286 = vunpack.c.h.b16 %v748
  %v4287 = vunpack.c.l.b16 %v749
  %v4288 = vunpack.c.h.b16 %v749
  %v4289 = vunpack.c.l.b16 %v750
  %v4290 = vunpack.c.h.b16 %v750
  %v4291 = vunpack.c.l.b16 %v751
  %v4292 = vunpack.c.h.b16 %v751
  %v4293 = vunpack.c.l.b16 %v752
  %v4294 = vunpack.c.h.b16 %v752
  %v4295 = vunpack.c.l.b16 %v753
  %v4296 = vunpack.c.h.b16 %v753
  %v4297 = vunpack.c.l.b16 %v754
  %v4298 = vunpack.c.h.b16 %v754
  %v4299 = vunpack.c.l.b16 %v755
  %v4300 = vunpack.c.h.b16 %v755
  %v4301 = vunpack.c.l.b16 %v756
  %v4302 = vunpack.c.h.b16 %v756
  %v4303 = vunpack.c.l.b16 %v757
  %v4304 = vunpack.c.h.b16 %v757
  %v4305 = vunpack.c.l.b16 %v758
  %v4306 = vunpack.c.h.b16 %v758
  %v4307 = vunpack.c.l.b16 %v759
  %v4308 = vunpack.c.h.b16 %v759
  %v4309 = vunpack.c.l.b16 %v760
  %v4310 = vunpack.c.h.b16 %v760
  %v4311 = vunpack.c.l.b16 %v761
  %v4312 = vunpack.c.h.b16 %v761
  %v4313 = vunpack.c.l.b16 %v762
  %v4314 = vunpack.c.h.b16 %v762
  %v4315 = vunpack.c.l.b16 %v763
  %v4316 = vunpack.c.h.b16 %v763
  %v4317 = vunpack.c.l.b16 %v764
  %v4318 = vunpack.c.h.b16 %v764
  %v4319 = vunpack.c.l.b16 %v765
  %v4320 = vunpack.c.h.b16 %v765
  %v4321 = vunpack.c.l.b16 %v766
  %v4322 = vunpack.c.h.b16 %v766
  %v4323 = vunpack.c.l.b16 %v767
  %v4324 = vunpack.c.h.b16 %v767
  %v4325 = vunpack.c.l.b16 %v768
  %v4326 = vunpack.c.h.b16 %v768
  %v4327 = vunpack.c.l.b16 %v769
  %v4328 = vunpack.c.h.b16 %v769
  %v4329 = vunpack.c.l.b16 %v770
  %v4330 = vunpack.c.h.b16 %v770
  %v4331 = vunpack.c.l.b16 %v771
  %v4332 = vunpack.c.h.b16 %v771
  %v4333 = vunpack.c.l.b16 %v772
  %v4334 = vunpack.c.h.b16 %v772
  %v4335 = vunpack.c.l.b16 %v773
  %v4336 = vunpack.c.h.b16 %v773
  %v4337 = vunpack.c.l.b16 %v774
  %v4338 = vunpack.c.h.b16 %v774
  %v4339 = vunpack.c.l.b16 %v775
  %v4340 = vunpack.c.h.b16 %v775
  %v4341 = vunpack.c.l.b16 %v776
  %v4342 = vunpack.c.h.b16 %v776
  %v4343 = vunpack.c.l.b16 %v777
  %v4344 = vunpack.c.h.b16 %v777
  %v4345 = vunpack.c.l.b16 %v778
  %v4346 = vunpack.c.h.b16 %v778
  %v4347 = vunpack.c.l.b16 %v779
  %v4348 = vunpack.c.h.b16 %v779
  %v4349 = vunpack.c.l.b16 %v780
  %v4350 = vunpack.c.h.b16 %v780
  %v4351 = vunpack.c.l.b16 %v781
  %v4352 = vunpack.c.h.b16 %v781
  %v4353 = vunpack.c.l.b16 %v782
  %v4354 = vunpack.c.h.b16 %v782
  %v4355 = vunpack.c.l.b16 %v783
  %v4356 = vunpack.c.h.b16 %v783
  %v4357 = vunpack.c.l.b16 %v784
  %v4358 = vunpack.c.h.b16 %v784
  %v4359 = vunpack.c.l.b16 %v785
  %v4360 = vunpack.c.h.b16 %v785
  %v4361 = vunpack.c.l.b16 %v786
  %v4362 = vunpack.c.h.b16 %v786
  %v4363 = vunpack.c.l.b16 %v787
  %v4364 = vunpack.c.h.b16 %v787
  %v4365 = vunpack.c.l.b16 %v788
  %v4366 = vunpack.c.h.b16 %v788
  %v4367 = vunpack.c.l.b16 %v789
  %v4368 = vunpack.c.h.b16 %v789
  %v4369 = vunpack.c.l.b16 %v790
  %v4370 = vunpack.c.h.b16 %v790
  %v4371 = vunpack.c.l.b16 %v791
  %v4372 = vunpack.c.h.b16 %v791
  %v4373 = vunpack.c.l.b16 %v792
  %v4374 = vunpack.c.h.b16 %v792
  %v4375 = vunpack.c.l.b16 %v793
  %v4376 = vunpack.c.h.b16 %v793
  %v4377 = vunpack.c.l.b16 %v794
  %v4378 = vunpack.c.h.b16 %v794
  %v4379 = vunpack.c.l.b16 %v795
  %v4380 = vunpack.c.h.b16 %v795
  %v4381 = vunpack.c.l.b16 %v796
  %v4382 = vunpack.c.h.b16 %v796
  %v4383 = vunpack.c.l.b16 %v797
  %v4384 = vunpack.c.h.b16 %v797
  %v4385 = vunpack.c.l.b16 %v798
  %v4386 = vunpack.c.h.b16 %v798
  %v4387 = vunpack.c.l.b16 %v799
  %v4388 = vunpack.c.h.b16 %v799
  %v4389 = vunpack.c.l.b16 %v800
  %v4390 = vunpack.c.h.b16 %v800
  %v4391 = vunpack.c.l.b16 %v801
  %v4392 = vunpack.c.h.b16 %v801
  %v4393 = vunpack.c.l.b16 %v802
  %v4394 = vunpack.c.h.b16 %v802
  %v4395 = vunpack.c.l.b16 %v803
  %v4396 = vunpack.c.h.b16 %v803
  %v4397 = vunpack.c.l.b16 %v804
  %v4398 = vunpack.c.h.b16 %v804
  %v4399 = vunpack.c.l.b16 %v805
  %v4400 = vunpack.c.h.b16 %v805
  %v4401 = vunpack.c.l.b16 %v806
  %v4402 = vunpack.c.h.b16 %v806
  %v4403 = vunpack.c.l.b16 %v807
  %v4404 = vunpack.c.h.b16 %v807
  %v4405 = vunpack.c.l.b16 %v808
  %v4406 = vunpack.c.h.b16 %v808
  %v4407 = vunpack.c.l.b16 %v809
  %v4408 = vunpack.c.h.b16 %v809
  %v4409 = vunpack.c.l.b16 %v810
  %v4410 = vunpack.c.h.b16 %v810
  %v4411 = vunpack.c.l.b16 %v811
  %v4412 = vunpack.c.h.b16 %v811
  %v4413 = vunpack.c.l.b16 %v812
  %v4414 = vunpack.c.h.b16 %v812
  %v4415 = vunpack.c.l.b16 %v813
  %v4416 = vunpack.c.h.b16 %v813
  %v4417 = vunpack.c.l.b16 %v814
  %v4418 = vunpack.c.h.b16 %v814
  %v4419 = vunpack.c.l.b16 %v815
  %v4420 = vunpack.c.h.b16 %v815
  %v4421 = vunpack.c.l.b16 %v816
  %v4422 = vunpack.c.h.b16 %v816
  %v4423 = vunpack.c.l.b16 %v817
  %v4424 = vunpack.c.h.b16 %v817
  %v4425 = vunpack.c.l.b16 %v818
  %v4426 = vunpack.c.h.b16 %v818
  %v4427 = vunpack.c.l.b16 %v819
  %v4428 = vunpack.c.h.b16 %v819
  %v4429 = vunpack.c.l.b16 %v820
  %v4430 = vunpack.c.h.b16 %v820
  %v4431 = vunpack.c.l.b16 %v821
  %v4432 = vunpack.c.h.b16 %v821
  %v4433 = vunpack.c.l.b16 %v822
  %v4434 = vunpack.c.h.b16 %v822
  %v4435 = vunpack.c.l.b16 %v823
  %v4436 = vunpack.c.h.b16 %v823
  %v4437 = vunpack.c.l.b16 %v824
  %v4438 = vunpack.c.h.b16 %v824
  %v4439 = vunpack.c.l.b16 %v825
  %v4440 = vunpack.c.h.b16 %v825
  %v4441 = vunpack.c.l.b16 %v826
  %v4442 = vunpack.c.h.b16 %v826
  %v4443 = vunpack.c.l.b16 %v827
  %v4444 = vunpack.c.h.b16 %v827
  %v4445 = vunpack.c.l.b16 %v828
  %v4446 = vunpack.c.h.b16 %v828
  %v4447 = vunpack.c.l.b16 %v829
  %v4448 = vunpack.c.h.b16 %v829
  %v4449 = vunpack.c.l.b16 %v830
  %v4450 = vunpack.c.h.b16 %v830
  %v4451 = vunpack.c.l.b16 %v831
  %v4452 = vunpack.c.h.b16 %v831
  %v4453 = vunpack.c.l.b16 %v832
  %v4454 = vunpack.c.h.b16 %v832
  %v4455 = vunpack.c.l.b16 %v833
  %v4456 = vunpack.c.h.b16 %v833
  %v4457 = vunpack.c.l.b16 %v834
  %v4458 = vunpack.c.h.b16 %v834
  %v4459 = vunpack.c.l.b16 %v835
  %v4460 = vunpack.c.h.b16 %v835
  %v4461 = vunpack.c.l.b16 %v836
  %v4462 = vunpack.c.h.b16 %v836
  %v4463 = vunpack.c.l.b16 %v837
  %v4464 = vunpack.c.h.b16 %v837
  %v4465 = vunpack.c.l.b16 %v838
  %v4466 = vunpack.c.h.b16 %v838
  %v4467 = vunpack.c.l.b16 %v839
  %v4468 = vunpack.c.h.b16 %v839
  %v4469 = vunpack.c.l.b16 %v840
  %v4470 = vunpack.c.h.b16 %v840
  %v4471 = vunpack.c.l.b16 %v841
  %v4472 = vunpack.c.h.b16 %v841
  %v4473 = vunpack.c.l.b16 %v842
  %v4474 = vunpack.c.h.b16 %v842
  %v4475 = vunpack.c.l.b16 %v843
  %v4476 = vunpack.c.h.b16 %v843
  %v4477 = vunpack.c.l.b16 %v844
  %v4478 = vunpack.c.h.b16 %v844
  %v4479 = vunpack.c.l.b16 %v845
  %v4480 = vunpack.c.h.b16 %v845
  %v4481 = vunpack.c.l.b16 %v846
  %v4482 = vunpack.c.h.b16 %v846
  %v4483 = vunpack.c.l.b16 %v847
  %v4484 = vunpack.c.h.b16 %v847
  %v4485 = vunpack.c.l.b16 %v848
  %v4486 = vunpack.c.h.b16 %v848
  %v4487 = vunpack.c.l.b16 %v849
  %v4488 = vunpack.c.h.b16 %v849
  %v4489 = vunpack.c.l.b16 %v850
  %v4490 = vunpack.c.h.b16 %v850
  %v4491 = vunpack.c.l.b16 %v851
  %v4492 = vunpack.c.h.b16 %v851
  %v4493 = vunpack.c.l.b16 %v852
  %v4494 = vunpack.c.h.b16 %v852
  %v4495 = vunpack.c.l.b16 %v853
  %v4496 = vunpack.c.h.b16 %v853
  %v4497 = vunpack.c.l.b16 %v854
  %v4498 = vunpack.c.h.b16 %v854
  %v4499 = vunpack.c.l.b16 %v855
  %v4500 = vunpack.c.h.b16 %v855
  %v4501 = vunpack.c.l.b16 %v856
  %v4502 = vunpack.c.h.b16 %v856
  %v4503 = vunpack.c.l.b16 %v857
  %v4504 = vunpack.c.h.b16 %v857
  %v4505 = vunpack.c.l.b16 %v858
  %v4506 = vunpack.c.h.b16 %v858
  %v4507 = vunpack.c.l.b16 %v859
  %v4508 = vunpack.c.h.b16 %v859
  %v4509 = vunpack.c.l.b16 %v860
  %v4510 = vunpack.c.h.b16 %v860
  %v4511 = vunpack.c.l.b16 %v861
  %v4512 = vunpack.c.h.b16 %v861
  %v4513 = vunpack.c.l.b16 %v862
  %v4514 = vunpack.c.h.b16 %v862
  %v4515 = vunpack.c.l.b16 %v863
  %v4516 = vunpack.c.h.b16 %v863
  %v4517 = vunpack.c.l.b16 %v864
  %v4518 = vunpack.c.h.b16 %v864
  %v4519 = vunpack.c.l.b16 %v865
  %v4520 = vunpack.c.h.b16 %v865
  %v4521 = vunpack.c.l.b16 %v866
  %v4522 = vunpack.c.h.b16 %v866
  %v4523 = vunpack.c.l.b16 %v867
  %v4524 = vunpack.c.h.b16 %v867
  %v4525 = vunpack.c.l.b16 %v868
  %v4526 = vunpack.c.h.b16 %v868
  %v4527 = vunpack.c.l.b16 %v869
  %v4528 = vunpack.c.h.b16 %v869
  %v4529 = vunpack.c.l.b16 %v870
  %v4530 = vunpack.c.h.b16 %v870
  %v4531 = vunpack.c.l.b16 %v871
  %v4532 = vunpack.c.h.b16 %v871
  %v4533 = vunpack.c.l.b16 %v872
  %v4534 = vunpack.c.h.b16 %v872
  %v4535 = vunpack.c.l.b16 %v873
  %v4536 = vunpack.c.h.b16 %v873
  %v4537 = vunpack.c.l.b16 %v874
  %v4538 = vunpack.c.h.b16 %v874
  %v4539 = vunpack.c.l.b16 %v875
  %v4540 = vunpack.c.h.b16 %v875
  %v4541 = vunpack.c.l.b16 %v876
  %v4542 = vunpack.c.h.b16 %v876
  %v4543 = vunpack.c.l.b16 %v877
  %v4544 = vunpack.c.h.b16 %v877
  %v4545 = vunpack.c.l.b16 %v878
  %v4546 = vunpack.c.h.b16 %v878
  %v4547 = vunpack.c.l.b16 %v879
  %v4548 = vunpack.c.h.b16 %v879
  %v4549 = vunpack.c.l.b16 %v880
  %v4550 = vunpack.c.h.b16 %v880
  %v4551 = vunpack.c.l.b16 %v881
  %v4552 = vunpack.c.h.b16 %v881
  %v4553 = vunpack.c.l.b16 %v882
  %v4554 = vunpack.c.h.b16 %v882
  %v4555 = vunpack.c.l.b16 %v883
  %v4556 = vunpack.c.h.b16 %v883
  %v4557 = vunpack.c.l.b16 %v884
  %v4558 = vunpack.c.h.b16 %v884
  %v4559 = vunpack.c.l.b16 %v885
  %v4560 = vunpack.c.h.b16 %v885
  %v4561 = vunpack.c.l.b16 %v886
  %v4562 = vunpack.c.h.b16 %v886
  %v4563 = vunpack.c.l.b16 %v887
  %v4564 = vunpack.c.h.b16 %v887
  %v4565 = vunpack.c.l.b16 %v888
  %v4566 = vunpack.c.h.b16 %v888
  %v4567 = vunpack.c.l.b16 %v889
  %v4568 = vunpack.c.h.b16 %v889
  %v4569 = vunpack.c.l.b16 %v890
  %v4570 = vunpack.c.h.b16 %v890
  %v4571 = vunpack.c.l.b16 %v891
  %v4572 = vunpack.c.h.b16 %v891
  %v4573 = vunpack.c.l.b16 %v892
  %v4574 = vunpack.c.h.b16 %v892
  %v4575 = vunpack.c.l.b16 %v893
  %v4576 = vunpack.c.h.b16 %v893
  %v4577 = vunpack.c.l.b16 %v894
  %v4578 = vunpack.c.h.b16 %v894
  %v4579 = vunpack.c.l.b16 %v895
  %v4580 = vunpack.c.h.b16 %v895
  %v4581 = vunpack.c.l.b16 %v896
  %v4582 = vunpack.c.h.b16 %v896
  %v4583 = vunpack.c.l.b16 %v897
  %v4584 = vunpack.c.h.b16 %v897
  %v4585 = vunpack.c.l.b16 %v898
  %v4586 = vunpack.c.h.b16 %v898
  %v4587 = vunpack.c.l.b16 %v899
  %v4588 = vunpack.c.h.b16 %v899
  %v4589 = vunpack.c.l.b16 %v900
  %v4590 = vunpack.c.h.b16 %v900
  %v4591 = vunpack.c.l.b16 %v901
  %v4592 = vunpack.c.h.b16 %v901
  %v4593 = vunpack.c.l.b16 %v902
  %v4594 = vunpack.c.h.b16 %v902
  %v4595 = vunpack.c.l.b16 %v903
  %v4596 = vunpack.c.h.b16 %v903
  %v4597 = vunpack.c.l.b16 %v904
  %v4598 = vunpack.c.h.b16 %v904
  %v4599 = vunpack.c.l.b16 %v905
  %v4600 = vunpack.c.h.b16 %v905
  %v4601 = vunpack.c.l.b16 %v906
  %v4602 = vunpack.c.h.b16 %v906
  %v4603 = vunpack.c.l.b16 %v907
  %v4604 = vunpack.c.h.b16 %v907
  %v4605 = vunpack.c.l.b16 %v908
  %v4606 = vunpack.c.h.b16 %v908
  %v4607 = vunpack.c.l.b16 %v909
  %v4608 = vunpack.c.h.b16 %v909
  %v4609 = vunpack.c.l.b16 %v910
  %v4610 = vunpack.c.h.b16 %v910
  %v4611 = vunpack.c.l.b16 %v911
  %v4612 = vunpack.c.h.b16 %v911
  %v4613 = vunpack.c.l.b16 %v912
  %v4614 = vunpack.c.h.b16 %v912
  %v4615 = vunpack.c.l.b16 %v913
  %v4616 = vunpack.c.h.b16 %v913
  %v4617 = vunpack.c.l.b16 %v914
  %v4618 = vunpack.c.h.b16 %v914
  %v4619 = vunpack.c.l.b16 %v915
  %v4620 = vunpack.c.h.b16 %v915
  %v4621 = vunpack.c.l.b16 %v916
  %v4622 = vunpack.c.h.b16 %v916
  %v4623 = vunpack.c.l.b16 %v917
  %v4624 = vunpack.c.h.b16 %v917
  %v4625 = vunpack.c.l.b16 %v918
  %v4626 = vunpack.c.h.b16 %v918
  %v4627 = vunpack.c.l.b16 %v919
  %v4628 = vunpack.c.h.b16 %v919
  %v4629 = vunpack.c.l.b16 %v920
  %v4630 = vunpack.c.h.b16 %v920
  %v4631 = vunpack.c.l.b16 %v921
  %v4632 = vunpack.c.h.b16 %v921
  %v4633 = vunpack.c.l.b16 %v922
  %v4634 = vunpack.c.h.b16 %v922
  %v4635 = vunpack.c.l.b16 %v923
  %v4636 = vunpack.c.h.b16 %v923
  %v4637 = vunpack.c.l.b16 %v924
  %v4638 = vunpack.c.h.b16 %v924
  %v4639 = vunpack.c.l.b16 %v925
  %v4640 = vunpack.c.h.b16 %v925
  %v4641 = vunpack.c.l.b16 %v926
  %v4642 = vunpack.c.h.b16 %v926
  %v4643 = vunpack.c.l.b16 %v927
  %v4644 = vunpack.c.h.b16 %v927
  %v4645 = vunpack.c.l.b16 %v928
  %v4646 = vunpack.c.h.b16 %v928
  %v4647 = vunpack.c.l.b16 %v929
  %v4648 = vunpack.c.h.b16 %v929
  %v4649 = vunpack.c.l.b16 %v930
  %v4650 = vunpack.c.h.b16 %v930
  %v4651 = vunpack.c.l.b16 %v931
  %v4652 = vunpack.c.h.b16 %v931
  %v4653 = vunpack.c.l.b16 %v932
  %v4654 = vunpack.c.h.b16 %v932
  %v4655 = vunpack.c.l.b16 %v933
  %v4656 = vunpack.c.h.b16 %v933
  %v4657 = vunpack.c.l.b16 %v934
  %v4658 = vunpack.c.h.b16 %v934
  %v4659 = vunpack.c.l.b16 %v935
  %v4660 = vunpack.c.h.b16 %v935
  %v4661 = vunpack.c.l.b16 %v936
  %v4662 = vunpack.c.h.b16 %v936
  %v4663 = vunpack.c.l.b16 %v937
  %v4664 = vunpack.c.h.b16 %v937
  %v4665 = vunpack.c.l.b16 %v938
  %v4666 = vunpack.c.h.b16 %v938
  %v4667 = vunpack.c.l.b16 %v939
  %v4668 = vunpack.c.h.b16 %v939
  %v4669 = vunpack.c.l.b16 %v940
  %v4670 = vunpack.c.h.b16 %v940
  %v4671 = vunpack.c.l.b16 %v941
  %v4672 = vunpack.c.h.b16 %v941
  %v4673 = vunpack.c.l.b16 %v942
  %v4674 = vunpack.c.h.b16 %v942
  %v4675 = vunpack.c.l.b16 %v943
  %v4676 = vunpack.c.h.b16 %v943
  %v4677 = vunpack.c.l.b16 %v944
  %v4678 = vunpack.c.h.b16 %v944
  %v4679 = vunpack.c.l.b16 %v945
  %v4680 = vunpack.c.h.b16 %v945
  %v4681 = vunpack.c.l.b16 %v946
  %v4682 = vunpack.c.h.b16 %v946
  %v4683 = vunpack.c.l.b16 %v947
  %v4684 = vunpack.c.h.b16 %v947
  %v4685 = vunpack.c.l.b16 %v948
  %v4686 = vunpack.c.h.b16 %v948
  %v4687 = vunpack.c.l.b16 %v949
  %v4688 = vunpack.c.h.b16 %v949
  %v4689 = vunpack.c.l.b16 %v950
  %v4690 = vunpack.c.h.b16 %v950
  %v4691 = vunpack.c.l.b16 %v951
  %v4692 = vunpack.c.h.b16 %v951
  %v4693 = vunpack.c.l.b16 %v952
  %v4694 = vunpack.c.h.b16 %v952
  %v4695 = vunpack.c.l.b16 %v953
  %v4696 = vunpack.c.h.b16 %v953
  %v4697 = vunpack.c.l.b16 %v954
  %v4698 = vunpack.c.h.b16 %v954
  %v4699 = vunpack.c.l.b16 %v955
  %v4700 = vunpack.c.h.b16 %v955
  %v4701 = vunpack.c.l.b16 %v956
  %v4702 = vunpack.c.h.b16 %v956
  %v4703 = vunpack.c.l.b16 %v957
  %v4704 = vunpack.c.h.b16 %v957
  %v4705 = vunpack.c.l.b16 %v958
  %v4706 = vunpack.c.h.b16 %v958
  %v4707 = vunpack.c.l.b16 %v959
  %v4708 = vunpack.c.h.b16 %v959
  %v4709 = vunpack.c.l.b16 %v960
  %v4710 = vunpack.c.h.b16 %v960
  %v4711 = vunpack.c.l.b16 %v961
  %v4712 = vunpack.c.h.b16 %v961
  %v4713 = vunpack.c.l.b16 %v962
  %v4714 = vunpack.c.h.b16 %v962
  %v4715 = vunpack.c.l.b16 %v963
  %v4716 = vunpack.c.h.b16 %v963
  %v4717 = vunpack.c.l.b16 %v964
  %v4718 = vunpack.c.h.b16 %v964
  %v4719 = vunpack.c.l.b16 %v965
  %v4720 = vunpack.c.h.b16 %v965
  %v4721 = vunpack.c.l.b16 %v966
  %v4722 = vunpack.c.h.b16 %v966
  %v4723 = vunpack.c.l.b16 %v967
  %v4724 = vunpack.c.h.b16 %v967
  %v4725 = vunpack.c.l.b16 %v968
  %v4726 = vunpack.c.h.b16 %v968
  %v4727 = vunpack.c.l.b16 %v969
  %v4728 = vunpack.c.h.b16 %v969
  %v4729 = vunpack.c.l.b16 %v970
  %v4730 = vunpack.c.h.b16 %v970
  %v4731 = vunpack.c.l.b16 %v971
  %v4732 = vunpack.c.h.b16 %v971
  %v4733 = vunpack.c.l.b16 %v972
  %v4734 = vunpack.c.h.b16 %v972
  %v4735 = vunpack.c.l.b16 %v973
  %v4736 = vunpack.c.h.b16 %v973
  %v4737 = vunpack.c.l.b16 %v974
  %v4738 = vunpack.c.h.b16 %v974
  %v4739 = vunpack.c.l.b16 %v975
  %v4740 = vunpack.c.h.b16 %v975
  %v4741 = vunpack.c.l.b16 %v976
  %v4742 = vunpack.c.h.b16 %v976
  %v4743 = vunpack.c.l.b16 %v977
  %v4744 = vunpack.c.h.b16 %v977
  %v4745 = vunpack.c.l.b16 %v978
  %v4746 = vunpack.c.h.b16 %v978
  %v4747 = vunpack.c.l.b16 %v979
  %v4748 = vunpack.c.h.b16 %v979
  %v4749 = vunpack.c.l.b16 %v980
  %v4750 = vunpack.c.h.b16 %v980
  %v4751 = vunpack.c.l.b16 %v981
  %v4752 = vunpack.c.h.b16 %v981
  %v4753 = vunpack.c.l.b16 %v982
  %v4754 = vunpack.c.h.b16 %v982
  %v4755 = vunpack.c.l.b16 %v983
  %v4756 = vunpack.c.h.b16 %v983
  %v4757 = vunpack.c.l.b16 %v984
  %v4758 = vunpack.c.h.b16 %v984
  %v4759 = vunpack.c.l.b16 %v985
  %v4760 = vunpack.c.h.b16 %v985
  %v4761 = vunpack.c.l.b16 %v986
  %v4762 = vunpack.c.h.b16 %v986
  %v4763 = vunpack.c.l.b16 %v987
  %v4764 = vunpack.c.h.b16 %v987
  %v4765 = vunpack.c.l.b16 %v988
  %v4766 = vunpack.c.h.b16 %v988
  %v4767 = vunpack.c.l.b16 %v989
  %v4768 = vunpack.c.h.b16 %v989
  %v4769 = vunpack.c.l.b16 %v990
  %v4770 = vunpack.c.h.b16 %v990
  %v4771 = vunpack.c.l.b16 %v991
  %v4772 = vunpack.c.h.b16 %v991
  %v4773 = vunpack.c.l.b16 %v992
  %v4774 = vunpack.c.h.b16 %v992
  %v4775 = vunpack.c.l.b16 %v993
  %v4776 = vunpack.c.h.b16 %v993
  %v4777 = vunpack.c.l.b16 %v994
  %v4778 = vunpack.c.h.b16 %v994
  %v4779 = vunpack.c.l.b16 %v995
  %v4780 = vunpack.c.h.b16 %v995
  %v4781 = vunpack.c.l.b16 %v996
  %v4782 = vunpack.c.h.b16 %v996
  %v4783 = vunpack.c.l.b16 %v997
  %v4784 = vunpack.c.h.b16 %v997
  %v4785 = vunpack.c.l.b16 %v998
  %v4786 = vunpack.c.h.b16 %v998
  %v4787 = vunpack.c.l.b16 %v999
  %v4788 = vunpack.c.h.b16 %v999
  %v4789 = vunpack.c.l.b16 %v1000
  %v4790 = vunpack.c.h.b16 %v1000
  %v4791 = vunpack.c.l.b16 %v1001
  %v4792 = vunpack.c.h.b16 %v1001
  %v4793 = vunpack.c.l.b16 %v1002
  %v4794 = vunpack.c.h.b16 %v1002
  %v4795 = vunpack.c.l.b16 %v1003
  %v4796 = vunpack.c.h.b16 %v1003
  %v4797 = vunpack.c.l.b16 %v1004
  %v4798 = vunpack.c.h.b16 %v1004
  %v4799 = vunpack.c.l.b16 %v1005
  %v4800 = vunpack.c.h.b16 %v1005
  %v4801 = vunpack.c.l.b16 %v1006
  %v4802 = vunpack.c.h.b16 %v1006
  %v4803 = vunpack.c.l.b16 %v1007
  %v4804 = vunpack.c.h.b16 %v1007
  %v4805 = vunpack.c.l.b16 %v1008
  %v4806 = vunpack.c.h.b16 %v1008
  %v4807 = vunpack.c.l.b16 %v1009
  %v4808 = vunpack.c.h.b16 %v1009
  %v4809 = vunpack.c.l.b16 %v1010
  %v4810 = vunpack.c.h.b16 %v1010
  %v4811 = vunpack.c.l.b16 %v1011
  %v4812 = vunpack.c.h.b16 %v1011
  %v4813 = vunpack.c.l.b16 %v1012
  %v4814 = vunpack.c.h.b16 %v1012
  %v4815 = vunpack.c.l.b16 %v1013
  %v4816 = vunpack.c.h.b16 %v1013
  %v4817 = vunpack.c.l.b16 %v1014
  %v4818 = vunpack.c.h.b16 %v1014
  %v4819 = vunpack.c.l.b16 %v1015
  %v4820 = vunpack.c.h.b16 %v1015
  %v4821 = vunpack.c.l.b16 %v1016
  %v4822 = vunpack.c.h.b16 %v1016
  %v4823 = vunpack.c.l.b16 %v1017
  %v4824 = vunpack.c.h.b16 %v1017
  %v4825 = vunpack.c.l.b16 %v1018
  %v4826 = vunpack.c.h.b16 %v1018
  %v4827 = vunpack.c.l.b16 %v1019
  %v4828 = vunpack.c.h.b16 %v1019
  %v4829 = vunpack.c.l.b16 %v1020
  %v4830 = vunpack.c.h.b16 %v1020
  %v4831 = vunpack.c.l.b16 %v1021
  %v4832 = vunpack.c.h.b16 %v1021
  %v4833 = vunpack.c.l.b16 %v1022
  %v4834 = vunpack.c.h.b16 %v1022
  %v4835 = vunpack.c.l.b16 %v1023
  %v4836 = vunpack.c.h.b16 %v1023
  %v4837 = vunpack.c.l.b16 %v1024
  %v4838 = vunpack.c.h.b16 %v1024
  %v4839 = vunpack.c.l.b16 %v1025
  %v4840 = vunpack.c.h.b16 %v1025
  %v4841 = vunpack.c.l.b16 %v1026
  %v4842 = vunpack.c.h.b16 %v1026
  %v4843 = vunpack.c.l.b16 %v1027
  %v4844 = vunpack.c.h.b16 %v1027
  %v4845 = vunpack.c.l.b16 %v1028
  %v4846 = vunpack.c.h.b16 %v1028
  %v4847 = vunpack.c.l.b16 %v1029
  %v4848 = vunpack.c.h.b16 %v1029
  %v4849 = vunpack.c.l.b16 %v1030
  %v4850 = vunpack.c.h.b16 %v1030
  %v4851 = vunpack.c.l.b16 %v1031
  %v4852 = vunpack.c.h.b16 %v1031
  %v4853 = vunpack.c.l.b16 %v1032
  %v4854 = vunpack.c.h.b16 %v1032
  %v4855 = vunpack.c.l.b16 %v1033
  %v4856 = vunpack.c.h.b16 %v1033
  %v4857 = vunpack.c.l.b16 %v1034
  %v4858 = vunpack.c.h.b16 %v1034
  %v4859 = vunpack.c.l.b16 %v1035
  %v4860 = vunpack.c.h.b16 %v1035
  %v4861 = vunpack.c.l.b16 %v1036
  %v4862 = vunpack.c.h.b16 %v1036
  %v4863 = vunpack.c.l.b16 %v1037
  %v4864 = vunpack.c.h.b16 %v1037
  %v4865 = vunpack.c.l.b16 %v1038
  %v4866 = vunpack.c.h.b16 %v1038
  %v4867 = vunpack.c.l.b16 %v1039
  %v4868 = vunpack.c.h.b16 %v1039
  %v4869 = vunpack.c.l.b16 %v1040
  %v4870 = vunpack.c.h.b16 %v1040
  %v4871 = vunpack.c.l.b16 %v1041
  %v4872 = vunpack.c.h.b16 %v1041
  %v4873 = vunpack.c.l.b16 %v1042
  %v4874 = vunpack.c.h.b16 %v1042
  %v4875 = vunpack.c.l.b16 %v1043
  %v4876 = vunpack.c.h.b16 %v1043
  %v4877 = vunpack.c.l.b16 %v1044
  %v4878 = vunpack.c.h.b16 %v1044
  %v4879 = vunpack.c.l.b16 %v1045
  %v4880 = vunpack.c.h.b16 %v1045
  %v4881 = vunpack.c.l.b16 %v1046
  %v4882 = vunpack.c.h.b16 %v1046
  %v4883 = vunpack.c.l.b16 %v1047
  %v4884 = vunpack.c.h.b16 %v1047
  %v4885 = vunpack.c.l.b16 %v1048
  %v4886 = vunpack.c.h.b16 %v1048
  %v4887 = vunpack.c.l.b16 %v1049
  %v4888 = vunpack.c.h.b16 %v1049
  %v4889 = vunpack.c.l.b16 %v1050
  %v4890 = vunpack.c.h.b16 %v1050
  %v4891 = vunpack.c.l.b16 %v1051
  %v4892 = vunpack.c.h.b16 %v1051
  %v4893 = vunpack.c.l.b16 %v1052
  %v4894 = vunpack.c.h.b16 %v1052
  %v4895 = vunpack.c.l.b16 %v1053
  %v4896 = vunpack.c.h.b16 %v1053
  %v4897 = vunpack.c.l.b16 %v1054
  %v4898 = vunpack.c.h.b16 %v1054
  %v4899 = vunpack.c.l.b16 %v1055
  %v4900 = vunpack.c.h.b16 %v1055
  %v4901 = vunpack.c.l.b16 %v1056
  %v4902 = vunpack.c.h.b16 %v1056
  %v4903 = vunpack.c.l.b16 %v1057
  %v4904 = vunpack.c.h.b16 %v1057
  %v4905 = vunpack.c.l.b16 %v1058
  %v4906 = vunpack.c.h.b16 %v1058
  %v4907 = vunpack.c.l.b16 %v1059
  %v4908 = vunpack.c.h.b16 %v1059
  %v4909 = vunpack.c.l.b16 %v1060
  %v4910 = vunpack.c.h.b16 %v1060
  %v4911 = vunpack.c.l.b16 %v1061
  %v4912 = vunpack.c.h.b16 %v1061
  %v4913 = vunpack.c.l.b16 %v1062
  %v4914 = vunpack.c.h.b16 %v1062
  %v4915 = vunpack.c.l.b16 %v1063
  %v4916 = vunpack.c.h.b16 %v1063
  %v4917 = vunpack.c.l.b16 %v1064
  %v4918 = vunpack.c.h.b16 %v1064
  %v4919 = vunpack.c.l.b16 %v1065
  %v4920 = vunpack.c.h.b16 %v1065
  %v4921 = vunpack.c.l.b16 %v1066
  %v4922 = vunpack.c.h.b16 %v1066
  %v4923 = vunpack.c.l.b16 %v1067
  %v4924 = vunpack.c.h.b16 %v1067
  %v4925 = vunpack.c.l.b16 %v1068
  %v4926 = vunpack.c.h.b16 %v1068
  %v4927 = vunpack.c.l.b16 %v1069
  %v4928 = vunpack.c.h.b16 %v1069
  %v4929 = vunpack.c.l.b16 %v1070
  %v4930 = vunpack.c.h.b16 %v1070
  %v4931 = vunpack.c.l.b16 %v1071
  %v4932 = vunpack.c.h.b16 %v1071
  %v4933 = vunpack.c.l.b16 %v1072
  %v4934 = vunpack.c.h.b16 %v1072
  %v4935 = vunpack.c.l.b16 %v1073
  %v4936 = vunpack.c.h.b16 %v1073
  %v4937 = vunpack.c.l.b16 %v1074
  %v4938 = vunpack.c.h.b16 %v1074
  %v4939 = vunpack.c.l.b16 %v1075
  %v4940 = vunpack.c.h.b16 %v1075
  %v4941 = vunpack.c.l.b16 %v1076
  %v4942 = vunpack.c.h.b16 %v1076
  %v4943 = vunpack.c.l.b16 %v1077
  %v4944 = vunpack.c.h.b16 %v1077
  %v4945 = vunpack.c.l.b16 %v1078
  %v4946 = vunpack.c.h.b16 %v1078
  %v4947 = vunpack.c.l.b16 %v1079
  %v4948 = vunpack.c.h.b16 %v1079
  %v4949 = vunpack.c.l.b16 %v1080
  %v4950 = vunpack.c.h.b16 %v1080
  %v4951 = vunpack.c.l.b16 %v1081
  %v4952 = vunpack.c.h.b16 %v1081
  %v4953 = vunpack.c.l.b16 %v1082
  %v4954 = vunpack.c.h.b16 %v1082
  %v4955 = vunpack.c.l.b16 %v1083
  %v4956 = vunpack.c.h.b16 %v1083
  %v4957 = vunpack.c.l.b16 %v1084
  %v4958 = vunpack.c.h.b16 %v1084
  %v4959 = vunpack.c.l.b16 %v1085
  %v4960 = vunpack.c.h.b16 %v1085
  %v4961 = vunpack.c.l.b16 %v1086
  %v4962 = vunpack.c.h.b16 %v1086
  %v4963 = vunpack.c.l.b16 %v1087
  %v4964 = vunpack.c.h.b16 %v1087
  %v4965 = vunpack.c.l.b16 %v1088
  %v4966 = vunpack.c.h.b16 %v1088
  %v4967 = vunpack.c.l.b16 %v1089
  %v4968 = vunpack.c.h.b16 %v1089
  %v4969 = vunpack.c.l.b16 %v1090
  %v4970 = vunpack.c.h.b16 %v1090
  %v4971 = vunpack.c.l.b16 %v1091
  %v4972 = vunpack.c.h.b16 %v1091
  %v4973 = vunpack.c.l.b16 %v1092
  %v4974 = vunpack.c.h.b16 %v1092
  %v4975 = vunpack.c.l.b16 %v1093
  %v4976 = vunpack.c.h.b16 %v1093
  %v4977 = vunpack.c.l.b16 %v1094
  %v4978 = vunpack.c.h.b16 %v1094
  %v4979 = vunpack.c.l.b16 %v1095
  %v4980 = vunpack.c.h.b16 %v1095
  %v4981 = vunpack.c.l.b16 %v1096
  %v4982 = vunpack.c.h.b16 %v1096
  %v4983 = vunpack.c.l.b16 %v1097
  %v4984 = vunpack.c.h.b16 %v1097
  %v4985 = vunpack.c.l.b16 %v1098
  %v4986 = vunpack.c.h.b16 %v1098
  %v4987 = vunpack.c.l.b16 %v1099
  %v4988 = vunpack.c.h.b16 %v1099
  %v4989 = vunpack.c.l.b16 %v1100
  %v4990 = vunpack.c.h.b16 %v1100
  %v4991 = vunpack.c.l.b16 %v1101
  %v4992 = vunpack.c.h.b16 %v1101
  %v4993 = vunpack.c.l.b16 %v1102
  %v4994 = vunpack.c.h.b16 %v1102
  %v4995 = vunpack.c.l.b16 %v1103
  %v4996 = vunpack.c.h.b16 %v1103
  %v4997 = vunpack.c.l.b16 %v1104
  %v4998 = vunpack.c.h.b16 %v1104
  %v4999 = vunpack.c.l.b16 %v1105
  %v5000 = vunpack.c.h.b16 %v1105
  %v5001 = vunpack.c.l.b16 %v1106
  %v5002 = vunpack.c.h.b16 %v1106
  %v5003 = vunpack.c.l.b16 %v1107
  %v5004 = vunpack.c.h.b16 %v1107
  %v5005 = vunpack.c.l.b16 %v1108
  %v5006 = vunpack.c.h.b16 %v1108
  %v5007 = vunpack.c.l.b16 %v1109
  %v5008 = vunpack.c.h.b16 %v1109
  %v5009 = vunpack.c.l.b16 %v1110
  %v5010 = vunpack.c.h.b16 %v1110
  %v5011 = vunpack.c.l.b16 %v1111
  %v5012 = vunpack.c.h.b16 %v1111
  %v5013 = vunpack.c.l.b16 %v1112
  %v5014 = vunpack.c.h.b16 %v1112
  %v5015 = vunpack.c.l.b16 %v1113
  %v5016 = vunpack.c.h.b16 %v1113
  %v5017 = vunpack.c.l.b16 %v1114
  %v5018 = vunpack.c.h.b16 %v1114
  %v5019 = vunpack.c.l.b16 %v1115
  %v5020 = vunpack.c.h.b16 %v1115
  %v5021 = vunpack.c.l.b16 %v1116
  %v5022 = vunpack.c.h.b16 %v1116
  %v5023 = vunpack.c.l.b16 %v1117
  %v5024 = vunpack.c.h.b16 %v1117
  %v5025 = vunpack.c.l.b16 %v1118
  %v5026 = vunpack.c.h.b16 %v1118
  %v5027 = vunpack.c.l.b16 %v1119
  %v5028 = vunpack.c.h.b16 %v1119
  %v5029 = vunpack.c.l.b16 %v1120
  %v5030 = vunpack.c.h.b16 %v1120
  %v5031 = vunpack.c.l.b16 %v1121
  %v5032 = vunpack.c.h.b16 %v1121
  %v5033 = vunpack.c.l.b16 %v1122
  %v5034 = vunpack.c.h.b16 %v1122
  %v5035 = vunpack.c.l.b16 %v1123
  %v5036 = vunpack.c.h.b16 %v1123
  %v5037 = vunpack.c.l.b16 %v1124
  %v5038 = vunpack.c.h.b16 %v1124
  %v5039 = vunpack.c.l.b16 %v1125
  %v5040 = vunpack.c.h.b16 %v1125
  %v5041 = vunpack.c.l.b16 %v1126
  %v5042 = vunpack.c.h.b16 %v1126
  %v5043 = vunpack.c.l.b16 %v1127
  %v5044 = vunpack.c.h.b16 %v1127
  %v5045 = vunpack.c.l.b16 %v1128
  %v5046 = vunpack.c.h.b16 %v1128
  %v5047 = vunpack.c.l.b16 %v1129
  %v5048 = vunpack.c.h.b16 %v1129
  %v5049 = vunpack.c.l.b16 %v1130
  %v5050 = vunpack.c.h.b16 %v1130
  %v5051 = vunpack.c.l.b16 %v1131
  %v5052 = vunpack.c.h.b16 %v1131
  %v5053 = vunpack.c.l.b16 %v1132
  %v5054 = vunpack.c.h.b16 %v1132
  %v5055 = vunpack.c.l.b16 %v1133
  %v5056 = vunpack.c.h.b16 %v1133
  %v5057 = vunpack.c.l.b16 %v1134
  %v5058 = vunpack.c.h.b16 %v1134
  %v5059 = vunpack.c.l.b16 %v1135
  %v5060 = vunpack.c.h.b16 %v1135
  %v5061 = vunpack.c.l.b16 %v1136
  %v5062 = vunpack.c.h.b16 %v1136
  %v5063 = vunpack.c.l.b16 %v1137
  %v5064 = vunpack.c.h.b16 %v1137
  %v5065 = vunpack.c.l.b16 %v1138
  %v5066 = vunpack.c.h.b16 %v1138
  %v5067 = vunpack.c.l.b16 %v1139
  %v5068 = vunpack.c.h.b16 %v1139
  %v5069 = vunpack.c.l.b16 %v1140
  %v5070 = vunpack.c.h.b16 %v1140
  %v5071 = vunpack.c.l.b16 %v1141
  %v5072 = vunpack.c.h.b16 %v1141
  %v5073 = vunpack.c.l.b16 %v1142
  %v5074 = vunpack.c.h.b16 %v1142
  %v5075 = vunpack.c.l.b16 %v1143
  %v5076 = vunpack.c.h.b16 %v1143
  %v5077 = vunpack.c.l.b16 %v1144
  %v5078 = vunpack.c.h.b16 %v1144
  %v5079 = vunpack.c.l.b16 %v1145
  %v5080 = vunpack.c.h.b16 %v1145
  %v5081 = vunpack.c.l.b16 %v1146
  %v5082 = vunpack.c.h.b16 %v1146
  %v5083 = vunpack.c.l.b16 %v1147
  %v5084 = vunpack.c.h.b16 %v1147
  %v5085 = vunpack.c.l.b16 %v1148
  %v5086 = vunpack.c.h.b16 %v1148
  %v5087 = vunpack.c.l.b16 %v1149
  %v5088 = vunpack.c.h.b16 %v1149
  %v5089 = vunpack.c.l.b16 %v1150
  %v5090 = vunpack.c.h.b16 %v1150
  %v5091 = vunpack.c.l.b16 %v1151
  %v5092 = vunpack.c.h.b16 %v1151
  %v5093 = vunpack.c.l.b16 %v1152
  %v5094 = vunpack.c.h.b16 %v1152
  %v5095 = vunpack.c.l.b16 %v1153
  %v5096 = vunpack.c.h.b16 %v1153
  %v5097 = vunpack.c.l.b16 %v1154
  %v5098 = vunpack.c.h.b16 %v1154
  %v5099 = vunpack.c.l.b16 %v1155
  %v5100 = vunpack.c.h.b16 %v1155
  %v5101 = vunpack.c.l.b16 %v1156
  %v5102 = vunpack.c.h.b16 %v1156
  %v5103 = vunpack.c.l.b16 %v1157
  %v5104 = vunpack.c.h.b16 %v1157
  %v5105 = vunpack.c.l.b16 %v1158
  %v5106 = vunpack.c.h.b16 %v1158
  %v5107 = vunpack.c.l.b16 %v1159
  %v5108 = vunpack.c.h.b16 %v1159
  %v5109 = vunpack.c.l.b16 %v1160
  %v5110 = vunpack.c.h.b16 %v1160
  %v5111 = vunpack.c.l.b16 %v1161
  %v5112 = vunpack.c.h.b16 %v1161
  %v5113 = vunpack.c.l.b16 %v1162
  %v5114 = vunpack.c.h.b16 %v1162
  %v5115 = vunpack.c.l.b16 %v1163
  %v5116 = vunpack.c.h.b16 %v1163
  %v5117 = vunpack.c.l.b16 %v1164
  %v5118 = vunpack.c.h.b16 %v1164
  %v5119 = vunpack.c.l.b16 %v1165
  %v5120 = vunpack.c.h.b16 %v1165
  %v5121 = vunpack.c.l.b16 %v1166
  %v5122 = vunpack.c.h.b16 %v1166
  %v5123 = vunpack.c.l.b16 %v1167
  %v5124 = vunpack.c.h.b16 %v1167
  %v5125 = vunpack.c.l.b16 %v1168
  %v5126 = vunpack.c.h.b16 %v1168
  %v5127 = vunpack.c.l.b16 %v1169
  %v5128 = vunpack.c.h.b16 %v1169
  %v5129 = vunpack.c.l.b16 %v1170
  %v5130 = vunpack.c.h.b16 %v1170
  %v5131 = vunpack.c.l.b16 %v1171
  %v5132 = vunpack.c.h.b16 %v1171
  %v5133 = vunpack.c.l.b16 %v1172
  %v5134 = vunpack.c.h.b16 %v1172
  %v5135 = vunpack.c.l.b16 %v1173
  %v5136 = vunpack.c.h.b16 %v1173
  %v5137 = vunpack.c.l.b16 %v1174
  %v5138 = vunpack.c.h.b16 %v1174
  %v5139 = vunpack.c.l.b16 %v1175
  %v5140 = vunpack.c.h.b16 %v1175
  %v5141 = vunpack.c.l.b16 %v1176
  %v5142 = vunpack.c.h.b16 %v1176
  %v5143 = vunpack.c.l.b16 %v1177
  %v5144 = vunpack.c.h.b16 %v1177
  %v5145 = vunpack.c.l.b16 %v1178
  %v5146 = vunpack.c.h.b16 %v1178
  %v5147 = vunpack.c.l.b16 %v1179
  %v5148 = vunpack.c.h.b16 %v1179
  %v5149 = vunpack.c.l.b16 %v1180
  %v5150 = vunpack.c.h.b16 %v1180
  %v5151 = vunpack.c.l.b16 %v1181
  %v5152 = vunpack.c.h.b16 %v1181
  %v5153 = vunpack.c.l.b16 %v1182
  %v5154 = vunpack.c.h.b16 %v1182
  %v5155 = vunpack.c.l.b16 %v1183
  %v5156 = vunpack.c.h.b16 %v1183
  %v5157 = vunpack.c.l.b16 %v1184
  %v5158 = vunpack.c.h.b16 %v1184
  %v5159 = vunpack.c.l.b16 %v1185
  %v5160 = vunpack.c.h.b16 %v1185
  %v5161 = vunpack.c.l.b16 %v1186
  %v5162 = vunpack.c.h.b16 %v1186
  %v5163 = vunpack.c.l.b16 %v1187
  %v5164 = vunpack.c.h.b16 %v1187
  %v5165 = vunpack.c.l.b16 %v1188
  %v5166 = vunpack.c.h.b16 %v1188
  %v5167 = vunpack.c.l.b16 %v1189
  %v5168 = vunpack.c.h.b16 %v1189
  %v5169 = vunpack.c.l.b16 %v1190
  %v5170 = vunpack.c.h.b16 %v1190
  %v5171 = vunpack.c.l.b16 %v1191
  %v5172 = vunpack.c.h.b16 %v1191
  %v5173 = vunpack.c.l.b16 %v1192
  %v5174 = vunpack.c.h.b16 %v1192
  %v5175 = vunpack.c.l.b16 %v1193
  %v5176 = vunpack.c.h.b16 %v1193
  %v5177 = vunpack.c.l.b16 %v1194
  %v5178 = vunpack.c.h.b16 %v1194
  %v5179 = vunpack.c.l.b16 %v1195
  %v5180 = vunpack.c.h.b16 %v1195
  %v5181 = vunpack.c.l.b16 %v1196
  %v5182 = vunpack.c.h.b16 %v1196
  %v5183 = vunpack.c.l.b16 %v1197
  %v5184 = vunpack.c.h.b16 %v1197
  %v5185 = vunpack.c.l.b16 %v1198
  %v5186 = vunpack.c.h.b16 %v1198
  %v5187 = vunpack.c.l.b16 %v1199
  %v5188 = vunpack.c.h.b16 %v1199
  %v5189 = vunpack.c.l.b16 %v1200
  %v5190 = vunpack.c.h.b16 %v1200
  %v5191 = vunpack.c.l.b16 %v1201
  %v5192 = vunpack.c.h.b16 %v1201
  %v5193 = vunpack.c.l.b16 %v1202
  %v5194 = vunpack.c.h.b16 %v1202
  %v5195 = vunpack.c.l.b16 %v1203
  %v5196 = vunpack.c.h.b16 %v1203
  %v5197 = vunpack.c.l.b16 %v1204
  %v5198 = vunpack.c.h.b16 %v1204
  %v5199 = vunpack.c.l.b16 %v1205
  %v5200 = vunpack.c.h.b16 %v1205
  %v5201 = vunpack.c.l.b16 %v1206
  %v5202 = vunpack.c.h.b16 %v1206
  %v5203 = vunpack.c.l.b16 %v1207
  %v5204 = vunpack.c.h.b16 %v1207
  %v5205 = vunpack.c.l.b16 %v1208
  %v5206 = vunpack.c.h.b16 %v1208
  %v5207 = vunpack.c.l.b16 %v1209
  %v5208 = vunpack.c.h.b16 %v1209
  %v5209 = vunpack.c.l.b16 %v1210
  %v5210 = vunpack.c.h.b16 %v1210
  %v5211 = vunpack.c.l.b16 %v1211
  %v5212 = vunpack.c.h.b16 %v1211
  %v5213 = vunpack.c.l.b16 %v1212
  %v5214 = vunpack.c.h.b16 %v1212
  %v5215 = vunpack.c.l.b16 %v1213
  %v5216 = vunpack.c.h.b16 %v1213
  %v5217 = vunpack.c.l.b16 %v1214
  %v5218 = vunpack.c.h.b16 %v1214
  %v5219 = vunpack.c.l.b16 %v1215
  %v5220 = vunpack.c.h.b16 %v1215
  %v5221 = vunpack.c.l.b16 %v1216
  %v5222 = vunpack.c.h.b16 %v1216
  %v5223 = vunpack.c.l.b16 %v1217
  %v5224 = vunpack.c.h.b16 %v1217
  %v5225 = vunpack.c.l.b16 %v1218
  %v5226 = vunpack.c.h.b16 %v1218
  %v5227 = vunpack.c.l.b16 %v1219
  %v5228 = vunpack.c.h.b16 %v1219
  %v5229 = vunpack.c.l.b16 %v1220
  %v5230 = vunpack.c.h.b16 %v1220
  %v5231 = vunpack.c.l.b16 %v1221
  %v5232 = vunpack.c.h.b16 %v1221
  %v5233 = vunpack.c.l.b16 %v1222
  %v5234 = vunpack.c.h.b16 %v1222
  %v5235 = vunpack.c.l.b16 %v1223
  %v5236 = vunpack.c.h.b16 %v1223
  %v5237 = vunpack.c.l.b16 %v1224
  %v5238 = vunpack.c.h.b16 %v1224
  %v5239 = vunpack.c.l.b16 %v1225
  %v5240 = vunpack.c.h.b16 %v1225
  %v5241 = vunpack.c.l.b16 %v1226
  %v5242 = vunpack.c.h.b16 %v1226
  %v5243 = vunpack.c.l.b16 %v1227
  %v5244 = vunpack.c.h.b16 %v1227
  %v5245 = vunpack.c.l.b16 %v1228
  %v5246 = vunpack.c.h.b16 %v1228
  %v5247 = vunpack.c.l.b16 %v1229
  %v5248 = vunpack.c.h.b16 %v1229
  %v5249 = vunpack.c.l.b16 %v1230
  %v5250 = vunpack.c.h.b16 %v1230
  %v5251 = vunpack.c.l.b16 %v1231
  %v5252 = vunpack.c.h.b16 %v1231
  %v5253 = vunpack.c.l.b16 %v1232
  %v5254 = vunpack.c.h.b16 %v1232
  %v5255 = vunpack.c.l.b16 %v1233
  %v5256 = vunpack.c.h.b16 %v1233
  %v5257 = vunpack.c.l.b16 %v1234
  %v5258 = vunpack.c.h.b16 %v1234
  %v5259 = vunpack.c.l.b16 %v1235
  %v5260 = vunpack.c.h.b16 %v1235
  %v5261 = vunpack.c.l.b16 %v1236
  %v5262 = vunpack.c.h.b16 %v1236
  %v5263 = vunpack.c.l.b16 %v1237
  %v5264 = vunpack.c.h.b16 %v1237
  %v5265 = vunpack.c.l.b16 %v1238
  %v5266 = vunpack.c.h.b16 %v1238
  %v5267 = vunpack.c.l.b16 %v1239
  %v5268 = vunpack.c.h.b16 %v1239
  %v5269 = vunpack.c.l.b16 %v1240
  %v5270 = vunpack.c.h.b16 %v1240
  %v5271 = vunpack.c.l.b16 %v1241
  %v5272 = vunpack.c.h.b16 %v1241
  %v5273 = vunpack.c.l.b16 %v1242
  %v5274 = vunpack.c.h.b16 %v1242
  %v5275 = vunpack.c.l.b16 %v1243
  %v5276 = vunpack.c.h.b16 %v1243
  %v5277 = vunpack.c.l.b16 %v1244
  %v5278 = vunpack.c.h.b16 %v1244
  %v5279 = vunpack.c.l.b16 %v1245
  %v5280 = vunpack.c.h.b16 %v1245
  %v5281 = vunpack.c.l.b16 %v1246
  %v5282 = vunpack.c.h.b16 %v1246
  %v5283 = vunpack.c.l.b16 %v1247
  %v5284 = vunpack.c.h.b16 %v1247
  %v5285 = vunpack.c.l.b16 %v1248
  %v5286 = vunpack.c.h.b16 %v1248
  %v5287 = vunpack.c.l.b16 %v1249
  %v5288 = vunpack.c.h.b16 %v1249
  %v5289 = vunpack.c.l.b16 %v1250
  %v5290 = vunpack.c.h.b16 %v1250
  %v5291 = vunpack.c.l.b16 %v1251
  %v5292 = vunpack.c.h.b16 %v1251
  %v5293 = vunpack.c.l.b16 %v1252
  %v5294 = vunpack.c.h.b16 %v1252
  %v5295 = vunpack.c.l.b16 %v1253
  %v5296 = vunpack.c.h.b16 %v1253
  %v5297 = vunpack.c.l.b16 %v1254
  %v5298 = vunpack.c.h.b16 %v1254
  %v5299 = vunpack.c.l.b16 %v1255
  %v5300 = vunpack.c.h.b16 %v1255
  %v5301 = vunpack.c.l.b16 %v1256
  %v5302 = vunpack.c.h.b16 %v1256
  %v5303 = vunpack.c.l.b16 %v1257
  %v5304 = vunpack.c.h.b16 %v1257
  %v5305 = vunpack.c.l.b16 %v1258
  %v5306 = vunpack.c.h.b16 %v1258
  %v5307 = vunpack.c.l.b16 %v1259
  %v5308 = vunpack.c.h.b16 %v1259
  %v5309 = vunpack.c.l.b16 %v1260
  %v5310 = vunpack.c.h.b16 %v1260
  %v5311 = vunpack.c.l.b16 %v1261
  %v5312 = vunpack.c.h.b16 %v1261
  %v5313 = vunpack.c.l.b16 %v1262
  %v5314 = vunpack.c.h.b16 %v1262
  %v5315 = vunpack.c.l.b16 %v1263
  %v5316 = vunpack.c.h.b16 %v1263
  %v5317 = vunpack.c.l.b16 %v1264
  %v5318 = vunpack.c.h.b16 %v1264
  %v5319 = vunpack.c.l.b16 %v1265
  %v5320 = vunpack.c.h.b16 %v1265
  %v5321 = vunpack.c.l.b16 %v1266
  %v5322 = vunpack.c.h.b16 %v1266
  %v5323 = vunpack.c.l.b16 %v1267
  %v5324 = vunpack.c.h.b16 %v1267
  %v5325 = vunpack.c.l.b16 %v1268
  %v5326 = vunpack.c.h.b16 %v1268
  %v5327 = vunpack.c.l.b16 %v1269
  %v5328 = vunpack.c.h.b16 %v1269
  %v5329 = vunpack.c.l.b16 %v1270
  %v5330 = vunpack.c.h.b16 %v1270
  %v5331 = vunpack.c.l.b16 %v1271
  %v5332 = vunpack.c.h.b16 %v1271
  %v5333 = vunpack.c.l.b16 %v1272
  %v5334 = vunpack.c.h.b16 %v1272
  %v5335 = vunpack.c.l.b16 %v1273
  %v5336 = vunpack.c.h.b16 %v1273
  %v5337 = vunpack.c.l.b16 %v1274
  %v5338 = vunpack.c.h.b16 %v1274
  %v5339 = vunpack.c.l.b16 %v1275
  %v5340 = vunpack.c.h.b16 %v1275
  %v5341 = vunpack.c.l.b16 %v1276
  %v5342 = vunpack.c.h.b16 %v1276
  %v5343 = vunpack.c.l.b16 %v1277
  %v5344 = vunpack.c.h.b16 %v1277
  %v5345 = vunpack.c.l.b16 %v1278
  %v5346 = vunpack.c.h.b16 %v1278
  %v5347 = vunpack.c.l.b16 %v1279
  %v5348 = vunpack.c.h.b16 %v1279
  %v5349 = vunpack.c.l.b16 %v1280
  %v5350 = vunpack.c.h.b16 %v1280
  %v5351 = vunpack.c.l.b16 %v1281
  %v5352 = vunpack.c.h.b16 %v1281
  %v5353 = vunpack.c.l.b16 %v1282
  %v5354 = vunpack.c.h.b16 %v1282
  %v5355 = vunpack.c.l.b16 %v1283
  %v5356 = vunpack.c.h.b16 %v1283
  %v5357 = vunpack.c.l.b16 %v1284
  %v5358 = vunpack.c.h.b16 %v1284
  %v5359 = vunpack.c.l.b16 %v1285
  %v5360 = vunpack.c.h.b16 %v1285
  %v5361 = vunpack.c.l.b16 %v1286
  %v5362 = vunpack.c.h.b16 %v1286
  %v5363 = vunpack.c.l.b16 %v1287
  %v5364 = vunpack.c.h.b16 %v1287
  %v5365 = vunpack.c.l.b16 %v1288
  %v5366 = vunpack.c.h.b16 %v1288
  %v5367 = vunpack.c.l.b16 %v1289
  %v5368 = vunpack.c.h.b16 %v1289
  %v5369 = vunpack.c.l.b16 %v1290
  %v5370 = vunpack.c.h.b16 %v1290
  %v5371 = vunpack.c.l.b16 %v1291
  %v5372 = vunpack.c.h.b16 %v1291
  %v5373 = vunpack.c.l.b16 %v1292
  %v5374 = vunpack.c.h.b16 %v1292
  %v5375 = vunpack.c.l.b16 %v1293
  %v5376 = vunpack.c.h.b16 %v1293
  %v5377 = vunpack.c.l.b16 %v1294
  %v5378 = vunpack.c.h.b16 %v1294
  %v5379 = vunpack.c.l.b16 %v1295
  %v5380 = vunpack.c.h.b16 %v1295
  %v5381 = vunpack.c.l.b16 %v1296
  %v5382 = vunpack.c.h.b16 %v1296
  %v5383 = vunpack.c.l.b16 %v1297
  %v5384 = vunpack.c.h.b16 %v1297
  %v5385 = vunpack.c.l.b16 %v1298
  %v5386 = vunpack.c.h.b16 %v1298
  %v5387 = vunpack.c.l.b16 %v1299
  %v5388 = vunpack.c.h.b16 %v1299
  %v5389 = vunpack.c.l.b16 %v1300
  %v5390 = vunpack.c.h.b16 %v1300
  %v5391 = vunpack.c.l.b16 %v1301
  %v5392 = vunpack.c.h.b16 %v1301
  %v5393 = vunpack.c.l.b16 %v1302
  %v5394 = vunpack.c.h.b16 %v1302
  %v5395 = vunpack.c.l.b16 %v1303
  %v5396 = vunpack.c.h.b16 %v1303
  %v5397 = vunpack.c.l.b16 %v1304
  %v5398 = vunpack.c.h.b16 %v1304
  %v5399 = vunpack.c.l.b16 %v1305
  %v5400 = vunpack.c.h.b16 %v1305
  %v5401 = vunpack.c.l.b16 %v1306
  %v5402 = vunpack.c.h.b16 %v1306
  %v5403 = vunpack.c.l.b16 %v1307
  %v5404 = vunpack.c.h.b16 %v1307
  %v5405 = vunpack.c.l.b16 %v1308
  %v5406 = vunpack.c.h.b16 %v1308
  %v5407 = vunpack.c.l.b16 %v1309
  %v5408 = vunpack.c.h.b16 %v1309
  %v5409 = vunpack.c.l.b16 %v1310
  %v5410 = vunpack.c.h.b16 %v1310
  %v5411 = vunpack.c.l.b16 %v1311
  %v5412 = vunpack.c.h.b16 %v1311
  %v5413 = vunpack.c.l.b16 %v1312
  %v5414 = vunpack.c.h.b16 %v1312
  %v5415 = vunpack.c.l.b16 %v1313
  %v5416 = vunpack.c.h.b16 %v1313
  %v5417 = vunpack.c.l.b16 %v1314
  %v5418 = vunpack.c.h.b16 %v1314
  %v5419 = vunpack.c.l.b16 %v1315
  %v5420 = vunpack.c.h.b16 %v1315
  %v5421 = vunpack.c.l.b16 %v1316
  %v5422 = vunpack.c.h.b16 %v1316
  %v5423 = vunpack.c.l.b16 %v1317
  %v5424 = vunpack.c.h.b16 %v1317
  %v5425 = vunpack.c.l.b16 %v1318
  %v5426 = vunpack.c.h.b16 %v1318
  %v5427 = vunpack.c.l.b16 %v1319
  %v5428 = vunpack.c.h.b16 %v1319
  %v5429 = vunpack.c.l.b16 %v1320
  %v5430 = vunpack.c.h.b16 %v1320
  %v5431 = vunpack.c.l.b16 %v1321
  %v5432 = vunpack.c.h.b16 %v1321
  %v5433 = vunpack.c.l.b16 %v1322
  %v5434 = vunpack.c.h.b16 %v1322
  %v5435 = vunpack.c.l.b16 %v1323
  %v5436 = vunpack.c.h.b16 %v1323
  %v5437 = vunpack.c.l.b16 %v1324
  %v5438 = vunpack.c.h.b16 %v1324
  %v5439 = vunpack.c.l.b16 %v1325
  %v5440 = vunpack.c.h.b16 %v1325
  %v5441 = vunpack.c.l.b16 %v1326
  %v5442 = vunpack.c.h.b16 %v1326
  %v5443 = vunpack.c.l.b16 %v1327
  %v5444 = vunpack.c.h.b16 %v1327
  %v5445 = vunpack.c.l.b16 %v1328
  %v5446 = vunpack.c.h.b16 %v1328
  %v5447 = vunpack.c.l.b16 %v1329
  %v5448 = vunpack.c.h.b16 %v1329
  %v5449 = vunpack.c.l.b16 %v1330
  %v5450 = vunpack.c.h.b16 %v1330
  %v5451 = vunpack.c.l.b16 %v1331
  %v5452 = vunpack.c.h.b16 %v1331
  %v5453 = vunpack.c.l.b16 %v1332
  %v5454 = vunpack.c.h.b16 %v1332
  %v5455 = vunpack.c.l.b16 %v1333
  %v5456 = vunpack.c.h.b16 %v1333
  %v5457 = vunpack.c.l.b16 %v1334
  %v5458 = vunpack.c.h.b16 %v1334
  %v5459 = vunpack.c.l.b16 %v1335
  %v5460 = vunpack.c.h.b16 %v1335
  %v5461 = vunpack.c.l.b16 %v1336
  %v5462 = vunpack.c.h.b16 %v1336
  %v5463 = vunpack.c.l.b16 %v1337
  %v5464 = vunpack.c.h.b16 %v1337
  %v5465 = vunpack.c.l.b16 %v1338
  %v5466 = vunpack.c.h.b16 %v1338
  %v5467 = vunpack.c.l.b16 %v1339
  %v5468 = vunpack.c.h.b16 %v1339
  %v5469 = vunpack.c.l.b16 %v1340
  %v5470 = vunpack.c.h.b16 %v1340
  %v5471 = vunpack.c.l.b16 %v1341
  %v5472 = vunpack.c.h.b16 %v1341
  %v5473 = vunpack.c.l.b16 %v1342
  %v5474 = vunpack.c.h.b16 %v1342
  %v5475 = vunpack.c.l.b16 %v1343
  %v5476 = vunpack.c.h.b16 %v1343
  %v5477 = vunpack.c.l.b16 %v1344
  %v5478 = vunpack.c.h.b16 %v1344
  %v5479 = vunpack.c.l.b16 %v1345
  %v5480 = vunpack.c.h.b16 %v1345
  %v5481 = vunpack.c.l.b16 %v1346
  %v5482 = vunpack.c.h.b16 %v1346
  %v5483 = vunpack.c.l.b16 %v1347
  %v5484 = vunpack.c.h.b16 %v1347
  %v5485 = vunpack.c.l.b16 %v1348
  %v5486 = vunpack.c.h.b16 %v1348
  %v5487 = vunpack.c.l.b16 %v1349
  %v5488 = vunpack.c.h.b16 %v1349
  %v5489 = vunpack.c.l.b16 %v1350
  %v5490 = vunpack.c.h.b16 %v1350
  %v5491 = vunpack.c.l.b16 %v1351
  %v5492 = vunpack.c.h.b16 %v1351
  %v5493 = vunpack.c.l.b16 %v1352
  %v5494 = vunpack.c.h.b16 %v1352
  %v5495 = vunpack.c.l.b16 %v1353
  %v5496 = vunpack.c.h.b16 %v1353
  %v5497 = vunpack.c.l.b16 %v1354
  %v5498 = vunpack.c.h.b16 %v1354
  %v5499 = vunpack.c.l.b16 %v1355
  %v5500 = vunpack.c.h.b16 %v1355
  %v5501 = vunpack.c.l.b16 %v1356
  %v5502 = vunpack.c.h.b16 %v1356
  %v5503 = vunpack.c.l.b16 %v1357
  %v5504 = vunpack.c.h.b16 %v1357
  %v5505 = vunpack.c.l.b16 %v1358
  %v5506 = vunpack.c.h.b16 %v1358
  %v5507 = vunpack.c.l.b16 %v1359
  %v5508 = vunpack.c.h.b16 %v1359
  %v5509 = vunpack.c.l.b16 %v1360
  %v5510 = vunpack.c.h.b16 %v1360
  %v5511 = vunpack.c.l.b16 %v1361
  %v5512 = vunpack.c.h.b16 %v1361
  %v5513 = vunpack.c.l.b16 %v1362
  %v5514 = vunpack.c.h.b16 %v1362
  %v5515 = vunpack.c.l.b16 %v1363
  %v5516 = vunpack.c.h.b16 %v1363
  %v5517 = vunpack.c.l.b16 %v1364
  %v5518 = vunpack.c.h.b16 %v1364
  %v5519 = vunpack.c.l.b16 %v1365
  %v5520 = vunpack.c.h.b16 %v1365
  %v5521 = vunpack.c.l.b16 %v1366
  %v5522 = vunpack.c.h.b16 %v1366
  %v5523 = vunpack.c.l.b16 %v1367
  %v5524 = vunpack.c.h.b16 %v1367
  %v5525 = vunpack.c.l.b16 %v1368
  %v5526 = vunpack.c.h.b16 %v1368
  %v5527 = vunpack.c.l.b16 %v1369
  %v5528 = vunpack.c.h.b16 %v1369
  %v5529 = vunpack.c.l.b16 %v1370
  %v5530 = vunpack.c.h.b16 %v1370
  %v5531 = vunpack.c.l.b16 %v1371
  %v5532 = vunpack.c.h.b16 %v1371
  %v5533 = vunpack.c.l.b16 %v1372
  %v5534 = vunpack.c.h.b16 %v1372
  %v5535 = vunpack.c.l.b16 %v1373
  %v5536 = vunpack.c.h.b16 %v1373
  %v5537 = vunpack.c.l.b16 %v1374
  %v5538 = vunpack.c.h.b16 %v1374
  %v5539 = vpack.c.b16 %v2919, %v2915
  %v5540 = vpack.c.b16 %v2920, %v2916
  %v5541 = vpack.c.b16 %v2921, %v2917
  %v5542 = vpack.c.b16 %v2922, %v2918
  %v5543 = vpack.c.b16 %v2927, %v2923
  %v5544 = vpack.c.b16 %v2928, %v2924
  %v5545 = vpack.c.b16 %v2929, %v2925
  %v5546 = vpack.c.b16 %v2930, %v2926
  %v5547 = vpack.c.b16 %v2935, %v2931
  %v5548 = vpack.c.b16 %v2936, %v2932
  %v5549 = vpack.c.b16 %v2937, %v2933
  %v5550 = vpack.c.b16 %v2938, %v2934
  %v5551 = vpack.c.b16 %v2943, %v2939
  %v5552 = vpack.c.b16 %v2944, %v2940
  %v5553 = vpack.c.b16 %v2945, %v2941
  %v5554 = vpack.c.b16 %v2946, %v2942
  %v5555 = vpack.c.b16 %v2951, %v2947
  %v5556 = vpack.c.b16 %v2952, %v2948
  %v5557 = vpack.c.b16 %v2953, %v2949
  %v5558 = vpack.c.b16 %v2954, %v2950
  %v5559 = vpack.c.b16 %v2959, %v2955
  %v5560 = vpack.c.b16 %v2960, %v2956
  %v5561 = vpack.c.b16 %v2961, %v2957
  %v5562 = vpack.c.b16 %v2962, %v2958
  %v5563 = vpack.c.b16 %v2967, %v2963
  %v5564 = vpack.c.b16 %v2968, %v2964
  %v5565 = vpack.c.b16 %v2969, %v2965
  %v5566 = vpack.c.b16 %v2970, %v2966
  %v5567 = vpack.c.b16 %v2975, %v2971
  %v5568 = vpack.c.b16 %v2976, %v2972
  %v5569 = vpack.c.b16 %v2977, %v2973
  %v5570 = vpack.c.b16 %v2978, %v2974
  %v5571 = vpack.c.b16 %v2983, %v2979
  %v5572 = vpack.c.b16 %v2984, %v2980
  %v5573 = vpack.c.b16 %v2985, %v2981
  %v5574 = vpack.c.b16 %v2986, %v2982
  %v5575 = vpack.c.b16 %v2991, %v2987
  %v5576 = vpack.c.b16 %v2992, %v2988
  %v5577 = vpack.c.b16 %v2993, %v2989
  %v5578 = vpack.c.b16 %v2994, %v2990
  %v5579 = vpack.c.b16 %v2999, %v2995
  %v5580 = vpack.c.b16 %v3000, %v2996
  %v5581 = vpack.c.b16 %v3001, %v2997
  %v5582 = vpack.c.b16 %v3002, %v2998
  %v5583 = vpack.c.b16 %v3007, %v3003
  %v5584 = vpack.c.b16 %v3008, %v3004
  %v5585 = vpack.c.b16 %v3009, %v3005
  %v5586 = vpack.c.b16 %v3010, %v3006
  %v5587 = vpack.c.b16 %v3015, %v3011
  %v5588 = vpack.c.b16 %v3016, %v3012
  %v5589 = vpack.c.b16 %v3017, %v3013
  %v5590 = vpack.c.b16 %v3018, %v3014
  %v5591 = vpack.c.b16 %v3023, %v3019
  %v5592 = vpack.c.b16 %v3024, %v3020
  %v5593 = vpack.c.b16 %v3025, %v3021
  %v5594 = vpack.c.b16 %v3026, %v3022
  %v5595 = vpack.c.b16 %v3031, %v3027
  %v5596 = vpack.c.b16 %v3032, %v3028
  %v5597 = vpack.c.b16 %v3033, %v3029
  %v5598 = vpack.c.b16 %v3034, %v3030
  %v5599 = vpack.c.b16 %v3039, %v3035
  %v5600 = vpack.c.b16 %v3040, %v3036
  %v5601 = vpack.c.b16 %v3041, %v3037
  %v5602 = vpack.c.b16 %v3042, %v3038
  %v5603 = vpack.c.b16 %v3047, %v3043
  %v5604 = vpack.c.b16 %v3048, %v3044
  %v5605 = vpack.c.b16 %v3049, %v3045
  %v5606 = vpack.c.b16 %v3050, %v3046
  %v5607 = vpack.c.b16 %v3055, %v3051
  %v5608 = vpack.c.b16 %v3056, %v3052
  %v5609 = vpack.c.b16 %v3057, %v3053
  %v5610 = vpack.c.b16 %v3058, %v3054
  %v5611 = vpack.c.b16 %v3063, %v3059
  %v5612 = vpack.c.b16 %v3064, %v3060
  %v5613 = vpack.c.b16 %v3065, %v3061
  %v5614 = vpack.c.b16 %v3066, %v3062
  %v5615 = vpack.c.b16 %v3071, %v3067
  %v5616 = vpack.c.b16 %v3072, %v3068
  %v5617 = vpack.c.b16 %v3073, %v3069
  %v5618 = vpack.c.b16 %v3074, %v3070
  %v5619 = vpack.c.b16 %v3079, %v3075
  %v5620 = vpack.c.b16 %v3080, %v3076
  %v5621 = vpack.c.b16 %v3081, %v3077
  %v5622 = vpack.c.b16 %v3082, %v3078
  %v5623 = vpack.c.b16 %v3087, %v3083
  %v5624 = vpack.c.b16 %v3088, %v3084
  %v5625 = vpack.c.b16 %v3089, %v3085
  %v5626 = vpack.c.b16 %v3090, %v3086
  %v5627 = vpack.c.b16 %v3095, %v3091
  %v5628 = vpack.c.b16 %v3096, %v3092
  %v5629 = vpack.c.b16 %v3097, %v3093
  %v5630 = vpack.c.b16 %v3098, %v3094
  %v5631 = vpack.c.b16 %v3103, %v3099
  %v5632 = vpack.c.b16 %v3104, %v3100
  %v5633 = vpack.c.b16 %v3105, %v3101
  %v5634 = vpack.c.b16 %v3106, %v3102
  %v5635 = vpack.c.b16 %v3111, %v3107
  %v5636 = vpack.c.b16 %v3112, %v3108
  %v5637 = vpack.c.b16 %v3113, %v3109
  %v5638 = vpack.c.b16 %v3114, %v3110
  %v5639 = vpack.c.b16 %v3119, %v3115
  %v5640 = vpack.c.b16 %v3120, %v3116
  %v5641 = vpack.c.b16 %v3121, %v3117
  %v5642 = vpack.c.b16 %v3122, %v3118
  %v5643 = vpack.c.b16 %v3127, %v3123
  %v5644 = vpack.c.b16 %v3128, %v3124
  %v5645 = vpack.c.b16 %v3129, %v3125
  %v5646 = vpack.c.b16 %v3130, %v3126
  %v5647 = vpack.c.b16 %v3135, %v3131
  %v5648 = vpack.c.b16 %v3136, %v3132
  %v5649 = vpack.c.b16 %v3137, %v3133
  %v5650 = vpack.c.b16 %v3138, %v3134
  %v5651 = vpack.c.b16 %v3143, %v3139
  %v5652 = vpack.c.b16 %v3144, %v3140
  %v5653 = vpack.c.b16 %v3145, %v3141
  %v5654 = vpack.c.b16 %v3146, %v3142
  %v5655 = vpack.c.b16 %v3151, %v3147
  %v5656 = vpack.c.b16 %v3152, %v3148
  %v5657 = vpack.c.b16 %v3153, %v3149
  %v5658 = vpack.c.b16 %v3154, %v3150
  %v5659 = vpack.c.b16 %v3159, %v3155
  %v5660 = vpack.c.b16 %v3160, %v3156
  %v5661 = vpack.c.b16 %v3161, %v3157
  %v5662 = vpack.c.b16 %v3162, %v3158
  %v5663 = vpack.c.b16 %v3167, %v3163
  %v5664 = vpack.c.b16 %v3168, %v3164
  %v5665 = vpack.c.b16 %v3169, %v3165
  %v5666 = vpack.c.b16 %v3170, %v3166
  %v5667 = vpack.c.b16 %v3175, %v3171
  %v5668 = vpack.c.b16 %v3176, %v3172
  %v5669 = vpack.c.b16 %v3177, %v3173
  %v5670 = vpack.c.b16 %v3178, %v3174
  %v5671 = vpack.c.b16 %v3183, %v3179
  %v5672 = vpack.c.b16 %v3184, %v3180
  %v5673 = vpack.c.b16 %v3185, %v3181
  %v5674 = vpack.c.b16 %v3186, %v3182
  %v5675 = vpack.c.b16 %v3191, %v3187
  %v5676 = vpack.c.b16 %v3192, %v3188
  %v5677 = vpack.c.b16 %v3193, %v3189
  %v5678 = vpack.c.b16 %v3194, %v3190
  %v5679 = vpack.c.b16 %v3199, %v3195
  %v5680 = vpack.c.b16 %v3200, %v3196
  %v5681 = vpack.c.b16 %v3201, %v3197
  %v5682 = vpack.c.b16 %v3202, %v3198
  %v5683 = vpack.c.b16 %v3207, %v3203
  %v5684 = vpack.c.b16 %v3208, %v3204
  %v5685 = vpack.c.b16 %v3209, %v3205
  %v5686 = vpack.c.b16 %v3210, %v3206
  %v5687 = vpack.c.b16 %v3215, %v3211
  %v5688 = vpack.c.b16 %v3216, %v3212
  %v5689 = vpack.c.b16 %v3217, %v3213
  %v5690 = vpack.c.b16 %v3218, %v3214
  %v5691 = vpack.c.b16 %v3223, %v3219
  %v5692 = vpack.c.b16 %v3224, %v3220
  %v5693 = vpack.c.b16 %v3225, %v3221
  %v5694 = vpack.c.b16 %v3226, %v3222
  %v5695 = vpack.c.b16 %v3231, %v3227
  %v5696 = vpack.c.b16 %v3232, %v3228
  %v5697 = vpack.c.b16 %v3233, %v3229
  %v5698 = vpack.c.b16 %v3234, %v3230
  %v5699 = vpack.c.b16 %v3239, %v3235
  %v5700 = vpack.c.b16 %v3240, %v3236
  %v5701 = vpack.c.b16 %v3241, %v3237
  %v5702 = vpack.c.b16 %v3242, %v3238
  %v5703 = vpack.c.b16 %v3247, %v3243
  %v5704 = vpack.c.b16 %v3248, %v3244
  %v5705 = vpack.c.b16 %v3249, %v3245
  %v5706 = vpack.c.b16 %v3250, %v3246
  %v5707 = vpack.c.b16 %v3255, %v3251
  %v5708 = vpack.c.b16 %v3256, %v3252
  %v5709 = vpack.c.b16 %v3257, %v3253
  %v5710 = vpack.c.b16 %v3258, %v3254
  %v5711 = vpack.c.b16 %v3263, %v3259
  %v5712 = vpack.c.b16 %v3264, %v3260
  %v5713 = vpack.c.b16 %v3265, %v3261
  %v5714 = vpack.c.b16 %v3266, %v3262
  %v5715 = vpack.c.b16 %v3271, %v3267
  %v5716 = vpack.c.b16 %v3272, %v3268
  %v5717 = vpack.c.b16 %v3273, %v3269
  %v5718 = vpack.c.b16 %v3274, %v3270
  %v5719 = vpack.c.b16 %v3279, %v3275
  %v5720 = vpack.c.b16 %v3280, %v3276
  %v5721 = vpack.c.b16 %v3281, %v3277
  %v5722 = vpack.c.b16 %v3282, %v3278
  %v5723 = vpack.c.b16 %v3287, %v3283
  %v5724 = vpack.c.b16 %v3288, %v3284
  %v5725 = vpack.c.b16 %v3289, %v3285
  %v5726 = vpack.c.b16 %v3290, %v3286
  %v5727 = vpack.c.b16 %v3295, %v3291
  %v5728 = vpack.c.b16 %v3296, %v3292
  %v5729 = vpack.c.b16 %v3297, %v3293
  %v5730 = vpack.c.b16 %v3298, %v3294
  %v5731 = vpack.c.b16 %v3303, %v3299
  %v5732 = vpack.c.b16 %v3304, %v3300
  %v5733 = vpack.c.b16 %v3305, %v3301
  %v5734 = vpack.c.b16 %v3306, %v3302
  %v5735 = vpack.c.b16 %v3311, %v3307
  %v5736 = vpack.c.b16 %v3312, %v3308
  %v5737 = vpack.c.b16 %v3313, %v3309
  %v5738 = vpack.c.b16 %v3314, %v3310
  %v5739 = vpack.c.b16 %v3319, %v3315
  %v5740 = vpack.c.b16 %v3320, %v3316
  %v5741 = vpack.c.b16 %v3321, %v3317
  %v5742 = vpack.c.b16 %v3322, %v3318
  %v5743 = vpack.c.b16 %v3327, %v3323
  %v5744 = vpack.c.b16 %v3328, %v3324
  %v5745 = vpack.c.b16 %v3329, %v3325
  %v5746 = vpack.c.b16 %v3330, %v3326
  %v5747 = vpack.c.b16 %v3335, %v3331
  %v5748 = vpack.c.b16 %v3336, %v3332
  %v5749 = vpack.c.b16 %v3337, %v3333
  %v5750 = vpack.c.b16 %v3338, %v3334
  %v5751 = vpack.c.b16 %v3343, %v3339
  %v5752 = vpack.c.b16 %v3344, %v3340
  %v5753 = vpack.c.b16 %v3345, %v3341
  %v5754 = vpack.c.b16 %v3346, %v3342
  %v5755 = vpack.c.b16 %v3351, %v3347
  %v5756 = vpack.c.b16 %v3352, %v3348
  %v5757 = vpack.c.b16 %v3353, %v3349
  %v5758 = vpack.c.b16 %v3354, %v3350
  %v5759 = vpack.c.b16 %v3359, %v3355
  %v5760 = vpack.c.b16 %v3360, %v3356
  %v5761 = vpack.c.b16 %v3361, %v3357
  %v5762 = vpack.c.b16 %v3362, %v3358
  %v5763 = vpack.c.b16 %v3367, %v3363
  %v5764 = vpack.c.b16 %v3368, %v3364
  %v5765 = vpack.c.b16 %v3369, %v3365
  %v5766 = vpack.c.b16 %v3370, %v3366
  %v5767 = vpack.c.b16 %v3375, %v3371
  %v5768 = vpack.c.b16 %v3376, %v3372
  %v5769 = vpack.c.b16 %v3377, %v3373
  %v5770 = vpack.c.b16 %v3378, %v3374
  %v5771 = vpack.c.b16 %v3383, %v3379
  %v5772 = vpack.c.b16 %v3384, %v3380
  %v5773 = vpack.c.b16 %v3385, %v3381
  %v5774 = vpack.c.b16 %v3386, %v3382
  %v5775 = vpack.c.b16 %v3391, %v3387
  %v5776 = vpack.c.b16 %v3392, %v3388
  %v5777 = vpack.c.b16 %v3393, %v3389
  %v5778 = vpack.c.b16 %v3394, %v3390
  %v5779 = vpack.c.b16 %v3399, %v3395
  %v5780 = vpack.c.b16 %v3400, %v3396
  %v5781 = vpack.c.b16 %v3401, %v3397
  %v5782 = vpack.c.b16 %v3402, %v3398
  %v5783 = vpack.c.b16 %v3407, %v3403
  %v5784 = vpack.c.b16 %v3408, %v3404
  %v5785 = vpack.c.b16 %v3409, %v3405
  %v5786 = vpack.c.b16 %v3410, %v3406
  %v5787 = vpack.c.b16 %v3415, %v3411
  %v5788 = vpack.c.b16 %v3416, %v3412
  %v5789 = vpack.c.b16 %v3417, %v3413
  %v5790 = vpack.c.b16 %v3418, %v3414
  %v5791 = vpack.c.b16 %v3423, %v3419
  %v5792 = vpack.c.b16 %v3424, %v3420
  %v5793 = vpack.c.b16 %v3425, %v3421
  %v5794 = vpack.c.b16 %v3426, %v3422
  %v5795 = vpack.c.b16 %v3431, %v3427
  %v5796 = vpack.c.b16 %v3432, %v3428
  %v5797 = vpack.c.b16 %v3433, %v3429
  %v5798 = vpack.c.b16 %v3434, %v3430
  %v5799 = vpack.c.b16 %v3439, %v3435
  %v5800 = vpack.c.b16 %v3440, %v3436
  %v5801 = vpack.c.b16 %v3441, %v3437
  %v5802 = vpack.c.b16 %v3442, %v3438
  %v5803 = vpack.c.b16 %v3447, %v3443
  %v5804 = vpack.c.b16 %v3448, %v3444
  %v5805 = vpack.c.b16 %v3449, %v3445
  %v5806 = vpack.c.b16 %v3450, %v3446
  %v5807 = vpack.c.b16 %v3455, %v3451
  %v5808 = vpack.c.b16 %v3456, %v3452
  %v5809 = vpack.c.b16 %v3457, %v3453
  %v5810 = vpack.c.b16 %v3458, %v3454
  %v5811 = vpack.c.b16 %v3463, %v3459
  %v5812 = vpack.c.b16 %v3464, %v3460
  %v5813 = vpack.c.b16 %v3465, %v3461
  %v5814 = vpack.c.b16 %v3466, %v3462
  %v5815 = vpack.c.b16 %v3471, %v3467
  %v5816 = vpack.c.b16 %v3472, %v3468
  %v5817 = vpack.c.b16 %v3473, %v3469
  %v5818 = vpack.c.b16 %v3474, %v3470
  %v5819 = vpack.c.b16 %v3479, %v3475
  %v5820 = vpack.c.b16 %v3480, %v3476
  %v5821 = vpack.c.b16 %v3481, %v3477
  %v5822 = vpack.c.b16 %v3482, %v3478
  %v5823 = vpack.c.b16 %v3487, %v3483
  %v5824 = vpack.c.b16 %v3488, %v3484
  %v5825 = vpack.c.b16 %v3489, %v3485
  %v5826 = vpack.c.b16 %v3490, %v3486
  %v5827 = vpack.c.b16 %v3495, %v3491
  %v5828 = vpack.c.b16 %v3496, %v3492
  %v5829 = vpack.c.b16 %v3497, %v3493
  %v5830 = vpack.c.b16 %v3498, %v3494
  %v5831 = vpack.c.b16 %v3503, %v3499
  %v5832 = vpack.c.b16 %v3504, %v3500
  %v5833 = vpack.c.b16 %v3505, %v3501
  %v5834 = vpack.c.b16 %v3506, %v3502
  %v5835 = vpack.c.b16 %v3511, %v3507
  %v5836 = vpack.c.b16 %v3512, %v3508
  %v5837 = vpack.c.b16 %v3513, %v3509
  %v5838 = vpack.c.b16 %v3514, %v3510
  %v5839 = vpack.c.b16 %v3519, %v3515
  %v5840 = vpack.c.b16 %v3520, %v3516
  %v5841 = vpack.c.b16 %v3521, %v3517
  %v5842 = vpack.c.b16 %v3522, %v3518
  %v5843 = vpack.c.b16 %v3527, %v3523
  %v5844 = vpack.c.b16 %v3528, %v3524
  %v5845 = vpack.c.b16 %v3529, %v3525
  %v5846 = vpack.c.b16 %v3530, %v3526
  %v5847 = vpack.c.b16 %v3535, %v3531
  %v5848 = vpack.c.b16 %v3536, %v3532
  %v5849 = vpack.c.b16 %v3537, %v3533
  %v5850 = vpack.c.b16 %v3538, %v3534
  %v5851 = vpack.c.b16 %v3543, %v3539
  %v5852 = vpack.c.b16 %v3544, %v3540
  %v5853 = vpack.c.b16 %v3545, %v3541
  %v5854 = vpack.c.b16 %v3546, %v3542
  %v5855 = vpack.c.b16 %v3551, %v3547
  %v5856 = vpack.c.b16 %v3552, %v3548
  %v5857 = vpack.c.b16 %v3553, %v3549
  %v5858 = vpack.c.b16 %v3554, %v3550
  %v5859 = vpack.c.b16 %v3559, %v3555
  %v5860 = vpack.c.b16 %v3560, %v3556
  %v5861 = vpack.c.b16 %v3561, %v3557
  %v5862 = vpack.c.b16 %v3562, %v3558
  %v5863 = vpack.c.b16 %v3567, %v3563
  %v5864 = vpack.c.b16 %v3568, %v3564
  %v5865 = vpack.c.b16 %v3569, %v3565
  %v5866 = vpack.c.b16 %v3570, %v3566
  %v5867 = vpack.c.b16 %v3575, %v3571
  %v5868 = vpack.c.b16 %v3576, %v3572
  %v5869 = vpack.c.b16 %v3577, %v3573
  %v5870 = vpack.c.b16 %v3578, %v3574
  %v5871 = vpack.c.b16 %v3583, %v3579
  %v5872 = vpack.c.b16 %v3584, %v3580
  %v5873 = vpack.c.b16 %v3585, %v3581
  %v5874 = vpack.c.b16 %v3586, %v3582
  %v5875 = vpack.c.b16 %v3591, %v3587
  %v5876 = vpack.c.b16 %v3592, %v3588
  %v5877 = vpack.c.b16 %v3593, %v3589
  %v5878 = vpack.c.b16 %v3594, %v3590
  %v5879 = vpack.c.b16 %v3599, %v3595
  %v5880 = vpack.c.b16 %v3600, %v3596
  %v5881 = vpack.c.b16 %v3601, %v3597
  %v5882 = vpack.c.b16 %v3602, %v3598
  %v5883 = vpack.c.b16 %v3607, %v3603
  %v5884 = vpack.c.b16 %v3608, %v3604
  %v5885 = vpack.c.b16 %v3609, %v3605
  %v5886 = vpack.c.b16 %v3610, %v3606
  %v5887 = vpack.c.b16 %v3615, %v3611
  %v5888 = vpack.c.b16 %v3616, %v3612
  %v5889 = vpack.c.b16 %v3617, %v3613
  %v5890 = vpack.c.b16 %v3618, %v3614
  %v5891 = vpack.c.b16 %v3623, %v3619
  %v5892 = vpack.c.b16 %v3624, %v3620
  %v5893 = vpack.c.b16 %v3625, %v3621
  %v5894 = vpack.c.b16 %v3626, %v3622
  %v5895 = vpack.c.b16 %v3631, %v3627
  %v5896 = vpack.c.b16 %v3632, %v3628
  %v5897 = vpack.c.b16 %v3633, %v3629
  %v5898 = vpack.c.b16 %v3634, %v3630
  %v5899 = vpack.c.b16 %v3639, %v3635
  %v5900 = vpack.c.b16 %v3640, %v3636
  %v5901 = vpack.c.b16 %v3641, %v3637
  %v5902 = vpack.c.b16 %v3642, %v3638
  %v5903 = vpack.c.b16 %v3647, %v3643
  %v5904 = vpack.c.b16 %v3648, %v3644
  %v5905 = vpack.c.b16 %v3649, %v3645
  %v5906 = vpack.c.b16 %v3650, %v3646
  %v5907 = vpack.c.b16 %v3655, %v3651
  %v5908 = vpack.c.b16 %v3656, %v3652
  %v5909 = vpack.c.b16 %v3657, %v3653
  %v5910 = vpack.c.b16 %v3658, %v3654
  %v5911 = vpack.c.b16 %v3663, %v3659
  %v5912 = vpack.c.b16 %v3664, %v3660
  %v5913 = vpack.c.b16 %v3665, %v3661
  %v5914 = vpack.c.b16 %v3666, %v3662
  %v5915 = vpack.c.b16 %v3671, %v3667
  %v5916 = vpack.c.b16 %v3672, %v3668
  %v5917 = vpack.c.b16 %v3673, %v3669
  %v5918 = vpack.c.b16 %v3674, %v3670
  %v5919 = vpack.c.b16 %v3679, %v3675
  %v5920 = vpack.c.b16 %v3680, %v3676
  %v5921 = vpack.c.b16 %v3681, %v3677
  %v5922 = vpack.c.b16 %v3682, %v3678
  %v5923 = vpack.c.b16 %v3687, %v3683
  %v5924 = vpack.c.b16 %v3688, %v3684
  %v5925 = vpack.c.b16 %v3689, %v3685
  %v5926 = vpack.c.b16 %v3690, %v3686
  %v5927 = vpack.c.b16 %v3695, %v3691
  %v5928 = vpack.c.b16 %v3696, %v3692
  %v5929 = vpack.c.b16 %v3697, %v3693
  %v5930 = vpack.c.b16 %v3698, %v3694
  %v5931 = vpack.c.b16 %v3703, %v3699
  %v5932 = vpack.c.b16 %v3704, %v3700
  %v5933 = vpack.c.b16 %v3705, %v3701
  %v5934 = vpack.c.b16 %v3706, %v3702
  %v5935 = vpack.c.b16 %v3711, %v3707
  %v5936 = vpack.c.b16 %v3712, %v3708
  %v5937 = vpack.c.b16 %v3713, %v3709
  %v5938 = vpack.c.b16 %v3714, %v3710
  %v5939 = vpack.c.b16 %v3719, %v3715
  %v5940 = vpack.c.b16 %v3720, %v3716
  %v5941 = vpack.c.b16 %v3721, %v3717
  %v5942 = vpack.c.b16 %v3722, %v3718
  %v5943 = vpack.c.b16 %v3727, %v3723
  %v5944 = vpack.c.b16 %v3728, %v3724
  %v5945 = vpack.c.b16 %v3729, %v3725
  %v5946 = vpack.c.b16 %v3730, %v3726
  %v5947 = vpack.c.b16 %v3735, %v3731
  %v5948 = vpack.c.b16 %v3736, %v3732
  %v5949 = vpack.c.b16 %v3737, %v3733
  %v5950 = vpack.c.b16 %v3738, %v3734
  %v5951 = vpack.c.b16 %v3743, %v3739
  %v5952 = vpack.c.b16 %v3744, %v3740
  %v5953 = vpack.c.b16 %v3745, %v3741
  %v5954 = vpack.c.b16 %v3746, %v3742
  %v5955 = vpack.c.b16 %v3751, %v3747
  %v5956 = vpack.c.b16 %v3752, %v3748
  %v5957 = vpack.c.b16 %v3753, %v3749
  %v5958 = vpack.c.b16 %v3754, %v3750
  %v5959 = vpack.c.b16 %v3759, %v3755
  %v5960 = vpack.c.b16 %v3760, %v3756
  %v5961 = vpack.c.b16 %v3761, %v3757
  %v5962 = vpack.c.b16 %v3762, %v3758
  %v5963 = vpack.c.b16 %v3767, %v3763
  %v5964 = vpack.c.b16 %v3768, %v3764
  %v5965 = vpack.c.b16 %v3769, %v3765
  %v5966 = vpack.c.b16 %v3770, %v3766
  %v5967 = vpack.c.b16 %v3775, %v3771
  %v5968 = vpack.c.b16 %v3776, %v3772
  %v5969 = vpack.c.b16 %v3777, %v3773
  %v5970 = vpack.c.b16 %v3778, %v3774
  %v5971 = vpack.c.b16 %v3783, %v3779
  %v5972 = vpack.c.b16 %v3784, %v3780
  %v5973 = vpack.c.b16 %v3785, %v3781
  %v5974 = vpack.c.b16 %v3786, %v3782
  %v5975 = vpack.c.b16 %v3791, %v3787
  %v5976 = vpack.c.b16 %v3792, %v3788
  %v5977 = vpack.c.b16 %v3793, %v3789
  %v5978 = vpack.c.b16 %v3794, %v3790
  %v5979 = vpack.c.b16 %v3799, %v3795
  %v5980 = vpack.c.b16 %v3800, %v3796
  %v5981 = vpack.c.b16 %v3801, %v3797
  %v5982 = vpack.c.b16 %v3802, %v3798
  %v5983 = vpack.c.b16 %v3807, %v3803
  %v5984 = vpack.c.b16 %v3808, %v3804
  %v5985 = vpack.c.b16 %v3809, %v3805
  %v5986 = vpack.c.b16 %v3810, %v3806
  %v5987 = vpack.c.b16 %v3815, %v3811
  %v5988 = vpack.c.b16 %v3816, %v3812
  %v5989 = vpack.c.b16 %v3817, %v3813
  %v5990 = vpack.c.b16 %v3818, %v3814
  %v5991 = vpack.c.b16 %v3823, %v3819
  %v5992 = vpack.c.b16 %v3824, %v3820
  %v5993 = vpack.c.b16 %v3825, %v3821
  %v5994 = vpack.c.b16 %v3826, %v3822
  %v5995 = vpack.c.b16 %v3831, %v3827
  %v5996 = vpack.c.b16 %v3832, %v3828
  %v5997 = vpack.c.b16 %v3833, %v3829
  %v5998 = vpack.c.b16 %v3834, %v3830
  %v5999 = vpack.c.b16 %v3839, %v3835
  %v6000 = vpack.c.b16 %v3840, %v3836
  %v6001 = vpack.c.b16 %v3841, %v3837
  %v6002 = vpack.c.b16 %v3842, %v3838
  %v6003 = vpack.c.b16 %v3847, %v3843
  %v6004 = vpack.c.b16 %v3848, %v3844
  %v6005 = vpack.c.b16 %v3849, %v3845
  %v6006 = vpack.c.b16 %v3850, %v3846
  %v6007 = vpack.c.b16 %v3855, %v3851
  %v6008 = vpack.c.b16 %v3856, %v3852
  %v6009 = vpack.c.b16 %v3857, %v3853
  %v6010 = vpack.c.b16 %v3858, %v3854
  %v6011 = vpack.c.b16 %v3863, %v3859
  %v6012 = vpack.c.b16 %v3864, %v3860
  %v6013 = vpack.c.b16 %v3865, %v3861
  %v6014 = vpack.c.b16 %v3866, %v3862
  %v6015 = vpack.c.b16 %v3871, %v3867
  %v6016 = vpack.c.b16 %v3872, %v3868
  %v6017 = vpack.c.b16 %v3873, %v3869
  %v6018 = vpack.c.b16 %v3874, %v3870
  %v6019 = vpack.c.b16 %v3879, %v3875
  %v6020 = vpack.c.b16 %v3880, %v3876
  %v6021 = vpack.c.b16 %v3881, %v3877
  %v6022 = vpack.c.b16 %v3882, %v3878
  %v6023 = vpack.c.b16 %v3887, %v3883
  %v6024 = vpack.c.b16 %v3888, %v3884
  %v6025 = vpack.c.b16 %v3889, %v3885
  %v6026 = vpack.c.b16 %v3890, %v3886
  %v6027 = vpack.c.b16 %v3895, %v3891
  %v6028 = vpack.c.b16 %v3896, %v3892
  %v6029 = vpack.c.b16 %v3897, %v3893
  %v6030 = vpack.c.b16 %v3898, %v3894
  %v6031 = vpack.c.b16 %v3903, %v3899
  %v6032 = vpack.c.b16 %v3904, %v3900
  %v6033 = vpack.c.b16 %v3905, %v3901
  %v6034 = vpack.c.b16 %v3906, %v3902
  %v6035 = vpack.c.b16 %v3911, %v3907
  %v6036 = vpack.c.b16 %v3912, %v3908
  %v6037 = vpack.c.b16 %v3913, %v3909
  %v6038 = vpack.c.b16 %v3914, %v3910
  %v6039 = vpack.c.b16 %v3919, %v3915
  %v6040 = vpack.c.b16 %v3920, %v3916
  %v6041 = vpack.c.b16 %v3921, %v3917
  %v6042 = vpack.c.b16 %v3922, %v3918
  %v6043 = vpack.c.b16 %v3927, %v3923
  %v6044 = vpack.c.b16 %v3928, %v3924
  %v6045 = vpack.c.b16 %v3929, %v3925
  %v6046 = vpack.c.b16 %v3930, %v3926
  %v6047 = vpack.c.b16 %v3935, %v3931
  %v6048 = vpack.c.b16 %v3936, %v3932
  %v6049 = vpack.c.b16 %v3937, %v3933
  %v6050 = vpack.c.b16 %v3938, %v3934
  %v6051 = vpack.c.b16 %v3943, %v3939
  %v6052 = vpack.c.b16 %v3944, %v3940
  %v6053 = vpack.c.b16 %v3945, %v3941
  %v6054 = vpack.c.b16 %v3946, %v3942
  %v6055 = vpack.c.b16 %v3951, %v3947
  %v6056 = vpack.c.b16 %v3952, %v3948
  %v6057 = vpack.c.b16 %v3953, %v3949
  %v6058 = vpack.c.b16 %v3954, %v3950
  %v6059 = vpack.c.b16 %v3959, %v3955
  %v6060 = vpack.c.b16 %v3960, %v3956
  %v6061 = vpack.c.b16 %v3961, %v3957
  %v6062 = vpack.c.b16 %v3962, %v3958
  %v6063 = vpack.c.b16 %v3967, %v3963
  %v6064 = vpack.c.b16 %v3968, %v3964
  %v6065 = vpack.c.b16 %v3969, %v3965
  %v6066 = vpack.c.b16 %v3970, %v3966
  %v6067 = vpack.c.b16 %v3975, %v3971
  %v6068 = vpack.c.b16 %v3976, %v3972
  %v6069 = vpack.c.b16 %v3977, %v3973
  %v6070 = vpack.c.b16 %v3978, %v3974
  %v6071 = vpack.c.b16 %v3983, %v3979
  %v6072 = vpack.c.b16 %v3984, %v3980
  %v6073 = vpack.c.b16 %v3985, %v3981
  %v6074 = vpack.c.b16 %v3986, %v3982
  %v6075 = vpack.c.b16 %v3991, %v3987
  %v6076 = vpack.c.b16 %v3992, %v3988
  %v6077 = vpack.c.b16 %v3993, %v3989
  %v6078 = vpack.c.b16 %v3994, %v3990
  %v6079 = vpack.c.b16 %v3999, %v3995
  %v6080 = vpack.c.b16 %v4000, %v3996
  %v6081 = vpack.c.b16 %v4001, %v3997
  %v6082 = vpack.c.b16 %v4002, %v3998
  %v6083 = vpack.c.b16 %v4007, %v4003
  %v6084 = vpack.c.b16 %v4008, %v4004
  %v6085 = vpack.c.b16 %v4009, %v4005
  %v6086 = vpack.c.b16 %v4010, %v4006
  %v6087 = vpack.c.b16 %v4015, %v4011
  %v6088 = vpack.c.b16 %v4016, %v4012
  %v6089 = vpack.c.b16 %v4017, %v4013
  %v6090 = vpack.c.b16 %v4018, %v4014
  %v6091 = vpack.c.b16 %v4023, %v4019
  %v6092 = vpack.c.b16 %v4024, %v4020
  %v6093 = vpack.c.b16 %v4025, %v4021
  %v6094 = vpack.c.b16 %v4026, %v4022
  %v6095 = vpack.c.b16 %v4031, %v4027
  %v6096 = vpack.c.b16 %v4032, %v4028
  %v6097 = vpack.c.b16 %v4033, %v4029
  %v6098 = vpack.c.b16 %v4034, %v4030
  %v6099 = vpack.c.b16 %v4039, %v4035
  %v6100 = vpack.c.b16 %v4040, %v4036
  %v6101 = vpack.c.b16 %v4041, %v4037
  %v6102 = vpack.c.b16 %v4042, %v4038
  %v6103 = vpack.c.b16 %v4047, %v4043
  %v6104 = vpack.c.b16 %v4048, %v4044
  %v6105 = vpack.c.b16 %v4049, %v4045
  %v6106 = vpack.c.b16 %v4050, %v4046
  %v6107 = vpack.c.b16 %v4055, %v4051
  %v6108 = vpack.c.b16 %v4056, %v4052
  %v6109 = vpack.c.b16 %v4057, %v4053
  %v6110 = vpack.c.b16 %v4058, %v4054
  %v6111 = vpack.c.b16 %v4063, %v4059
  %v6112 = vpack.c.b16 %v4064, %v4060
  %v6113 = vpack.c.b16 %v4065, %v4061
  %v6114 = vpack.c.b16 %v4066, %v4062
  %v6115 = vpack.c.b16 %v4071, %v4067
  %v6116 = vpack.c.b16 %v4072, %v4068
  %v6117 = vpack.c.b16 %v4073, %v4069
  %v6118 = vpack.c.b16 %v4074, %v4070
  %v6119 = vpack.c.b16 %v4079, %v4075
  %v6120 = vpack.c.b16 %v4080, %v4076
  %v6121 = vpack.c.b16 %v4081, %v4077
  %v6122 = vpack.c.b16 %v4082, %v4078
  %v6123 = vpack.c.b16 %v4087, %v4083
  %v6124 = vpack.c.b16 %v4088, %v4084
  %v6125 = vpack.c.b16 %v4089, %v4085
  %v6126 = vpack.c.b16 %v4090, %v4086
  %v6127 = vpack.c.b16 %v4095, %v4091
  %v6128 = vpack.c.b16 %v4096, %v4092
  %v6129 = vpack.c.b16 %v4097, %v4093
  %v6130 = vpack.c.b16 %v4098, %v4094
  %v6131 = vpack.c.b16 %v4103, %v4099
  %v6132 = vpack.c.b16 %v4104, %v4100
  %v6133 = vpack.c.b16 %v4105, %v4101
  %v6134 = vpack.c.b16 %v4106, %v4102
  %v6135 = vpack.c.b16 %v4111, %v4107
  %v6136 = vpack.c.b16 %v4112, %v4108
  %v6137 = vpack.c.b16 %v4113, %v4109
  %v6138 = vpack.c.b16 %v4114, %v4110
  %v6139 = vpack.c.b16 %v4119, %v4115
  %v6140 = vpack.c.b16 %v4120, %v4116
  %v6141 = vpack.c.b16 %v4121, %v4117
  %v6142 = vpack.c.b16 %v4122, %v4118
  %v6143 = vpack.c.b16 %v4127, %v4123
  %v6144 = vpack.c.b16 %v4128, %v4124
  %v6145 = vpack.c.b16 %v4129, %v4125
  %v6146 = vpack.c.b16 %v4130, %v4126
  %v6147 = vpack.c.b16 %v4135, %v4131
  %v6148 = vpack.c.b16 %v4136, %v4132
  %v6149 = vpack.c.b16 %v4137, %v4133
  %v6150 = vpack.c.b16 %v4138, %v4134
  %v6151 = vpack.c.b16 %v4143, %v4139
  %v6152 = vpack.c.b16 %v4144, %v4140
  %v6153 = vpack.c.b16 %v4145, %v4141
  %v6154 = vpack.c.b16 %v4146, %v4142
  %v6155 = vpack.c.b16 %v4151, %v4147
  %v6156 = vpack.c.b16 %v4152, %v4148
  %v6157 = vpack.c.b16 %v4153, %v4149
  %v6158 = vpack.c.b16 %v4154, %v4150
  %v6159 = vpack.c.b16 %v4159, %v4155
  %v6160 = vpack.c.b16 %v4160, %v4156
  %v6161 = vpack.c.b16 %v4161, %v4157
  %v6162 = vpack.c.b16 %v4162, %v4158
  %v6163 = vpack.c.b16 %v4167, %v4163
  %v6164 = vpack.c.b16 %v4168, %v4164
  %v6165 = vpack.c.b16 %v4169, %v4165
  %v6166 = vpack.c.b16 %v4170, %v4166
  %v6167 = vpack.c.b16 %v4175, %v4171
  %v6168 = vpack.c.b16 %v4176, %v4172
  %v6169 = vpack.c.b16 %v4177, %v4173
  %v6170 = vpack.c.b16 %v4178, %v4174
  %v6171 = vpack.c.b16 %v4183, %v4179
  %v6172 = vpack.c.b16 %v4184, %v4180
  %v6173 = vpack.c.b16 %v4185, %v4181
  %v6174 = vpack.c.b16 %v4186, %v4182
  %v6175 = vpack.c.b16 %v4191, %v4187
  %v6176 = vpack.c.b16 %v4192, %v4188
  %v6177 = vpack.c.b16 %v4193, %v4189
  %v6178 = vpack.c.b16 %v4194, %v4190
  %v6179 = vpack.c.b16 %v4199, %v4195
  %v6180 = vpack.c.b16 %v4200, %v4196
  %v6181 = vpack.c.b16 %v4201, %v4197
  %v6182 = vpack.c.b16 %v4202, %v4198
  %v6183 = vpack.c.b16 %v4207, %v4203
  %v6184 = vpack.c.b16 %v4208, %v4204
  %v6185 = vpack.c.b16 %v4209, %v4205
  %v6186 = vpack.c.b16 %v4210, %v4206
  %v6187 = vpack.c.b16 %v4215, %v4211
  %v6188 = vpack.c.b16 %v4216, %v4212
  %v6189 = vpack.c.b16 %v4217, %v4213
  %v6190 = vpack.c.b16 %v4218, %v4214
  %v6191 = vpack.c.b16 %v4223, %v4219
  %v6192 = vpack.c.b16 %v4224, %v4220
  %v6193 = vpack.c.b16 %v4225, %v4221
  %v6194 = vpack.c.b16 %v4226, %v4222
  %v6195 = vpack.c.b16 %v4231, %v4227
  %v6196 = vpack.c.b16 %v4232, %v4228
  %v6197 = vpack.c.b16 %v4233, %v4229
  %v6198 = vpack.c.b16 %v4234, %v4230
  %v6199 = vpack.c.b16 %v4239, %v4235
  %v6200 = vpack.c.b16 %v4240, %v4236
  %v6201 = vpack.c.b16 %v4241, %v4237
  %v6202 = vpack.c.b16 %v4242, %v4238
  %v6203 = vpack.c.b16 %v4247, %v4243
  %v6204 = vpack.c.b16 %v4248, %v4244
  %v6205 = vpack.c.b16 %v4249, %v4245
  %v6206 = vpack.c.b16 %v4250, %v4246
  %v6207 = vpack.c.b16 %v4255, %v4251
  %v6208 = vpack.c.b16 %v4256, %v4252
  %v6209 = vpack.c.b16 %v4257, %v4253
  %v6210 = vpack.c.b16 %v4258, %v4254
  %v6211 = vpack.c.b16 %v4263, %v4259
  %v6212 = vpack.c.b16 %v4264, %v4260
  %v6213 = vpack.c.b16 %v4265, %v4261
  %v6214 = vpack.c.b16 %v4266, %v4262
  %v6215 = vpack.c.b16 %v4271, %v4267
  %v6216 = vpack.c.b16 %v4272, %v4268
  %v6217 = vpack.c.b16 %v4273, %v4269
  %v6218 = vpack.c.b16 %v4274, %v4270
  %v6219 = vpack.c.b16 %v4279, %v4275
  %v6220 = vpack.c.b16 %v4280, %v4276
  %v6221 = vpack.c.b16 %v4281, %v4277
  %v6222 = vpack.c.b16 %v4282, %v4278
  %v6223 = vpack.c.b16 %v4287, %v4283
  %v6224 = vpack.c.b16 %v4288, %v4284
  %v6225 = vpack.c.b16 %v4289, %v4285
  %v6226 = vpack.c.b16 %v4290, %v4286
  %v6227 = vpack.c.b16 %v4295, %v4291
  %v6228 = vpack.c.b16 %v4296, %v4292
  %v6229 = vpack.c.b16 %v4297, %v4293
  %v6230 = vpack.c.b16 %v4298, %v4294
  %v6231 = vpack.c.b16 %v4303, %v4299
  %v6232 = vpack.c.b16 %v4304, %v4300
  %v6233 = vpack.c.b16 %v4305, %v4301
  %v6234 = vpack.c.b16 %v4306, %v4302
  %v6235 = vpack.c.b16 %v4311, %v4307
  %v6236 = vpack.c.b16 %v4312, %v4308
  %v6237 = vpack.c.b16 %v4313, %v4309
  %v6238 = vpack.c.b16 %v4314, %v4310
  %v6239 = vpack.c.b16 %v4319, %v4315
  %v6240 = vpack.c.b16 %v4320, %v4316
  %v6241 = vpack.c.b16 %v4321, %v4317
  %v6242 = vpack.c.b16 %v4322, %v4318
  %v6243 = vpack.c.b16 %v4327, %v4323
  %v6244 = vpack.c.b16 %v4328, %v4324
  %v6245 = vpack.c.b16 %v4329, %v4325
  %v6246 = vpack.c.b16 %v4330, %v4326
  %v6247 = vpack.c.b16 %v4335, %v4331
  %v6248 = vpack.c.b16 %v4336, %v4332
  %v6249 = vpack.c.b16 %v4337, %v4333
  %v6250 = vpack.c.b16 %v4338, %v4334
  %v6251 = vpack.c.b16 %v4343, %v4339
  %v6252 = vpack.c.b16 %v4344, %v4340
  %v6253 = vpack.c.b16 %v4345, %v4341
  %v6254 = vpack.c.b16 %v4346, %v4342
  %v6255 = vpack.c.b16 %v4351, %v4347
  %v6256 = vpack.c.b16 %v4352, %v4348
  %v6257 = vpack.c.b16 %v4353, %v4349
  %v6258 = vpack.c.b16 %v4354, %v4350
  %v6259 = vpack.c.b16 %v4359, %v4355
  %v6260 = vpack.c.b16 %v4360, %v4356
  %v6261 = vpack.c.b16 %v4361, %v4357
  %v6262 = vpack.c.b16 %v4362, %v4358
  %v6263 = vpack.c.b16 %v4367, %v4363
  %v6264 = vpack.c.b16 %v4368, %v4364
  %v6265 = vpack.c.b16 %v4369, %v4365
  %v6266 = vpack.c.b16 %v4370, %v4366
  %v6267 = vpack.c.b16 %v4375, %v4371
  %v6268 = vpack.c.b16 %v4376, %v4372
  %v6269 = vpack.c.b16 %v4377, %v4373
  %v6270 = vpack.c.b16 %v4378, %v4374
  %v6271 = vpack.c.b16 %v4383, %v4379
  %v6272 = vpack.c.b16 %v4384, %v4380
  %v6273 = vpack.c.b16 %v4385, %v4381
  %v6274 = vpack.c.b16 %v4386, %v4382
  %v6275 = vpack.c.b16 %v4391, %v4387
  %v6276 = vpack.c.b16 %v4392, %v4388
  %v6277 = vpack.c.b16 %v4393, %v4389
  %v6278 = vpack.c.b16 %v4394, %v4390
  %v6279 = vpack.c.b16 %v4399, %v4395
  %v6280 = vpack.c.b16 %v4400, %v4396
  %v6281 = vpack.c.b16 %v4401, %v4397
  %v6282 = vpack.c.b16 %v4402, %v4398
  %v6283 = vpack.c.b16 %v4407, %v4403
  %v6284 = vpack.c.b16 %v4408, %v4404
  %v6285 = vpack.c.b16 %v4409, %v4405
  %v6286 = vpack.c.b16 %v4410, %v4406
  %v6287 = vpack.c.b16 %v4415, %v4411
  %v6288 = vpack.c.b16 %v4416, %v4412
  %v6289 = vpack.c.b16 %v4417, %v4413
  %v6290 = vpack.c.b16 %v4418, %v4414
  %v6291 = vpack.c.b16 %v4423, %v4419
  %v6292 = vpack.c.b16 %v4424, %v4420
  %v6293 = vpack.c.b16 %v4425, %v4421
  %v6294 = vpack.c.b16 %v4426, %v4422
  %v6295 = vpack.c.b16 %v4431, %v4427
  %v6296 = vpack.c.b16 %v4432, %v4428
  %v6297 = vpack.c.b16 %v4433, %v4429
  %v6298 = vpack.c.b16 %v4434, %v4430
  %v6299 = vpack.c.b16 %v4439, %v4435
  %v6300 = vpack.c.b16 %v4440, %v4436
  %v6301 = vpack.c.b16 %v4441, %v4437
  %v6302 = vpack.c.b16 %v4442, %v4438
  %v6303 = vpack.c.b16 %v4447, %v4443
  %v6304 = vpack.c.b16 %v4448, %v4444
  %v6305 = vpack.c.b16 %v4449, %v4445
  %v6306 = vpack.c.b16 %v4450, %v4446
  %v6307 = vpack.c.b16 %v4455, %v4451
  %v6308 = vpack.c.b16 %v4456, %v4452
  %v6309 = vpack.c.b16 %v4457, %v4453
  %v6310 = vpack.c.b16 %v4458, %v4454
  %v6311 = vpack.c.b16 %v4463, %v4459
  %v6312 = vpack.c.b16 %v4464, %v4460
  %v6313 = vpack.c.b16 %v4465, %v4461
  %v6314 = vpack.c.b16 %v4466, %v4462
  %v6315 = vpack.c.b16 %v4471, %v4467
  %v6316 = vpack.c.b16 %v4472, %v4468
  %v6317 = vpack.c.b16 %v4473, %v4469
  %v6318 = vpack.c.b16 %v4474, %v4470
  %v6319 = vpack.c.b16 %v4479, %v4475
  %v6320 = vpack.c.b16 %v4480, %v4476
  %v6321 = vpack.c.b16 %v4481, %v4477
  %v6322 = vpack.c.b16 %v4482, %v4478
  %v6323 = vpack.c.b16 %v4487, %v4483
  %v6324 = vpack.c.b16 %v4488, %v4484
  %v6325 = vpack.c.b16 %v4489, %v4485
  %v6326 = vpack.c.b16 %v4490, %v4486
  %v6327 = vpack.c.b16 %v4495, %v4491
  %v6328 = vpack.c.b16 %v4496, %v4492
  %v6329 = vpack.c.b16 %v4497, %v4493
  %v6330 = vpack.c.b16 %v4498, %v4494
  %v6331 = vpack.c.b16 %v4503, %v4499
  %v6332 = vpack.c.b16 %v4504, %v4500
  %v6333 = vpack.c.b16 %v4505, %v4501
  %v6334 = vpack.c.b16 %v4506, %v4502
  %v6335 = vpack.c.b16 %v4511, %v4507
  %v6336 = vpack.c.b16 %v4512, %v4508
  %v6337 = vpack.c.b16 %v4513, %v4509
  %v6338 = vpack.c.b16 %v4514, %v4510
  %v6339 = vpack.c.b16 %v4519, %v4515
  %v6340 = vpack.c.b16 %v4520, %v4516
  %v6341 = vpack.c.b16 %v4521, %v4517
  %v6342 = vpack.c.b16 %v4522, %v4518
  %v6343 = vpack.c.b16 %v4527, %v4523
  %v6344 = vpack.c.b16 %v4528, %v4524
  %v6345 = vpack.c.b16 %v4529, %v4525
  %v6346 = vpack.c.b16 %v4530, %v4526
  %v6347 = vpack.c.b16 %v4535, %v4531
  %v6348 = vpack.c.b16 %v4536, %v4532
  %v6349 = vpack.c.b16 %v4537, %v4533
  %v6350 = vpack.c.b16 %v4538, %v4534
  %v6351 = vpack.c.b16 %v4543, %v4539
  %v6352 = vpack.c.b16 %v4544, %v4540
  %v6353 = vpack.c.b16 %v4545, %v4541
  %v6354 = vpack.c.b16 %v4546, %v4542
  %v6355 = vpack.c.b16 %v4551, %v4547
  %v6356 = vpack.c.b16 %v4552, %v4548
  %v6357 = vpack.c.b16 %v4553, %v4549
  %v6358 = vpack.c.b16 %v4554, %v4550
  %v6359 = vpack.c.b16 %v4559, %v4555
  %v6360 = vpack.c.b16 %v4560, %v4556
  %v6361 = vpack.c.b16 %v4561, %v4557
  %v6362 = vpack.c.b16 %v4562, %v4558
  %v6363 = vpack.c.b16 %v4567, %v4563
  %v6364 = vpack.c.b16 %v4568, %v4564
  %v6365 = vpack.c.b16 %v4569, %v4565
  %v6366 = vpack.c.b16 %v4570, %v4566
  %v6367 = vpack.c.b16 %v4575, %v4571
  %v6368 = vpack.c.b16 %v4576, %v4572
  %v6369 = vpack.c.b16 %v4577, %v4573
  %v6370 = vpack.c.b16 %v4578, %v4574
  %v6371 = vpack.c.b16 %v4583, %v4579
  %v6372 = vpack.c.b16 %v4584, %v4580
  %v6373 = vpack.c.b16 %v4585, %v4581
  %v6374 = vpack.c.b16 %v4586, %v4582
  %v6375 = vpack.c.b16 %v4591, %v4587
  %v6376 = vpack.c.b16 %v4592, %v4588
  %v6377 = vpack.c.b16 %v4593, %v4589
  %v6378 = vpack.c.b16 %v4594, %v4590
  %v6379 = vpack.c.b16 %v4599, %v4595
  %v6380 = vpack.c.b16 %v4600, %v4596
  %v6381 = vpack.c.b16 %v4601, %v4597
  %v6382 = vpack.c.b16 %v4602, %v4598
  %v6383 = vpack.c.b16 %v4607, %v4603
  %v6384 = vpack.c.b16 %v4608, %v4604
  %v6385 = vpack.c.b16 %v4609, %v4605
  %v6386 = vpack.c.b16 %v4610, %v4606
  %v6387 = vpack.c.b16 %v4615, %v4611
  %v6388 = vpack.c.b16 %v4616, %v4612
  %v6389 = vpack.c.b16 %v4617, %v4613
  %v6390 = vpack.c.b16 %v4618, %v4614
  %v6391 = vpack.c.b16 %v4623, %v4619
  %v6392 = vpack.c.b16 %v4624, %v4620
  %v6393 = vpack.c.b16 %v4625, %v4621
  %v6394 = vpack.c.b16 %v4626, %v4622
  %v6395 = vpack.c.b16 %v4631, %v4627
  %v6396 = vpack.c.b16 %v4632, %v4628
  %v6397 = vpack.c.b16 %v4633, %v4629
  %v6398 = vpack.c.b16 %v4634, %v4630
  %v6399 = vpack.c.b16 %v4639, %v4635
  %v6400 = vpack.c.b16 %v4640, %v4636
  %v6401 = vpack.c.b16 %v4641, %v4637
  %v6402 = vpack.c.b16 %v4642, %v4638
  %v6403 = vpack.c.b16 %v4647, %v4643
  %v6404 = vpack.c.b16 %v4648, %v4644
  %v6405 = vpack.c.b16 %v4649, %v4645
  %v6406 = vpack.c.b16 %v4650, %v4646
  %v6407 = vpack.c.b16 %v4655, %v4651
  %v6408 = vpack.c.b16 %v4656, %v4652
  %v6409 = vpack.c.b16 %v4657, %v4653
  %v6410 = vpack.c.b16 %v4658, %v4654
  %v6411 = vpack.c.b16 %v4663, %v4659
  %v6412 = vpack.c.b16 %v4664, %v4660
  %v6413 = vpack.c.b16 %v4665, %v4661
  %v6414 = vpack.c.b16 %v4666, %v4662
  %v6415 = vpack.c.b16 %v4671, %v4667
  %v6416 = vpack.c.b16 %v4672, %v4668
  %v6417 = vpack.c.b16 %v4673, %v4669
  %v6418 = vpack.c.b16 %v4674, %v4670
  %v6419 = vpack.c.b16 %v4679, %v4675
  %v6420 = vpack.c.b16 %v4680, %v4676
  %v6421 = vpack.c.b16 %v4681, %v4677
  %v6422 = vpack.c.b16 %v4682, %v4678
  %v6423 = vpack.c.b16 %v4687, %v4683
  %v6424 = vpack.c.b16 %v4688, %v4684
  %v6425 = vpack.c.b16 %v4689, %v4685
  %v6426 = vpack.c.b16 %v4690, %v4686
  %v6427 = vpack.c.b16 %v4695, %v4691
  %v6428 = vpack.c.b16 %v4696, %v4692
  %v6429 = vpack.c.b16 %v4697, %v4693
  %v6430 = vpack.c.b16 %v4698, %v4694
  %v6431 = vpack.c.b16 %v4703, %v4699
  %v6432 = vpack.c.b16 %v4704, %v4700
  %v6433 = vpack.c.b16 %v4705, %v4701
  %v6434 = vpack.c.b16 %v4706, %v4702
  %v6435 = vpack.c.b16 %v4711, %v4707
  %v6436 = vpack.c.b16 %v4712, %v4708
  %v6437 = vpack.c.b16 %v4713, %v4709
  %v6438 = vpack.c.b16 %v4714, %v4710
  %v6439 = vpack.c.b16 %v4719, %v4715
  %v6440 = vpack.c.b16 %v4720, %v4716
  %v6441 = vpack.c.b16 %v4721, %v4717
  %v6442 = vpack.c.b16 %v4722, %v4718
  %v6443 = vpack.c.b16 %v4727, %v4723
  %v6444 = vpack.c.b16 %v4728, %v4724
  %v6445 = vpack.c.b16 %v4729, %v4725
  %v6446 = vpack.c.b16 %v4730, %v4726
  %v6447 = vpack.c.b16 %v4735, %v4731
  %v6448 = vpack.c.b16 %v4736, %v4732
  %v6449 = vpack.c.b16 %v4737, %v4733
  %v6450 = vpack.c.b16 %v4738, %v4734
  %v6451 = vpack.c.b16 %v4743, %v4739
  %v6452 = vpack.c.b16 %v4744, %v4740
  %v6453 = vpack.c.b16 %v4745, %v4741
  %v6454 = vpack.c.b16 %v4746, %v4742
  %v6455 = vpack.c.b16 %v4751, %v4747
  %v6456 = vpack.c.b16 %v4752, %v4748
  %v6457 = vpack.c.b16 %v4753, %v4749
  %v6458 = vpack.c.b16 %v4754, %v4750
  %v6459 = vpack.c.b16 %v4759, %v4755
  %v6460 = vpack.c.b16 %v4760, %v4756
  %v6461 = vpack.c.b16 %v4761, %v4757
  %v6462 = vpack.c.b16 %v4762, %v4758
  %v6463 = vpack.c.b16 %v4767, %v4763
  %v6464 = vpack.c.b16 %v4768, %v4764
  %v6465 = vpack.c.b16 %v4769, %v4765
  %v6466 = vpack.c.b16 %v4770, %v4766
  %v6467 = vpack.c.b16 %v4775, %v4771
  %v6468 = vpack.c.b16 %v4776, %v4772
  %v6469 = vpack.c.b16 %v4777, %v4773
  %v6470 = vpack.c.b16 %v4778, %v4774
  %v6471 = vpack.c.b16 %v4783, %v4779
  %v6472 = vpack.c.b16 %v4784, %v4780
  %v6473 = vpack.c.b16 %v4785, %v4781
  %v6474 = vpack.c.b16 %v4786, %v4782
  %v6475 = vpack.c.b16 %v4791, %v4787
  %v6476 = vpack.c.b16 %v4792, %v4788
  %v6477 = vpack.c.b16 %v4793, %v4789
  %v6478 = vpack.c.b16 %v4794, %v4790
  %v6479 = vpack.c.b16 %v4799, %v4795
  %v6480 = vpack.c.b16 %v4800, %v4796
  %v6481 = vpack.c.b16 %v4801, %v4797
  %v6482 = vpack.c.b16 %v4802, %v4798
  %v6483 = vpack.c.b16 %v4807, %v4803
  %v6484 = vpack.c.b16 %v4808, %v4804
  %v6485 = vpack.c.b16 %v4809, %v4805
  %v6486 = vpack.c.b16 %v4810, %v4806
  %v6487 = vpack.c.b16 %v4815, %v4811
  %v6488 = vpack.c.b16 %v4816, %v4812
  %v6489 = vpack.c.b16 %v4817, %v4813
  %v6490 = vpack.c.b16 %v4818, %v4814
  %v6491 = vpack.c.b16 %v4823, %v4819
  %v6492 = vpack.c.b16 %v4824, %v4820
  %v6493 = vpack.c.b16 %v4825, %v4821
  %v6494 = vpack.c.b16 %v4826, %v4822
  %v6495 = vpack.c.b16 %v4831, %v4827
  %v6496 = vpack.c.b16 %v4832, %v4828
  %v6497 = vpack.c.b16 %v4833, %v4829
  %v6498 = vpack.c.b16 %v4834, %v4830
  %v6499 = vpack.c.b16 %v4839, %v4835
  %v6500 = vpack.c.b16 %v4840, %v4836
  %v6501 = vpack.c.b16 %v4841, %v4837
  %v6502 = vpack.c.b16 %v4842, %v4838
  %v6503 = vpack.c.b16 %v4847, %v4843
  %v6504 = vpack.c.b16 %v4848, %v4844
  %v6505 = vpack.c.b16 %v4849, %v4845
  %v6506 = vpack.c.b16 %v4850, %v4846
  %v6507 = vpack.c.b16 %v4855, %v4851
  %v6508 = vpack.c.b16 %v4856, %v4852
  %v6509 = vpack.c.b16 %v4857, %v4853
  %v6510 = vpack.c.b16 %v4858, %v4854
  %v6511 = vpack.c.b16 %v4863, %v4859
  %v6512 = vpack.c.b16 %v4864, %v4860
  %v6513 = vpack.c.b16 %v4865, %v4861
  %v6514 = vpack.c.b16 %v4866, %v4862
  %v6515 = vpack.c.b16 %v4871, %v4867
  %v6516 = vpack.c.b16 %v4872, %v4868
  %v6517 = vpack.c.b16 %v4873, %v4869
  %v6518 = vpack.c.b16 %v4874, %v4870
  %v6519 = vpack.c.b16 %v4879, %v4875
  %v6520 = vpack.c.b16 %v4880, %v4876
  %v6521 = vpack.c.b16 %v4881, %v4877
  %v6522 = vpack.c.b16 %v4882, %v4878
  %v6523 = vpack.c.b16 %v4887, %v4883
  %v6524 = vpack.c.b16 %v4888, %v4884
  %v6525 = vpack.c.b16 %v4889, %v4885
  %v6526 = vpack.c.b16 %v4890, %v4886
  %v6527 = vpack.c.b16 %v4895, %v4891
  %v6528 = vpack.c.b16 %v4896, %v4892
  %v6529 = vpack.c.b16 %v4897, %v4893
  %v6530 = vpack.c.b16 %v4898, %v4894
  %v6531 = vpack.c.b16 %v4903, %v4899
  %v6532 = vpack.c.b16 %v4904, %v4900
  %v6533 = vpack.c.b16 %v4905, %v4901
  %v6534 = vpack.c.b16 %v4906, %v4902
  %v6535 = vpack.c.b16 %v4911, %v4907
  %v6536 = vpack.c.b16 %v4912, %v4908
  %v6537 = vpack.c.b16 %v4913, %v4909
  %v6538 = vpack.c.b16 %v4914, %v4910
  %v6539 = vpack.c.b16 %v4919, %v4915
  %v6540 = vpack.c.b16 %v4920, %v4916
  %v6541 = vpack.c.b16 %v4921, %v4917
  %v6542 = vpack.c.b16 %v4922, %v4918
  %v6543 = vpack.c.b16 %v4927, %v4923
  %v6544 = vpack.c.b16 %v4928, %v4924
  %v6545 = vpack.c.b16 %v4929, %v4925
  %v6546 = vpack.c.b16 %v4930, %v4926
  %v6547 = vpack.c.b16 %v4935, %v4931
  %v6548 = vpack.c.b16 %v4936, %v4932
  %v6549 = vpack.c.b16 %v4937, %v4933
  %v6550 = vpack.c.b16 %v4938, %v4934
  %v6551 = vpack.c.b16 %v4943, %v4939
  %v6552 = vpack.c.b16 %v4944, %v4940
  %v6553 = vpack.c.b16 %v4945, %v4941
  %v6554 = vpack.c.b16 %v4946, %v4942
  %v6555 = vpack.c.b16 %v4951, %v4947
  %v6556 = vpack.c.b16 %v4952, %v4948
  %v6557 = vpack.c.b16 %v4953, %v4949
  %v6558 = vpack.c.b16 %v4954, %v4950
  %v6559 = vpack.c.b16 %v4959, %v4955
  %v6560 = vpack.c.b16 %v4960, %v4956
  %v6561 = vpack.c.b16 %v4961, %v4957
  %v6562 = vpack.c.b16 %v4962, %v4958
  %v6563 = vpack.c.b16 %v4967, %v4963
  %v6564 = vpack.c.b16 %v4968, %v4964
  %v6565 = vpack.c.b16 %v4969, %v4965
  %v6566 = vpack.c.b16 %v4970, %v4966
  %v6567 = vpack.c.b16 %v4975, %v4971
  %v6568 = vpack.c.b16 %v4976, %v4972
  %v6569 = vpack.c.b16 %v4977, %v4973
  %v6570 = vpack.c.b16 %v4978, %v4974
  %v6571 = vpack.c.b16 %v4983, %v4979
  %v6572 = vpack.c.b16 %v4984, %v4980
  %v6573 = vpack.c.b16 %v4985, %v4981
  %v6574 = vpack.c.b16 %v4986, %v4982
  %v6575 = vpack.c.b16 %v4991, %v4987
  %v6576 = vpack.c.b16 %v4992, %v4988
  %v6577 = vpack.c.b16 %v4993, %v4989
  %v6578 = vpack.c.b16 %v4994, %v4990
  %v6579 = vpack.c.b16 %v4999, %v4995
  %v6580 = vpack.c.b16 %v5000, %v4996
  %v6581 = vpack.c.b16 %v5001, %v4997
  %v6582 = vpack.c.b16 %v5002, %v4998
  %v6583 = vpack.c.b16 %v5007, %v5003
  %v6584 = vpack.c.b16 %v5008, %v5004
  %v6585 = vpack.c.b16 %v5009, %v5005
  %v6586 = vpack.c.b16 %v5010, %v5006
  %v6587 = vpack.c.b16 %v5015, %v5011
  %v6588 = vpack.c.b16 %v5016, %v5012
  %v6589 = vpack.c.b16 %v5017, %v5013
  %v6590 = vpack.c.b16 %v5018, %v5014
  %v6591 = vpack.c.b16 %v5023, %v5019
  %v6592 = vpack.c.b16 %v5024, %v5020
  %v6593 = vpack.c.b16 %v5025, %v5021
  %v6594 = vpack.c.b16 %v5026, %v5022
  %v6595 = vpack.c.b16 %v5031, %v5027
  %v6596 = vpack.c.b16 %v5032, %v5028
  %v6597 = vpack.c.b16 %v5033, %v5029
  %v6598 = vpack.c.b16 %v5034, %v5030
  %v6599 = vpack.c.b16 %v5039, %v5035
  %v6600 = vpack.c.b16 %v5040, %v5036
  %v6601 = vpack.c.b16 %v5041, %v5037
  %v6602 = vpack.c.b16 %v5042, %v5038
  %v6603 = vpack.c.b16 %v5047, %v5043
  %v6604 = vpack.c.b16 %v5048, %v5044
  %v6605 = vpack.c.b16 %v5049, %v5045
  %v6606 = vpack.c.b16 %v5050, %v5046
  %v6607 = vpack.c.b16 %v5055, %v5051
  %v6608 = vpack.c.b16 %v5056, %v5052
  %v6609 = vpack.c.b16 %v5057, %v5053
  %v6610 = vpack.c.b16 %v5058, %v5054
  %v6611 = vpack.c.b16 %v5063, %v5059
  %v6612 = vpack.c.b16 %v5064, %v5060
  %v6613 = vpack.c.b16 %v5065, %v5061
  %v6614 = vpack.c.b16 %v5066, %v5062
  %v6615 = vpack.c.b16 %v5071, %v5067
  %v6616 = vpack.c.b16 %v5072, %v5068
  %v6617 = vpack.c.b16 %v5073, %v5069
  %v6618 = vpack.c.b16 %v5074, %v5070
  %v6619 = vpack.c.b16 %v5079, %v5075
  %v6620 = vpack.c.b16 %v5080, %v5076
  %v6621 = vpack.c.b16 %v5081, %v5077
  %v6622 = vpack.c.b16 %v5082, %v5078
  %v6623 = vpack.c.b16 %v5087, %v5083
  %v6624 = vpack.c.b16 %v5088, %v5084
  %v6625 = vpack.c.b16 %v5089, %v5085
  %v6626 = vpack.c.b16 %v5090, %v5086
  %v6627 = vpack.c.b16 %v5095, %v5091
  %v6628 = vpack.c.b16 %v5096, %v5092
  %v6629 = vpack.c.b16 %v5097, %v5093
  %v6630 = vpack.c.b16 %v5098, %v5094
  %v6631 = vpack.c.b16 %v5103, %v5099
  %v6632 = vpack.c.b16 %v5104, %v5100
  %v6633 = vpack.c.b16 %v5105, %v5101
  %v6634 = vpack.c.b16 %v5106, %v5102
  %v6635 = vpack.c.b16 %v5111, %v5107
  %v6636 = vpack.c.b16 %v5112, %v5108
  %v6637 = vpack.c.b16 %v5113, %v5109
  %v6638 = vpack.c.b16 %v5114, %v5110
  %v6639 = vpack.c.b16 %v5119, %v5115
  %v6640 = vpack.c.b16 %v5120, %v5116
  %v6641 = vpack.c.b16 %v5121, %v5117
  %v6642 = vpack.c.b16 %v5122, %v5118
  %v6643 = vpack.c.b16 %v5127, %v5123
  %v6644 = vpack.c.b16 %v5128, %v5124
  %v6645 = vpack.c.b16 %v5129, %v5125
  %v6646 = vpack.c.b16 %v5130, %v5126
  %v6647 = vpack.c.b16 %v5135, %v5131
  %v6648 = vpack.c.b16 %v5136, %v5132
  %v6649 = vpack.c.b16 %v5137, %v5133
  %v6650 = vpack.c.b16 %v5138, %v5134
  %v6651 = vpack.c.b16 %v5143, %v5139
  %v6652 = vpack.c.b16 %v5144, %v5140
  %v6653 = vpack.c.b16 %v5145, %v5141
  %v6654 = vpack.c.b16 %v5146, %v5142
  %v6655 = vpack.c.b16 %v5151, %v5147
  %v6656 = vpack.c.b16 %v5152, %v5148
  %v6657 = vpack.c.b16 %v5153, %v5149
  %v6658 = vpack.c.b16 %v5154, %v5150
  %v6659 = vpack.c.b16 %v5159, %v5155
  %v6660 = vpack.c.b16 %v5160, %v5156
  %v6661 = vpack.c.b16 %v5161, %v5157
  %v6662 = vpack.c.b16 %v5162, %v5158
  %v6663 = vpack.c.b16 %v5167, %v5163
  %v6664 = vpack.c.b16 %v5168, %v5164
  %v6665 = vpack.c.b16 %v5169, %v5165
  %v6666 = vpack.c.b16 %v5170, %v5166
  %v6667 = vpack.c.b16 %v5175, %v5171
  %v6668 = vpack.c.b16 %v5176, %v5172
  %v6669 = vpack.c.b16 %v5177, %v5173
  %v6670 = vpack.c.b16 %v5178, %v5174
  %v6671 = vpack.c.b16 %v5183, %v5179
  %v6672 = vpack.c.b16 %v5184, %v5180
  %v6673 = vpack.c.b16 %v5185, %v5181
  %v6674 = vpack.c.b16 %v5186, %v5182
  %v6675 = vpack.c.b16 %v5191, %v5187
  %v6676 = vpack.c.b16 %v5192, %v5188
  %v6677 = vpack.c.b16 %v5193, %v5189
  %v6678 = vpack.c.b16 %v5194, %v5190
  %v6679 = vpack.c.b16 %v5199, %v5195
  %v6680 = vpack.c.b16 %v5200, %v5196
  %v6681 = vpack.c.b16 %v5201, %v5197
  %v6682 = vpack.c.b16 %v5202, %v5198
  %v6683 = vpack.c.b16 %v5207, %v5203
  %v6684 = vpack.c.b16 %v5208, %v5204
  %v6685 = vpack.c.b16 %v5209, %v5205
  %v6686 = vpack.c.b16 %v5210, %v5206
  %v6687 = vpack.c.b16 %v5215, %v5211
  %v6688 = vpack.c.b16 %v5216, %v5212
  %v6689 = vpack.c.b16 %v5217, %v5213
  %v6690 = vpack.c.b16 %v5218, %v5214
  %v6691 = vpack.c.b16 %v5223, %v5219
  %v6692 = vpack.c.b16 %v5224, %v5220
  %v6693 = vpack.c.b16 %v5225, %v5221
  %v6694 = vpack.c.b16 %v5226, %v5222
  %v6695 = vpack.c.b16 %v5231, %v5227
  %v6696 = vpack.c.b16 %v5232, %v5228
  %v6697 = vpack.c.b16 %v5233, %v5229
  %v6698 = vpack.c.b16 %v5234, %v5230
  %v6699 = vpack.c.b16 %v5239, %v5235
  %v6700 = vpack.c.b16 %v5240, %v5236
  %v6701 = vpack.c.b16 %v5241, %v5237
  %v6702 = vpack.c.b16 %v5242, %v5238
  %v6703 = vpack.c.b16 %v5247, %v5243
  %v6704 = vpack.c.b16 %v5248, %v5244
  %v6705 = vpack.c.b16 %v5249, %v5245
  %v6706 = vpack.c.b16 %v5250, %v5246
  %v6707 = vpack.c.b16 %v5255, %v5251
  %v6708 = vpack.c.b16 %v5256, %v5252
  %v6709 = vpack.c.b16 %v5257, %v5253
  %v6710 = vpack.c.b16 %v5258, %v5254
  %v6711 = vpack.c.b16 %v5263, %v5259
  %v6712 = vpack.c.b16 %v5264, %v5260
  %v6713 = vpack.c.b16 %v5265, %v5261
  %v6714 = vpack.c.b16 %v5266, %v5262
  %v6715 = vpack.c.b16 %v5271, %v5267
  %v6716 = vpack.c.b16 %v5272, %v5268
  %v6717 = vpack.c.b16 %v5273, %v5269
  %v6718 = vpack.c.b16 %v5274, %v5270
  %v6719 = vpack.c.b16 %v5279, %v5275
  %v6720 = vpack.c.b16 %v5280, %v5276
  %v6721 = vpack.c.b16 %v5281, %v5277
  %v6722 = vpack.c.b16 %v5282, %v5278
  %v6723 = vpack.c.b16 %v5287, %v5283
  %v6724 = vpack.c.b16 %v5288, %v5284
  %v6725 = vpack.c.b16 %v5289, %v5285
  %v6726 = vpack.c.b16 %v5290, %v5286
  %v6727 = vpack.c.b16 %v5295, %v5291
  %v6728 = vpack.c.b16 %v5296, %v5292
  %v6729 = vpack.c.b16 %v5297, %v5293
  %v6730 = vpack.c.b16 %v5298, %v5294
  %v6731 = vpack.c.b16 %v5303, %v5299
  %v6732 = vpack.c.b16 %v5304, %v5300
  %v6733 = vpack.c.b16 %v5305, %v5301
  %v6734 = vpack.c.b16 %v5306, %v5302
  %v6735 = vpack.c.b16 %v5311, %v5307
  %v6736 = vpack.c.b16 %v5312, %v5308
  %v6737 = vpack.c.b16 %v5313, %v5309
  %v6738 = vpack.c.b16 %v5314, %v5310
  %v6739 = vpack.c.b16 %v5319, %v5315
  %v6740 = vpack.c.b16 %v5320, %v5316
  %v6741 = vpack.c.b16 %v5321, %v5317
  %v6742 = vpack.c.b16 %v5322, %v5318
  %v6743 = vpack.c.b16 %v5327, %v5323
  %v6744 = vpack.c.b16 %v5328, %v5324
  %v6745 = vpack.c.b16 %v5329, %v5325
  %v6746 = vpack.c.b16 %v5330, %v5326
  %v6747 = vpack.c.b16 %v5335, %v5331
  %v6748 = vpack.c.b16 %v5336, %v5332
  %v6749 = vpack.c.b16 %v5337, %v5333
  %v6750 = vpack.c.b16 %v5338, %v5334
  %v6751 = vpack.c.b16 %v5343, %v5339
  %v6752 = vpack.c.b16 %v5344, %v5340
  %v6753 = vpack.c.b16 %v5345, %v5341
  %v6754 = vpack.c.b16 %v5346, %v5342
  %v6755 = vpack.c.b16 %v5351, %v5347
  %v6756 = vpack.c.b16 %v5352, %v5348
  %v6757 = vpack.c.b16 %v5353, %v5349
  %v6758 = vpack.c.b16 %v5354, %v5350
  %v6759 = vpack.c.b16 %v5359, %v5355
  %v6760 = vpack.c.b16 %v5360, %v5356
  %v6761 = vpack.c.b16 %v5361, %v5357
  %v6762 = vpack.c.b16 %v5362, %v5358
  %v6763 = vpack.c.b16 %v5367, %v5363
  %v6764 = vpack.c.b16 %v5368, %v5364
  %v6765 = vpack.c.b16 %v5369, %v5365
  %v6766 = vpack.c.b16 %v5370, %v5366
  %v6767 = vpack.c.b16 %v5375, %v5371
  %v6768 = vpack.c.b16 %v5376, %v5372
  %v6769 = vpack.c.b16 %v5377, %v5373
  %v6770 = vpack.c.b16 %v5378, %v5374
  %v6771 = vpack.c.b16 %v5383, %v5379
  %v6772 = vpack.c.b16 %v5384, %v5380
  %v6773 = vpack.c.b16 %v5385, %v5381
  %v6774 = vpack.c.b16 %v5386, %v5382
  %v6775 = vpack.c.b16 %v5391, %v5387
  %v6776 = vpack.c.b16 %v5392, %v5388
  %v6777 = vpack.c.b16 %v5393, %v5389
  %v6778 = vpack.c.b16 %v5394, %v5390
  %v6779 = vpack.c.b16 %v5399, %v5395
  %v6780 = vpack.c.b16 %v5400, %v5396
  %v6781 = vpack.c.b16 %v5401, %v5397
  %v6782 = vpack.c.b16 %v5402, %v5398
  %v6783 = vpack.c.b16 %v5407, %v5403
  %v6784 = vpack.c.b16 %v5408, %v5404
  %v6785 = vpack.c.b16 %v5409, %v5405
  %v6786 = vpack.c.b16 %v5410, %v5406
  %v6787 = vpack.c.b16 %v5415, %v5411
  %v6788 = vpack.c.b16 %v5416, %v5412
  %v6789 = vpack.c.b16 %v5417, %v5413
  %v6790 = vpack.c.b16 %v5418, %v5414
  %v6791 = vpack.c.b16 %v5423, %v5419
  %v6792 = vpack.c.b16 %v5424, %v5420
  %v6793 = vpack.c.b16 %v5425, %v5421
  %v6794 = vpack.c.b16 %v5426, %v5422
  %v6795 = vpack.c.b16 %v5431, %v5427
  %v6796 = vpack.c.b16 %v5432, %v5428
  %v6797 = vpack.c.b16 %v5433, %v5429
  %v6798 = vpack.c.b16 %v5434, %v5430
  %v6799 = vpack.c.b16 %v5439, %v5435
  %v6800 = vpack.c.b16 %v5440, %v5436
  %v6801 = vpack.c.b16 %v5441, %v5437
  %v6802 = vpack.c.b16 %v5442, %v5438
  %v6803 = vpack.c.b16 %v5447, %v5443
  %v6804 = vpack.c.b16 %v5448, %v5444
  %v6805 = vpack.c.b16 %v5449, %v5445
  %v6806 = vpack.c.b16 %v5450, %v5446
  %v6807 = vpack.c.b16 %v5455, %v5451
  %v6808 = vpack.c.b16 %v5456, %v5452
  %v6809 = vpack.c.b16 %v5457, %v5453
  %v6810 = vpack.c.b16 %v5458, %v5454
  %v6811 = vpack.c.b16 %v5463, %v5459
  %v6812 = vpack.c.b16 %v5464, %v5460
  %v6813 = vpack.c.b16 %v5465, %v5461
  %v6814 = vpack.c.b16 %v5466, %v5462
  %v6815 = vpack.c.b16 %v5471, %v5467
  %v6816 = vpack.c.b16 %v5472, %v5468
  %v6817 = vpack.c.b16 %v5473, %v5469
  %v6818 = vpack.c.b16 %v5474, %v5470
  %v6819 = vpack.c.b16 %v5479, %v5475
  %v6820 = vpack.c.b16 %v5480, %v5476
  %v6821 = vpack.c.b16 %v5481, %v5477
  %v6822 = vpack.c.b16 %v5482, %v5478
  %v6823 = vpack.c.b16 %v5487, %v5483
  %v6824 = vpack.c.b16 %v5488, %v5484
  %v6825 = vpack.c.b16 %v5489, %v5485
  %v6826 = vpack.c.b16 %v5490, %v5486
  %v6827 = vpack.c.b16 %v5495, %v5491
  %v6828 = vpack.c.b16 %v5496, %v5492
  %v6829 = vpack.c.b16 %v5497, %v5493
  %v6830 = vpack.c.b16 %v5498, %v5494
  %v6831 = vpack.c.b16 %v5503, %v5499
  %v6832 = vpack.c.b16 %v5504, %v5500
  %v6833 = vpack.c.b16 %v5505, %v5501
  %v6834 = vpack.c.b16 %v5506, %v5502
  %v6835 = vpack.c.b16 %v5511, %v5507
  %v6836 = vpack.c.b16 %v5512, %v5508
  %v6837 = vpack.c.b16 %v5513, %v5509
  %v6838 = vpack.c.b16 %v5514, %v5510
  %v6839 = vpack.c.b16 %v5519, %v5515
  %v6840 = vpack.c.b16 %v5520, %v5516
  %v6841 = vpack.c.b16 %v5521, %v5517
  %v6842 = vpack.c.b16 %v5522, %v5518
  %v6843 = vpack.c.b16 %v5527, %v5523
  %v6844 = vpack.c.b16 %v5528, %v5524
  %v6845 = vpack.c.b16 %v5529, %v5525
  %v6846 = vpack.c.b16 %v5530, %v5526
  %v6847 = vpack.c.b16 %v5535, %v5531
  %v6848 = vpack.c.b16 %v5536, %v5532
  %v6849 = vpack.c.b16 %v5537, %v5533
  %v6850 = vpack.c.b16 %v5538, %v5534
  %8163 = vmatprep.subr.bf16.mxu0 %v5540
  %8164 = vmatpush1.bf16.msra.mxu0 %v5539
  %8165 = vmatprep.subr.bf16.mxu0 %v5544
  %8166 = vmatpush1.bf16.msra.mxu0 %v5543
  %8167 = vmatprep.subr.bf16.mxu0 %v5548
  %8168 = vmatpush1.bf16.msra.mxu0 %v5547
  %8169 = vmatprep.subr.bf16.mxu0 %v5552
  %8170 = vmatpush1.bf16.msra.mxu0 %v5551
  %8171 = vmatprep.subr.bf16.mxu0 %v5556
  %8172 = vmatpush1.bf16.msra.mxu0 %v5555
  %8173 = vmatprep.subr.bf16.mxu0 %v5560
  %8174 = vmatpush1.bf16.msra.mxu0 %v5559
  %8175 = vmatprep.subr.bf16.mxu0 %v5564
  %8176 = vmatpush1.bf16.msra.mxu0 %v5563
  %8177 = vmatprep.subr.bf16.mxu0 %v5568
  %8178 = vmatpush1.bf16.msra.mxu0 %v5567
  %8179 = vmatprep.subr.bf16.mxu0 %v5572
  %8180 = vmatpush1.bf16.msra.mxu0 %v5571
  %8181 = vmatprep.subr.bf16.mxu0 %v5576
  %8182 = vmatpush1.bf16.msra.mxu0 %v5575
  %8183 = vmatprep.subr.bf16.mxu0 %v5580
  %8184 = vmatpush1.bf16.msra.mxu0 %v5579
  %8185 = vmatprep.subr.bf16.mxu0 %v5584
  %8186 = vmatpush1.bf16.msra.mxu0 %v5583
  %8187 = vmatprep.subr.bf16.mxu0 %v5588
  %8188 = vmatpush1.bf16.msra.mxu0 %v5587
  %8189 = vmatprep.subr.bf16.mxu0 %v5592
  %8190 = vmatpush1.bf16.msra.mxu0 %v5591
  %8191 = vmatprep.subr.bf16.mxu0 %v5596
  %8192 = vmatpush1.bf16.msra.mxu0 %v5595
  %8193 = vmatprep.subr.bf16.mxu0 %v5600
  %8194 = vmatpush1.bf16.msra.mxu0 %v5599
  %8195 = vmatprep.mubr.bf16.mxu0 %v1522
  %8196 = vmatmul.mubr.bf16.gmra.mrb[0].mxu0 %v1521
  %v8197 = vpop.f32.mrb[0].mxu0
  %v8198 = vadd.f32 %v1380, %v8197
  %v8199 = vpop.f32.mrb[0].mxu0
  %v8200 = vadd.f32 %v1384, %v8199
  %v8201 = vpop.f32.mrb[0].mxu0
  %v8202 = vadd.f32 %v1380, %v8201
  %v8203 = vpop.f32.mrb[0].mxu0
  %v8204 = vadd.f32 %v1384, %v8203
  %8205 = vdwg.mxu0
  %8206 = vmatprep.subr.bf16.mxu0 %v5604
  %8207 = vmatpush1.bf16.msra.mxu0 %v5603
  %8208 = vmatprep.subr.bf16.mxu0 %v5608
  %8209 = vmatpush1.bf16.msra.mxu0 %v5607
  %8210 = vmatprep.subr.bf16.mxu0 %v5612
  %8211 = vmatpush1.bf16.msra.mxu0 %v5611
  %8212 = vmatprep.subr.bf16.mxu0 %v5616
  %8213 = vmatpush1.bf16.msra.mxu0 %v5615
  %8214 = vmatprep.subr.bf16.mxu0 %v5620
  %8215 = vmatpush1.bf16.msra.mxu0 %v5619
  %8216 = vmatprep.subr.bf16.mxu0 %v5624
  %8217 = vmatpush1.bf16.msra.mxu0 %v5623
  %8218 = vmatprep.subr.bf16.mxu0 %v5628
  %8219 = vmatpush1.bf16.msra.mxu0 %v5627
  %8220 = vmatprep.subr.bf16.mxu0 %v5632
  %8221 = vmatpush1.bf16.msra.mxu0 %v5631
  %8222 = vmatprep.subr.bf16.mxu0 %v5636
  %8223 = vmatpush1.bf16.msra.mxu0 %v5635
  %8224 = vmatprep.subr.bf16.mxu0 %v5640
  %8225 = vmatpush1.bf16.msra.mxu0 %v5639
  %8226 = vmatprep.subr.bf16.mxu0 %v5644
  %8227 = vmatpush1.bf16.msra.mxu0 %v5643
  %8228 = vmatprep.subr.bf16.mxu0 %v5648
  %8229 = vmatpush1.bf16.msra.mxu0 %v5647
  %8230 = vmatprep.subr.bf16.mxu0 %v5652
  %8231 = vmatpush1.bf16.msra.mxu0 %v5651
  %8232 = vmatprep.subr.bf16.mxu0 %v5656
  %8233 = vmatpush1.bf16.msra.mxu0 %v5655
  %8234 = vmatprep.subr.bf16.mxu0 %v5660
  %8235 = vmatpush1.bf16.msra.mxu0 %v5659
  %8236 = vmatprep.subr.bf16.mxu0 %v5664
  %8237 = vmatpush1.bf16.msra.mxu0 %v5663
  %8238 = vmatprep.mubr.bf16.mxu0 %v1524
  %8239 = vmatmul.mubr.bf16.gmra.mrb[0].mxu0 %v1523
  %v8240 = vpop.f32.mrb[0].mxu0
  %v8241 = vadd.f32 %v8198, %v8240
  %v8242 = vpop.f32.mrb[0].mxu0
  %v8243 = vadd.f32 %v8200, %v8242
  %v8244 = vpop.f32.mrb[0].mxu0
  %v8245 = vadd.f32 %v8202, %v8244
  %v8246 = vpop.f32.mrb[0].mxu0
  %v8247 = vadd.f32 %v8204, %v8246
  %8248 = vdwg.mxu0
  %8249 = vmatprep.subr.bf16.mxu0 %v5668
  %8250 = vmatpush1.bf16.msra.mxu0 %v5667
  %8251 = vmatprep.subr.bf16.mxu0 %v5672
  %8252 = vmatpush1.bf16.msra.mxu0 %v5671
  %8253 = vmatprep.subr.bf16.mxu0 %v5676
  %8254 = vmatpush1.bf16.msra.mxu0 %v5675
  %8255 = vmatprep.subr.bf16.mxu0 %v5680
  %8256 = vmatpush1.bf16.msra.mxu0 %v5679
  %8257 = vmatprep.subr.bf16.mxu0 %v5684
  %8258 = vmatpush1.bf16.msra.mxu0 %v5683
  %8259 = vmatprep.subr.bf16.mxu0 %v5688
  %8260 = vmatpush1.bf16.msra.mxu0 %v5687
  %8261 = vmatprep.subr.bf16.mxu0 %v5692
  %8262 = vmatpush1.bf16.msra.mxu0 %v5691
  %8263 = vmatprep.subr.bf16.mxu0 %v5696
  %8264 = vmatpush1.bf16.msra.mxu0 %v5695
  %8265 = vmatprep.subr.bf16.mxu0 %v5700
  %8266 = vmatpush1.bf16.msra.mxu0 %v5699
  %8267 = vmatprep.subr.bf16.mxu0 %v5704
  %8268 = vmatpush1.bf16.msra.mxu0 %v5703
  %8269 = vmatprep.subr.bf16.mxu0 %v5708
  %8270 = vmatpush1.bf16.msra.mxu0 %v5707
  %8271 = vmatprep.subr.bf16.mxu0 %v5712
  %8272 = vmatpush1.bf16.msra.mxu0 %v5711
  %8273 = vmatprep.subr.bf16.mxu0 %v5716
  %8274 = vmatpush1.bf16.msra.mxu0 %v5715
  %8275 = vmatprep.subr.bf16.mxu0 %v5720
  %8276 = vmatpush1.bf16.msra.mxu0 %v5719
  %8277 = vmatprep.subr.bf16.mxu0 %v5724
  %8278 = vmatpush1.bf16.msra.mxu0 %v5723
  %8279 = vmatprep.subr.bf16.mxu0 %v5728
  %8280 = vmatpush1.bf16.msra.mxu0 %v5727
  %8281 = vmatprep.mubr.bf16.mxu0 %v1526
  %8282 = vmatmul.mubr.bf16.gmra.mrb[0].mxu0 %v1525
  %v8283 = vpop.f32.mrb[0].mxu0
  %v8284 = vadd.f32 %v8241, %v8283
  %v8285 = vpop.f32.mrb[0].mxu0
  %v8286 = vadd.f32 %v8243, %v8285
  %v8287 = vpop.f32.mrb[0].mxu0
  %v8288 = vadd.f32 %v8245, %v8287
  %v8289 = vpop.f32.mrb[0].mxu0
  %v8290 = vadd.f32 %v8247, %v8289
  %8291 = vdwg.mxu0
  %8292 = vmatprep.subr.bf16.mxu0 %v5732
  %8293 = vmatpush1.bf16.msra.mxu0 %v5731
  %8294 = vmatprep.subr.bf16.mxu0 %v5736
  %8295 = vmatpush1.bf16.msra.mxu0 %v5735
  %8296 = vmatprep.subr.bf16.mxu0 %v5740
  %8297 = vmatpush1.bf16.msra.mxu0 %v5739
  %8298 = vmatprep.subr.bf16.mxu0 %v5744
  %8299 = vmatpush1.bf16.msra.mxu0 %v5743
  %8300 = vmatprep.subr.bf16.mxu0 %v5748
  %8301 = vmatpush1.bf16.msra.mxu0 %v5747
  %8302 = vmatprep.subr.bf16.mxu0 %v5752
  %8303 = vmatpush1.bf16.msra.mxu0 %v5751
  %8304 = vmatprep.subr.bf16.mxu0 %v5756
  %8305 = vmatpush1.bf16.msra.mxu0 %v5755
  %8306 = vmatprep.subr.bf16.mxu0 %v5760
  %8307 = vmatpush1.bf16.msra.mxu0 %v5759
  %8308 = vmatprep.subr.bf16.mxu0 %v5764
  %8309 = vmatpush1.bf16.msra.mxu0 %v5763
  %8310 = vmatprep.subr.bf16.mxu0 %v5768
  %8311 = vmatpush1.bf16.msra.mxu0 %v5767
  %8312 = vmatprep.subr.bf16.mxu0 %v5772
  %8313 = vmatpush1.bf16.msra.mxu0 %v5771
  %8314 = vmatprep.subr.bf16.mxu0 %v5776
  %8315 = vmatpush1.bf16.msra.mxu0 %v5775
  %8316 = vmatprep.subr.bf16.mxu0 %v5780
  %8317 = vmatpush1.bf16.msra.mxu0 %v5779
  %8318 = vmatprep.subr.bf16.mxu0 %v5784
  %8319 = vmatpush1.bf16.msra.mxu0 %v5783
  %8320 = vmatprep.subr.bf16.mxu0 %v5788
  %8321 = vmatpush1.bf16.msra.mxu0 %v5787
  %8322 = vmatprep.subr.bf16.mxu0 %v5792
  %8323 = vmatpush1.bf16.msra.mxu0 %v5791
  %8324 = vmatprep.mubr.bf16.mxu0 %v1528
  %8325 = vmatmul.mubr.bf16.gmra.mrb[0].mxu0 %v1527
  %v8326 = vpop.f32.mrb[0].mxu0
  %v8327 = vadd.f32 %v8284, %v8326
  %v8328 = vpop.f32.mrb[0].mxu0
  %v8329 = vadd.f32 %v8286, %v8328
  %v8330 = vpop.f32.mrb[0].mxu0
  %v8331 = vadd.f32 %v8288, %v8330
  %v8332 = vpop.f32.mrb[0].mxu0
  %v8333 = vadd.f32 %v8290, %v8332
  %8334 = vdwg.mxu0
  %8335 = vmatprep.subr.bf16.mxu0 %v5796
  %8336 = vmatpush1.bf16.msra.mxu0 %v5795
  %8337 = vmatprep.subr.bf16.mxu0 %v5800
  %8338 = vmatpush1.bf16.msra.mxu0 %v5799
  %8339 = vmatprep.subr.bf16.mxu0 %v5804
  %8340 = vmatpush1.bf16.msra.mxu0 %v5803
  %8341 = vmatprep.subr.bf16.mxu0 %v5808
  %8342 = vmatpush1.bf16.msra.mxu0 %v5807
  %8343 = vmatprep.subr.bf16.mxu0 %v5812
  %8344 = vmatpush1.bf16.msra.mxu0 %v5811
  %8345 = vmatprep.subr.bf16.mxu0 %v5816
  %8346 = vmatpush1.bf16.msra.mxu0 %v5815
  %8347 = vmatprep.subr.bf16.mxu0 %v5820
  %8348 = vmatpush1.bf16.msra.mxu0 %v5819
  %8349 = vmatprep.subr.bf16.mxu0 %v5824
  %8350 = vmatpush1.bf16.msra.mxu0 %v5823
  %8351 = vmatprep.subr.bf16.mxu0 %v5828
  %8352 = vmatpush1.bf16.msra.mxu0 %v5827
  %8353 = vmatprep.subr.bf16.mxu0 %v5832
  %8354 = vmatpush1.bf16.msra.mxu0 %v5831
  %8355 = vmatprep.subr.bf16.mxu0 %v5836
  %8356 = vmatpush1.bf16.msra.mxu0 %v5835
  %8357 = vmatprep.subr.bf16.mxu0 %v5840
  %8358 = vmatpush1.bf16.msra.mxu0 %v5839
  %8359 = vmatprep.subr.bf16.mxu0 %v5844
  %8360 = vmatpush1.bf16.msra.mxu0 %v5843
  %8361 = vmatprep.subr.bf16.mxu0 %v5848
  %8362 = vmatpush1.bf16.msra.mxu0 %v5847
  %8363 = vmatprep.subr.bf16.mxu0 %v5852
  %8364 = vmatpush1.bf16.msra.mxu0 %v5851
  %8365 = vmatprep.subr.bf16.mxu0 %v5856
  %8366 = vmatpush1.bf16.msra.mxu0 %v5855
  %8367 = vmatprep.mubr.bf16.mxu0 %v1530
  %8368 = vmatmul.mubr.bf16.gmra.mrb[0].mxu0 %v1529
  %v8369 = vpop.f32.mrb[0].mxu0
  %v8370 = vadd.f32 %v8327, %v8369
  %v8371 = vpop.f32.mrb[0].mxu0
  %v8372 = vadd.f32 %v8329, %v8371
  %v8373 = vpop.f32.mrb[0].mxu0
  %v8374 = vadd.f32 %v8331, %v8373
  %v8375 = vpop.f32.mrb[0].mxu0
  %v8376 = vadd.f32 %v8333, %v8375
  %8377 = vdwg.mxu0
  %8378 = vmatprep.subr.bf16.mxu0 %v5860
  %8379 = vmatpush1.bf16.msra.mxu0 %v5859
  %8380 = vmatprep.subr.bf16.mxu0 %v5864
  %8381 = vmatpush1.bf16.msra.mxu0 %v5863
  %8382 = vmatprep.subr.bf16.mxu0 %v5868
  %8383 = vmatpush1.bf16.msra.mxu0 %v5867
  %8384 = vmatprep.subr.bf16.mxu0 %v5872
  %8385 = vmatpush1.bf16.msra.mxu0 %v5871
  %8386 = vmatprep.subr.bf16.mxu0 %v5876
  %8387 = vmatpush1.bf16.msra.mxu0 %v5875
  %8388 = vmatprep.subr.bf16.mxu0 %v5880
  %8389 = vmatpush1.bf16.msra.mxu0 %v5879
  %8390 = vmatprep.subr.bf16.mxu0 %v5884
  %8391 = vmatpush1.bf16.msra.mxu0 %v5883
  %8392 = vmatprep.subr.bf16.mxu0 %v5888
  %8393 = vmatpush1.bf16.msra.mxu0 %v5887
  %8394 = vmatprep.subr.bf16.mxu0 %v5892
  %8395 = vmatpush1.bf16.msra.mxu0 %v5891
  %8396 = vmatprep.subr.bf16.mxu0 %v5896
  %8397 = vmatpush1.bf16.msra.mxu0 %v5895
  %8398 = vmatprep.subr.bf16.mxu0 %v5900
  %8399 = vmatpush1.bf16.msra.mxu0 %v5899
  %8400 = vmatprep.subr.bf16.mxu0 %v5904
  %8401 = vmatpush1.bf16.msra.mxu0 %v5903
  %8402 = vmatprep.subr.bf16.mxu0 %v5908
  %8403 = vmatpush1.bf16.msra.mxu0 %v5907
  %8404 = vmatprep.subr.bf16.mxu0 %v5912
  %8405 = vmatpush1.bf16.msra.mxu0 %v5911
  %8406 = vmatprep.subr.bf16.mxu0 %v5916
  %8407 = vmatpush1.bf16.msra.mxu0 %v5915
  %8408 = vmatprep.subr.bf16.mxu0 %v5920
  %8409 = vmatpush1.bf16.msra.mxu0 %v5919
  %8410 = vmatprep.mubr.bf16.mxu0 %v1532
  %8411 = vmatmul.mubr.bf16.gmra.mrb[0].mxu0 %v1531
  %v8412 = vpop.f32.mrb[0].mxu0
  %v8413 = vadd.f32 %v8370, %v8412
  %v8414 = vpop.f32.mrb[0].mxu0
  %v8415 = vadd.f32 %v8372, %v8414
  %v8416 = vpop.f32.mrb[0].mxu0
  %v8417 = vadd.f32 %v8374, %v8416
  %v8418 = vpop.f32.mrb[0].mxu0
  %v8419 = vadd.f32 %v8376, %v8418
  %8420 = vdwg.mxu0
  %8421 = vmatprep.subr.bf16.mxu0 %v5924
  %8422 = vmatpush1.bf16.msra.mxu0 %v5923
  %8423 = vmatprep.subr.bf16.mxu0 %v5928
  %8424 = vmatpush1.bf16.msra.mxu0 %v5927
  %8425 = vmatprep.subr.bf16.mxu0 %v5932
  %8426 = vmatpush1.bf16.msra.mxu0 %v5931
  %8427 = vmatprep.subr.bf16.mxu0 %v5936
  %8428 = vmatpush1.bf16.msra.mxu0 %v5935
  %8429 = vmatprep.subr.bf16.mxu0 %v5940
  %8430 = vmatpush1.bf16.msra.mxu0 %v5939
  %8431 = vmatprep.subr.bf16.mxu0 %v5944
  %8432 = vmatpush1.bf16.msra.mxu0 %v5943
  %8433 = vmatprep.subr.bf16.mxu0 %v5948
  %8434 = vmatpush1.bf16.msra.mxu0 %v5947
  %8435 = vmatprep.subr.bf16.mxu0 %v5952
  %8436 = vmatpush1.bf16.msra.mxu0 %v5951
  %8437 = vmatprep.subr.bf16.mxu0 %v5956
  %8438 = vmatpush1.bf16.msra.mxu0 %v5955
  %8439 = vmatprep.subr.bf16.mxu0 %v5960
  %8440 = vmatpush1.bf16.msra.mxu0 %v5959
  %8441 = vmatprep.subr.bf16.mxu0 %v5964
  %8442 = vmatpush1.bf16.msra.mxu0 %v5963
  %8443 = vmatprep.subr.bf16.mxu0 %v5968
  %8444 = vmatpush1.bf16.msra.mxu0 %v5967
  %8445 = vmatprep.subr.bf16.mxu0 %v5972
  %8446 = vmatpush1.bf16.msra.mxu0 %v5971
  %8447 = vmatprep.subr.bf16.mxu0 %v5976
  %8448 = vmatpush1.bf16.msra.mxu0 %v5975
  %8449 = vmatprep.subr.bf16.mxu0 %v5980
  %8450 = vmatpush1.bf16.msra.mxu0 %v5979
  %8451 = vmatprep.subr.bf16.mxu0 %v5984
  %8452 = vmatpush1.bf16.msra.mxu0 %v5983
  %8453 = vmatprep.mubr.bf16.mxu0 %v1534
  %8454 = vmatmul.mubr.bf16.gmra.mrb[0].mxu0 %v1533
  %v8455 = vpop.f32.mrb[0].mxu0
  %v8456 = vadd.f32 %v8413, %v8455
  %v8457 = vpop.f32.mrb[0].mxu0
  %v8458 = vadd.f32 %v8415, %v8457
  %v8459 = vpop.f32.mrb[0].mxu0
  %v8460 = vadd.f32 %v8417, %v8459
  %v8461 = vpop.f32.mrb[0].mxu0
  %v8462 = vadd.f32 %v8419, %v8461
  %8463 = vdwg.mxu0
  %8464 = vmatprep.subr.bf16.mxu0 %v5988
  %8465 = vmatpush1.bf16.msra.mxu0 %v5987
  %8466 = vmatprep.subr.bf16.mxu0 %v5992
  %8467 = vmatpush1.bf16.msra.mxu0 %v5991
  %8468 = vmatprep.subr.bf16.mxu0 %v5996
  %8469 = vmatpush1.bf16.msra.mxu0 %v5995
  %8470 = vmatprep.subr.bf16.mxu0 %v6000
  %8471 = vmatpush1.bf16.msra.mxu0 %v5999
  %8472 = vmatprep.subr.bf16.mxu0 %v6004
  %8473 = vmatpush1.bf16.msra.mxu0 %v6003
  %8474 = vmatprep.subr.bf16.mxu0 %v6008
  %8475 = vmatpush1.bf16.msra.mxu0 %v6007
  %8476 = vmatprep.subr.bf16.mxu0 %v6012
  %8477 = vmatpush1.bf16.msra.mxu0 %v6011
  %8478 = vmatprep.subr.bf16.mxu0 %v6016
  %8479 = vmatpush1.bf16.msra.mxu0 %v6015
  %8480 = vmatprep.subr.bf16.mxu0 %v6020
  %8481 = vmatpush1.bf16.msra.mxu0 %v6019
  %8482 = vmatprep.subr.bf16.mxu0 %v6024
  %8483 = vmatpush1.bf16.msra.mxu0 %v6023
  %8484 = vmatprep.subr.bf16.mxu0 %v6028
  %8485 = vmatpush1.bf16.msra.mxu0 %v6027
  %8486 = vmatprep.subr.bf16.mxu0 %v6032
  %8487 = vmatpush1.bf16.msra.mxu0 %v6031
  %8488 = vmatprep.subr.bf16.mxu0 %v6036
  %8489 = vmatpush1.bf16.msra.mxu0 %v6035
  %8490 = vmatprep.subr.bf16.mxu0 %v6040
  %8491 = vmatpush1.bf16.msra.mxu0 %v6039
  %8492 = vmatprep.subr.bf16.mxu0 %v6044
  %8493 = vmatpush1.bf16.msra.mxu0 %v6043
  %8494 = vmatprep.subr.bf16.mxu0 %v6048
  %8495 = vmatpush1.bf16.msra.mxu0 %v6047
  %8496 = vmatprep.mubr.bf16.mxu0 %v1536
  %8497 = vmatmul.mubr.bf16.gmra.mrb[0].mxu0 %v1535
  %v8498 = vpop.f32.mrb[0].mxu0
  %v8499 = vadd.f32 %v8456, %v8498
  %v8500 = vpop.f32.mrb[0].mxu0
  %v8501 = vadd.f32 %v8458, %v8500
  %v8502 = vpop.f32.mrb[0].mxu0
  %v8503 = vadd.f32 %v8460, %v8502
  %v8504 = vpop.f32.mrb[0].mxu0
  %v8505 = vadd.f32 %v8462, %v8504
  %8506 = vdwg.mxu0
  %8507 = vmatprep.subr.bf16.mxu0 %v6052
  %8508 = vmatpush1.bf16.msra.mxu0 %v6051
  %8509 = vmatprep.subr.bf16.mxu0 %v6056
  %8510 = vmatpush1.bf16.msra.mxu0 %v6055
  %8511 = vmatprep.subr.bf16.mxu0 %v6060
  %8512 = vmatpush1.bf16.msra.mxu0 %v6059
  %8513 = vmatprep.subr.bf16.mxu0 %v6064
  %8514 = vmatpush1.bf16.msra.mxu0 %v6063
  %8515 = vmatprep.subr.bf16.mxu0 %v6068
  %8516 = vmatpush1.bf16.msra.mxu0 %v6067
  %8517 = vmatprep.subr.bf16.mxu0 %v6072
  %8518 = vmatpush1.bf16.msra.mxu0 %v6071
  %8519 = vmatprep.subr.bf16.mxu0 %v6076
  %8520 = vmatpush1.bf16.msra.mxu0 %v6075
  %8521 = vmatprep.subr.bf16.mxu0 %v6080
  %8522 = vmatpush1.bf16.msra.mxu0 %v6079
  %8523 = vmatprep.subr.bf16.mxu0 %v6084
  %8524 = vmatpush1.bf16.msra.mxu0 %v6083
  %8525 = vmatprep.subr.bf16.mxu0 %v6088
  %8526 = vmatpush1.bf16.msra.mxu0 %v6087
  %8527 = vmatprep.subr.bf16.mxu0 %v6092
  %8528 = vmatpush1.bf16.msra.mxu0 %v6091
  %8529 = vmatprep.subr.bf16.mxu0 %v6096
  %8530 = vmatpush1.bf16.msra.mxu0 %v6095
  %8531 = vmatprep.subr.bf16.mxu0 %v6100
  %8532 = vmatpush1.bf16.msra.mxu0 %v6099
  %8533 = vmatprep.subr.bf16.mxu0 %v6104
  %8534 = vmatpush1.bf16.msra.mxu0 %v6103
  %8535 = vmatprep.subr.bf16.mxu0 %v6108
  %8536 = vmatpush1.bf16.msra.mxu0 %v6107
  %8537 = vmatprep.subr.bf16.mxu0 %v6112
  %8538 = vmatpush1.bf16.msra.mxu0 %v6111
  %8539 = vmatprep.mubr.bf16.mxu0 %v1538
  %8540 = vmatmul.mubr.bf16.gmra.mrb[0].mxu0 %v1537
  %v8541 = vpop.f32.mrb[0].mxu0
  %v8542 = vadd.f32 %v8499, %v8541
  %v8543 = vpop.f32.mrb[0].mxu0
  %v8544 = vadd.f32 %v8501, %v8543
  %v8545 = vpop.f32.mrb[0].mxu0
  %v8546 = vadd.f32 %v8503, %v8545
  %v8547 = vpop.f32.mrb[0].mxu0
  %v8548 = vadd.f32 %v8505, %v8547
  %8549 = vdwg.mxu0
  %8550 = vmatprep.subr.bf16.mxu0 %v6116
  %8551 = vmatpush1.bf16.msra.mxu0 %v6115
  %8552 = vmatprep.subr.bf16.mxu0 %v6120
  %8553 = vmatpush1.bf16.msra.mxu0 %v6119
  %8554 = vmatprep.subr.bf16.mxu0 %v6124
  %8555 = vmatpush1.bf16.msra.mxu0 %v6123
  %8556 = vmatprep.subr.bf16.mxu0 %v6128
  %8557 = vmatpush1.bf16.msra.mxu0 %v6127
  %8558 = vmatprep.subr.bf16.mxu0 %v6132
  %8559 = vmatpush1.bf16.msra.mxu0 %v6131
  %8560 = vmatprep.subr.bf16.mxu0 %v6136
  %8561 = vmatpush1.bf16.msra.mxu0 %v6135
  %8562 = vmatprep.subr.bf16.mxu0 %v6140
  %8563 = vmatpush1.bf16.msra.mxu0 %v6139
  %8564 = vmatprep.subr.bf16.mxu0 %v6144
  %8565 = vmatpush1.bf16.msra.mxu0 %v6143
  %8566 = vmatprep.subr.bf16.mxu0 %v6148
  %8567 = vmatpush1.bf16.msra.mxu0 %v6147
  %8568 = vmatprep.subr.bf16.mxu0 %v6152
  %8569 = vmatpush1.bf16.msra.mxu0 %v6151
  %8570 = vmatprep.subr.bf16.mxu0 %v6156
  %8571 = vmatpush1.bf16.msra.mxu0 %v6155
  %8572 = vmatprep.subr.bf16.mxu0 %v6160
  %8573 = vmatpush1.bf16.msra.mxu0 %v6159
  %8574 = vmatprep.subr.bf16.mxu0 %v6164
  %8575 = vmatpush1.bf16.msra.mxu0 %v6163
  %8576 = vmatprep.subr.bf16.mxu0 %v6168
  %8577 = vmatpush1.bf16.msra.mxu0 %v6167
  %8578 = vmatprep.subr.bf16.mxu0 %v6172
  %8579 = vmatpush1.bf16.msra.mxu0 %v6171
  %8580 = vmatprep.subr.bf16.mxu0 %v6176
  %8581 = vmatpush1.bf16.msra.mxu0 %v6175
  %8582 = vmatprep.mubr.bf16.mxu0 %v1540
  %8583 = vmatmul.mubr.bf16.gmra.mrb[0].mxu0 %v1539
  %v8584 = vpop.f32.mrb[0].mxu0
  %v8585 = vadd.f32 %v8542, %v8584
  %v8586 = vpop.f32.mrb[0].mxu0
  %v8587 = vadd.f32 %v8544, %v8586
  %v8588 = vpop.f32.mrb[0].mxu0
  %v8589 = vadd.f32 %v8546, %v8588
  %v8590 = vpop.f32.mrb[0].mxu0
  %v8591 = vadd.f32 %v8548, %v8590
  %8592 = vdwg.mxu0
  %8593 = vmatprep.subr.bf16.mxu0 %v6180
  %8594 = vmatpush1.bf16.msra.mxu0 %v6179
  %8595 = vmatprep.subr.bf16.mxu0 %v6184
  %8596 = vmatpush1.bf16.msra.mxu0 %v6183
  %8597 = vmatprep.subr.bf16.mxu0 %v6188
  %8598 = vmatpush1.bf16.msra.mxu0 %v6187
  %8599 = vmatprep.subr.bf16.mxu0 %v6192
  %8600 = vmatpush1.bf16.msra.mxu0 %v6191
  %8601 = vmatprep.subr.bf16.mxu0 %v6196
  %8602 = vmatpush1.bf16.msra.mxu0 %v6195
  %8603 = vmatprep.subr.bf16.mxu0 %v6200
  %8604 = vmatpush1.bf16.msra.mxu0 %v6199
  %8605 = vmatprep.subr.bf16.mxu0 %v6204
  %8606 = vmatpush1.bf16.msra.mxu0 %v6203
  %8607 = vmatprep.subr.bf16.mxu0 %v6208
  %8608 = vmatpush1.bf16.msra.mxu0 %v6207
  %8609 = vmatprep.subr.bf16.mxu0 %v6212
  %8610 = vmatpush1.bf16.msra.mxu0 %v6211
  %8611 = vmatprep.subr.bf16.mxu0 %v6216
  %8612 = vmatpush1.bf16.msra.mxu0 %v6215
  %8613 = vmatprep.subr.bf16.mxu0 %v6220
  %8614 = vmatpush1.bf16.msra.mxu0 %v6219
  %8615 = vmatprep.subr.bf16.mxu0 %v6224
  %8616 = vmatpush1.bf16.msra.mxu0 %v6223
  %8617 = vmatprep.subr.bf16.mxu0 %v6228
  %8618 = vmatpush1.bf16.msra.mxu0 %v6227
  %8619 = vmatprep.subr.bf16.mxu0 %v6232
  %8620 = vmatpush1.bf16.msra.mxu0 %v6231
  %8621 = vmatprep.subr.bf16.mxu0 %v6236
  %8622 = vmatpush1.bf16.msra.mxu0 %v6235
  %8623 = vmatprep.subr.bf16.mxu0 %v6240
  %8624 = vmatpush1.bf16.msra.mxu0 %v6239
  %8625 = vmatprep.mubr.bf16.mxu0 %v1542
  %8626 = vmatmul.mubr.bf16.gmra.mrb[0].mxu0 %v1541
  %v8627 = vpop.f32.mrb[0].mxu0
  %v8628 = vadd.f32 %v8585, %v8627
  %v8629 = vpop.f32.mrb[0].mxu0
  %v8630 = vadd.f32 %v8587, %v8629
  %v8631 = vpop.f32.mrb[0].mxu0
  %v8632 = vadd.f32 %v8589, %v8631
  %v8633 = vpop.f32.mrb[0].mxu0
  %v8634 = vadd.f32 %v8591, %v8633
  %8635 = vdwg.mxu0
  %8636 = vmatprep.subr.bf16.mxu0 %v6244
  %8637 = vmatpush1.bf16.msra.mxu0 %v6243
  %8638 = vmatprep.subr.bf16.mxu0 %v6248
  %8639 = vmatpush1.bf16.msra.mxu0 %v6247
  %8640 = vmatprep.subr.bf16.mxu0 %v6252
  %8641 = vmatpush1.bf16.msra.mxu0 %v6251
  %8642 = vmatprep.subr.bf16.mxu0 %v6256
  %8643 = vmatpush1.bf16.msra.mxu0 %v6255
  %8644 = vmatprep.subr.bf16.mxu0 %v6260
  %8645 = vmatpush1.bf16.msra.mxu0 %v6259
  %8646 = vmatprep.subr.bf16.mxu0 %v6264
  %8647 = vmatpush1.bf16.msra.mxu0 %v6263
  %8648 = vmatprep.subr.bf16.mxu0 %v6268
  %8649 = vmatpush1.bf16.msra.mxu0 %v6267
  %8650 = vmatprep.subr.bf16.mxu0 %v6272
  %8651 = vmatpush1.bf16.msra.mxu0 %v6271
  %8652 = vmatprep.subr.bf16.mxu0 %v6276
  %8653 = vmatpush1.bf16.msra.mxu0 %v6275
  %8654 = vmatprep.subr.bf16.mxu0 %v6280
  %8655 = vmatpush1.bf16.msra.mxu0 %v6279
  %8656 = vmatprep.subr.bf16.mxu0 %v6284
  %8657 = vmatpush1.bf16.msra.mxu0 %v6283
  %8658 = vmatprep.subr.bf16.mxu0 %v6288
  %8659 = vmatpush1.bf16.msra.mxu0 %v6287
  %8660 = vmatprep.subr.bf16.mxu0 %v6292
  %8661 = vmatpush1.bf16.msra.mxu0 %v6291
  %8662 = vmatprep.subr.bf16.mxu0 %v6296
  %8663 = vmatpush1.bf16.msra.mxu0 %v6295
  %8664 = vmatprep.subr.bf16.mxu0 %v6300
  %8665 = vmatpush1.bf16.msra.mxu0 %v6299
  %8666 = vmatprep.subr.bf16.mxu0 %v6304
  %8667 = vmatpush1.bf16.msra.mxu0 %v6303
  %8668 = vmatprep.mubr.bf16.mxu0 %v1544
  %8669 = vmatmul.mubr.bf16.gmra.mrb[0].mxu0 %v1543
  %v8670 = vpop.f32.mrb[0].mxu0
  %v8671 = vadd.f32 %v8628, %v8670
  %v8672 = vpop.f32.mrb[0].mxu0
  %v8673 = vadd.f32 %v8630, %v8672
  %v8674 = vpop.f32.mrb[0].mxu0
  %v8675 = vadd.f32 %v8632, %v8674
  %v8676 = vpop.f32.mrb[0].mxu0
  %v8677 = vadd.f32 %v8634, %v8676
  %8678 = vdwg.mxu0
  %8679 = vmatprep.subr.bf16.mxu0 %v6308
  %8680 = vmatpush1.bf16.msra.mxu0 %v6307
  %8681 = vmatprep.subr.bf16.mxu0 %v6312
  %8682 = vmatpush1.bf16.msra.mxu0 %v6311
  %8683 = vmatprep.subr.bf16.mxu0 %v6316
  %8684 = vmatpush1.bf16.msra.mxu0 %v6315
  %8685 = vmatprep.subr.bf16.mxu0 %v6320
  %8686 = vmatpush1.bf16.msra.mxu0 %v6319
  %8687 = vmatprep.subr.bf16.mxu0 %v6324
  %8688 = vmatpush1.bf16.msra.mxu0 %v6323
  %8689 = vmatprep.subr.bf16.mxu0 %v6328
  %8690 = vmatpush1.bf16.msra.mxu0 %v6327
  %8691 = vmatprep.subr.bf16.mxu0 %v6332
  %8692 = vmatpush1.bf16.msra.mxu0 %v6331
  %8693 = vmatprep.subr.bf16.mxu0 %v6336
  %8694 = vmatpush1.bf16.msra.mxu0 %v6335
  %8695 = vmatprep.subr.bf16.mxu0 %v6340
  %8696 = vmatpush1.bf16.msra.mxu0 %v6339
  %8697 = vmatprep.subr.bf16.mxu0 %v6344
  %8698 = vmatpush1.bf16.msra.mxu0 %v6343
  %8699 = vmatprep.subr.bf16.mxu0 %v6348
  %8700 = vmatpush1.bf16.msra.mxu0 %v6347
  %8701 = vmatprep.subr.bf16.mxu0 %v6352
  %8702 = vmatpush1.bf16.msra.mxu0 %v6351
  %8703 = vmatprep.subr.bf16.mxu0 %v6356
  %8704 = vmatpush1.bf16.msra.mxu0 %v6355
  %8705 = vmatprep.subr.bf16.mxu0 %v6360
  %8706 = vmatpush1.bf16.msra.mxu0 %v6359
  %8707 = vmatprep.subr.bf16.mxu0 %v6364
  %8708 = vmatpush1.bf16.msra.mxu0 %v6363
  %8709 = vmatprep.subr.bf16.mxu0 %v6368
  %8710 = vmatpush1.bf16.msra.mxu0 %v6367
  %8711 = vmatprep.mubr.bf16.mxu0 %v1546
  %8712 = vmatmul.mubr.bf16.gmra.mrb[0].mxu0 %v1545
  %v8713 = vpop.f32.mrb[0].mxu0
  %v8714 = vadd.f32 %v8671, %v8713
  %v8715 = vpop.f32.mrb[0].mxu0
  %v8716 = vadd.f32 %v8673, %v8715
  %v8717 = vpop.f32.mrb[0].mxu0
  %v8718 = vadd.f32 %v8675, %v8717
  %v8719 = vpop.f32.mrb[0].mxu0
  %v8720 = vadd.f32 %v8677, %v8719
  %8721 = vdwg.mxu0
  %8722 = vmatprep.subr.bf16.mxu0 %v6372
  %8723 = vmatpush1.bf16.msra.mxu0 %v6371
  %8724 = vmatprep.subr.bf16.mxu0 %v6376
  %8725 = vmatpush1.bf16.msra.mxu0 %v6375
  %8726 = vmatprep.subr.bf16.mxu0 %v6380
  %8727 = vmatpush1.bf16.msra.mxu0 %v6379
  %8728 = vmatprep.subr.bf16.mxu0 %v6384
  %8729 = vmatpush1.bf16.msra.mxu0 %v6383
  %8730 = vmatprep.subr.bf16.mxu0 %v6388
  %8731 = vmatpush1.bf16.msra.mxu0 %v6387
  %8732 = vmatprep.subr.bf16.mxu0 %v6392
  %8733 = vmatpush1.bf16.msra.mxu0 %v6391
  %8734 = vmatprep.subr.bf16.mxu0 %v6396
  %8735 = vmatpush1.bf16.msra.mxu0 %v6395
  %8736 = vmatprep.subr.bf16.mxu0 %v6400
  %8737 = vmatpush1.bf16.msra.mxu0 %v6399
  %8738 = vmatprep.subr.bf16.mxu0 %v6404
  %8739 = vmatpush1.bf16.msra.mxu0 %v6403
  %8740 = vmatprep.subr.bf16.mxu0 %v6408
  %8741 = vmatpush1.bf16.msra.mxu0 %v6407
  %8742 = vmatprep.subr.bf16.mxu0 %v6412
  %8743 = vmatpush1.bf16.msra.mxu0 %v6411
  %8744 = vmatprep.subr.bf16.mxu0 %v6416
  %8745 = vmatpush1.bf16.msra.mxu0 %v6415
  %8746 = vmatprep.subr.bf16.mxu0 %v6420
  %8747 = vmatpush1.bf16.msra.mxu0 %v6419
  %8748 = vmatprep.subr.bf16.mxu0 %v6424
  %8749 = vmatpush1.bf16.msra.mxu0 %v6423
  %8750 = vmatprep.subr.bf16.mxu0 %v6428
  %8751 = vmatpush1.bf16.msra.mxu0 %v6427
  %8752 = vmatprep.subr.bf16.mxu0 %v6432
  %8753 = vmatpush1.bf16.msra.mxu0 %v6431
  %8754 = vmatprep.mubr.bf16.mxu0 %v1548
  %8755 = vmatmul.mubr.bf16.gmra.mrb[0].mxu0 %v1547
  %v8756 = vpop.f32.mrb[0].mxu0
  %v8757 = vadd.f32 %v8714, %v8756
  %v8758 = vpop.f32.mrb[0].mxu0
  %v8759 = vadd.f32 %v8716, %v8758
  %v8760 = vpop.f32.mrb[0].mxu0
  %v8761 = vadd.f32 %v8718, %v8760
  %v8762 = vpop.f32.mrb[0].mxu0
  %v8763 = vadd.f32 %v8720, %v8762
  %8764 = vdwg.mxu0
  %8765 = vmatprep.subr.bf16.mxu0 %v6436
  %8766 = vmatpush1.bf16.msra.mxu0 %v6435
  %8767 = vmatprep.subr.bf16.mxu0 %v6440
  %8768 = vmatpush1.bf16.msra.mxu0 %v6439
  %8769 = vmatprep.subr.bf16.mxu0 %v6444
  %8770 = vmatpush1.bf16.msra.mxu0 %v6443
  %8771 = vmatprep.subr.bf16.mxu0 %v6448
  %8772 = vmatpush1.bf16.msra.mxu0 %v6447
  %8773 = vmatprep.subr.bf16.mxu0 %v6452
  %8774 = vmatpush1.bf16.msra.mxu0 %v6451
  %8775 = vmatprep.subr.bf16.mxu0 %v6456
  %8776 = vmatpush1.bf16.msra.mxu0 %v6455
  %8777 = vmatprep.subr.bf16.mxu0 %v6460
  %8778 = vmatpush1.bf16.msra.mxu0 %v6459
  %8779 = vmatprep.subr.bf16.mxu0 %v6464
  %8780 = vmatpush1.bf16.msra.mxu0 %v6463
  %8781 = vmatprep.subr.bf16.mxu0 %v6468
  %8782 = vmatpush1.bf16.msra.mxu0 %v6467
  %8783 = vmatprep.subr.bf16.mxu0 %v6472
  %8784 = vmatpush1.bf16.msra.mxu0 %v6471
  %8785 = vmatprep.subr.bf16.mxu0 %v6476
  %8786 = vmatpush1.bf16.msra.mxu0 %v6475
  %8787 = vmatprep.subr.bf16.mxu0 %v6480
  %8788 = vmatpush1.bf16.msra.mxu0 %v6479
  %8789 = vmatprep.subr.bf16.mxu0 %v6484
  %8790 = vmatpush1.bf16.msra.mxu0 %v6483
  %8791 = vmatprep.subr.bf16.mxu0 %v6488
  %8792 = vmatpush1.bf16.msra.mxu0 %v6487
  %8793 = vmatprep.subr.bf16.mxu0 %v6492
  %8794 = vmatpush1.bf16.msra.mxu0 %v6491
  %8795 = vmatprep.subr.bf16.mxu0 %v6496
  %8796 = vmatpush1.bf16.msra.mxu0 %v6495
  %8797 = vmatprep.mubr.bf16.mxu0 %v1550
  %8798 = vmatmul.mubr.bf16.gmra.mrb[0].mxu0 %v1549
  %v8799 = vpop.f32.mrb[0].mxu0
  %v8800 = vadd.f32 %v8757, %v8799
  %v8801 = vpop.f32.mrb[0].mxu0
  %v8802 = vadd.f32 %v8759, %v8801
  %v8803 = vpop.f32.mrb[0].mxu0
  %v8804 = vadd.f32 %v8761, %v8803
  %v8805 = vpop.f32.mrb[0].mxu0
  %v8806 = vadd.f32 %v8763, %v8805
  %8807 = vdwg.mxu0
  %8808 = vmatprep.subr.bf16.mxu0 %v6500
  %8809 = vmatpush1.bf16.msra.mxu0 %v6499
  %8810 = vmatprep.subr.bf16.mxu0 %v6504
  %8811 = vmatpush1.bf16.msra.mxu0 %v6503
  %8812 = vmatprep.subr.bf16.mxu0 %v6508
  %8813 = vmatpush1.bf16.msra.mxu0 %v6507
  %8814 = vmatprep.subr.bf16.mxu0 %v6512
  %8815 = vmatpush1.bf16.msra.mxu0 %v6511
  %8816 = vmatprep.subr.bf16.mxu0 %v6516
  %8817 = vmatpush1.bf16.msra.mxu0 %v6515
  %8818 = vmatprep.subr.bf16.mxu0 %v6520
  %8819 = vmatpush1.bf16.msra.mxu0 %v6519
  %8820 = vmatprep.subr.bf16.mxu0 %v6524
  %8821 = vmatpush1.bf16.msra.mxu0 %v6523
  %8822 = vmatprep.subr.bf16.mxu0 %v6528
  %8823 = vmatpush1.bf16.msra.mxu0 %v6527
  %8824 = vmatprep.subr.bf16.mxu0 %v6532
  %8825 = vmatpush1.bf16.msra.mxu0 %v6531
  %8826 = vmatprep.subr.bf16.mxu0 %v6536
  %8827 = vmatpush1.bf16.msra.mxu0 %v6535
  %8828 = vmatprep.subr.bf16.mxu0 %v6540
  %8829 = vmatpush1.bf16.msra.mxu0 %v6539
  %8830 = vmatprep.subr.bf16.mxu0 %v6544
  %8831 = vmatpush1.bf16.msra.mxu0 %v6543
  %8832 = vmatprep.subr.bf16.mxu0 %v6548
  %8833 = vmatpush1.bf16.msra.mxu0 %v6547
  %8834 = vmatprep.subr.bf16.mxu0 %v6552
  %8835 = vmatpush1.bf16.msra.mxu0 %v6551
  %8836 = vmatprep.subr.bf16.mxu0 %v6556
  %8837 = vmatpush1.bf16.msra.mxu0 %v6555
  %8838 = vmatprep.subr.bf16.mxu0 %v6560
  %8839 = vmatpush1.bf16.msra.mxu0 %v6559
  %8840 = vmatprep.mubr.bf16.mxu0 %v1552
  %8841 = vmatmul.mubr.bf16.gmra.mrb[0].mxu0 %v1551
  %v8842 = vpop.f32.mrb[0].mxu0
  %v8843 = vadd.f32 %v8800, %v8842
  %v8844 = vpop.f32.mrb[0].mxu0
  %v8845 = vadd.f32 %v8802, %v8844
  %v8846 = vpop.f32.mrb[0].mxu0
  %v8847 = vadd.f32 %v8804, %v8846
  %v8848 = vpop.f32.mrb[0].mxu0
  %v8849 = vadd.f32 %v8806, %v8848
  %8850 = vdwg.mxu0
  %8851 = vmatprep.subr.bf16.mxu0 %v6564
  %8852 = vmatpush1.bf16.msra.mxu0 %v6563
  %8853 = vmatprep.subr.bf16.mxu0 %v6568
  %8854 = vmatpush1.bf16.msra.mxu0 %v6567
  %8855 = vmatprep.subr.bf16.mxu0 %v6572
  %8856 = vmatpush1.bf16.msra.mxu0 %v6571
  %8857 = vmatprep.subr.bf16.mxu0 %v6576
  %8858 = vmatpush1.bf16.msra.mxu0 %v6575
  %8859 = vmatprep.subr.bf16.mxu0 %v6580
  %8860 = vmatpush1.bf16.msra.mxu0 %v6579
  %8861 = vmatprep.subr.bf16.mxu0 %v6584
  %8862 = vmatpush1.bf16.msra.mxu0 %v6583
  %8863 = vmatprep.subr.bf16.mxu0 %v6588
  %8864 = vmatpush1.bf16.msra.mxu0 %v6587
  %8865 = vmatprep.subr.bf16.mxu0 %v6592
  %8866 = vmatpush1.bf16.msra.mxu0 %v6591
  %8867 = vmatprep.subr.bf16.mxu0 %v6596
  %8868 = vmatpush1.bf16.msra.mxu0 %v6595
  %8869 = vmatprep.subr.bf16.mxu0 %v6600
  %8870 = vmatpush1.bf16.msra.mxu0 %v6599
  %8871 = vmatprep.subr.bf16.mxu0 %v6604
  %8872 = vmatpush1.bf16.msra.mxu0 %v6603
  %8873 = vmatprep.subr.bf16.mxu0 %v6608
  %8874 = vmatpush1.bf16.msra.mxu0 %v6607
  %8875 = vmatprep.subr.bf16.mxu0 %v6612
  %8876 = vmatpush1.bf16.msra.mxu0 %v6611
  %8877 = vmatprep.subr.bf16.mxu0 %v6616
  %8878 = vmatpush1.bf16.msra.mxu0 %v6615
  %8879 = vmatprep.subr.bf16.mxu0 %v6620
  %8880 = vmatpush1.bf16.msra.mxu0 %v6619
  %8881 = vmatprep.subr.bf16.mxu0 %v6624
  %8882 = vmatpush1.bf16.msra.mxu0 %v6623
  %8883 = vmatprep.mubr.bf16.mxu0 %v1554
  %8884 = vmatmul.mubr.bf16.gmra.mrb[0].mxu0 %v1553
  %v8885 = vpop.f32.mrb[0].mxu0
  %v8886 = vadd.f32 %v8843, %v8885
  %v8887 = vpop.f32.mrb[0].mxu0
  %v8888 = vadd.f32 %v8845, %v8887
  %v8889 = vpop.f32.mrb[0].mxu0
  %v8890 = vadd.f32 %v8847, %v8889
  %v8891 = vpop.f32.mrb[0].mxu0
  %v8892 = vadd.f32 %v8849, %v8891
  %8893 = vdwg.mxu0
  %8894 = vmatprep.subr.bf16.mxu0 %v6628
  %8895 = vmatpush1.bf16.msra.mxu0 %v6627
  %8896 = vmatprep.subr.bf16.mxu0 %v6632
  %8897 = vmatpush1.bf16.msra.mxu0 %v6631
  %8898 = vmatprep.subr.bf16.mxu0 %v6636
  %8899 = vmatpush1.bf16.msra.mxu0 %v6635
  %8900 = vmatprep.subr.bf16.mxu0 %v6640
  %8901 = vmatpush1.bf16.msra.mxu0 %v6639
  %8902 = vmatprep.subr.bf16.mxu0 %v6644
  %8903 = vmatpush1.bf16.msra.mxu0 %v6643
  %8904 = vmatprep.subr.bf16.mxu0 %v6648
  %8905 = vmatpush1.bf16.msra.mxu0 %v6647
  %8906 = vmatprep.subr.bf16.mxu0 %v6652
  %8907 = vmatpush1.bf16.msra.mxu0 %v6651
  %8908 = vmatprep.subr.bf16.mxu0 %v6656
  %8909 = vmatpush1.bf16.msra.mxu0 %v6655
  %8910 = vmatprep.subr.bf16.mxu0 %v6660
  %8911 = vmatpush1.bf16.msra.mxu0 %v6659
  %8912 = vmatprep.subr.bf16.mxu0 %v6664
  %8913 = vmatpush1.bf16.msra.mxu0 %v6663
  %8914 = vmatprep.subr.bf16.mxu0 %v6668
  %8915 = vmatpush1.bf16.msra.mxu0 %v6667
  %8916 = vmatprep.subr.bf16.mxu0 %v6672
  %8917 = vmatpush1.bf16.msra.mxu0 %v6671
  %8918 = vmatprep.subr.bf16.mxu0 %v6676
  %8919 = vmatpush1.bf16.msra.mxu0 %v6675
  %8920 = vmatprep.subr.bf16.mxu0 %v6680
  %8921 = vmatpush1.bf16.msra.mxu0 %v6679
  %8922 = vmatprep.subr.bf16.mxu0 %v6684
  %8923 = vmatpush1.bf16.msra.mxu0 %v6683
  %8924 = vmatprep.subr.bf16.mxu0 %v6688
  %8925 = vmatpush1.bf16.msra.mxu0 %v6687
  %8926 = vmatprep.mubr.bf16.mxu0 %v1556
  %8927 = vmatmul.mubr.bf16.gmra.mrb[0].mxu0 %v1555
  %v8928 = vpop.f32.mrb[0].mxu0
  %v8929 = vadd.f32 %v8886, %v8928
  %v8930 = vpop.f32.mrb[0].mxu0
  %v8931 = vadd.f32 %v8888, %v8930
  %v8932 = vpop.f32.mrb[0].mxu0
  %v8933 = vadd.f32 %v8890, %v8932
  %v8934 = vpop.f32.mrb[0].mxu0
  %v8935 = vadd.f32 %v8892, %v8934
  %8936 = vdwg.mxu0
  %8937 = vmatprep.subr.bf16.mxu0 %v6692
  %8938 = vmatpush1.bf16.msra.mxu0 %v6691
  %8939 = vmatprep.subr.bf16.mxu0 %v6696
  %8940 = vmatpush1.bf16.msra.mxu0 %v6695
  %8941 = vmatprep.subr.bf16.mxu0 %v6700
  %8942 = vmatpush1.bf16.msra.mxu0 %v6699
  %8943 = vmatprep.subr.bf16.mxu0 %v6704
  %8944 = vmatpush1.bf16.msra.mxu0 %v6703
  %8945 = vmatprep.subr.bf16.mxu0 %v6708
  %8946 = vmatpush1.bf16.msra.mxu0 %v6707
  %8947 = vmatprep.subr.bf16.mxu0 %v6712
  %8948 = vmatpush1.bf16.msra.mxu0 %v6711
  %8949 = vmatprep.subr.bf16.mxu0 %v6716
  %8950 = vmatpush1.bf16.msra.mxu0 %v6715
  %8951 = vmatprep.subr.bf16.mxu0 %v6720
  %8952 = vmatpush1.bf16.msra.mxu0 %v6719
  %8953 = vmatprep.subr.bf16.mxu0 %v6724
  %8954 = vmatpush1.bf16.msra.mxu0 %v6723
  %8955 = vmatprep.subr.bf16.mxu0 %v6728
  %8956 = vmatpush1.bf16.msra.mxu0 %v6727
  %8957 = vmatprep.subr.bf16.mxu0 %v6732
  %8958 = vmatpush1.bf16.msra.mxu0 %v6731
  %8959 = vmatprep.subr.bf16.mxu0 %v6736
  %8960 = vmatpush1.bf16.msra.mxu0 %v6735
  %8961 = vmatprep.subr.bf16.mxu0 %v6740
  %8962 = vmatpush1.bf16.msra.mxu0 %v6739
  %8963 = vmatprep.subr.bf16.mxu0 %v6744
  %8964 = vmatpush1.bf16.msra.mxu0 %v6743
  %8965 = vmatprep.subr.bf16.mxu0 %v6748
  %8966 = vmatpush1.bf16.msra.mxu0 %v6747
  %8967 = vmatprep.subr.bf16.mxu0 %v6752
  %8968 = vmatpush1.bf16.msra.mxu0 %v6751
  %8969 = vmatprep.mubr.bf16.mxu0 %v1558
  %8970 = vmatmul.mubr.bf16.gmra.mrb[0].mxu0 %v1557
  %v8971 = vpop.f32.mrb[0].mxu0
  %v8972 = vadd.f32 %v8929, %v8971
  %v8973 = vpop.f32.mrb[0].mxu0
  %v8974 = vadd.f32 %v8931, %v8973
  %v8975 = vpop.f32.mrb[0].mxu0
  %v8976 = vadd.f32 %v8933, %v8975
  %v8977 = vpop.f32.mrb[0].mxu0
  %v8978 = vadd.f32 %v8935, %v8977
  %8979 = vdwg.mxu0
  %8980 = vmatprep.subr.bf16.mxu0 %v6756
  %8981 = vmatpush1.bf16.msra.mxu0 %v6755
  %8982 = vmatprep.subr.bf16.mxu0 %v6760
  %8983 = vmatpush1.bf16.msra.mxu0 %v6759
  %8984 = vmatprep.subr.bf16.mxu0 %v6764
  %8985 = vmatpush1.bf16.msra.mxu0 %v6763
  %8986 = vmatprep.subr.bf16.mxu0 %v6768
  %8987 = vmatpush1.bf16.msra.mxu0 %v6767
  %8988 = vmatprep.subr.bf16.mxu0 %v6772
  %8989 = vmatpush1.bf16.msra.mxu0 %v6771
  %8990 = vmatprep.subr.bf16.mxu0 %v6776
  %8991 = vmatpush1.bf16.msra.mxu0 %v6775
  %8992 = vmatprep.subr.bf16.mxu0 %v6780
  %8993 = vmatpush1.bf16.msra.mxu0 %v6779
  %8994 = vmatprep.subr.bf16.mxu0 %v6784
  %8995 = vmatpush1.bf16.msra.mxu0 %v6783
  %8996 = vmatprep.subr.bf16.mxu0 %v6788
  %8997 = vmatpush1.bf16.msra.mxu0 %v6787
  %8998 = vmatprep.subr.bf16.mxu0 %v6792
  %8999 = vmatpush1.bf16.msra.mxu0 %v6791
  %9000 = vmatprep.subr.bf16.mxu0 %v6796
  %9001 = vmatpush1.bf16.msra.mxu0 %v6795
  %9002 = vmatprep.subr.bf16.mxu0 %v6800
  %9003 = vmatpush1.bf16.msra.mxu0 %v6799
  %9004 = vmatprep.subr.bf16.mxu0 %v6804
  %9005 = vmatpush1.bf16.msra.mxu0 %v6803
  %9006 = vmatprep.subr.bf16.mxu0 %v6808
  %9007 = vmatpush1.bf16.msra.mxu0 %v6807
  %9008 = vmatprep.subr.bf16.mxu0 %v6812
  %9009 = vmatpush1.bf16.msra.mxu0 %v6811
  %9010 = vmatprep.subr.bf16.mxu0 %v6816
  %9011 = vmatpush1.bf16.msra.mxu0 %v6815
  %9012 = vmatprep.mubr.bf16.mxu0 %v1560
  %9013 = vmatmul.mubr.bf16.gmra.mrb[0].mxu0 %v1559
  %v9014 = vpop.f32.mrb[0].mxu0
  %v9015 = vadd.f32 %v8972, %v9014
  %v9016 = vpop.f32.mrb[0].mxu0
  %v9017 = vadd.f32 %v8974, %v9016
  %v9018 = vpop.f32.mrb[0].mxu0
  %v9019 = vadd.f32 %v8976, %v9018
  %v9020 = vpop.f32.mrb[0].mxu0
  %v9021 = vadd.f32 %v8978, %v9020
  %9022 = vdwg.mxu0
  %9023 = vmatprep.subr.bf16.mxu0 %v6820
  %9024 = vmatpush1.bf16.msra.mxu0 %v6819
  %9025 = vmatprep.subr.bf16.mxu0 %v6824
  %9026 = vmatpush1.bf16.msra.mxu0 %v6823
  %9027 = vmatprep.subr.bf16.mxu0 %v6828
  %9028 = vmatpush1.bf16.msra.mxu0 %v6827
  %9029 = vmatprep.subr.bf16.mxu0 %v6832
  %9030 = vmatpush1.bf16.msra.mxu0 %v6831
  %9031 = vmatprep.subr.bf16.mxu0 %v6836
  %9032 = vmatpush1.bf16.msra.mxu0 %v6835
  %9033 = vmatprep.subr.bf16.mxu0 %v6840
  %9034 = vmatpush1.bf16.msra.mxu0 %v6839
  %9035 = vmatprep.subr.bf16.mxu0 %v6844
  %9036 = vmatpush1.bf16.msra.mxu0 %v6843
  %9037 = vmatprep.subr.bf16.mxu0 %v6848
  %9038 = vmatpush1.bf16.msra.mxu0 %v6847
  %9039 = vmatprep.subr.bf16.mxu0 0
  %9040 = vmatpush1.bf16.msra.mxu0 0
  %9041 = vmatprep.subr.bf16.mxu0 0
  %9042 = vmatpush1.bf16.msra.mxu0 0
  %9043 = vmatprep.subr.bf16.mxu0 0
  %9044 = vmatpush1.bf16.msra.mxu0 0
  %9045 = vmatprep.subr.bf16.mxu0 0
  %9046 = vmatpush1.bf16.msra.mxu0 0
  %9047 = vmatprep.subr.bf16.mxu0 0
  %9048 = vmatpush1.bf16.msra.mxu0 0
  %9049 = vmatprep.subr.bf16.mxu0 0
  %9050 = vmatpush1.bf16.msra.mxu0 0
  %9051 = vmatprep.subr.bf16.mxu0 0
  %9052 = vmatpush1.bf16.msra.mxu0 0
  %9053 = vmatprep.subr.bf16.mxu0 0
  %9054 = vmatpush1.bf16.msra.mxu0 0
  %9055 = vmatprep.mubr.bf16.mxu0 0
  %9056 = vmatmul.mubr.bf16.gmra.mrb[0].mxu0 %v1561
  %v9057 = vpop.f32.mrb[0].mxu0
  %v9058 = vadd.f32 %v9015, %v9057
  %v9059 = vpop.f32.mrb[0].mxu0
  %v9060 = vadd.f32 %v9017, %v9059
  %v9061 = vpop.f32.mrb[0].mxu0
  %v9062 = vadd.f32 %v9019, %v9061
  %v9063 = vpop.f32.mrb[0].mxu0
  %v9064 = vadd.f32 %v9021, %v9063
  %9065 = vdwg.mxu0
  %9066 = vmatprep.subr.bf16.mxu0 %v5542
  %9067 = vmatpush1.bf16.msra.mxu0 %v5541
  %9068 = vmatprep.subr.bf16.mxu0 %v5546
  %9069 = vmatpush1.bf16.msra.mxu0 %v5545
  %9070 = vmatprep.subr.bf16.mxu0 %v5550
  %9071 = vmatpush1.bf16.msra.mxu0 %v5549
  %9072 = vmatprep.subr.bf16.mxu0 %v5554
  %9073 = vmatpush1.bf16.msra.mxu0 %v5553
  %9074 = vmatprep.subr.bf16.mxu0 %v5558
  %9075 = vmatpush1.bf16.msra.mxu0 %v5557
  %9076 = vmatprep.subr.bf16.mxu0 %v5562
  %9077 = vmatpush1.bf16.msra.mxu0 %v5561
  %9078 = vmatprep.subr.bf16.mxu0 %v5566
  %9079 = vmatpush1.bf16.msra.mxu0 %v5565
  %9080 = vmatprep.subr.bf16.mxu0 %v5570
  %9081 = vmatpush1.bf16.msra.mxu0 %v5569
  %9082 = vmatprep.subr.bf16.mxu0 %v5574
  %9083 = vmatpush1.bf16.msra.mxu0 %v5573
  %9084 = vmatprep.subr.bf16.mxu0 %v5578
  %9085 = vmatpush1.bf16.msra.mxu0 %v5577
  %9086 = vmatprep.subr.bf16.mxu0 %v5582
  %9087 = vmatpush1.bf16.msra.mxu0 %v5581
  %9088 = vmatprep.subr.bf16.mxu0 %v5586
  %9089 = vmatpush1.bf16.msra.mxu0 %v5585
  %9090 = vmatprep.subr.bf16.mxu0 %v5590
  %9091 = vmatpush1.bf16.msra.mxu0 %v5589
  %9092 = vmatprep.subr.bf16.mxu0 %v5594
  %9093 = vmatpush1.bf16.msra.mxu0 %v5593
  %9094 = vmatprep.subr.bf16.mxu0 %v5598
  %9095 = vmatpush1.bf16.msra.mxu0 %v5597
  %9096 = vmatprep.subr.bf16.mxu0 %v5602
  %9097 = vmatpush1.bf16.msra.mxu0 %v5601
  %9098 = vmatprep.mubr.bf16.mxu0 %v1522
  %9099 = vmatmul.mubr.bf16.gmra.mrb[0].mxu0 %v1521
  %v9100 = vpop.f32.mrb[0].mxu0
  %v9101 = vadd.f32 %v1388, %v9100
  %v9102 = vpop.f32.mrb[0].mxu0
  %v9103 = vadd.f32 %v1392, %v9102
  %v9104 = vpop.f32.mrb[0].mxu0
  %v9105 = vadd.f32 %v1388, %v9104
  %v9106 = vpop.f32.mrb[0].mxu0
  %v9107 = vadd.f32 %v1392, %v9106
  %9108 = vdwg.mxu0
  %9109 = vmatprep.subr.bf16.mxu0 %v5606
  %9110 = vmatpush1.bf16.msra.mxu0 %v5605
  %9111 = vmatprep.subr.bf16.mxu0 %v5610
  %9112 = vmatpush1.bf16.msra.mxu0 %v5609
  %9113 = vmatprep.subr.bf16.mxu0 %v5614
  %9114 = vmatpush1.bf16.msra.mxu0 %v5613
  %9115 = vmatprep.subr.bf16.mxu0 %v5618
  %9116 = vmatpush1.bf16.msra.mxu0 %v5617
  %9117 = vmatprep.subr.bf16.mxu0 %v5622
  %9118 = vmatpush1.bf16.msra.mxu0 %v5621
  %9119 = vmatprep.subr.bf16.mxu0 %v5626
  %9120 = vmatpush1.bf16.msra.mxu0 %v5625
  %9121 = vmatprep.subr.bf16.mxu0 %v5630
  %9122 = vmatpush1.bf16.msra.mxu0 %v5629
  %9123 = vmatprep.subr.bf16.mxu0 %v5634
  %9124 = vmatpush1.bf16.msra.mxu0 %v5633
  %9125 = vmatprep.subr.bf16.mxu0 %v5638
  %9126 = vmatpush1.bf16.msra.mxu0 %v5637
  %9127 = vmatprep.subr.bf16.mxu0 %v5642
  %9128 = vmatpush1.bf16.msra.mxu0 %v5641
  %9129 = vmatprep.subr.bf16.mxu0 %v5646
  %9130 = vmatpush1.bf16.msra.mxu0 %v5645
  %9131 = vmatprep.subr.bf16.mxu0 %v5650
  %9132 = vmatpush1.bf16.msra.mxu0 %v5649
  %9133 = vmatprep.subr.bf16.mxu0 %v5654
  %9134 = vmatpush1.bf16.msra.mxu0 %v5653
  %9135 = vmatprep.subr.bf16.mxu0 %v5658
  %9136 = vmatpush1.bf16.msra.mxu0 %v5657
  %9137 = vmatprep.subr.bf16.mxu0 %v5662
  %9138 = vmatpush1.bf16.msra.mxu0 %v5661
  %9139 = vmatprep.subr.bf16.mxu0 %v5666
  %9140 = vmatpush1.bf16.msra.mxu0 %v5665
  %9141 = vmatprep.mubr.bf16.mxu0 %v1524
  %9142 = vmatmul.mubr.bf16.gmra.mrb[0].mxu0 %v1523
  %v9143 = vpop.f32.mrb[0].mxu0
  %v9144 = vadd.f32 %v9101, %v9143
  %v9145 = vpop.f32.mrb[0].mxu0
  %v9146 = vadd.f32 %v9103, %v9145
  %v9147 = vpop.f32.mrb[0].mxu0
  %v9148 = vadd.f32 %v9105, %v9147
  %v9149 = vpop.f32.mrb[0].mxu0
  %v9150 = vadd.f32 %v9107, %v9149
  %9151 = vdwg.mxu0
  %9152 = vmatprep.subr.bf16.mxu0 %v5670
  %9153 = vmatpush1.bf16.msra.mxu0 %v5669
  %9154 = vmatprep.subr.bf16.mxu0 %v5674
  %9155 = vmatpush1.bf16.msra.mxu0 %v5673
  %9156 = vmatprep.subr.bf16.mxu0 %v5678
  %9157 = vmatpush1.bf16.msra.mxu0 %v5677
  %9158 = vmatprep.subr.bf16.mxu0 %v5682
  %9159 = vmatpush1.bf16.msra.mxu0 %v5681
  %9160 = vmatprep.subr.bf16.mxu0 %v5686
  %9161 = vmatpush1.bf16.msra.mxu0 %v5685
  %9162 = vmatprep.subr.bf16.mxu0 %v5690
  %9163 = vmatpush1.bf16.msra.mxu0 %v5689
  %9164 = vmatprep.subr.bf16.mxu0 %v5694
  %9165 = vmatpush1.bf16.msra.mxu0 %v5693
  %9166 = vmatprep.subr.bf16.mxu0 %v5698
  %9167 = vmatpush1.bf16.msra.mxu0 %v5697
  %9168 = vmatprep.subr.bf16.mxu0 %v5702
  %9169 = vmatpush1.bf16.msra.mxu0 %v5701
  %9170 = vmatprep.subr.bf16.mxu0 %v5706
  %9171 = vmatpush1.bf16.msra.mxu0 %v5705
  %9172 = vmatprep.subr.bf16.mxu0 %v5710
  %9173 = vmatpush1.bf16.msra.mxu0 %v5709
  %9174 = vmatprep.subr.bf16.mxu0 %v5714
  %9175 = vmatpush1.bf16.msra.mxu0 %v5713
  %9176 = vmatprep.subr.bf16.mxu0 %v5718
  %9177 = vmatpush1.bf16.msra.mxu0 %v5717
  %9178 = vmatprep.subr.bf16.mxu0 %v5722
  %9179 = vmatpush1.bf16.msra.mxu0 %v5721
  %9180 = vmatprep.subr.bf16.mxu0 %v5726
  %9181 = vmatpush1.bf16.msra.mxu0 %v5725
  %9182 = vmatprep.subr.bf16.mxu0 %v5730
  %9183 = vmatpush1.bf16.msra.mxu0 %v5729
  %9184 = vmatprep.mubr.bf16.mxu0 %v1526
  %9185 = vmatmul.mubr.bf16.gmra.mrb[0].mxu0 %v1525
  %v9186 = vpop.f32.mrb[0].mxu0
  %v9187 = vadd.f32 %v9144, %v9186
  %v9188 = vpop.f32.mrb[0].mxu0
  %v9189 = vadd.f32 %v9146, %v9188
  %v9190 = vpop.f32.mrb[0].mxu0
  %v9191 = vadd.f32 %v9148, %v9190
  %v9192 = vpop.f32.mrb[0].mxu0
  %v9193 = vadd.f32 %v9150, %v9192
  %9194 = vdwg.mxu0
  %9195 = vmatprep.subr.bf16.mxu0 %v5734
  %9196 = vmatpush1.bf16.msra.mxu0 %v5733
  %9197 = vmatprep.subr.bf16.mxu0 %v5738
  %9198 = vmatpush1.bf16.msra.mxu0 %v5737
  %9199 = vmatprep.subr.bf16.mxu0 %v5742
  %9200 = vmatpush1.bf16.msra.mxu0 %v5741
  %9201 = vmatprep.subr.bf16.mxu0 %v5746
  %9202 = vmatpush1.bf16.msra.mxu0 %v5745
  %9203 = vmatprep.subr.bf16.mxu0 %v5750
  %9204 = vmatpush1.bf16.msra.mxu0 %v5749
  %9205 = vmatprep.subr.bf16.mxu0 %v5754
  %9206 = vmatpush1.bf16.msra.mxu0 %v5753
  %9207 = vmatprep.subr.bf16.mxu0 %v5758
  %9208 = vmatpush1.bf16.msra.mxu0 %v5757
  %9209 = vmatprep.subr.bf16.mxu0 %v5762
  %9210 = vmatpush1.bf16.msra.mxu0 %v5761
  %9211 = vmatprep.subr.bf16.mxu0 %v5766
  %9212 = vmatpush1.bf16.msra.mxu0 %v5765
  %9213 = vmatprep.subr.bf16.mxu0 %v5770
  %9214 = vmatpush1.bf16.msra.mxu0 %v5769
  %9215 = vmatprep.subr.bf16.mxu0 %v5774
  %9216 = vmatpush1.bf16.msra.mxu0 %v5773
  %9217 = vmatprep.subr.bf16.mxu0 %v5778
  %9218 = vmatpush1.bf16.msra.mxu0 %v5777
  %9219 = vmatprep.subr.bf16.mxu0 %v5782
  %9220 = vmatpush1.bf16.msra.mxu0 %v5781
  %9221 = vmatprep.subr.bf16.mxu0 %v5786
  %9222 = vmatpush1.bf16.msra.mxu0 %v5785
  %9223 = vmatprep.subr.bf16.mxu0 %v5790
  %9224 = vmatpush1.bf16.msra.mxu0 %v5789
  %9225 = vmatprep.subr.bf16.mxu0 %v5794
  %9226 = vmatpush1.bf16.msra.mxu0 %v5793
  %9227 = vmatprep.mubr.bf16.mxu0 %v1528
  %9228 = vmatmul.mubr.bf16.gmra.mrb[0].mxu0 %v1527
  %v9229 = vpop.f32.mrb[0].mxu0
  %v9230 = vadd.f32 %v9187, %v9229
  %v9231 = vpop.f32.mrb[0].mxu0
  %v9232 = vadd.f32 %v9189, %v9231
  %v9233 = vpop.f32.mrb[0].mxu0
  %v9234 = vadd.f32 %v9191, %v9233
  %v9235 = vpop.f32.mrb[0].mxu0
  %v9236 = vadd.f32 %v9193, %v9235
  %9237 = vdwg.mxu0
  %9238 = vmatprep.subr.bf16.mxu0 %v5798
  %9239 = vmatpush1.bf16.msra.mxu0 %v5797
  %9240 = vmatprep.subr.bf16.mxu0 %v5802
  %9241 = vmatpush1.bf16.msra.mxu0 %v5801
  %9242 = vmatprep.subr.bf16.mxu0 %v5806
  %9243 = vmatpush1.bf16.msra.mxu0 %v5805
  %9244 = vmatprep.subr.bf16.mxu0 %v5810
  %9245 = vmatpush1.bf16.msra.mxu0 %v5809
  %9246 = vmatprep.subr.bf16.mxu0 %v5814
  %9247 = vmatpush1.bf16.msra.mxu0 %v5813
  %9248 = vmatprep.subr.bf16.mxu0 %v5818
  %9249 = vmatpush1.bf16.msra.mxu0 %v5817
  %9250 = vmatprep.subr.bf16.mxu0 %v5822
  %9251 = vmatpush1.bf16.msra.mxu0 %v5821
  %9252 = vmatprep.subr.bf16.mxu0 %v5826
  %9253 = vmatpush1.bf16.msra.mxu0 %v5825
  %9254 = vmatprep.subr.bf16.mxu0 %v5830
  %9255 = vmatpush1.bf16.msra.mxu0 %v5829
  %9256 = vmatprep.subr.bf16.mxu0 %v5834
  %9257 = vmatpush1.bf16.msra.mxu0 %v5833
  %9258 = vmatprep.subr.bf16.mxu0 %v5838
  %9259 = vmatpush1.bf16.msra.mxu0 %v5837
  %9260 = vmatprep.subr.bf16.mxu0 %v5842
  %9261 = vmatpush1.bf16.msra.mxu0 %v5841
  %9262 = vmatprep.subr.bf16.mxu0 %v5846
  %9263 = vmatpush1.bf16.msra.mxu0 %v5845
  %9264 = vmatprep.subr.bf16.mxu0 %v5850
  %9265 = vmatpush1.bf16.msra.mxu0 %v5849
  %9266 = vmatprep.subr.bf16.mxu0 %v5854
  %9267 = vmatpush1.bf16.msra.mxu0 %v5853
  %9268 = vmatprep.subr.bf16.mxu0 %v5858
  %9269 = vmatpush1.bf16.msra.mxu0 %v5857
  %9270 = vmatprep.mubr.bf16.mxu0 %v1530
  %9271 = vmatmul.mubr.bf16.gmra.mrb[0].mxu0 %v1529
  %v9272 = vpop.f32.mrb[0].mxu0
  %v9273 = vadd.f32 %v9230, %v9272
  %v9274 = vpop.f32.mrb[0].mxu0
  %v9275 = vadd.f32 %v9232, %v9274
  %v9276 = vpop.f32.mrb[0].mxu0
  %v9277 = vadd.f32 %v9234, %v9276
  %v9278 = vpop.f32.mrb[0].mxu0
  %v9279 = vadd.f32 %v9236, %v9278
  %9280 = vdwg.mxu0
  %9281 = vmatprep.subr.bf16.mxu0 %v5862
  %9282 = vmatpush1.bf16.msra.mxu0 %v5861
  %9283 = vmatprep.subr.bf16.mxu0 %v5866
  %9284 = vmatpush1.bf16.msra.mxu0 %v5865
  %9285 = vmatprep.subr.bf16.mxu0 %v5870
  %9286 = vmatpush1.bf16.msra.mxu0 %v5869
  %9287 = vmatprep.subr.bf16.mxu0 %v5874
  %9288 = vmatpush1.bf16.msra.mxu0 %v5873
  %9289 = vmatprep.subr.bf16.mxu0 %v5878
  %9290 = vmatpush1.bf16.msra.mxu0 %v5877
  %9291 = vmatprep.subr.bf16.mxu0 %v5882
  %9292 = vmatpush1.bf16.msra.mxu0 %v5881
  %9293 = vmatprep.subr.bf16.mxu0 %v5886
  %9294 = vmatpush1.bf16.msra.mxu0 %v5885
  %9295 = vmatprep.subr.bf16.mxu0 %v5890
  %9296 = vmatpush1.bf16.msra.mxu0 %v5889
  %9297 = vmatprep.subr.bf16.mxu0 %v5894
  %9298 = vmatpush1.bf16.msra.mxu0 %v5893
  %9299 = vmatprep.subr.bf16.mxu0 %v5898
  %9300 = vmatpush1.bf16.msra.mxu0 %v5897
  %9301 = vmatprep.subr.bf16.mxu0 %v5902
  %9302 = vmatpush1.bf16.msra.mxu0 %v5901
  %9303 = vmatprep.subr.bf16.mxu0 %v5906
  %9304 = vmatpush1.bf16.msra.mxu0 %v5905
  %9305 = vmatprep.subr.bf16.mxu0 %v5910
  %9306 = vmatpush1.bf16.msra.mxu0 %v5909
  %9307 = vmatprep.subr.bf16.mxu0 %v5914
  %9308 = vmatpush1.bf16.msra.mxu0 %v5913
  %9309 = vmatprep.subr.bf16.mxu0 %v5918
  %9310 = vmatpush1.bf16.msra.mxu0 %v5917
  %9311 = vmatprep.subr.bf16.mxu0 %v5922
  %9312 = vmatpush1.bf16.msra.mxu0 %v5921
  %9313 = vmatprep.mubr.bf16.mxu0 %v1532
  %9314 = vmatmul.mubr.bf16.gmra.mrb[0].mxu0 %v1531
  %v9315 = vpop.f32.mrb[0].mxu0
  %v9316 = vadd.f32 %v9273, %v9315
  %v9317 = vpop.f32.mrb[0].mxu0
  %v9318 = vadd.f32 %v9275, %v9317
  %v9319 = vpop.f32.mrb[0].mxu0
  %v9320 = vadd.f32 %v9277, %v9319
  %v9321 = vpop.f32.mrb[0].mxu0
  %v9322 = vadd.f32 %v9279, %v9321
  %9323 = vdwg.mxu0
  %9324 = vmatprep.subr.bf16.mxu0 %v5926
  %9325 = vmatpush1.bf16.msra.mxu0 %v5925
  %9326 = vmatprep.subr.bf16.mxu0 %v5930
  %9327 = vmatpush1.bf16.msra.mxu0 %v5929
  %9328 = vmatprep.subr.bf16.mxu0 %v5934
  %9329 = vmatpush1.bf16.msra.mxu0 %v5933
  %9330 = vmatprep.subr.bf16.mxu0 %v5938
  %9331 = vmatpush1.bf16.msra.mxu0 %v5937
  %9332 = vmatprep.subr.bf16.mxu0 %v5942
  %9333 = vmatpush1.bf16.msra.mxu0 %v5941
  %9334 = vmatprep.subr.bf16.mxu0 %v5946
  %9335 = vmatpush1.bf16.msra.mxu0 %v5945
  %9336 = vmatprep.subr.bf16.mxu0 %v5950
  %9337 = vmatpush1.bf16.msra.mxu0 %v5949
  %9338 = vmatprep.subr.bf16.mxu0 %v5954
  %9339 = vmatpush1.bf16.msra.mxu0 %v5953
  %9340 = vmatprep.subr.bf16.mxu0 %v5958
  %9341 = vmatpush1.bf16.msra.mxu0 %v5957
  %9342 = vmatprep.subr.bf16.mxu0 %v5962
  %9343 = vmatpush1.bf16.msra.mxu0 %v5961
  %9344 = vmatprep.subr.bf16.mxu0 %v5966
  %9345 = vmatpush1.bf16.msra.mxu0 %v5965
  %9346 = vmatprep.subr.bf16.mxu0 %v5970
  %9347 = vmatpush1.bf16.msra.mxu0 %v5969
  %9348 = vmatprep.subr.bf16.mxu0 %v5974
  %9349 = vmatpush1.bf16.msra.mxu0 %v5973
  %9350 = vmatprep.subr.bf16.mxu0 %v5978
  %9351 = vmatpush1.bf16.msra.mxu0 %v5977
  %9352 = vmatprep.subr.bf16.mxu0 %v5982
  %9353 = vmatpush1.bf16.msra.mxu0 %v5981
  %9354 = vmatprep.subr.bf16.mxu0 %v5986
  %9355 = vmatpush1.bf16.msra.mxu0 %v5985
  %9356 = vmatprep.mubr.bf16.mxu0 %v1534
  %9357 = vmatmul.mubr.bf16.gmra.mrb[0].mxu0 %v1533
  %v9358 = vpop.f32.mrb[0].mxu0
  %v9359 = vadd.f32 %v9316, %v9358
  %v9360 = vpop.f32.mrb[0].mxu0
  %v9361 = vadd.f32 %v9318, %v9360
  %v9362 = vpop.f32.mrb[0].mxu0
  %v9363 = vadd.f32 %v9320, %v9362
  %v9364 = vpop.f32.mrb[0].mxu0
  %v9365 = vadd.f32 %v9322, %v9364
  %9366 = vdwg.mxu0
  %9367 = vmatprep.subr.bf16.mxu0 %v5990
  %9368 = vmatpush1.bf16.msra.mxu0 %v5989
  %9369 = vmatprep.subr.bf16.mxu0 %v5994
  %9370 = vmatpush1.bf16.msra.mxu0 %v5993
  %9371 = vmatprep.subr.bf16.mxu0 %v5998
  %9372 = vmatpush1.bf16.msra.mxu0 %v5997
  %9373 = vmatprep.subr.bf16.mxu0 %v6002
  %9374 = vmatpush1.bf16.msra.mxu0 %v6001
  %9375 = vmatprep.subr.bf16.mxu0 %v6006
  %9376 = vmatpush1.bf16.msra.mxu0 %v6005
  %9377 = vmatprep.subr.bf16.mxu0 %v6010
  %9378 = vmatpush1.bf16.msra.mxu0 %v6009
  %9379 = vmatprep.subr.bf16.mxu0 %v6014
  %9380 = vmatpush1.bf16.msra.mxu0 %v6013
  %9381 = vmatprep.subr.bf16.mxu0 %v6018
  %9382 = vmatpush1.bf16.msra.mxu0 %v6017
  %9383 = vmatprep.subr.bf16.mxu0 %v6022
  %9384 = vmatpush1.bf16.msra.mxu0 %v6021
  %9385 = vmatprep.subr.bf16.mxu0 %v6026
  %9386 = vmatpush1.bf16.msra.mxu0 %v6025
  %9387 = vmatprep.subr.bf16.mxu0 %v6030
  %9388 = vmatpush1.bf16.msra.mxu0 %v6029
  %9389 = vmatprep.subr.bf16.mxu0 %v6034
  %9390 = vmatpush1.bf16.msra.mxu0 %v6033
  %9391 = vmatprep.subr.bf16.mxu0 %v6038
  %9392 = vmatpush1.bf16.msra.mxu0 %v6037
  %9393 = vmatprep.subr.bf16.mxu0 %v6042
  %9394 = vmatpush1.bf16.msra.mxu0 %v6041
  %9395 = vmatprep.subr.bf16.mxu0 %v6046
  %9396 = vmatpush1.bf16.msra.mxu0 %v6045
  %9397 = vmatprep.subr.bf16.mxu0 %v6050
  %9398 = vmatpush1.bf16.msra.mxu0 %v6049
  %9399 = vmatprep.mubr.bf16.mxu0 %v1536
  %9400 = vmatmul.mubr.bf16.gmra.mrb[0].mxu0 %v1535
  %v9401 = vpop.f32.mrb[0].mxu0
  %v9402 = vadd.f32 %v9359, %v9401
  %v9403 = vpop.f32.mrb[0].mxu0
  %v9404 = vadd.f32 %v9361, %v9403
  %v9405 = vpop.f32.mrb[0].mxu0
  %v9406 = vadd.f32 %v9363, %v9405
  %v9407 = vpop.f32.mrb[0].mxu0
  %v9408 = vadd.f32 %v9365, %v9407
  %9409 = vdwg.mxu0
  %9410 = vmatprep.subr.bf16.mxu0 %v6054
  %9411 = vmatpush1.bf16.msra.mxu0 %v6053
  %9412 = vmatprep.subr.bf16.mxu0 %v6058
  %9413 = vmatpush1.bf16.msra.mxu0 %v6057
  %9414 = vmatprep.subr.bf16.mxu0 %v6062
  %9415 = vmatpush1.bf16.msra.mxu0 %v6061
  %9416 = vmatprep.subr.bf16.mxu0 %v6066
  %9417 = vmatpush1.bf16.msra.mxu0 %v6065
  %9418 = vmatprep.subr.bf16.mxu0 %v6070
  %9419 = vmatpush1.bf16.msra.mxu0 %v6069
  %9420 = vmatprep.subr.bf16.mxu0 %v6074
  %9421 = vmatpush1.bf16.msra.mxu0 %v6073
  %9422 = vmatprep.subr.bf16.mxu0 %v6078
  %9423 = vmatpush1.bf16.msra.mxu0 %v6077
  %9424 = vmatprep.subr.bf16.mxu0 %v6082
  %9425 = vmatpush1.bf16.msra.mxu0 %v6081
  %9426 = vmatprep.subr.bf16.mxu0 %v6086
  %9427 = vmatpush1.bf16.msra.mxu0 %v6085
  %9428 = vmatprep.subr.bf16.mxu0 %v6090
  %9429 = vmatpush1.bf16.msra.mxu0 %v6089
  %9430 = vmatprep.subr.bf16.mxu0 %v6094
  %9431 = vmatpush1.bf16.msra.mxu0 %v6093
  %9432 = vmatprep.subr.bf16.mxu0 %v6098
  %9433 = vmatpush1.bf16.msra.mxu0 %v6097
  %9434 = vmatprep.subr.bf16.mxu0 %v6102
  %9435 = vmatpush1.bf16.msra.mxu0 %v6101
  %9436 = vmatprep.subr.bf16.mxu0 %v6106
  %9437 = vmatpush1.bf16.msra.mxu0 %v6105
  %9438 = vmatprep.subr.bf16.mxu0 %v6110
  %9439 = vmatpush1.bf16.msra.mxu0 %v6109
  %9440 = vmatprep.subr.bf16.mxu0 %v6114
  %9441 = vmatpush1.bf16.msra.mxu0 %v6113
  %9442 = vmatprep.mubr.bf16.mxu0 %v1538
  %9443 = vmatmul.mubr.bf16.gmra.mrb[0].mxu0 %v1537
  %v9444 = vpop.f32.mrb[0].mxu0
  %v9445 = vadd.f32 %v9402, %v9444
  %v9446 = vpop.f32.mrb[0].mxu0
  %v9447 = vadd.f32 %v9404, %v9446
  %v9448 = vpop.f32.mrb[0].mxu0
  %v9449 = vadd.f32 %v9406, %v9448
  %v9450 = vpop.f32.mrb[0].mxu0
  %v9451 = vadd.f32 %v9408, %v9450
  %9452 = vdwg.mxu0
  %9453 = vmatprep.subr.bf16.mxu0 %v6118
  %9454 = vmatpush1.bf16.msra.mxu0 %v6117
  %9455 = vmatprep.subr.bf16.mxu0 %v6122
  %9456 = vmatpush1.bf16.msra.mxu0 %v6121
  %9457 = vmatprep.subr.bf16.mxu0 %v6126
  %9458 = vmatpush1.bf16.msra.mxu0 %v6125
  %9459 = vmatprep.subr.bf16.mxu0 %v6130
  %9460 = vmatpush1.bf16.msra.mxu0 %v6129
  %9461 = vmatprep.subr.bf16.mxu0 %v6134
  %9462 = vmatpush1.bf16.msra.mxu0 %v6133
  %9463 = vmatprep.subr.bf16.mxu0 %v6138
  %9464 = vmatpush1.bf16.msra.mxu0 %v6137
  %9465 = vmatprep.subr.bf16.mxu0 %v6142
  %9466 = vmatpush1.bf16.msra.mxu0 %v6141
  %9467 = vmatprep.subr.bf16.mxu0 %v6146
  %9468 = vmatpush1.bf16.msra.mxu0 %v6145
  %9469 = vmatprep.subr.bf16.mxu0 %v6150
  %9470 = vmatpush1.bf16.msra.mxu0 %v6149
  %9471 = vmatprep.subr.bf16.mxu0 %v6154
  %9472 = vmatpush1.bf16.msra.mxu0 %v6153
  %9473 = vmatprep.subr.bf16.mxu0 %v6158
  %9474 = vmatpush1.bf16.msra.mxu0 %v6157
  %9475 = vmatprep.subr.bf16.mxu0 %v6162
  %9476 = vmatpush1.bf16.msra.mxu0 %v6161
  %9477 = vmatprep.subr.bf16.mxu0 %v6166
  %9478 = vmatpush1.bf16.msra.mxu0 %v6165
  %9479 = vmatprep.subr.bf16.mxu0 %v6170
  %9480 = vmatpush1.bf16.msra.mxu0 %v6169
  %9481 = vmatprep.subr.bf16.mxu0 %v6174
  %9482 = vmatpush1.bf16.msra.mxu0 %v6173
  %9483 = vmatprep.subr.bf16.mxu0 %v6178
  %9484 = vmatpush1.bf16.msra.mxu0 %v6177
  %9485 = vmatprep.mubr.bf16.mxu0 %v1540
  %9486 = vmatmul.mubr.bf16.gmra.mrb[0].mxu0 %v1539
  %v9487 = vpop.f32.mrb[0].mxu0
  %v9488 = vadd.f32 %v9445, %v9487
  %v9489 = vpop.f32.mrb[0].mxu0
  %v9490 = vadd.f32 %v9447, %v9489
  %v9491 = vpop.f32.mrb[0].mxu0
  %v9492 = vadd.f32 %v9449, %v9491
  %v9493 = vpop.f32.mrb[0].mxu0
  %v9494 = vadd.f32 %v9451, %v9493
  %9495 = vdwg.mxu0
  %9496 = vmatprep.subr.bf16.mxu0 %v6182
  %9497 = vmatpush1.bf16.msra.mxu0 %v6181
  %9498 = vmatprep.subr.bf16.mxu0 %v6186
  %9499 = vmatpush1.bf16.msra.mxu0 %v6185
  %9500 = vmatprep.subr.bf16.mxu0 %v6190
  %9501 = vmatpush1.bf16.msra.mxu0 %v6189
  %9502 = vmatprep.subr.bf16.mxu0 %v6194
  %9503 = vmatpush1.bf16.msra.mxu0 %v6193
  %9504 = vmatprep.subr.bf16.mxu0 %v6198
  %9505 = vmatpush1.bf16.msra.mxu0 %v6197
  %9506 = vmatprep.subr.bf16.mxu0 %v6202
  %9507 = vmatpush1.bf16.msra.mxu0 %v6201
  %9508 = vmatprep.subr.bf16.mxu0 %v6206
  %9509 = vmatpush1.bf16.msra.mxu0 %v6205
  %9510 = vmatprep.subr.bf16.mxu0 %v6210
  %9511 = vmatpush1.bf16.msra.mxu0 %v6209
  %9512 = vmatprep.subr.bf16.mxu0 %v6214
  %9513 = vmatpush1.bf16.msra.mxu0 %v6213
  %9514 = vmatprep.subr.bf16.mxu0 %v6218
  %9515 = vmatpush1.bf16.msra.mxu0 %v6217
  %9516 = vmatprep.subr.bf16.mxu0 %v6222
  %9517 = vmatpush1.bf16.msra.mxu0 %v6221
  %9518 = vmatprep.subr.bf16.mxu0 %v6226
  %9519 = vmatpush1.bf16.msra.mxu0 %v6225
  %9520 = vmatprep.subr.bf16.mxu0 %v6230
  %9521 = vmatpush1.bf16.msra.mxu0 %v6229
  %9522 = vmatprep.subr.bf16.mxu0 %v6234
  %9523 = vmatpush1.bf16.msra.mxu0 %v6233
  %9524 = vmatprep.subr.bf16.mxu0 %v6238
  %9525 = vmatpush1.bf16.msra.mxu0 %v6237
  %9526 = vmatprep.subr.bf16.mxu0 %v6242
  %9527 = vmatpush1.bf16.msra.mxu0 %v6241
  %9528 = vmatprep.mubr.bf16.mxu0 %v1542
  %9529 = vmatmul.mubr.bf16.gmra.mrb[0].mxu0 %v1541
  %v9530 = vpop.f32.mrb[0].mxu0
  %v9531 = vadd.f32 %v9488, %v9530
  %v9532 = vpop.f32.mrb[0].mxu0
  %v9533 = vadd.f32 %v9490, %v9532
  %v9534 = vpop.f32.mrb[0].mxu0
  %v9535 = vadd.f32 %v9492, %v9534
  %v9536 = vpop.f32.mrb[0].mxu0
  %v9537 = vadd.f32 %v9494, %v9536
  %9538 = vdwg.mxu0
  %9539 = vmatprep.subr.bf16.mxu0 %v6246
  %9540 = vmatpush1.bf16.msra.mxu0 %v6245
  %9541 = vmatprep.subr.bf16.mxu0 %v6250
  %9542 = vmatpush1.bf16.msra.mxu0 %v6249
  %9543 = vmatprep.subr.bf16.mxu0 %v6254
  %9544 = vmatpush1.bf16.msra.mxu0 %v6253
  %9545 = vmatprep.subr.bf16.mxu0 %v6258
  %9546 = vmatpush1.bf16.msra.mxu0 %v6257
  %9547 = vmatprep.subr.bf16.mxu0 %v6262
  %9548 = vmatpush1.bf16.msra.mxu0 %v6261
  %9549 = vmatprep.subr.bf16.mxu0 %v6266
  %9550 = vmatpush1.bf16.msra.mxu0 %v6265
  %9551 = vmatprep.subr.bf16.mxu0 %v6270
  %9552 = vmatpush1.bf16.msra.mxu0 %v6269
  %9553 = vmatprep.subr.bf16.mxu0 %v6274
  %9554 = vmatpush1.bf16.msra.mxu0 %v6273
  %9555 = vmatprep.subr.bf16.mxu0 %v6278
  %9556 = vmatpush1.bf16.msra.mxu0 %v6277
  %9557 = vmatprep.subr.bf16.mxu0 %v6282
  %9558 = vmatpush1.bf16.msra.mxu0 %v6281
  %9559 = vmatprep.subr.bf16.mxu0 %v6286
  %9560 = vmatpush1.bf16.msra.mxu0 %v6285
  %9561 = vmatprep.subr.bf16.mxu0 %v6290
  %9562 = vmatpush1.bf16.msra.mxu0 %v6289
  %9563 = vmatprep.subr.bf16.mxu0 %v6294
  %9564 = vmatpush1.bf16.msra.mxu0 %v6293
  %9565 = vmatprep.subr.bf16.mxu0 %v6298
  %9566 = vmatpush1.bf16.msra.mxu0 %v6297
  %9567 = vmatprep.subr.bf16.mxu0 %v6302
  %9568 = vmatpush1.bf16.msra.mxu0 %v6301
  %9569 = vmatprep.subr.bf16.mxu0 %v6306
  %9570 = vmatpush1.bf16.msra.mxu0 %v6305
  %9571 = vmatprep.mubr.bf16.mxu0 %v1544
  %9572 = vmatmul.mubr.bf16.gmra.mrb[0].mxu0 %v1543
  %v9573 = vpop.f32.mrb[0].mxu0
  %v9574 = vadd.f32 %v9531, %v9573
  %v9575 = vpop.f32.mrb[0].mxu0
  %v9576 = vadd.f32 %v9533, %v9575
  %v9577 = vpop.f32.mrb[0].mxu0
  %v9578 = vadd.f32 %v9535, %v9577
  %v9579 = vpop.f32.mrb[0].mxu0
  %v9580 = vadd.f32 %v9537, %v9579
  %9581 = vdwg.mxu0
  %9582 = vmatprep.subr.bf16.mxu0 %v6310
  %9583 = vmatpush1.bf16.msra.mxu0 %v6309
  %9584 = vmatprep.subr.bf16.mxu0 %v6314
  %9585 = vmatpush1.bf16.msra.mxu0 %v6313
  %9586 = vmatprep.subr.bf16.mxu0 %v6318
  %9587 = vmatpush1.bf16.msra.mxu0 %v6317
  %9588 = vmatprep.subr.bf16.mxu0 %v6322
  %9589 = vmatpush1.bf16.msra.mxu0 %v6321
  %9590 = vmatprep.subr.bf16.mxu0 %v6326
  %9591 = vmatpush1.bf16.msra.mxu0 %v6325
  %9592 = vmatprep.subr.bf16.mxu0 %v6330
  %9593 = vmatpush1.bf16.msra.mxu0 %v6329
  %9594 = vmatprep.subr.bf16.mxu0 %v6334
  %9595 = vmatpush1.bf16.msra.mxu0 %v6333
  %9596 = vmatprep.subr.bf16.mxu0 %v6338
  %9597 = vmatpush1.bf16.msra.mxu0 %v6337
  %9598 = vmatprep.subr.bf16.mxu0 %v6342
  %9599 = vmatpush1.bf16.msra.mxu0 %v6341
  %9600 = vmatprep.subr.bf16.mxu0 %v6346
  %9601 = vmatpush1.bf16.msra.mxu0 %v6345
  %9602 = vmatprep.subr.bf16.mxu0 %v6350
  %9603 = vmatpush1.bf16.msra.mxu0 %v6349
  %9604 = vmatprep.subr.bf16.mxu0 %v6354
  %9605 = vmatpush1.bf16.msra.mxu0 %v6353
  %9606 = vmatprep.subr.bf16.mxu0 %v6358
  %9607 = vmatpush1.bf16.msra.mxu0 %v6357
  %9608 = vmatprep.subr.bf16.mxu0 %v6362
  %9609 = vmatpush1.bf16.msra.mxu0 %v6361
  %9610 = vmatprep.subr.bf16.mxu0 %v6366
  %9611 = vmatpush1.bf16.msra.mxu0 %v6365
  %9612 = vmatprep.subr.bf16.mxu0 %v6370
  %9613 = vmatpush1.bf16.msra.mxu0 %v6369
  %9614 = vmatprep.mubr.bf16.mxu0 %v1546
  %9615 = vmatmul.mubr.bf16.gmra.mrb[0].mxu0 %v1545
  %v9616 = vpop.f32.mrb[0].mxu0
  %v9617 = vadd.f32 %v9574, %v9616
  %v9618 = vpop.f32.mrb[0].mxu0
  %v9619 = vadd.f32 %v9576, %v9618
  %v9620 = vpop.f32.mrb[0].mxu0
  %v9621 = vadd.f32 %v9578, %v9620
  %v9622 = vpop.f32.mrb[0].mxu0
  %v9623 = vadd.f32 %v9580, %v9622
  %9624 = vdwg.mxu0
  %9625 = vmatprep.subr.bf16.mxu0 %v6374
  %9626 = vmatpush1.bf16.msra.mxu0 %v6373
  %9627 = vmatprep.subr.bf16.mxu0 %v6378
  %9628 = vmatpush1.bf16.msra.mxu0 %v6377
  %9629 = vmatprep.subr.bf16.mxu0 %v6382
  %9630 = vmatpush1.bf16.msra.mxu0 %v6381
  %9631 = vmatprep.subr.bf16.mxu0 %v6386
  %9632 = vmatpush1.bf16.msra.mxu0 %v6385
  %9633 = vmatprep.subr.bf16.mxu0 %v6390
  %9634 = vmatpush1.bf16.msra.mxu0 %v6389
  %9635 = vmatprep.subr.bf16.mxu0 %v6394
  %9636 = vmatpush1.bf16.msra.mxu0 %v6393
  %9637 = vmatprep.subr.bf16.mxu0 %v6398
  %9638 = vmatpush1.bf16.msra.mxu0 %v6397
  %9639 = vmatprep.subr.bf16.mxu0 %v6402
  %9640 = vmatpush1.bf16.msra.mxu0 %v6401
  %9641 = vmatprep.subr.bf16.mxu0 %v6406
  %9642 = vmatpush1.bf16.msra.mxu0 %v6405
  %9643 = vmatprep.subr.bf16.mxu0 %v6410
  %9644 = vmatpush1.bf16.msra.mxu0 %v6409
  %9645 = vmatprep.subr.bf16.mxu0 %v6414
  %9646 = vmatpush1.bf16.msra.mxu0 %v6413
  %9647 = vmatprep.subr.bf16.mxu0 %v6418
  %9648 = vmatpush1.bf16.msra.mxu0 %v6417
  %9649 = vmatprep.subr.bf16.mxu0 %v6422
  %9650 = vmatpush1.bf16.msra.mxu0 %v6421
  %9651 = vmatprep.subr.bf16.mxu0 %v6426
  %9652 = vmatpush1.bf16.msra.mxu0 %v6425
  %9653 = vmatprep.subr.bf16.mxu0 %v6430
  %9654 = vmatpush1.bf16.msra.mxu0 %v6429
  %9655 = vmatprep.subr.bf16.mxu0 %v6434
  %9656 = vmatpush1.bf16.msra.mxu0 %v6433
  %9657 = vmatprep.mubr.bf16.mxu0 %v1548
  %9658 = vmatmul.mubr.bf16.gmra.mrb[0].mxu0 %v1547
  %v9659 = vpop.f32.mrb[0].mxu0
  %v9660 = vadd.f32 %v9617, %v9659
  %v9661 = vpop.f32.mrb[0].mxu0
  %v9662 = vadd.f32 %v9619, %v9661
  %v9663 = vpop.f32.mrb[0].mxu0
  %v9664 = vadd.f32 %v9621, %v9663
  %v9665 = vpop.f32.mrb[0].mxu0
  %v9666 = vadd.f32 %v9623, %v9665
  %9667 = vdwg.mxu0
  %9668 = vmatprep.subr.bf16.mxu0 %v6438
  %9669 = vmatpush1.bf16.msra.mxu0 %v6437
  %9670 = vmatprep.subr.bf16.mxu0 %v6442
  %9671 = vmatpush1.bf16.msra.mxu0 %v6441
  %9672 = vmatprep.subr.bf16.mxu0 %v6446
  %9673 = vmatpush1.bf16.msra.mxu0 %v6445
  %9674 = vmatprep.subr.bf16.mxu0 %v6450
  %9675 = vmatpush1.bf16.msra.mxu0 %v6449
  %9676 = vmatprep.subr.bf16.mxu0 %v6454
  %9677 = vmatpush1.bf16.msra.mxu0 %v6453
  %9678 = vmatprep.subr.bf16.mxu0 %v6458
  %9679 = vmatpush1.bf16.msra.mxu0 %v6457
  %9680 = vmatprep.subr.bf16.mxu0 %v6462
  %9681 = vmatpush1.bf16.msra.mxu0 %v6461
  %9682 = vmatprep.subr.bf16.mxu0 %v6466
  %9683 = vmatpush1.bf16.msra.mxu0 %v6465
  %9684 = vmatprep.subr.bf16.mxu0 %v6470
  %9685 = vmatpush1.bf16.msra.mxu0 %v6469
  %9686 = vmatprep.subr.bf16.mxu0 %v6474
  %9687 = vmatpush1.bf16.msra.mxu0 %v6473
  %9688 = vmatprep.subr.bf16.mxu0 %v6478
  %9689 = vmatpush1.bf16.msra.mxu0 %v6477
  %9690 = vmatprep.subr.bf16.mxu0 %v6482
  %9691 = vmatpush1.bf16.msra.mxu0 %v6481
  %9692 = vmatprep.subr.bf16.mxu0 %v6486
  %9693 = vmatpush1.bf16.msra.mxu0 %v6485
  %9694 = vmatprep.subr.bf16.mxu0 %v6490
  %9695 = vmatpush1.bf16.msra.mxu0 %v6489
  %9696 = vmatprep.subr.bf16.mxu0 %v6494
  %9697 = vmatpush1.bf16.msra.mxu0 %v6493
  %9698 = vmatprep.subr.bf16.mxu0 %v6498
  %9699 = vmatpush1.bf16.msra.mxu0 %v6497
  %9700 = vmatprep.mubr.bf16.mxu0 %v1550
  %9701 = vmatmul.mubr.bf16.gmra.mrb[0].mxu0 %v1549
  %v9702 = vpop.f32.mrb[0].mxu0
  %v9703 = vadd.f32 %v9660, %v9702
  %v9704 = vpop.f32.mrb[0].mxu0
  %v9705 = vadd.f32 %v9662, %v9704
  %v9706 = vpop.f32.mrb[0].mxu0
  %v9707 = vadd.f32 %v9664, %v9706
  %v9708 = vpop.f32.mrb[0].mxu0
  %v9709 = vadd.f32 %v9666, %v9708
  %9710 = vdwg.mxu0
  %9711 = vmatprep.subr.bf16.mxu0 %v6502
  %9712 = vmatpush1.bf16.msra.mxu0 %v6501
  %9713 = vmatprep.subr.bf16.mxu0 %v6506
  %9714 = vmatpush1.bf16.msra.mxu0 %v6505
  %9715 = vmatprep.subr.bf16.mxu0 %v6510
  %9716 = vmatpush1.bf16.msra.mxu0 %v6509
  %9717 = vmatprep.subr.bf16.mxu0 %v6514
  %9718 = vmatpush1.bf16.msra.mxu0 %v6513
  %9719 = vmatprep.subr.bf16.mxu0 %v6518
  %9720 = vmatpush1.bf16.msra.mxu0 %v6517
  %9721 = vmatprep.subr.bf16.mxu0 %v6522
  %9722 = vmatpush1.bf16.msra.mxu0 %v6521
  %9723 = vmatprep.subr.bf16.mxu0 %v6526
  %9724 = vmatpush1.bf16.msra.mxu0 %v6525
  %9725 = vmatprep.subr.bf16.mxu0 %v6530
  %9726 = vmatpush1.bf16.msra.mxu0 %v6529
  %9727 = vmatprep.subr.bf16.mxu0 %v6534
  %9728 = vmatpush1.bf16.msra.mxu0 %v6533
  %9729 = vmatprep.subr.bf16.mxu0 %v6538
  %9730 = vmatpush1.bf16.msra.mxu0 %v6537
  %9731 = vmatprep.subr.bf16.mxu0 %v6542
  %9732 = vmatpush1.bf16.msra.mxu0 %v6541
  %9733 = vmatprep.subr.bf16.mxu0 %v6546
  %9734 = vmatpush1.bf16.msra.mxu0 %v6545
  %9735 = vmatprep.subr.bf16.mxu0 %v6550
  %9736 = vmatpush1.bf16.msra.mxu0 %v6549
  %9737 = vmatprep.subr.bf16.mxu0 %v6554
  %9738 = vmatpush1.bf16.msra.mxu0 %v6553
  %9739 = vmatprep.subr.bf16.mxu0 %v6558
  %9740 = vmatpush1.bf16.msra.mxu0 %v6557
  %9741 = vmatprep.subr.bf16.mxu0 %v6562
  %9742 = vmatpush1.bf16.msra.mxu0 %v6561
  %9743 = vmatprep.mubr.bf16.mxu0 %v1552
  %9744 = vmatmul.mubr.bf16.gmra.mrb[0].mxu0 %v1551
  %v9745 = vpop.f32.mrb[0].mxu0
  %v9746 = vadd.f32 %v9703, %v9745
  %v9747 = vpop.f32.mrb[0].mxu0
  %v9748 = vadd.f32 %v9705, %v9747
  %v9749 = vpop.f32.mrb[0].mxu0
  %v9750 = vadd.f32 %v9707, %v9749
  %v9751 = vpop.f32.mrb[0].mxu0
  %v9752 = vadd.f32 %v9709, %v9751
  %9753 = vdwg.mxu0
  %9754 = vmatprep.subr.bf16.mxu0 %v6566
  %9755 = vmatpush1.bf16.msra.mxu0 %v6565
  %9756 = vmatprep.subr.bf16.mxu0 %v6570
  %9757 = vmatpush1.bf16.msra.mxu0 %v6569
  %9758 = vmatprep.subr.bf16.mxu0 %v6574
  %9759 = vmatpush1.bf16.msra.mxu0 %v6573
  %9760 = vmatprep.subr.bf16.mxu0 %v6578
  %9761 = vmatpush1.bf16.msra.mxu0 %v6577
  %9762 = vmatprep.subr.bf16.mxu0 %v6582
  %9763 = vmatpush1.bf16.msra.mxu0 %v6581
  %9764 = vmatprep.subr.bf16.mxu0 %v6586
  %9765 = vmatpush1.bf16.msra.mxu0 %v6585
  %9766 = vmatprep.subr.bf16.mxu0 %v6590
  %9767 = vmatpush1.bf16.msra.mxu0 %v6589
  %9768 = vmatprep.subr.bf16.mxu0 %v6594
  %9769 = vmatpush1.bf16.msra.mxu0 %v6593
  %9770 = vmatprep.subr.bf16.mxu0 %v6598
  %9771 = vmatpush1.bf16.msra.mxu0 %v6597
  %9772 = vmatprep.subr.bf16.mxu0 %v6602
  %9773 = vmatpush1.bf16.msra.mxu0 %v6601
  %9774 = vmatprep.subr.bf16.mxu0 %v6606
  %9775 = vmatpush1.bf16.msra.mxu0 %v6605
  %9776 = vmatprep.subr.bf16.mxu0 %v6610
  %9777 = vmatpush1.bf16.msra.mxu0 %v6609
  %9778 = vmatprep.subr.bf16.mxu0 %v6614
  %9779 = vmatpush1.bf16.msra.mxu0 %v6613
  %9780 = vmatprep.subr.bf16.mxu0 %v6618
  %9781 = vmatpush1.bf16.msra.mxu0 %v6617
  %9782 = vmatprep.subr.bf16.mxu0 %v6622
  %9783 = vmatpush1.bf16.msra.mxu0 %v6621
  %9784 = vmatprep.subr.bf16.mxu0 %v6626
  %9785 = vmatpush1.bf16.msra.mxu0 %v6625
  %9786 = vmatprep.mubr.bf16.mxu0 %v1554
  %9787 = vmatmul.mubr.bf16.gmra.mrb[0].mxu0 %v1553
  %v9788 = vpop.f32.mrb[0].mxu0
  %v9789 = vadd.f32 %v9746, %v9788
  %v9790 = vpop.f32.mrb[0].mxu0
  %v9791 = vadd.f32 %v9748, %v9790
  %v9792 = vpop.f32.mrb[0].mxu0
  %v9793 = vadd.f32 %v9750, %v9792
  %v9794 = vpop.f32.mrb[0].mxu0
  %v9795 = vadd.f32 %v9752, %v9794
  %9796 = vdwg.mxu0
  %9797 = vmatprep.subr.bf16.mxu0 %v6630
  %9798 = vmatpush1.bf16.msra.mxu0 %v6629
  %9799 = vmatprep.subr.bf16.mxu0 %v6634
  %9800 = vmatpush1.bf16.msra.mxu0 %v6633
  %9801 = vmatprep.subr.bf16.mxu0 %v6638
  %9802 = vmatpush1.bf16.msra.mxu0 %v6637
  %9803 = vmatprep.subr.bf16.mxu0 %v6642
  %9804 = vmatpush1.bf16.msra.mxu0 %v6641
  %9805 = vmatprep.subr.bf16.mxu0 %v6646
  %9806 = vmatpush1.bf16.msra.mxu0 %v6645
  %9807 = vmatprep.subr.bf16.mxu0 %v6650
  %9808 = vmatpush1.bf16.msra.mxu0 %v6649
  %9809 = vmatprep.subr.bf16.mxu0 %v6654
  %9810 = vmatpush1.bf16.msra.mxu0 %v6653
  %9811 = vmatprep.subr.bf16.mxu0 %v6658
  %9812 = vmatpush1.bf16.msra.mxu0 %v6657
  %9813 = vmatprep.subr.bf16.mxu0 %v6662
  %9814 = vmatpush1.bf16.msra.mxu0 %v6661
  %9815 = vmatprep.subr.bf16.mxu0 %v6666
  %9816 = vmatpush1.bf16.msra.mxu0 %v6665
  %9817 = vmatprep.subr.bf16.mxu0 %v6670
  %9818 = vmatpush1.bf16.msra.mxu0 %v6669
  %9819 = vmatprep.subr.bf16.mxu0 %v6674
  %9820 = vmatpush1.bf16.msra.mxu0 %v6673
  %9821 = vmatprep.subr.bf16.mxu0 %v6678
  %9822 = vmatpush1.bf16.msra.mxu0 %v6677
  %9823 = vmatprep.subr.bf16.mxu0 %v6682
  %9824 = vmatpush1.bf16.msra.mxu0 %v6681
  %9825 = vmatprep.subr.bf16.mxu0 %v6686
  %9826 = vmatpush1.bf16.msra.mxu0 %v6685
  %9827 = vmatprep.subr.bf16.mxu0 %v6690
  %9828 = vmatpush1.bf16.msra.mxu0 %v6689
  %9829 = vmatprep.mubr.bf16.mxu0 %v1556
  %9830 = vmatmul.mubr.bf16.gmra.mrb[0].mxu0 %v1555
  %v9831 = vpop.f32.mrb[0].mxu0
  %v9832 = vadd.f32 %v9789, %v9831
  %v9833 = vpop.f32.mrb[0].mxu0
  %v9834 = vadd.f32 %v9791, %v9833
  %v9835 = vpop.f32.mrb[0].mxu0
  %v9836 = vadd.f32 %v9793, %v9835
  %v9837 = vpop.f32.mrb[0].mxu0
  %v9838 = vadd.f32 %v9795, %v9837
  %9839 = vdwg.mxu0
  %9840 = vmatprep.subr.bf16.mxu0 %v6694
  %9841 = vmatpush1.bf16.msra.mxu0 %v6693
  %9842 = vmatprep.subr.bf16.mxu0 %v6698
  %9843 = vmatpush1.bf16.msra.mxu0 %v6697
  %9844 = vmatprep.subr.bf16.mxu0 %v6702
  %9845 = vmatpush1.bf16.msra.mxu0 %v6701
  %9846 = vmatprep.subr.bf16.mxu0 %v6706
  %9847 = vmatpush1.bf16.msra.mxu0 %v6705
  %9848 = vmatprep.subr.bf16.mxu0 %v6710
  %9849 = vmatpush1.bf16.msra.mxu0 %v6709
  %9850 = vmatprep.subr.bf16.mxu0 %v6714
  %9851 = vmatpush1.bf16.msra.mxu0 %v6713
  %9852 = vmatprep.subr.bf16.mxu0 %v6718
  %9853 = vmatpush1.bf16.msra.mxu0 %v6717
  %9854 = vmatprep.subr.bf16.mxu0 %v6722
  %9855 = vmatpush1.bf16.msra.mxu0 %v6721
  %9856 = vmatprep.subr.bf16.mxu0 %v6726
  %9857 = vmatpush1.bf16.msra.mxu0 %v6725
  %9858 = vmatprep.subr.bf16.mxu0 %v6730
  %9859 = vmatpush1.bf16.msra.mxu0 %v6729
  %9860 = vmatprep.subr.bf16.mxu0 %v6734
  %9861 = vmatpush1.bf16.msra.mxu0 %v6733
  %9862 = vmatprep.subr.bf16.mxu0 %v6738
  %9863 = vmatpush1.bf16.msra.mxu0 %v6737
  %9864 = vmatprep.subr.bf16.mxu0 %v6742
  %9865 = vmatpush1.bf16.msra.mxu0 %v6741
  %9866 = vmatprep.subr.bf16.mxu0 %v6746
  %9867 = vmatpush1.bf16.msra.mxu0 %v6745
  %9868 = vmatprep.subr.bf16.mxu0 %v6750
  %9869 = vmatpush1.bf16.msra.mxu0 %v6749
  %9870 = vmatprep.subr.bf16.mxu0 %v6754
  %9871 = vmatpush1.bf16.msra.mxu0 %v6753
  %9872 = vmatprep.mubr.bf16.mxu0 %v1558
  %9873 = vmatmul.mubr.bf16.gmra.mrb[0].mxu0 %v1557
  %v9874 = vpop.f32.mrb[0].mxu0
  %v9875 = vadd.f32 %v9832, %v9874
  %v9876 = vpop.f32.mrb[0].mxu0
  %v9877 = vadd.f32 %v9834, %v9876
  %v9878 = vpop.f32.mrb[0].mxu0
  %v9879 = vadd.f32 %v9836, %v9878
  %v9880 = vpop.f32.mrb[0].mxu0
  %v9881 = vadd.f32 %v9838, %v9880
  %9882 = vdwg.mxu0
  %9883 = vmatprep.subr.bf16.mxu0 %v6758
  %9884 = vmatpush1.bf16.msra.mxu0 %v6757
  %9885 = vmatprep.subr.bf16.mxu0 %v6762
  %9886 = vmatpush1.bf16.msra.mxu0 %v6761
  %9887 = vmatprep.subr.bf16.mxu0 %v6766
  %9888 = vmatpush1.bf16.msra.mxu0 %v6765
  %9889 = vmatprep.subr.bf16.mxu0 %v6770
  %9890 = vmatpush1.bf16.msra.mxu0 %v6769
  %9891 = vmatprep.subr.bf16.mxu0 %v6774
  %9892 = vmatpush1.bf16.msra.mxu0 %v6773
  %9893 = vmatprep.subr.bf16.mxu0 %v6778
  %9894 = vmatpush1.bf16.msra.mxu0 %v6777
  %9895 = vmatprep.subr.bf16.mxu0 %v6782
  %9896 = vmatpush1.bf16.msra.mxu0 %v6781
  %9897 = vmatprep.subr.bf16.mxu0 %v6786
  %9898 = vmatpush1.bf16.msra.mxu0 %v6785
  %9899 = vmatprep.subr.bf16.mxu0 %v6790
  %9900 = vmatpush1.bf16.msra.mxu0 %v6789
  %9901 = vmatprep.subr.bf16.mxu0 %v6794
  %9902 = vmatpush1.bf16.msra.mxu0 %v6793
  %9903 = vmatprep.subr.bf16.mxu0 %v6798
  %9904 = vmatpush1.bf16.msra.mxu0 %v6797
  %9905 = vmatprep.subr.bf16.mxu0 %v6802
  %9906 = vmatpush1.bf16.msra.mxu0 %v6801
  %9907 = vmatprep.subr.bf16.mxu0 %v6806
  %9908 = vmatpush1.bf16.msra.mxu0 %v6805
  %9909 = vmatprep.subr.bf16.mxu0 %v6810
  %9910 = vmatpush1.bf16.msra.mxu0 %v6809
  %9911 = vmatprep.subr.bf16.mxu0 %v6814
  %9912 = vmatpush1.bf16.msra.mxu0 %v6813
  %9913 = vmatprep.subr.bf16.mxu0 %v6818
  %9914 = vmatpush1.bf16.msra.mxu0 %v6817
  %9915 = vmatprep.mubr.bf16.mxu0 %v1560
  %9916 = vmatmul.mubr.bf16.gmra.mrb[0].mxu0 %v1559
  %v9917 = vpop.f32.mrb[0].mxu0
  %v9918 = vadd.f32 %v9875, %v9917
  %v9919 = vpop.f32.mrb[0].mxu0
  %v9920 = vadd.f32 %v9877, %v9919
  %v9921 = vpop.f32.mrb[0].mxu0
  %v9922 = vadd.f32 %v9879, %v9921
  %v9923 = vpop.f32.mrb[0].mxu0
  %v9924 = vadd.f32 %v9881, %v9923
  %9925 = vdwg.mxu0
  %9926 = vmatprep.subr.bf16.mxu0 %v6822
  %9927 = vmatpush1.bf16.msra.mxu0 %v6821
  %9928 = vmatprep.subr.bf16.mxu0 %v6826
  %9929 = vmatpush1.bf16.msra.mxu0 %v6825
  %9930 = vmatprep.subr.bf16.mxu0 %v6830
  %9931 = vmatpush1.bf16.msra.mxu0 %v6829
  %9932 = vmatprep.subr.bf16.mxu0 %v6834
  %9933 = vmatpush1.bf16.msra.mxu0 %v6833
  %9934 = vmatprep.subr.bf16.mxu0 %v6838
  %9935 = vmatpush1.bf16.msra.mxu0 %v6837
  %9936 = vmatprep.subr.bf16.mxu0 %v6842
  %9937 = vmatpush1.bf16.msra.mxu0 %v6841
  %9938 = vmatprep.subr.bf16.mxu0 %v6846
  %9939 = vmatpush1.bf16.msra.mxu0 %v6845
  %9940 = vmatprep.subr.bf16.mxu0 %v6850
  %9941 = vmatpush1.bf16.msra.mxu0 %v6849
  %9942 = vmatprep.subr.bf16.mxu0 0
  %9943 = vmatpush1.bf16.msra.mxu0 0
  %9944 = vmatprep.subr.bf16.mxu0 0
  %9945 = vmatpush1.bf16.msra.mxu0 0
  %9946 = vmatprep.subr.bf16.mxu0 0
  %9947 = vmatpush1.bf16.msra.mxu0 0
  %9948 = vmatprep.subr.bf16.mxu0 0
  %9949 = vmatpush1.bf16.msra.mxu0 0
  %9950 = vmatprep.subr.bf16.mxu0 0
  %9951 = vmatpush1.bf16.msra.mxu0 0
  %9952 = vmatprep.subr.bf16.mxu0 0
  %9953 = vmatpush1.bf16.msra.mxu0 0
  %9954 = vmatprep.subr.bf16.mxu0 0
  %9955 = vmatpush1.bf16.msra.mxu0 0
  %9956 = vmatprep.subr.bf16.mxu0 0
  %9957 = vmatpush1.bf16.msra.mxu0 0
  %9958 = vmatprep.mubr.bf16.mxu0 0
  %9959 = vmatmul.mubr.bf16.gmra.mrb[0].mxu0 %v1561
  %v9960 = vpop.f32.mrb[0].mxu0
  %v9961 = vadd.f32 %v9918, %v9960
  %v9962 = vpop.f32.mrb[0].mxu0
  %v9963 = vadd.f32 %v9920, %v9962
  %v9964 = vpop.f32.mrb[0].mxu0
  %v9965 = vadd.f32 %v9922, %v9964
  %v9966 = vpop.f32.mrb[0].mxu0
  %v9967 = vadd.f32 %v9924, %v9966
  %9968 = vdwg.mxu0
  %v9969 = vmax.f32 %v9058, 0.0
  %v9970 = vmax.f32 %v9060, 0.0
  %v9971 = vmax.f32 %v9961, 0.0
  %v9972 = vmax.f32 %v9963, 0.0
  %v9973 = vmax.f32 %v9062, 0.0
  %v9974 = vmax.f32 %v9064, 0.0
  %v9975 = vmax.f32 %v9965, 0.0
  %v9976 = vmax.f32 %v9967, 0.0
  %v9977 = vpack.c.bf16 %v9973, %v9969
  %v9978 = vpack.c.bf16 %v9974, %v9970
  %v9979 = vpack.c.bf16 %v9975, %v9971
  %v9980 = vpack.c.bf16 %v9976, %v9972
  %v9981 = vld [vmem:[%s3] sm:$0xf]
  %v9982 = vld [vmem:[%s3 + $0x4] sm:$0xf]
  %v9983 = vld [vmem:[%s3 + $0x8] sm:$0xf]
  %v9984 = vld [vmem:[%s3 + $0xc] sm:$0xf]
  %v9985 = vld [vmem:[%s3 + $0x10] sm:$0xf]
  %v9986 = vld [vmem:[%s3 + $0x14] sm:$0xf]
  %v9987 = vld [vmem:[%s3 + $0x18] sm:$0xf]
  %v9988 = vld [vmem:[%s3 + $0x1c] sm:$0xf]
  %v9989 = vld [vmem:[%s3 + $0x20] sm:$0xf]
  %v9990 = vld [vmem:[%s3 + $0x24] sm:$0xf]
  %v9991 = vld [vmem:[%s3 + $0x28] sm:$0xf]
  %v9992 = vld [vmem:[%s3 + $0x2c] sm:$0xf]
  %v9993 = vld [vmem:[%s3 + $0x30] sm:$0xf]
  %v9994 = vld [vmem:[%s3 + $0x34] sm:$0xf]
  %v9995 = vld [vmem:[%s3 + $0x38] sm:$0xf]
  %v9996 = vld [vmem:[%s3 + $0x3c] sm:$0xf]
  %v9997 = vld [vmem:[%s3 + $0x40] sm:$0xf]
  %v9998 = vld [vmem:[%s3 + $0x44] sm:$0xf]
  %v9999 = vld [vmem:[%s3 + $0x48] sm:$0xf]
  %v10000 = vld [vmem:[%s3 + $0x4c] sm:$0xf]
  %v10001 = vld [vmem:[%s3 + $0x50] sm:$0xf]
  %v10002 = vld [vmem:[%s3 + $0x54] sm:$0xf]
  %v10003 = vld [vmem:[%s3 + $0x58] sm:$0xf]
  %v10004 = vld [vmem:[%s3 + $0x5c] sm:$0xf]
  %v10005 = vld [vmem:[%s3 + $0x60] sm:$0xf]
  %v10006 = vld [vmem:[%s3 + $0x64] sm:$0xf]
  %v10007 = vld [vmem:[%s3 + $0x68] sm:$0xf]
  %v10008 = vld [vmem:[%s3 + $0x6c] sm:$0xf]
  %v10009 = vld [vmem:[%s3 + $0x70] sm:$0xf]
  %v10010 = vld [vmem:[%s3 + $0x74] sm:$0xf]
  %v10011 = vld [vmem:[%s3 + $0x78] sm:$0xf]
  %v10012 = vld [vmem:[%s3 + $0x7c] sm:$0xf]
  %v10013 = vld [vmem:[%s3 + $0x80] sm:$0xf]
  %v10014 = vld [vmem:[%s3 + $0x84] sm:$0xf]
  %v10015 = vld [vmem:[%s3 + $0x88] sm:$0xf]
  %v10016 = vld [vmem:[%s3 + $0x8c] sm:$0xf]
  %v10017 = vld [vmem:[%s3 + $0x90] sm:$0xf]
  %v10018 = vld [vmem:[%s3 + $0x94] sm:$0xf]
  %v10019 = vld [vmem:[%s3 + $0x98] sm:$0xf]
  %v10020 = vld [vmem:[%s3 + $0x9c] sm:$0xf]
  %v10021 = vld [vmem:[%s3 + $0xa0] sm:$0xf]
  %v10022 = vld [vmem:[%s3 + $0xa4] sm:$0xf]
  %v10023 = vld [vmem:[%s3 + $0xa8] sm:$0xf]
  %v10024 = vld [vmem:[%s3 + $0xac] sm:$0xf]
  %v10025 = vld [vmem:[%s3 + $0xb0] sm:$0xf]
  %v10026 = vld [vmem:[%s3 + $0xb4] sm:$0xf]
  %v10027 = vld [vmem:[%s3 + $0xb8] sm:$0xf]
  %v10028 = vld [vmem:[%s3 + $0xbc] sm:$0xf]
  %v10029 = vld [vmem:[%s3 + $0xc0] sm:$0xf]
  %v10030 = vld [vmem:[%s3 + $0xc4] sm:$0xf]
  %v10031 = vld [vmem:[%s3 + $0xc8] sm:$0xf]
  %v10032 = vld [vmem:[%s3 + $0xcc] sm:$0xf]
  %v10033 = vld [vmem:[%s3 + $0xd0] sm:$0xf]
  %v10034 = vld [vmem:[%s3 + $0xd4] sm:$0xf]
  %v10035 = vld [vmem:[%s3 + $0xd8] sm:$0xf]
  %v10036 = vld [vmem:[%s3 + $0xdc] sm:$0xf]
  %v10037 = vld [vmem:[%s3 + $0xe0] sm:$0xf]
  %v10038 = vld [vmem:[%s3 + $0xe4] sm:$0xf]
  %v10039 = vld [vmem:[%s3 + $0xe8] sm:$0xf]
  %v10040 = vld [vmem:[%s3 + $0xec] sm:$0xf]
  %v10041 = vld [vmem:[%s3 + $0xf0] sm:$0xf]
  %v10042 = vld [vmem:[%s3 + $0xf4] sm:$0xf]
  %v10043 = vld [vmem:[%s3 + $0xf8] sm:$0xf]
  %v10044 = vld [vmem:[%s3 + $0xfc] sm:$0xf]
  %v10045 = vld [vmem:[%s4] sm:$0x1]
  %v10047 = vlaneseq
  %v10048 = vshrl.u32 %v10047, 7
  %v10049 = vsub.s32 0, %v10048
  %v10050 = vrot.slane %v10045, %v10049
  %v10116 = vunpack.c.l.b16 %v9981
  %v10117 = vunpack.c.l.b16 %v9982
  %v10118 = vunpack.c.l.b16 %v9983
  %v10119 = vunpack.c.l.b16 %v9984
  %v10120 = vunpack.c.l.b16 %v9985
  %v10121 = vunpack.c.l.b16 %v9986
  %v10122 = vunpack.c.l.b16 %v9987
  %v10123 = vunpack.c.l.b16 %v9988
  %v10124 = vunpack.c.l.b16 %v9989
  %v10125 = vunpack.c.l.b16 %v9990
  %v10126 = vunpack.c.l.b16 %v9991
  %v10127 = vunpack.c.l.b16 %v9992
  %v10128 = vunpack.c.l.b16 %v9993
  %v10129 = vunpack.c.l.b16 %v9994
  %v10130 = vunpack.c.l.b16 %v9995
  %v10131 = vunpack.c.l.b16 %v9996
  %v10132 = vunpack.c.l.b16 %v9997
  %v10133 = vunpack.c.l.b16 %v9998
  %v10134 = vunpack.c.l.b16 %v9999
  %v10135 = vunpack.c.l.b16 %v10000
  %v10136 = vunpack.c.l.b16 %v10001
  %v10137 = vunpack.c.l.b16 %v10002
  %v10138 = vunpack.c.l.b16 %v10003
  %v10139 = vunpack.c.l.b16 %v10004
  %v10140 = vunpack.c.l.b16 %v10005
  %v10141 = vunpack.c.l.b16 %v10006
  %v10142 = vunpack.c.l.b16 %v10007
  %v10143 = vunpack.c.l.b16 %v10008
  %v10144 = vunpack.c.l.b16 %v10009
  %v10145 = vunpack.c.l.b16 %v10010
  %v10146 = vunpack.c.l.b16 %v10011
  %v10147 = vunpack.c.l.b16 %v10012
  %v10148 = vunpack.c.l.b16 %v10013
  %v10149 = vunpack.c.l.b16 %v10014
  %v10150 = vunpack.c.l.b16 %v10015
  %v10151 = vunpack.c.l.b16 %v10016
  %v10152 = vunpack.c.l.b16 %v10017
  %v10153 = vunpack.c.l.b16 %v10018
  %v10154 = vunpack.c.l.b16 %v10019
  %v10155 = vunpack.c.l.b16 %v10020
  %v10156 = vunpack.c.l.b16 %v10021
  %v10157 = vunpack.c.l.b16 %v10022
  %v10158 = vunpack.c.l.b16 %v10023
  %v10159 = vunpack.c.l.b16 %v10024
  %v10160 = vunpack.c.l.b16 %v10025
  %v10161 = vunpack.c.l.b16 %v10026
  %v10162 = vunpack.c.l.b16 %v10027
  %v10163 = vunpack.c.l.b16 %v10028
  %v10164 = vunpack.c.l.b16 %v10029
  %v10165 = vunpack.c.l.b16 %v10030
  %v10166 = vunpack.c.l.b16 %v10031
  %v10167 = vunpack.c.l.b16 %v10032
  %v10168 = vunpack.c.l.b16 %v10033
  %v10169 = vunpack.c.l.b16 %v10034
  %v10170 = vunpack.c.l.b16 %v10035
  %v10171 = vunpack.c.l.b16 %v10036
  %v10172 = vunpack.c.l.b16 %v10037
  %v10173 = vunpack.c.l.b16 %v10038
  %v10174 = vunpack.c.l.b16 %v10039
  %v10175 = vunpack.c.l.b16 %v10040
  %v10176 = vunpack.c.l.b16 %v10041
  %v10177 = vunpack.c.l.b16 %v10042
  %v10178 = vunpack.c.l.b16 %v10043
  %v10179 = vunpack.c.l.b16 %v10044
  %v10180 = vpack.c.b16 %v10117, %v10116
  %v10181 = vpack.c.b16 %v10119, %v10118
  %v10182 = vpack.c.b16 %v10121, %v10120
  %v10183 = vpack.c.b16 %v10123, %v10122
  %v10184 = vpack.c.b16 %v10125, %v10124
  %v10185 = vpack.c.b16 %v10127, %v10126
  %v10186 = vpack.c.b16 %v10129, %v10128
  %v10187 = vpack.c.b16 %v10131, %v10130
  %v10188 = vpack.c.b16 %v10133, %v10132
  %v10189 = vpack.c.b16 %v10135, %v10134
  %v10190 = vpack.c.b16 %v10137, %v10136
  %v10191 = vpack.c.b16 %v10139, %v10138
  %v10192 = vpack.c.b16 %v10141, %v10140
  %v10193 = vpack.c.b16 %v10143, %v10142
  %v10194 = vpack.c.b16 %v10145, %v10144
  %v10195 = vpack.c.b16 %v10147, %v10146
  %v10196 = vpack.c.b16 %v10149, %v10148
  %v10197 = vpack.c.b16 %v10151, %v10150
  %v10198 = vpack.c.b16 %v10153, %v10152
  %v10199 = vpack.c.b16 %v10155, %v10154
  %v10200 = vpack.c.b16 %v10157, %v10156
  %v10201 = vpack.c.b16 %v10159, %v10158
  %v10202 = vpack.c.b16 %v10161, %v10160
  %v10203 = vpack.c.b16 %v10163, %v10162
  %v10204 = vpack.c.b16 %v10165, %v10164
  %v10205 = vpack.c.b16 %v10167, %v10166
  %v10206 = vpack.c.b16 %v10169, %v10168
  %v10207 = vpack.c.b16 %v10171, %v10170
  %v10208 = vpack.c.b16 %v10173, %v10172
  %v10209 = vpack.c.b16 %v10175, %v10174
  %v10210 = vpack.c.b16 %v10177, %v10176
  %v10211 = vpack.c.b16 %v10179, %v10178
  %10244 = vmatprep.subr.bf16.mxu0 0
  %10245 = vmatpush1.bf16.msra.mxu0 %v10180
  %10246 = vmatprep.subr.bf16.mxu0 0
  %10247 = vmatpush1.bf16.msra.mxu0 %v10181
  %10248 = vmatprep.subr.bf16.mxu0 0
  %10249 = vmatpush1.bf16.msra.mxu0 %v10182
  %10250 = vmatprep.subr.bf16.mxu0 0
  %10251 = vmatpush1.bf16.msra.mxu0 %v10183
  %10252 = vmatprep.subr.bf16.mxu0 0
  %10253 = vmatpush1.bf16.msra.mxu0 %v10184
  %10254 = vmatprep.subr.bf16.mxu0 0
  %10255 = vmatpush1.bf16.msra.mxu0 %v10185
  %10256 = vmatprep.subr.bf16.mxu0 0
  %10257 = vmatpush1.bf16.msra.mxu0 %v10186
  %10258 = vmatprep.subr.bf16.mxu0 0
  %10259 = vmatpush1.bf16.msra.mxu0 %v10187
  %10260 = vmatprep.subr.bf16.mxu0 0
  %10261 = vmatpush1.bf16.msra.mxu0 %v10188
  %10262 = vmatprep.subr.bf16.mxu0 0
  %10263 = vmatpush1.bf16.msra.mxu0 %v10189
  %10264 = vmatprep.subr.bf16.mxu0 0
  %10265 = vmatpush1.bf16.msra.mxu0 %v10190
  %10266 = vmatprep.subr.bf16.mxu0 0
  %10267 = vmatpush1.bf16.msra.mxu0 %v10191
  %10268 = vmatprep.subr.bf16.mxu0 0
  %10269 = vmatpush1.bf16.msra.mxu0 %v10192
  %10270 = vmatprep.subr.bf16.mxu0 0
  %10271 = vmatpush1.bf16.msra.mxu0 %v10193
  %10272 = vmatprep.subr.bf16.mxu0 0
  %10273 = vmatpush1.bf16.msra.mxu0 %v10194
  %10274 = vmatprep.subr.bf16.mxu0 0
  %10275 = vmatpush1.bf16.msra.mxu0 %v10195
  %10276 = vmatprep.mubr.bf16.mxu0 %v9978
  %10277 = vmatmul.mubr.bf16.gmra.mrb[0].mxu0 %v9977
  %v10278 = vpop.f32.mrb[0].mxu0
  %v10279 = vadd.f32 %v10050, %v10278
  %v10280 = vpop.f32.mrb[0].mxu0
  %v10281 = vpop.f32.mrb[0].mxu0
  %v10282 = vadd.f32 %v10050, %v10281
  %v10283 = vpop.f32.mrb[0].mxu0
  %10284 = vdwg.mxu0
  %10285 = vmatprep.subr.bf16.mxu0 0
  %10286 = vmatpush1.bf16.msra.mxu0 %v10196
  %10287 = vmatprep.subr.bf16.mxu0 0
  %10288 = vmatpush1.bf16.msra.mxu0 %v10197
  %10289 = vmatprep.subr.bf16.mxu0 0
  %10290 = vmatpush1.bf16.msra.mxu0 %v10198
  %10291 = vmatprep.subr.bf16.mxu0 0
  %10292 = vmatpush1.bf16.msra.mxu0 %v10199
  %10293 = vmatprep.subr.bf16.mxu0 0
  %10294 = vmatpush1.bf16.msra.mxu0 %v10200
  %10295 = vmatprep.subr.bf16.mxu0 0
  %10296 = vmatpush1.bf16.msra.mxu0 %v10201
  %10297 = vmatprep.subr.bf16.mxu0 0
  %10298 = vmatpush1.bf16.msra.mxu0 %v10202
  %10299 = vmatprep.subr.bf16.mxu0 0
  %10300 = vmatpush1.bf16.msra.mxu0 %v10203
  %10301 = vmatprep.subr.bf16.mxu0 0
  %10302 = vmatpush1.bf16.msra.mxu0 %v10204
  %10303 = vmatprep.subr.bf16.mxu0 0
  %10304 = vmatpush1.bf16.msra.mxu0 %v10205
  %10305 = vmatprep.subr.bf16.mxu0 0
  %10306 = vmatpush1.bf16.msra.mxu0 %v10206
  %10307 = vmatprep.subr.bf16.mxu0 0
  %10308 = vmatpush1.bf16.msra.mxu0 %v10207
  %10309 = vmatprep.subr.bf16.mxu0 0
  %10310 = vmatpush1.bf16.msra.mxu0 %v10208
  %10311 = vmatprep.subr.bf16.mxu0 0
  %10312 = vmatpush1.bf16.msra.mxu0 %v10209
  %10313 = vmatprep.subr.bf16.mxu0 0
  %10314 = vmatpush1.bf16.msra.mxu0 %v10210
  %10315 = vmatprep.subr.bf16.mxu0 0
  %10316 = vmatpush1.bf16.msra.mxu0 %v10211
  %10317 = vmatprep.mubr.bf16.mxu0 %v9980
  %10318 = vmatmul.mubr.bf16.gmra.mrb[0].mxu0 %v9979
  %v10319 = vpop.f32.mrb[0].mxu0
  %v10320 = vadd.f32 %v10279, %v10319
  %v10321 = vpop.f32.mrb[0].mxu0
  %v10322 = vpop.f32.mrb[0].mxu0
  %v10323 = vadd.f32 %v10282, %v10322
  %v10324 = vpop.f32.mrb[0].mxu0
  %10325 = vdwg.mxu0
  %v10326 = vlaneseq
  %v10327 = vand.u32 %v10326, 127
  %vm10328 = vcmp.gt.f32.partialorder %v10320, 20.0
  %vm10329 = vcmp.gt.f32.partialorder %v10323, 20.0
  %v10330 = vmin.f32 %v10320, 20.0
  %v10331 = vmin.f32 %v10323, 20.0
  %v10332 = vmul.f32 %v10330, 1.442695
  %v10333 = vpow.pop %v10332
  %v10334 = vmul.f32 %v10331, 1.442695
  %v10335 = vpow.pop %v10334
  %v10336 = vadd.f32 %v10333, 1.0
  %v10337 = vlog2.pop %v10336
  %v10338 = vmul.f32 %v10337, 0.6931472
  %v10339 = vmul.f32 -0.5, %v10333
  %v10340 = vadd.f32 %v10339, 1.0
  %v10341 = vmul.f32 %v10340, %v10333
  %v10342 = vand.u32 2147483647, %v10333
  %vm10343 = vcmp.lt.f32.partialorder %v10342, 0.0004427343
  %v10344 = vsel %vm10343, %v10341, %v10338
  %v10345 = vadd.f32 %v10335, 1.0
  %v10346 = vlog2.pop %v10345
  %v10347 = vmul.f32 %v10346, 0.6931472
  %v10348 = vmul.f32 -0.5, %v10335
  %v10349 = vadd.f32 %v10348, 1.0
  %v10350 = vmul.f32 %v10349, %v10335
  %v10351 = vand.u32 2147483647, %v10335
  %vm10352 = vcmp.lt.f32.partialorder %v10351, 0.0004427343
  %v10353 = vsel %vm10352, %v10350, %v10347
  %v10354 = vsel %vm10328, %v10320, %v10344
  %v10355 = vsel %vm10329, %v10323, %v10353
  %vm10356 = vcmp.lt.s32.totalorder %v10327, 3
  %v10357 = vsel %vm10356, %v10354, %v10320
  %v10358 = vsel %vm10356, %v10355, %v10323
  %10359 = vst [vmem:[%s5] sm:$0xff] %v10357
  %10360 = vst [vmem:[%s5 + $0x8] sm:$0xff] %v10358
  // Predicated region
  $region22: #{actor_critic_forward.7} parent=0 // pred_check
    _
  $region23: #{actor_critic_forward.7} parent=0 // pred_check_branch
    %10362 = sbr.rel (0) target = $region25
  $region24: #{actor_critic_forward.7} parent=0 // pred_region
    _
  $region25: #{actor_critic_forward.7} parent=0 // pred_fallthru
    _
  // Predicated region
  $region26: #{actor_critic_forward.7} parent=0 // pred_check
    _
  $region27: #{actor_critic_forward.7} parent=0 // pred_check_branch
    %10364 = sbr.rel (0) target = $region29
  $region28: #{actor_critic_forward.7} parent=0 // pred_region
    _
  $region29: #{actor_critic_forward.7} parent=0 // pred_fallthru
    _

</llo_original>
